<compile_context>
chip_gen: v5e
topology: v5e:2x2
jax: 0.10.0
libtpu: 0.0.40
codegen_flags: <defaults>
</compile_context>

<pallas_src>
import jax
import jax.numpy as jnp
from jax.experimental import pallas as pl
from jax.experimental.pallas import tpu as pltpu

INPUT_SIZE = 351
OUTPUT_SIZE = 20
HIDDEN = (1024, 512, 128, 32)
BN_EPS = 1e-5

PAD_IN = 384    # 351 -> 3*128: clean (8,128) layout for the first GEMM
PAD_MID = 128   # 32  -> 128:  lane-dense fc4 output / fc5 input
PAD_OUT = 128   # 20  -> 128:  unmasked lane-dense output stores


# ---------------------------------------------------------------------------
# Kernel: five GEMMs, each followed only by bias + relu (BN already folded).
# ---------------------------------------------------------------------------
def _net_kernel(x_ref,
                w1_ref, b1_ref,
                w2_ref, b2_ref,
                w3_ref, b3_ref,
                w4_ref, b4_ref,
                w5_ref, b5_ref,
                o_ref):
    # layer 1: relu(bn1(fc1(x)))            (bn1 folded into w1/b1)
    h = jnp.dot(x_ref[...], w1_ref[...], preferred_element_type=jnp.float32)
    h = jnp.maximum(h + b1_ref[...], 0.0).astype(jnp.bfloat16)

    # layer 2: relu(fc2(h))                 (bn2 + dropout folded into w3/b3)
    h = jnp.dot(h, w2_ref[...], preferred_element_type=jnp.float32)
    h = jnp.maximum(h + b2_ref[...], 0.0).astype(jnp.bfloat16)

    # layer 3: relu(bn3(fc3(bn2(h))))       (bn2 rows-fold + bn3 cols-fold)
    h = jnp.dot(h, w3_ref[...], preferred_element_type=jnp.float32)
    h = jnp.maximum(h + b3_ref[...], 0.0).astype(jnp.bfloat16)

    # layer 4: relu(bn4(fc4(h)))            (bn4 folded; cols zero-padded to 128)
    h = jnp.dot(h, w4_ref[...], preferred_element_type=jnp.float32)
    h = jnp.maximum(h + b4_ref[...], 0.0).astype(jnp.bfloat16)

    # layer 5: sigmoid(fc5(h))              (rows/cols zero-padded)
    logits = jnp.dot(h, w5_ref[...], preferred_element_type=jnp.float32)
    o_ref[...] = jax.nn.sigmoid(logits + b5_ref[...]).astype(o_ref.dtype)


# ---------------------------------------------------------------------------
# Parameters: raw (PyTorch-equivalent, f32) and kernel-ready (folded, padded,
# bf16 weights).
# ---------------------------------------------------------------------------
def init_raw_params(key, input_size=INPUT_SIZE, output_size=OUTPUT_SIZE):
    """kaiming_uniform_(relu) weights, zero biases, fresh BN running stats."""
    dims = [input_size, *HIDDEN, output_size]
    keys = jax.random.split(key, 5)
    raw = {}
    for i in range(5):
        fan_in, fan_out = dims[i], dims[i + 1]
        # kaiming_uniform_(nonlinearity='relu'): bound = sqrt(2) * sqrt(3 / fan_in)
        bound = float(jnp.sqrt(2.0) * jnp.sqrt(3.0 / fan_in))
        raw[f"w{i + 1}"] = jax.random.uniform(
            keys[i], (fan_in, fan_out), jnp.float32, -bound, bound)
        raw[f"b{i + 1}"] = jnp.zeros((fan_out,), jnp.float32)
    for i, n in enumerate(HIDDEN, start=1):
        raw[f"gamma{i}"] = jnp.ones((n,), jnp.float32)
        raw[f"beta{i}"] = jnp.zeros((n,), jnp.float32)
        raw[f"mean{i}"] = jnp.zeros((n,), jnp.float32)
        raw[f"var{i}"] = jnp.ones((n,), jnp.float32)
    return raw


def fold_params(raw):
    """Fold eval-mode BatchNorm into weights/biases, pad, cast weights to bf16."""
    def inv_shift(i):
        inv = raw[f"gamma{i}"] / jnp.sqrt(raw[f"var{i}"] + BN_EPS)
        return inv, raw[f"beta{i}"] - raw[f"mean{i}"] * inv

    inv1, sh1 = inv_shift(1)
    inv2, sh2 = inv_shift(2)
    inv3, sh3 = inv_shift(3)
    inv4, sh4 = inv_shift(4)

    # layer 1: bn1(fc1(x)) = x @ (W1*inv1) + (b1*inv1 + sh1)
    w1 = raw["w1"] * inv1[None, :]
    b1 = raw["b1"] * inv1 + sh1

    # layer 2 stays relu(fc2(.) + b2); bn2 (then dropout=id) folds forward:
    #   bn2(z) @ W3 + b3 = z @ (inv2[:,None]*W3) + (sh2 @ W3 + b3)
    w2 = raw["w2"]
    b2 = raw["b2"]
    w3 = raw["w3"] * inv2[:, None]
    b3 = sh2 @ raw["w3"] + raw["b3"]
    # ... then bn3 on the fc3 output:
    w3 = w3 * inv3[None, :]
    b3 = b3 * inv3 + sh3

    # layer 4: bn4 fold
    w4 = raw["w4"] * inv4[None, :]
    b4 = raw["b4"] * inv4 + sh4

    w5 = raw["w5"]
    b5 = raw["b5"]

    # host-side zero padding (one-time cost)
    w1 = jnp.pad(w1, ((0, PAD_IN - w1.shape[0]), (0, 0)))
    w4 = jnp.pad(w4, ((0, 0), (0, PAD_MID - w4.shape[1])))
    b4 = jnp.pad(b4, (0, PAD_MID - b4.shape[0]))
    w5 = jnp.pad(w5, ((0, PAD_MID - w5.shape[0]), (0, PAD_OUT - w5.shape[1])))
    b5 = jnp.pad(b5, (0, PAD_OUT - b5.shape[0]))

    bf16 = jnp.bfloat16
    return {
        "w1": w1.astype(bf16), "b1": b1.reshape(1, -1),
        "w2": w2.astype(bf16), "b2": b2.reshape(1, -1),
        "w3": w3.astype(bf16), "b3": b3.reshape(1, -1),
        "w4": w4.astype(bf16), "b4": b4.reshape(1, -1),
        "w5": w5.astype(bf16), "b5": b5.reshape(1, -1),
    }


# ---------------------------------------------------------------------------
# Wrapper
# ---------------------------------------------------------------------------
def net_forward(x, params, *, block_b=512):
    B, F = x.shape

    # batch tile: sublane-aligned; keep >=2 grid steps when the batch allows
    # (so the second TensorCore on v7x gets work); cap at block_b (<=512 keeps
    # scoped VMEM comfortably under v7x's 64 MiB).
    half = max(8, ((-(-B // 2)) + 7) // 8 * 8)
    tb = min(block_b, half)
    bp = (-(-B // tb)) * tb

    # fused pad (features 351->384, batch -> multiple of tb) + bf16 cast:
    # halves the per-tile input DMA and removes the in-kernel cast.
    xp = jnp.pad(x, ((0, bp - B), (0, PAD_IN - F))).astype(jnp.bfloat16)

    inputs = (
        xp,
        params["w1"], params["b1"],
        params["w2"], params["b2"],
        params["w3"], params["b3"],
        params["w4"], params["b4"],
        params["w5"], params["b5"],
    )
    grid = (bp // tb,)

    weight_bytes = sum(int(a.size) * a.dtype.itemsize for a in inputs[1:])
    cost = pl.CostEstimate(
        flops=2 * bp * (PAD_IN * 1024 + 1024 * 512 + 512 * 128
                        + 128 * PAD_MID + PAD_MID * PAD_OUT),
        transcendentals=bp * PAD_OUT,
        bytes_accessed=weight_bytes
        + int(xp.size) * xp.dtype.itemsize
        + bp * PAD_OUT * 2,
    )

    def const_spec(a, single_buffer):
        nd = a.ndim
        idx = lambda i, _n=nd: (0,) * _n
        if single_buffer:
            # block index never changes -> no need to double-buffer the weights
            return pl.BlockSpec(a.shape, idx, pipeline_mode=pl.Buffered(1))
        return pl.BlockSpec(a.shape, idx)

    def build(single_buffer):
        in_specs = [pl.BlockSpec((tb, PAD_IN), lambda i: (i, 0))]
        in_specs += [const_spec(a, single_buffer) for a in inputs[1:]]
        out_spec = pl.BlockSpec((tb, PAD_OUT), lambda i: (i, 0))
        return pl.pallas_call(
            _net_kernel,
            out_shape=jax.ShapeDtypeStruct((bp, PAD_OUT), jnp.bfloat16),
            grid_spec=pltpu.PrefetchScalarGridSpec(
                num_scalar_prefetch=0,
                grid=grid,
                in_specs=in_specs,
                out_specs=out_spec,
            ),
            compiler_params=pltpu.CompilerParams(
                dimension_semantics=("parallel",),
                vmem_limit_bytes=32 << 20,  # safe on v7x (64 MiB), ample on v5e/v6e
            ),
            cost_estimate=cost,
        )

    try:
        out = build(True)(*inputs)
    except Exception:
        # fallback if single-buffered pipeline_mode is unsupported on this jax
        out = build(False)(*inputs)

    return out[:B, :OUTPUT_SIZE].astype(jnp.float32)


def net_forward_ref(x, raw):
    """Pure-JAX f32 eval-mode reference following the PyTorch forward exactly."""
    def bn(y, i):
        inv = raw[f"gamma{i}"] / jnp.sqrt(raw[f"var{i}"] + BN_EPS)
        return (y - raw[f"mean{i}"]) * inv + raw[f"beta{i}"]

    h = jnp.maximum(bn(x @ raw["w1"] + raw["b1"], 1), 0.0)
    h = bn(jnp.maximum(h @ raw["w2"] + raw["b2"], 0.0), 2)   # dropout = id (eval)
    h = jnp.maximum(bn(h @ raw["w3"] + raw["b3"], 3), 0.0)
    h = jnp.maximum(bn(h @ raw["w4"] + raw["b4"], 4), 0.0)
    return jax.nn.sigmoid(h @ raw["w5"] + raw["b5"])


if __name__ == "__main__":
    key = jax.random.PRNGKey(0)
    k_param, k_x = jax.random.split(key)

    batch = 8
    x = jax.random.normal(k_x, (batch, INPUT_SIZE), dtype=jnp.float32)

    raw = init_raw_params(k_param)
    params = fold_params(raw)

    out = jax.block_until_ready(net_forward(x, params))

    assert out.shape == (batch, OUTPUT_SIZE)
    assert bool(jnp.all(jnp.isfinite(out)))
    assert bool(jnp.all((out >= 0.0) & (out <= 1.0)))  # sigmoid output range

    ref = net_forward_ref(x, raw)
    assert bool(jnp.allclose(out, ref, atol=3e-2, rtol=3e-2))
    print("KERNEL_OK")
</pallas_src>

<mosaic_0001>
module attributes {stable_mosaic.version = 11 : i64} {
  func.func @_net_kernel(%arg0: i32, %arg1: memref<8x384xbf16, #tpu.memory_space<vmem>>, %arg2: memref<384x1024xbf16, #tpu.memory_space<vmem>>, %arg3: memref<1x1024xf32, #tpu.memory_space<vmem>>, %arg4: memref<1024x512xbf16, #tpu.memory_space<vmem>>, %arg5: memref<1x512xf32, #tpu.memory_space<vmem>>, %arg6: memref<512x128xbf16, #tpu.memory_space<vmem>>, %arg7: memref<1x128xf32, #tpu.memory_space<vmem>>, %arg8: memref<128x128xbf16, #tpu.memory_space<vmem>>, %arg9: memref<1x128xf32, #tpu.memory_space<vmem>>, %arg10: memref<128x128xbf16, #tpu.memory_space<vmem>>, %arg11: memref<1x128xf32, #tpu.memory_space<vmem>>, %arg12: memref<8x128xbf16, #tpu.memory_space<vmem>>) attributes {dimension_semantics = [#tpu.dimension_semantics<parallel>], iteration_bounds = array<i64: 1>, scalar_prefetch = 0 : i64, scratch_operands = 0 : i64, tpu.core_type = #tpu.core_type<tc>, window_params = [{transform_indices = @transform_0, window_bounds = array<i64: 8, 384>}, {pipeline_mode = #tpu.pipeline_mode<synchronous>, transform_indices = @transform_1, window_bounds = array<i64: 384, 1024>}, {pipeline_mode = #tpu.pipeline_mode<synchronous>, transform_indices = @transform_2, window_bounds = array<i64: 1, 1024>}, {pipeline_mode = #tpu.pipeline_mode<synchronous>, transform_indices = @transform_3, window_bounds = array<i64: 1024, 512>}, {pipeline_mode = #tpu.pipeline_mode<synchronous>, transform_indices = @transform_4, window_bounds = array<i64: 1, 512>}, {pipeline_mode = #tpu.pipeline_mode<synchronous>, transform_indices = @transform_5, window_bounds = array<i64: 512, 128>}, {pipeline_mode = #tpu.pipeline_mode<synchronous>, transform_indices = @transform_6, window_bounds = array<i64: 1, 128>}, {pipeline_mode = #tpu.pipeline_mode<synchronous>, transform_indices = @transform_7, window_bounds = array<i64: 128, 128>}, {pipeline_mode = #tpu.pipeline_mode<synchronous>, transform_indices = @transform_8, window_bounds = array<i64: 1, 128>}, {pipeline_mode = #tpu.pipeline_mode<synchronous>, transform_indices = @transform_9, window_bounds = array<i64: 128, 128>}, {pipeline_mode = #tpu.pipeline_mode<synchronous>, transform_indices = @transform_10, window_bounds = array<i64: 1, 128>}, {transform_indices = @transform_11, window_bounds = array<i64: 8, 128>}]} {
    %c0 = arith.constant 0 : index
    %c0_0 = arith.constant 0 : index
    %0 = vector.load %arg1[%c0, %c0_0] : memref<8x384xbf16, #tpu.memory_space<vmem>>, vector<8x384xbf16>
    %c0_1 = arith.constant 0 : index
    %c0_2 = arith.constant 0 : index
    %1 = vector.load %arg2[%c0_1, %c0_2] : memref<384x1024xbf16, #tpu.memory_space<vmem>>, vector<384x1024xbf16>
    %cst = arith.constant dense<0.000000e+00> : vector<8x1024xf32>
    %2 = tpu.matmul %0, %1, %cst {dimension_numbers = #tpu.dot_dimension_numbers<[1], [0], [0], [1], [0, 0, 1, 1], [], []>} : vector<8x384xbf16>, vector<384x1024xbf16>, vector<8x1024xf32> -> vector<8x1024xf32>
    %c0_3 = arith.constant 0 : index
    %c0_4 = arith.constant 0 : index
    %3 = vector.load %arg3[%c0_3, %c0_4] : memref<1x1024xf32, #tpu.memory_space<vmem>>, vector<1x1024xf32>
    %4 = vector.broadcast %3 : vector<1x1024xf32> to vector<8x1024xf32>
    %5 = arith.addf %2, %4 : vector<8x1024xf32>
    %cst_5 = arith.constant 0.000000e+00 : f32
    %6 = vector.broadcast %cst_5 : f32 to vector<8x1024xf32>
    %7 = arith.maximumf %5, %6 : vector<8x1024xf32>
    %8 = arith.truncf %7 : vector<8x1024xf32> to vector<8x1024xbf16>
    %c0_6 = arith.constant 0 : index
    %c0_7 = arith.constant 0 : index
    %9 = vector.load %arg4[%c0_6, %c0_7] : memref<1024x512xbf16, #tpu.memory_space<vmem>>, vector<1024x512xbf16>
    %cst_8 = arith.constant dense<0.000000e+00> : vector<8x512xf32>
    %10 = tpu.matmul %8, %9, %cst_8 {dimension_numbers = #tpu.dot_dimension_numbers<[1], [0], [0], [1], [0, 0, 1, 1], [], []>} : vector<8x1024xbf16>, vector<1024x512xbf16>, vector<8x512xf32> -> vector<8x512xf32>
    %c0_9 = arith.constant 0 : index
    %c0_10 = arith.constant 0 : index
    %11 = vector.load %arg5[%c0_9, %c0_10] : memref<1x512xf32, #tpu.memory_space<vmem>>, vector<1x512xf32>
    %12 = vector.broadcast %11 : vector<1x512xf32> to vector<8x512xf32>
    %13 = arith.addf %10, %12 : vector<8x512xf32>
    %cst_11 = arith.constant 0.000000e+00 : f32
    %14 = vector.broadcast %cst_11 : f32 to vector<8x512xf32>
    %15 = arith.maximumf %13, %14 : vector<8x512xf32>
    %16 = arith.truncf %15 : vector<8x512xf32> to vector<8x512xbf16>
    %c0_12 = arith.constant 0 : index
    %c0_13 = arith.constant 0 : index
    %17 = vector.load %arg6[%c0_12, %c0_13] : memref<512x128xbf16, #tpu.memory_space<vmem>>, vector<512x128xbf16>
    %cst_14 = arith.constant dense<0.000000e+00> : vector<8x128xf32>
    %18 = tpu.matmul %16, %17, %cst_14 {dimension_numbers = #tpu.dot_dimension_numbers<[1], [0], [0], [1], [0, 0, 1, 1], [], []>} : vector<8x512xbf16>, vector<512x128xbf16>, vector<8x128xf32> -> vector<8x128xf32>
    %c0_15 = arith.constant 0 : index
    %c0_16 = arith.constant 0 : index
    %19 = vector.load %arg7[%c0_15, %c0_16] : memref<1x128xf32, #tpu.memory_space<vmem>>, vector<1x128xf32>
    %20 = vector.broadcast %19 : vector<1x128xf32> to vector<8x128xf32>
    %21 = arith.addf %18, %20 : vector<8x128xf32>
    %cst_17 = arith.constant 0.000000e+00 : f32
    %22 = vector.broadcast %cst_17 : f32 to vector<8x128xf32>
    %23 = arith.maximumf %21, %22 : vector<8x128xf32>
    %24 = arith.truncf %23 : vector<8x128xf32> to vector<8x128xbf16>
    %c0_18 = arith.constant 0 : index
    %c0_19 = arith.constant 0 : index
    %25 = vector.load %arg8[%c0_18, %c0_19] : memref<128x128xbf16, #tpu.memory_space<vmem>>, vector<128x128xbf16>
    %cst_20 = arith.constant dense<0.000000e+00> : vector<8x128xf32>
    %26 = tpu.matmul %24, %25, %cst_20 {dimension_numbers = #tpu.dot_dimension_numbers<[1], [0], [0], [1], [0, 0, 1, 1], [], []>} : vector<8x128xbf16>, vector<128x128xbf16>, vector<8x128xf32> -> vector<8x128xf32>
    %c0_21 = arith.constant 0 : index
    %c0_22 = arith.constant 0 : index
    %27 = vector.load %arg9[%c0_21, %c0_22] : memref<1x128xf32, #tpu.memory_space<vmem>>, vector<1x128xf32>
    %28 = vector.broadcast %27 : vector<1x128xf32> to vector<8x128xf32>
    %29 = arith.addf %26, %28 : vector<8x128xf32>
    %cst_23 = arith.constant 0.000000e+00 : f32
    %30 = vector.broadcast %cst_23 : f32 to vector<8x128xf32>
    %31 = arith.maximumf %29, %30 : vector<8x128xf32>
    %32 = arith.truncf %31 : vector<8x128xf32> to vector<8x128xbf16>
    %c0_24 = arith.constant 0 : index
    %c0_25 = arith.constant 0 : index
    %33 = vector.load %arg10[%c0_24, %c0_25] : memref<128x128xbf16, #tpu.memory_space<vmem>>, vector<128x128xbf16>
    %cst_26 = arith.constant dense<0.000000e+00> : vector<8x128xf32>
    %34 = tpu.matmul %32, %33, %cst_26 {dimension_numbers = #tpu.dot_dimension_numbers<[1], [0], [0], [1], [0, 0, 1, 1], [], []>} : vector<8x128xbf16>, vector<128x128xbf16>, vector<8x128xf32> -> vector<8x128xf32>
    %c0_27 = arith.constant 0 : index
    %c0_28 = arith.constant 0 : index
    %35 = vector.load %arg11[%c0_27, %c0_28] : memref<1x128xf32, #tpu.memory_space<vmem>>, vector<1x128xf32>
    %36 = vector.broadcast %35 : vector<1x128xf32> to vector<8x128xf32>
    %37 = arith.addf %34, %36 : vector<8x128xf32>
    %38 = arith.negf %37 : vector<8x128xf32>
    %39 = math.exp %38 : vector<8x128xf32>
    %cst_29 = arith.constant 1.000000e+00 : f32
    %40 = vector.broadcast %cst_29 : f32 to vector<8x128xf32>
    %41 = arith.addf %40, %39 : vector<8x128xf32>
    %42 = arith.divf %40, %41 : vector<8x128xf32>
    %43 = arith.truncf %42 : vector<8x128xf32> to vector<8x128xbf16>
    %c0_30 = arith.constant 0 : index
    %c0_31 = arith.constant 0 : index
    %44 = vector.load %arg12[%c0_30, %c0_31] : memref<8x128xbf16, #tpu.memory_space<vmem>>, vector<8x128xbf16>
    tpu.vector_store %arg12[%c0_30, %c0_31], %43 {strides = array<i32>} : memref<8x128xbf16, #tpu.memory_space<vmem>>, vector<8x128xbf16>,
    return
  }
  func.func @transform_0(%arg0: i32) -> (i32, i32) {
    %c0_i32 = arith.constant 0 : i32
    %c0_i32_0 = arith.constant 0 : i32
    return %arg0, %c0_i32 : i32, i32
  }
  func.func @transform_1(%arg0: i32) -> (i32, i32) {
    %c0_i32 = arith.constant 0 : i32
    %c0_i32_0 = arith.constant 0 : i32
    %c0_i32_1 = arith.constant 0 : i32
    return %c0_i32, %c0_i32_0 : i32, i32
  }
  func.func @transform_2(%arg0: i32) -> (i32, i32) {
    %c0_i32 = arith.constant 0 : i32
    %c0_i32_0 = arith.constant 0 : i32
    %c0_i32_1 = arith.constant 0 : i32
    return %c0_i32, %c0_i32_0 : i32, i32
  }
  func.func @transform_3(%arg0: i32) -> (i32, i32) {
    %c0_i32 = arith.constant 0 : i32
    %c0_i32_0 = arith.constant 0 : i32
    %c0_i32_1 = arith.constant 0 : i32
    return %c0_i32, %c0_i32_0 : i32, i32
  }
  func.func @transform_4(%arg0: i32) -> (i32, i32) {
    %c0_i32 = arith.constant 0 : i32
    %c0_i32_0 = arith.constant 0 : i32
    %c0_i32_1 = arith.constant 0 : i32
    return %c0_i32, %c0_i32_0 : i32, i32
  }
  func.func @transform_5(%arg0: i32) -> (i32, i32) {
    %c0_i32 = arith.constant 0 : i32
    %c0_i32_0 = arith.constant 0 : i32
    %c0_i32_1 = arith.constant 0 : i32
    return %c0_i32, %c0_i32_0 : i32, i32
  }
  func.func @transform_6(%arg0: i32) -> (i32, i32) {
    %c0_i32 = arith.constant 0 : i32
    %c0_i32_0 = arith.constant 0 : i32
    %c0_i32_1 = arith.constant 0 : i32
    return %c0_i32, %c0_i32_0 : i32, i32
  }
  func.func @transform_7(%arg0: i32) -> (i32, i32) {
    %c0_i32 = arith.constant 0 : i32
    %c0_i32_0 = arith.constant 0 : i32
    %c0_i32_1 = arith.constant 0 : i32
    return %c0_i32, %c0_i32_0 : i32, i32
  }
  func.func @transform_8(%arg0: i32) -> (i32, i32) {
    %c0_i32 = arith.constant 0 : i32
    %c0_i32_0 = arith.constant 0 : i32
    %c0_i32_1 = arith.constant 0 : i32
    return %c0_i32, %c0_i32_0 : i32, i32
  }
  func.func @transform_9(%arg0: i32) -> (i32, i32) {
    %c0_i32 = arith.constant 0 : i32
    %c0_i32_0 = arith.constant 0 : i32
    %c0_i32_1 = arith.constant 0 : i32
    return %c0_i32, %c0_i32_0 : i32, i32
  }
  func.func @transform_10(%arg0: i32) -> (i32, i32) {
    %c0_i32 = arith.constant 0 : i32
    %c0_i32_0 = arith.constant 0 : i32
    %c0_i32_1 = arith.constant 0 : i32
    return %c0_i32, %c0_i32_0 : i32, i32
  }
  func.func @transform_11(%arg0: i32) -> (i32, i32) {
    %c0_i32 = arith.constant 0 : i32
    %c0_i32_0 = arith.constant 0 : i32
    return %arg0, %c0_i32 : i32, i32
  }
}

module attributes {stable_mosaic.version = 11 : i64} {
  func.func @_net_kernel(%arg0: i32, %arg1: memref<8x384xbf16, #tpu.memory_space<vmem>>, %arg2: memref<384x1024xbf16, #tpu.memory_space<vmem>>, %arg3: memref<1x1024xf32, #tpu.memory_space<vmem>>, %arg4: memref<1024x512xbf16, #tpu.memory_space<vmem>>, %arg5: memref<1x512xf32, #tpu.memory_space<vmem>>, %arg6: memref<512x128xbf16, #tpu.memory_space<vmem>>, %arg7: memref<1x128xf32, #tpu.memory_space<vmem>>, %arg8: memref<128x128xbf16, #tpu.memory_space<vmem>>, %arg9: memref<1x128xf32, #tpu.memory_space<vmem>>, %arg10: memref<128x128xbf16, #tpu.memory_space<vmem>>, %arg11: memref<1x128xf32, #tpu.memory_space<vmem>>, %arg12: memref<8x128xbf16, #tpu.memory_space<vmem>>) attributes {dimension_semantics = [#tpu.dimension_semantics<parallel>], iteration_bounds = array<i64: 1>, scalar_prefetch = 0 : i64, scratch_operands = 0 : i64, tpu.core_type = #tpu.core_type<tc>, window_params = [{transform_indices = @transform_0, window_bounds = array<i64: 8, 384>}, {pipeline_mode = #tpu.pipeline_mode<synchronous>, transform_indices = @transform_1, window_bounds = array<i64: 384, 1024>}, {pipeline_mode = #tpu.pipeline_mode<synchronous>, transform_indices = @transform_2, window_bounds = array<i64: 1, 1024>}, {pipeline_mode = #tpu.pipeline_mode<synchronous>, transform_indices = @transform_3, window_bounds = array<i64: 1024, 512>}, {pipeline_mode = #tpu.pipeline_mode<synchronous>, transform_indices = @transform_4, window_bounds = array<i64: 1, 512>}, {pipeline_mode = #tpu.pipeline_mode<synchronous>, transform_indices = @transform_5, window_bounds = array<i64: 512, 128>}, {pipeline_mode = #tpu.pipeline_mode<synchronous>, transform_indices = @transform_6, window_bounds = array<i64: 1, 128>}, {pipeline_mode = #tpu.pipeline_mode<synchronous>, transform_indices = @transform_7, window_bounds = array<i64: 128, 128>}, {pipeline_mode = #tpu.pipeline_mode<synchronous>, transform_indices = @transform_8, window_bounds = array<i64: 1, 128>}, {pipeline_mode = #tpu.pipeline_mode<synchronous>, transform_indices = @transform_9, window_bounds = array<i64: 128, 128>}, {pipeline_mode = #tpu.pipeline_mode<synchronous>, transform_indices = @transform_10, window_bounds = array<i64: 1, 128>}, {transform_indices = @transform_11, window_bounds = array<i64: 8, 128>}]} {
    %c0 = arith.constant 0 : index
    %c0_0 = arith.constant 0 : index
    %0 = vector.load %arg1[%c0, %c0_0] : memref<8x384xbf16, #tpu.memory_space<vmem>>, vector<8x384xbf16>
    %c0_1 = arith.constant 0 : index
    %c0_2 = arith.constant 0 : index
    %1 = vector.load %arg2[%c0_1, %c0_2] : memref<384x1024xbf16, #tpu.memory_space<vmem>>, vector<384x1024xbf16>
    %cst = arith.constant dense<0.000000e+00> : vector<8x1024xf32>
    %2 = tpu.matmul %0, %1, %cst {dimension_numbers = #tpu.dot_dimension_numbers<[1], [0], [0], [1], [0, 0, 1, 1], [], []>} : vector<8x384xbf16>, vector<384x1024xbf16>, vector<8x1024xf32> -> vector<8x1024xf32>
    %c0_3 = arith.constant 0 : index
    %c0_4 = arith.constant 0 : index
    %3 = vector.load %arg3[%c0_3, %c0_4] : memref<1x1024xf32, #tpu.memory_space<vmem>>, vector<1x1024xf32>
    %4 = vector.broadcast %3 : vector<1x1024xf32> to vector<8x1024xf32>
    %5 = arith.addf %2, %4 : vector<8x1024xf32>
    %cst_5 = arith.constant 0.000000e+00 : f32
    %6 = vector.broadcast %cst_5 : f32 to vector<8x1024xf32>
    %7 = arith.maximumf %5, %6 : vector<8x1024xf32>
    %8 = arith.truncf %7 : vector<8x1024xf32> to vector<8x1024xbf16>
    %c0_6 = arith.constant 0 : index
    %c0_7 = arith.constant 0 : index
    %9 = vector.load %arg4[%c0_6, %c0_7] : memref<1024x512xbf16, #tpu.memory_space<vmem>>, vector<1024x512xbf16>
    %cst_8 = arith.constant dense<0.000000e+00> : vector<8x512xf32>
    %10 = tpu.matmul %8, %9, %cst_8 {dimension_numbers = #tpu.dot_dimension_numbers<[1], [0], [0], [1], [0, 0, 1, 1], [], []>} : vector<8x1024xbf16>, vector<1024x512xbf16>, vector<8x512xf32> -> vector<8x512xf32>
    %c0_9 = arith.constant 0 : index
    %c0_10 = arith.constant 0 : index
    %11 = vector.load %arg5[%c0_9, %c0_10] : memref<1x512xf32, #tpu.memory_space<vmem>>, vector<1x512xf32>
    %12 = vector.broadcast %11 : vector<1x512xf32> to vector<8x512xf32>
    %13 = arith.addf %10, %12 : vector<8x512xf32>
    %cst_11 = arith.constant 0.000000e+00 : f32
    %14 = vector.broadcast %cst_11 : f32 to vector<8x512xf32>
    %15 = arith.maximumf %13, %14 : vector<8x512xf32>
    %16 = arith.truncf %15 : vector<8x512xf32> to vector<8x512xbf16>
    %c0_12 = arith.constant 0 : index
    %c0_13 = arith.constant 0 : index
    %17 = vector.load %arg6[%c0_12, %c0_13] : memref<512x128xbf16, #tpu.memory_space<vmem>>, vector<512x128xbf16>
    %cst_14 = arith.constant dense<0.000000e+00> : vector<8x128xf32>
    %18 = tpu.matmul %16, %17, %cst_14 {dimension_numbers = #tpu.dot_dimension_numbers<[1], [0], [0], [1], [0, 0, 1, 1], [], []>} : vector<8x512xbf16>, vector<512x128xbf16>, vector<8x128xf32> -> vector<8x128xf32>
    %c0_15 = arith.constant 0 : index
    %c0_16 = arith.constant 0 : index
    %19 = vector.load %arg7[%c0_15, %c0_16] : memref<1x128xf32, #tpu.memory_space<vmem>>, vector<1x128xf32>
    %20 = vector.broadcast %19 : vector<1x128xf32> to vector<8x128xf32>
    %21 = arith.addf %18, %20 : vector<8x128xf32>
    %cst_17 = arith.constant 0.000000e+00 : f32
    %22 = vector.broadcast %cst_17 : f32 to vector<8x128xf32>
    %23 = arith.maximumf %21, %22 : vector<8x128xf32>
    %24 = arith.truncf %23 : vector<8x128xf32> to vector<8x128xbf16>
    %c0_18 = arith.constant 0 : index
    %c0_19 = arith.constant 0 : index
    %25 = vector.load %arg8[%c0_18, %c0_19] : memref<128x128xbf16, #tpu.memory_space<vmem>>, vector<128x128xbf16>
    %cst_20 = arith.constant dense<0.000000e+00> : vector<8x128xf32>
    %26 = tpu.matmul %24, %25, %cst_20 {dimension_numbers = #tpu.dot_dimension_numbers<[1], [0], [0], [1], [0, 0, 1, 1], [], []>} : vector<8x128xbf16>, vector<128x128xbf16>, vector<8x128xf32> -> vector<8x128xf32>
    %c0_21 = arith.constant 0 : index
    %c0_22 = arith.constant 0 : index
    %27 = vector.load %arg9[%c0_21, %c0_22] : memref<1x128xf32, #tpu.memory_space<vmem>>, vector<1x128xf32>
    %28 = vector.broadcast %27 : vector<1x128xf32> to vector<8x128xf32>
    %29 = arith.addf %26, %28 : vector<8x128xf32>
    %cst_23 = arith.constant 0.000000e+00 : f32
    %30 = vector.broadcast %cst_23 : f32 to vector<8x128xf32>
    %31 = arith.maximumf %29, %30 : vector<8x128xf32>
    %32 = arith.truncf %31 : vector<8x128xf32> to vector<8x128xbf16>
    %c0_24 = arith.constant 0 : index
    %c0_25 = arith.constant 0 : index
    %33 = vector.load %arg10[%c0_24, %c0_25] : memref<128x128xbf16, #tpu.memory_space<vmem>>, vector<128x128xbf16>
    %cst_26 = arith.constant dense<0.000000e+00> : vector<8x128xf32>
    %34 = tpu.matmul %32, %33, %cst_26 {dimension_numbers = #tpu.dot_dimension_numbers<[1], [0], [0], [1], [0, 0, 1, 1], [], []>} : vector<8x128xbf16>, vector<128x128xbf16>, vector<8x128xf32> -> vector<8x128xf32>
    %c0_27 = arith.constant 0 : index
    %c0_28 = arith.constant 0 : index
    %35 = vector.load %arg11[%c0_27, %c0_28] : memref<1x128xf32, #tpu.memory_space<vmem>>, vector<1x128xf32>
    %36 = vector.broadcast %35 : vector<1x128xf32> to vector<8x128xf32>
    %37 = arith.addf %34, %36 : vector<8x128xf32>
    %38 = arith.negf %37 : vector<8x128xf32>
    %39 = math.exp %38 : vector<8x128xf32>
    %cst_29 = arith.constant 1.000000e+00 : f32
    %40 = vector.broadcast %cst_29 : f32 to vector<8x128xf32>
    %41 = arith.addf %40, %39 : vector<8x128xf32>
    %42 = arith.divf %40, %41 : vector<8x128xf32>
    %43 = arith.truncf %42 : vector<8x128xf32> to vector<8x128xbf16>
    %c0_30 = arith.constant 0 : index
    %c0_31 = arith.constant 0 : index
    %44 = vector.load %arg12[%c0_30, %c0_31] : memref<8x128xbf16, #tpu.memory_space<vmem>>, vector<8x128xbf16>
    tpu.vector_store %arg12[%c0_30, %c0_31], %43 {strides = array<i32>} : memref<8x128xbf16, #tpu.memory_space<vmem>>, vector<8x128xbf16>,
    return
  }
  func.func @transform_0(%arg0: i32) -> (i32, i32) {
    %c0_i32 = arith.constant 0 : i32
    %c0_i32_0 = arith.constant 0 : i32
    return %arg0, %c0_i32 : i32, i32
  }
  func.func @transform_1(%arg0: i32) -> (i32, i32) {
    %c0_i32 = arith.constant 0 : i32
    %c0_i32_0 = arith.constant 0 : i32
    %c0_i32_1 = arith.constant 0 : i32
    return %c0_i32, %c0_i32_0 : i32, i32
  }
  func.func @transform_2(%arg0: i32) -> (i32, i32) {
    %c0_i32 = arith.constant 0 : i32
    %c0_i32_0 = arith.constant 0 : i32
    %c0_i32_1 = arith.constant 0 : i32
    return %c0_i32, %c0_i32_0 : i32, i32
  }
  func.func @transform_3(%arg0: i32) -> (i32, i32) {
    %c0_i32 = arith.constant 0 : i32
    %c0_i32_0 = arith.constant 0 : i32
    %c0_i32_1 = arith.constant 0 : i32
    return %c0_i32, %c0_i32_0 : i32, i32
  }
  func.func @transform_4(%arg0: i32) -> (i32, i32) {
    %c0_i32 = arith.constant 0 : i32
    %c0_i32_0 = arith.constant 0 : i32
    %c0_i32_1 = arith.constant 0 : i32
    return %c0_i32, %c0_i32_0 : i32, i32
  }
  func.func @transform_5(%arg0: i32) -> (i32, i32) {
    %c0_i32 = arith.constant 0 : i32
    %c0_i32_0 = arith.constant 0 : i32
    %c0_i32_1 = arith.constant 0 : i32
    return %c0_i32, %c0_i32_0 : i32, i32
  }
  func.func @transform_6(%arg0: i32) -> (i32, i32) {
    %c0_i32 = arith.constant 0 : i32
    %c0_i32_0 = arith.constant 0 : i32
    %c0_i32_1 = arith.constant 0 : i32
    return %c0_i32, %c0_i32_0 : i32, i32
  }
  func.func @transform_7(%arg0: i32) -> (i32, i32) {
    %c0_i32 = arith.constant 0 : i32
    %c0_i32_0 = arith.constant 0 : i32
    %c0_i32_1 = arith.constant 0 : i32
    return %c0_i32, %c0_i32_0 : i32, i32
  }
  func.func @transform_8(%arg0: i32) -> (i32, i32) {
    %c0_i32 = arith.constant 0 : i32
    %c0_i32_0 = arith.constant 0 : i32
    %c0_i32_1 = arith.constant 0 : i32
    return %c0_i32, %c0_i32_0 : i32, i32
  }
  func.func @transform_9(%arg0: i32) -> (i32, i32) {
    %c0_i32 = arith.constant 0 : i32
    %c0_i32_0 = arith.constant 0 : i32
    %c0_i32_1 = arith.constant 0 : i32
    return %c0_i32, %c0_i32_0 : i32, i32
  }
  func.func @transform_10(%arg0: i32) -> (i32, i32) {
    %c0_i32 = arith.constant 0 : i32
    %c0_i32_0 = arith.constant 0 : i32
    %c0_i32_1 = arith.constant 0 : i32
    return %c0_i32, %c0_i32_0 : i32, i32
  }
  func.func @transform_11(%arg0: i32) -> (i32, i32) {
    %c0_i32 = arith.constant 0 : i32
    %c0_i32_0 = arith.constant 0 : i32
    return %arg0, %c0_i32 : i32, i32
  }
}

</mosaic_0001>

<llo_original>
// kernel: tpu_custom_call.1
$region0: #{tpu_custom_call.1}
  #allocation0 [shape = 'u32[]', space=smem, size = 0x4, offset = 0x4, fixed_abs, tag = 'smem constant byte address 0x4 - core index']
  #allocation1 [shape = 'u32[72,128]{1,0:T(1,128)}', space=vmem, size = 0x9000, scoped, tag = 'internal scratch']
  %s0 = inlined_call_operand.hbm [shape: bf16[8,384], index: 0, kind: input, shape index: {}]
  %s1 = inlined_call_operand.hbm [shape: bf16[384,1024], index: 1, kind: input, shape index: {}]
  %s2 = inlined_call_operand.hbm [shape: f32[1,1024], index: 2, kind: input, shape index: {}]
  %s3 = inlined_call_operand.hbm [shape: bf16[1024,512], index: 3, kind: input, shape index: {}]
  %s4 = inlined_call_operand.hbm [shape: f32[1,512], index: 4, kind: input, shape index: {}]
  %s5 = inlined_call_operand.hbm [shape: bf16[512,128], index: 5, kind: input, shape index: {}]
  %s6 = inlined_call_operand.vmem [shape: f32[1,128], index: 6, kind: input, shape index: {}]
  %s7 = inlined_call_operand.hbm [shape: bf16[128,128], index: 7, kind: input, shape index: {}]
  %s8 = inlined_call_operand.vmem [shape: f32[1,128], index: 8, kind: input, shape index: {}]
  %s9 = inlined_call_operand.hbm [shape: bf16[128,128], index: 9, kind: input, shape index: {}]
  %s10 = inlined_call_operand.vmem [shape: f32[1,128], index: 10, kind: input, shape index: {}]
  %s11 = inlined_call_operand.hbm [shape: bf16[8,128], index: 11, kind: output, shape index: {}]
  %s12 = sld [smem:[#allocation0]]
  $region86: #{tpu_custom_call.1} parent=0
    _
  %s14 = ssub.s32 1, %s12
  %s15 = scalar_select 0, %s14, %s12
  $region1: #{tpu_custom_call.1} parent=0
    #allocation2 [shape = 'u8[6144]{0}', space=vmem, size = 0x1800, scoped, tag = 'input window, operand 0, single buffered']
    #allocation3 [shape = 's32[1]{0}', space=sflag, size = 0x4, scoped, tag = 'scoped memory for tpu_custom_call.1']
    #allocation4 [shape = 's32[1]{0}', space=sflag, size = 0x4, scoped, tag = 'scoped memory for tpu_custom_call.1']
    #allocation5 [shape = 'u8[786432]{0}', space=vmem, size = 0xc0000, scoped, tag = 'input window, operand 1, single buffered']
    #allocation6 [shape = 's32[1]{0}', space=sflag, size = 0x4, scoped, tag = 'scoped memory for tpu_custom_call.1']
    #allocation7 [shape = 'u8[4096]{0}', space=vmem, size = 0x1000, scoped, tag = 'input window, operand 2, single buffered']
    #allocation8 [shape = 'u8[1048576]{0}', space=vmem, size = 0x100000, scoped, tag = 'input window, operand 3, single buffered']
    #allocation9 [shape = 's32[1]{0}', space=sflag, size = 0x4, scoped, tag = 'scoped memory for tpu_custom_call.1']
    #allocation10 [shape = 'u8[2048]{0}', space=vmem, size = 0x800, scoped, tag = 'input window, operand 4, single buffered']
    #allocation11 [shape = 'u8[131072]{0}', space=vmem, size = 0x20000, scoped, tag = 'input window, operand 5, single buffered']
    #allocation12 [shape = 's32[1]{0}', space=sflag, size = 0x4, scoped, tag = 'scoped memory for tpu_custom_call.1']
    #allocation13 [shape = 'u8[32768]{0}', space=vmem, size = 0x8000, scoped, tag = 'input window, operand 7, single buffered']
    #allocation14 [shape = 'u8[32768]{0}', space=vmem, size = 0x8000, scoped, tag = 'input window, operand 9, single buffered']
    #allocation15 [shape = 's32[1]{0}', space=sflag, size = 0x4, scoped, tag = 'scoped memory for tpu_custom_call.1']
    #allocation16 [shape = 'u8[2048]{0}', space=vmem, size = 0x800, scoped, tag = 'output window, operand 0, single buffered']
    %16 = vsyncpa [#allocation3], 0
    %17 = vsyncpa [#allocation6], 0
    %18 = vsyncpa [#allocation9], 0
    %19 = vsyncpa [#allocation12], 0
    %20 = vsyncpa [#allocation15], 0
    %21 = vsyncpa [#allocation4], 0
    // Predicated region
    $region2: #{tpu_custom_call.1} parent=1 // pred_check
      _
    $region3: #{tpu_custom_call.1} parent=1 // pred_check_branch
      %23 = sbr.rel (0) target = $region5
    $region4: #{tpu_custom_call.1} parent=1 // pred_region
      %25 = vsyncadd [#allocation3], 0
      %s27 = sshll.u32 %s0, 4
      %s28 = int_to_ptr.hbm [resolvable:$true] %s27
      %s29 = sshll.u32 [#allocation2], 4
      %s30 = int_to_ptr.vmem [resolvable:$true] %s29
      %32 = dma.hbm_to_vmem [thread:$0]  %s28, 192, %s30, [#allocation3]
    $region5: #{tpu_custom_call.1} parent=1 // pred_fallthru
      _
    // Predicated region
    $region6: #{tpu_custom_call.1} parent=1 // pred_check
      _
    $region7: #{tpu_custom_call.1} parent=1 // pred_check_branch
      %34 = sbr.rel (0) target = $region9
    $region8: #{tpu_custom_call.1} parent=1 // pred_region
      %36 = vsyncadd [#allocation6], 0
      %s37 = sshll.u32 %s1, 4
      %s38 = int_to_ptr.hbm [resolvable:$true] %s37
      %s39 = sshll.u32 [#allocation5], 4
      %s40 = int_to_ptr.vmem [resolvable:$true] %s39
      %45 = dma.hbm_to_vmem [thread:$0]  %s38, 24576, %s40, [#allocation6], 512, 512, 32
    $region9: #{tpu_custom_call.1} parent=1 // pred_fallthru
      _
    // Predicated region
    $region10: #{tpu_custom_call.1} parent=1 // pred_check
      _
    $region11: #{tpu_custom_call.1} parent=1 // pred_check_branch
      %47 = sbr.rel (0) target = $region13
    $region12: #{tpu_custom_call.1} parent=1 // pred_region
      %49 = vsyncadd [#allocation6], 0
      %s51 = sshll.u32 %s2, 4
      %s52 = int_to_ptr.hbm [resolvable:$true] %s51
      %s53 = sshll.u32 [#allocation7], 4
      %s54 = int_to_ptr.vmem [resolvable:$true] %s53
      %56 = dma.hbm_to_vmem [thread:$0]  %s52, 128, %s54, [#allocation6]
    $region13: #{tpu_custom_call.1} parent=1 // pred_fallthru
      _
    // Predicated region
    $region14: #{tpu_custom_call.1} parent=1 // pred_check
      _
    $region15: #{tpu_custom_call.1} parent=1 // pred_check_branch
      %58 = sbr.rel (0) target = $region17
    $region16: #{tpu_custom_call.1} parent=1 // pred_region
      %60 = vsyncadd [#allocation9], 0
      %s61 = sshll.u32 %s3, 4
      %s62 = int_to_ptr.hbm [resolvable:$true] %s61
      %s63 = sshll.u32 [#allocation8], 4
      %s64 = int_to_ptr.vmem [resolvable:$true] %s63
      %69 = dma.hbm_to_vmem [thread:$0]  %s62, 32768, %s64, [#allocation9], 256, 256, 16
    $region17: #{tpu_custom_call.1} parent=1 // pred_fallthru
      _
    // Predicated region
    $region18: #{tpu_custom_call.1} parent=1 // pred_check
      _
    $region19: #{tpu_custom_call.1} parent=1 // pred_check_branch
      %71 = sbr.rel (0) target = $region21
    $region20: #{tpu_custom_call.1} parent=1 // pred_region
      %73 = vsyncadd [#allocation9], 0
      %s75 = sshll.u32 %s4, 4
      %s76 = int_to_ptr.hbm [resolvable:$true] %s75
      %s77 = sshll.u32 [#allocation10], 4
      %s78 = int_to_ptr.vmem [resolvable:$true] %s77
      %80 = dma.hbm_to_vmem [thread:$0]  %s76, 64, %s78, [#allocation9]
    $region21: #{tpu_custom_call.1} parent=1 // pred_fallthru
      _
    // Predicated region
    $region22: #{tpu_custom_call.1} parent=1 // pred_check
      _
    $region23: #{tpu_custom_call.1} parent=1 // pred_check_branch
      %82 = sbr.rel (0) target = $region25
    $region24: #{tpu_custom_call.1} parent=1 // pred_region
      %84 = vsyncadd [#allocation12], 0
      %s85 = sshll.u32 %s5, 4
      %s86 = int_to_ptr.hbm [resolvable:$true] %s85
      %s87 = sshll.u32 [#allocation11], 4
      %s88 = int_to_ptr.vmem [resolvable:$true] %s87
      %93 = dma.hbm_to_vmem [thread:$0]  %s86, 4096, %s88, [#allocation12], 64, 64, 4
    $region25: #{tpu_custom_call.1} parent=1 // pred_fallthru
      _
    // Predicated region
    $region26: #{tpu_custom_call.1} parent=1 // pred_check
      _
    $region27: #{tpu_custom_call.1} parent=1 // pred_check_branch
      %95 = sbr.rel (0) target = $region29
    $region28: #{tpu_custom_call.1} parent=1 // pred_region
      _
    $region29: #{tpu_custom_call.1} parent=1 // pred_fallthru
      _
    // Predicated region
    $region30: #{tpu_custom_call.1} parent=1 // pred_check
      _
    $region31: #{tpu_custom_call.1} parent=1 // pred_check_branch
      %97 = sbr.rel (0) target = $region33
    $region32: #{tpu_custom_call.1} parent=1 // pred_region
      %99 = vsyncadd [#allocation12], 0
      %s100 = sshll.u32 %s7, 4
      %s101 = int_to_ptr.hbm [resolvable:$true] %s100
      %s102 = sshll.u32 [#allocation13], 4
      %s103 = int_to_ptr.vmem [resolvable:$true] %s102
      %108 = dma.hbm_to_vmem [thread:$0]  %s101, 1024, %s103, [#allocation12], 64, 64, 4
    $region33: #{tpu_custom_call.1} parent=1 // pred_fallthru
      _
    // Predicated region
    $region34: #{tpu_custom_call.1} parent=1 // pred_check
      _
    $region35: #{tpu_custom_call.1} parent=1 // pred_check_branch
      %110 = sbr.rel (0) target = $region37
    $region36: #{tpu_custom_call.1} parent=1 // pred_region
      _
    $region37: #{tpu_custom_call.1} parent=1 // pred_fallthru
      _
    // Predicated region
    $region38: #{tpu_custom_call.1} parent=1 // pred_check
      _
    $region39: #{tpu_custom_call.1} parent=1 // pred_check_branch
      %112 = sbr.rel (0) target = $region41
    $region40: #{tpu_custom_call.1} parent=1 // pred_region
      %114 = vsyncadd [#allocation15], 0
      %s115 = sshll.u32 %s9, 4
      %s116 = int_to_ptr.hbm [resolvable:$true] %s115
      %s117 = sshll.u32 [#allocation14], 4
      %s118 = int_to_ptr.vmem [resolvable:$true] %s117
      %123 = dma.hbm_to_vmem [thread:$0]  %s116, 1024, %s118, [#allocation15], 64, 64, 4
    $region41: #{tpu_custom_call.1} parent=1 // pred_fallthru
      _
    // Predicated region
    $region42: #{tpu_custom_call.1} parent=1 // pred_check
      _
    $region43: #{tpu_custom_call.1} parent=1 // pred_check_branch
      %125 = sbr.rel (0) target = $region45
    $region44: #{tpu_custom_call.1} parent=1 // pred_region
      _
    $region45: #{tpu_custom_call.1} parent=1 // pred_fallthru
      _
    // Predicated region
    $region46: #{tpu_custom_call.1} parent=1 // pred_check
      _
    $region47: #{tpu_custom_call.1} parent=1 // pred_check_branch
      %127 = sbr.rel (0) target = $region49
    $region48: #{tpu_custom_call.1} parent=1 // pred_region
      %129 = dma.done [#allocation3], 192
    $region49: #{tpu_custom_call.1} parent=1 // pred_fallthru
      _
    // Predicated region
    $region50: #{tpu_custom_call.1} parent=1 // pred_check
      _
    $region51: #{tpu_custom_call.1} parent=1 // pred_check_branch
      %131 = sbr.rel (0) target = $region53
    $region52: #{tpu_custom_call.1} parent=1 // pred_region
      %133 = dma.done [#allocation6], 24576
    $region53: #{tpu_custom_call.1} parent=1 // pred_fallthru
      _
    // Predicated region
    $region54: #{tpu_custom_call.1} parent=1 // pred_check
      _
    $region55: #{tpu_custom_call.1} parent=1 // pred_check_branch
      %135 = sbr.rel (0) target = $region57
    $region56: #{tpu_custom_call.1} parent=1 // pred_region
      %137 = dma.done [#allocation6], 128
    $region57: #{tpu_custom_call.1} parent=1 // pred_fallthru
      _
    // Predicated region
    $region58: #{tpu_custom_call.1} parent=1 // pred_check
      _
    $region59: #{tpu_custom_call.1} parent=1 // pred_check_branch
      %139 = sbr.rel (0) target = $region61
    $region60: #{tpu_custom_call.1} parent=1 // pred_region
      %141 = dma.done [#allocation9], 32768
    $region61: #{tpu_custom_call.1} parent=1 // pred_fallthru
      _
    // Predicated region
    $region62: #{tpu_custom_call.1} parent=1 // pred_check
      _
    $region63: #{tpu_custom_call.1} parent=1 // pred_check_branch
      %143 = sbr.rel (0) target = $region65
    $region64: #{tpu_custom_call.1} parent=1 // pred_region
      %145 = dma.done [#allocation9], 64
    $region65: #{tpu_custom_call.1} parent=1 // pred_fallthru
      _
    // Predicated region
    $region66: #{tpu_custom_call.1} parent=1 // pred_check
      _
    $region67: #{tpu_custom_call.1} parent=1 // pred_check_branch
      %147 = sbr.rel (0) target = $region69
    $region68: #{tpu_custom_call.1} parent=1 // pred_region
      %149 = dma.done [#allocation12], 4096
    $region69: #{tpu_custom_call.1} parent=1 // pred_fallthru
      _
    // Predicated region
    $region70: #{tpu_custom_call.1} parent=1 // pred_check
      _
    $region71: #{tpu_custom_call.1} parent=1 // pred_check_branch
      %151 = sbr.rel (0) target = $region73
    $region72: #{tpu_custom_call.1} parent=1 // pred_region
      %153 = dma.done [#allocation12], 1024
    $region73: #{tpu_custom_call.1} parent=1 // pred_fallthru
      _
    // Predicated region
    $region74: #{tpu_custom_call.1} parent=1 // pred_check
      _
    $region75: #{tpu_custom_call.1} parent=1 // pred_check_branch
      %155 = sbr.rel (0) target = $region77
    $region76: #{tpu_custom_call.1} parent=1 // pred_region
      %157 = dma.done [#allocation15], 1024
    $region77: #{tpu_custom_call.1} parent=1 // pred_fallthru
      _
    %v158 = vld [vmem:[#allocation2] sm:$0xff]
    %v159 = vld [vmem:[#allocation2 + $0x8] sm:$0xf]
    %v160 = vld [vmem:[#allocation5] sm:$0xff]
    %v161 = vld [vmem:[#allocation5 + $0x8] sm:$0xff]
    %v162 = vld [vmem:[#allocation5 + $0x10] sm:$0xff]
    %v163 = vld [vmem:[#allocation5 + $0x18] sm:$0xff]
    %v164 = vld [vmem:[#allocation5 + $0x20] sm:$0xff]
    %v165 = vld [vmem:[#allocation5 + $0x28] sm:$0xff]
    %v166 = vld [vmem:[#allocation5 + $0x30] sm:$0xff]
    %v167 = vld [vmem:[#allocation5 + $0x38] sm:$0xff]
    %v168 = vld [vmem:[#allocation5 + $0x40] sm:$0xff]
    %v169 = vld [vmem:[#allocation5 + $0x48] sm:$0xff]
    %v170 = vld [vmem:[#allocation5 + $0x50] sm:$0xff]
    %v171 = vld [vmem:[#allocation5 + $0x58] sm:$0xff]
    %v172 = vld [vmem:[#allocation5 + $0x60] sm:$0xff]
    %v173 = vld [vmem:[#allocation5 + $0x68] sm:$0xff]
    %v174 = vld [vmem:[#allocation5 + $0x70] sm:$0xff]
    %v175 = vld [vmem:[#allocation5 + $0x78] sm:$0xff]
    %v176 = vld [vmem:[#allocation5 + $0x80] sm:$0xff]
    %v177 = vld [vmem:[#allocation5 + $0x88] sm:$0xff]
    %v178 = vld [vmem:[#allocation5 + $0x90] sm:$0xff]
    %v179 = vld [vmem:[#allocation5 + $0x98] sm:$0xff]
    %v180 = vld [vmem:[#allocation5 + $0xa0] sm:$0xff]
    %v181 = vld [vmem:[#allocation5 + $0xa8] sm:$0xff]
    %v182 = vld [vmem:[#allocation5 + $0xb0] sm:$0xff]
    %v183 = vld [vmem:[#allocation5 + $0xb8] sm:$0xff]
    %v184 = vld [vmem:[#allocation5 + $0xc0] sm:$0xff]
    %v185 = vld [vmem:[#allocation5 + $0xc8] sm:$0xff]
    %v186 = vld [vmem:[#allocation5 + $0xd0] sm:$0xff]
    %v187 = vld [vmem:[#allocation5 + $0xd8] sm:$0xff]
    %v188 = vld [vmem:[#allocation5 + $0xe0] sm:$0xff]
    %v189 = vld [vmem:[#allocation5 + $0xe8] sm:$0xff]
    %v190 = vld [vmem:[#allocation5 + $0xf0] sm:$0xff]
    %v191 = vld [vmem:[#allocation5 + $0xf8] sm:$0xff]
    %v192 = vld [vmem:[#allocation5 + $0x100] sm:$0xff]
    %v193 = vld [vmem:[#allocation5 + $0x108] sm:$0xff]
    %v194 = vld [vmem:[#allocation5 + $0x110] sm:$0xff]
    %v195 = vld [vmem:[#allocation5 + $0x118] sm:$0xff]
    %v196 = vld [vmem:[#allocation5 + $0x120] sm:$0xff]
    %v197 = vld [vmem:[#allocation5 + $0x128] sm:$0xff]
    %v198 = vld [vmem:[#allocation5 + $0x130] sm:$0xff]
    %v199 = vld [vmem:[#allocation5 + $0x138] sm:$0xff]
    %v200 = vld [vmem:[#allocation5 + $0x140] sm:$0xff]
    %v201 = vld [vmem:[#allocation5 + $0x148] sm:$0xff]
    %v202 = vld [vmem:[#allocation5 + $0x150] sm:$0xff]
    %v203 = vld [vmem:[#allocation5 + $0x158] sm:$0xff]
    %v204 = vld [vmem:[#allocation5 + $0x160] sm:$0xff]
    %v205 = vld [vmem:[#allocation5 + $0x168] sm:$0xff]
    %v206 = vld [vmem:[#allocation5 + $0x170] sm:$0xff]
    %v207 = vld [vmem:[#allocation5 + $0x178] sm:$0xff]
    %v208 = vld [vmem:[#allocation5 + $0x180] sm:$0xff]
    %v209 = vld [vmem:[#allocation5 + $0x188] sm:$0xff]
    %v210 = vld [vmem:[#allocation5 + $0x190] sm:$0xff]
    %v211 = vld [vmem:[#allocation5 + $0x198] sm:$0xff]
    %v212 = vld [vmem:[#allocation5 + $0x1a0] sm:$0xff]
    %v213 = vld [vmem:[#allocation5 + $0x1a8] sm:$0xff]
    %v214 = vld [vmem:[#allocation5 + $0x1b0] sm:$0xff]
    %v215 = vld [vmem:[#allocation5 + $0x1b8] sm:$0xff]
    %v216 = vld [vmem:[#allocation5 + $0x1c0] sm:$0xff]
    %v217 = vld [vmem:[#allocation5 + $0x1c8] sm:$0xff]
    %v218 = vld [vmem:[#allocation5 + $0x1d0] sm:$0xff]
    %v219 = vld [vmem:[#allocation5 + $0x1d8] sm:$0xff]
    %v220 = vld [vmem:[#allocation5 + $0x1e0] sm:$0xff]
    %v221 = vld [vmem:[#allocation5 + $0x1e8] sm:$0xff]
    %v222 = vld [vmem:[#allocation5 + $0x1f0] sm:$0xff]
    %v223 = vld [vmem:[#allocation5 + $0x1f8] sm:$0xff]
    %v224 = vld [vmem:[#allocation5 + $0x200] sm:$0xff]
    %v225 = vld [vmem:[#allocation5 + $0x208] sm:$0xff]
    %v226 = vld [vmem:[#allocation5 + $0x210] sm:$0xff]
    %v227 = vld [vmem:[#allocation5 + $0x218] sm:$0xff]
    %v228 = vld [vmem:[#allocation5 + $0x220] sm:$0xff]
    %v229 = vld [vmem:[#allocation5 + $0x228] sm:$0xff]
    %v230 = vld [vmem:[#allocation5 + $0x230] sm:$0xff]
    %v231 = vld [vmem:[#allocation5 + $0x238] sm:$0xff]
    %v232 = vld [vmem:[#allocation5 + $0x240] sm:$0xff]
    %v233 = vld [vmem:[#allocation5 + $0x248] sm:$0xff]
    %v234 = vld [vmem:[#allocation5 + $0x250] sm:$0xff]
    %v235 = vld [vmem:[#allocation5 + $0x258] sm:$0xff]
    %v236 = vld [vmem:[#allocation5 + $0x260] sm:$0xff]
    %v237 = vld [vmem:[#allocation5 + $0x268] sm:$0xff]
    %v238 = vld [vmem:[#allocation5 + $0x270] sm:$0xff]
    %v239 = vld [vmem:[#allocation5 + $0x278] sm:$0xff]
    %v240 = vld [vmem:[#allocation5 + $0x280] sm:$0xff]
    %v241 = vld [vmem:[#allocation5 + $0x288] sm:$0xff]
    %v242 = vld [vmem:[#allocation5 + $0x290] sm:$0xff]
    %v243 = vld [vmem:[#allocation5 + $0x298] sm:$0xff]
    %v244 = vld [vmem:[#allocation5 + $0x2a0] sm:$0xff]
    %v245 = vld [vmem:[#allocation5 + $0x2a8] sm:$0xff]
    %v246 = vld [vmem:[#allocation5 + $0x2b0] sm:$0xff]
    %v247 = vld [vmem:[#allocation5 + $0x2b8] sm:$0xff]
    %v248 = vld [vmem:[#allocation5 + $0x2c0] sm:$0xff]
    %v249 = vld [vmem:[#allocation5 + $0x2c8] sm:$0xff]
    %v250 = vld [vmem:[#allocation5 + $0x2d0] sm:$0xff]
    %v251 = vld [vmem:[#allocation5 + $0x2d8] sm:$0xff]
    %v252 = vld [vmem:[#allocation5 + $0x2e0] sm:$0xff]
    %v253 = vld [vmem:[#allocation5 + $0x2e8] sm:$0xff]
    %v254 = vld [vmem:[#allocation5 + $0x2f0] sm:$0xff]
    %v255 = vld [vmem:[#allocation5 + $0x2f8] sm:$0xff]
    %v256 = vld [vmem:[#allocation5 + $0x300] sm:$0xff]
    %v257 = vld [vmem:[#allocation5 + $0x308] sm:$0xff]
    %v258 = vld [vmem:[#allocation5 + $0x310] sm:$0xff]
    %v259 = vld [vmem:[#allocation5 + $0x318] sm:$0xff]
    %v260 = vld [vmem:[#allocation5 + $0x320] sm:$0xff]
    %v261 = vld [vmem:[#allocation5 + $0x328] sm:$0xff]
    %v262 = vld [vmem:[#allocation5 + $0x330] sm:$0xff]
    %v263 = vld [vmem:[#allocation5 + $0x338] sm:$0xff]
    %v264 = vld [vmem:[#allocation5 + $0x340] sm:$0xff]
    %v265 = vld [vmem:[#allocation5 + $0x348] sm:$0xff]
    %v266 = vld [vmem:[#allocation5 + $0x350] sm:$0xff]
    %v267 = vld [vmem:[#allocation5 + $0x358] sm:$0xff]
    %v268 = vld [vmem:[#allocation5 + $0x360] sm:$0xff]
    %v269 = vld [vmem:[#allocation5 + $0x368] sm:$0xff]
    %v270 = vld [vmem:[#allocation5 + $0x370] sm:$0xff]
    %v271 = vld [vmem:[#allocation5 + $0x378] sm:$0xff]
    %v272 = vld [vmem:[#allocation5 + $0x380] sm:$0xff]
    %v273 = vld [vmem:[#allocation5 + $0x388] sm:$0xff]
    %v274 = vld [vmem:[#allocation5 + $0x390] sm:$0xff]
    %v275 = vld [vmem:[#allocation5 + $0x398] sm:$0xff]
    %v276 = vld [vmem:[#allocation5 + $0x3a0] sm:$0xff]
    %v277 = vld [vmem:[#allocation5 + $0x3a8] sm:$0xff]
    %v278 = vld [vmem:[#allocation5 + $0x3b0] sm:$0xff]
    %v279 = vld [vmem:[#allocation5 + $0x3b8] sm:$0xff]
    %v280 = vld [vmem:[#allocation5 + $0x3c0] sm:$0xff]
    %v281 = vld [vmem:[#allocation5 + $0x3c8] sm:$0xff]
    %v282 = vld [vmem:[#allocation5 + $0x3d0] sm:$0xff]
    %v283 = vld [vmem:[#allocation5 + $0x3d8] sm:$0xff]
    %v284 = vld [vmem:[#allocation5 + $0x3e0] sm:$0xff]
    %v285 = vld [vmem:[#allocation5 + $0x3e8] sm:$0xff]
    %v286 = vld [vmem:[#allocation5 + $0x3f0] sm:$0xff]
    %v287 = vld [vmem:[#allocation5 + $0x3f8] sm:$0xff]
    %v288 = vld [vmem:[#allocation5 + $0x400] sm:$0xff]
    %v289 = vld [vmem:[#allocation5 + $0x408] sm:$0xff]
    %v290 = vld [vmem:[#allocation5 + $0x410] sm:$0xff]
    %v291 = vld [vmem:[#allocation5 + $0x418] sm:$0xff]
    %v292 = vld [vmem:[#allocation5 + $0x420] sm:$0xff]
    %v293 = vld [vmem:[#allocation5 + $0x428] sm:$0xff]
    %v294 = vld [vmem:[#allocation5 + $0x430] sm:$0xff]
    %v295 = vld [vmem:[#allocation5 + $0x438] sm:$0xff]
    %v296 = vld [vmem:[#allocation5 + $0x440] sm:$0xff]
    %v297 = vld [vmem:[#allocation5 + $0x448] sm:$0xff]
    %v298 = vld [vmem:[#allocation5 + $0x450] sm:$0xff]
    %v299 = vld [vmem:[#allocation5 + $0x458] sm:$0xff]
    %v300 = vld [vmem:[#allocation5 + $0x460] sm:$0xff]
    %v301 = vld [vmem:[#allocation5 + $0x468] sm:$0xff]
    %v302 = vld [vmem:[#allocation5 + $0x470] sm:$0xff]
    %v303 = vld [vmem:[#allocation5 + $0x478] sm:$0xff]
    %v304 = vld [vmem:[#allocation5 + $0x480] sm:$0xff]
    %v305 = vld [vmem:[#allocation5 + $0x488] sm:$0xff]
    %v306 = vld [vmem:[#allocation5 + $0x490] sm:$0xff]
    %v307 = vld [vmem:[#allocation5 + $0x498] sm:$0xff]
    %v308 = vld [vmem:[#allocation5 + $0x4a0] sm:$0xff]
    %v309 = vld [vmem:[#allocation5 + $0x4a8] sm:$0xff]
    %v310 = vld [vmem:[#allocation5 + $0x4b0] sm:$0xff]
    %v311 = vld [vmem:[#allocation5 + $0x4b8] sm:$0xff]
    %v312 = vld [vmem:[#allocation5 + $0x4c0] sm:$0xff]
    %v313 = vld [vmem:[#allocation5 + $0x4c8] sm:$0xff]
    %v314 = vld [vmem:[#allocation5 + $0x4d0] sm:$0xff]
    %v315 = vld [vmem:[#allocation5 + $0x4d8] sm:$0xff]
    %v316 = vld [vmem:[#allocation5 + $0x4e0] sm:$0xff]
    %v317 = vld [vmem:[#allocation5 + $0x4e8] sm:$0xff]
    %v318 = vld [vmem:[#allocation5 + $0x4f0] sm:$0xff]
    %v319 = vld [vmem:[#allocation5 + $0x4f8] sm:$0xff]
    %v320 = vld [vmem:[#allocation5 + $0x500] sm:$0xff]
    %v321 = vld [vmem:[#allocation5 + $0x508] sm:$0xff]
    %v322 = vld [vmem:[#allocation5 + $0x510] sm:$0xff]
    %v323 = vld [vmem:[#allocation5 + $0x518] sm:$0xff]
    %v324 = vld [vmem:[#allocation5 + $0x520] sm:$0xff]
    %v325 = vld [vmem:[#allocation5 + $0x528] sm:$0xff]
    %v326 = vld [vmem:[#allocation5 + $0x530] sm:$0xff]
    %v327 = vld [vmem:[#allocation5 + $0x538] sm:$0xff]
    %v328 = vld [vmem:[#allocation5 + $0x540] sm:$0xff]
    %v329 = vld [vmem:[#allocation5 + $0x548] sm:$0xff]
    %v330 = vld [vmem:[#allocation5 + $0x550] sm:$0xff]
    %v331 = vld [vmem:[#allocation5 + $0x558] sm:$0xff]
    %v332 = vld [vmem:[#allocation5 + $0x560] sm:$0xff]
    %v333 = vld [vmem:[#allocation5 + $0x568] sm:$0xff]
    %v334 = vld [vmem:[#allocation5 + $0x570] sm:$0xff]
    %v335 = vld [vmem:[#allocation5 + $0x578] sm:$0xff]
    %v336 = vld [vmem:[#allocation5 + $0x580] sm:$0xff]
    %v337 = vld [vmem:[#allocation5 + $0x588] sm:$0xff]
    %v338 = vld [vmem:[#allocation5 + $0x590] sm:$0xff]
    %v339 = vld [vmem:[#allocation5 + $0x598] sm:$0xff]
    %v340 = vld [vmem:[#allocation5 + $0x5a0] sm:$0xff]
    %v341 = vld [vmem:[#allocation5 + $0x5a8] sm:$0xff]
    %v342 = vld [vmem:[#allocation5 + $0x5b0] sm:$0xff]
    %v343 = vld [vmem:[#allocation5 + $0x5b8] sm:$0xff]
    %v344 = vld [vmem:[#allocation5 + $0x5c0] sm:$0xff]
    %v345 = vld [vmem:[#allocation5 + $0x5c8] sm:$0xff]
    %v346 = vld [vmem:[#allocation5 + $0x5d0] sm:$0xff]
    %v347 = vld [vmem:[#allocation5 + $0x5d8] sm:$0xff]
    %v348 = vld [vmem:[#allocation5 + $0x5e0] sm:$0xff]
    %v349 = vld [vmem:[#allocation5 + $0x5e8] sm:$0xff]
    %v350 = vld [vmem:[#allocation5 + $0x5f0] sm:$0xff]
    %v351 = vld [vmem:[#allocation5 + $0x5f8] sm:$0xff]
    %v352 = vld [vmem:[#allocation7] sm:$0xff]
    %v354 = vperm.slane %v352, 0
    %v355 = vperm.slane %v352, 1
    %v356 = vperm.slane %v352, 2
    %v357 = vperm.slane %v352, 3
    %v358 = vperm.slane %v352, 4
    %v359 = vperm.slane %v352, 5
    %v360 = vperm.slane %v352, 6
    %v361 = vperm.slane %v352, 7
    %v372 = vunpack.c.l.b16 %v158
    %v373 = vunpack.c.h.b16 %v158
    %v374 = vunpack.c.l.b16 %v159
    %v375 = vpack.c.b16 %v372, %v372
    %v376 = vpack.c.b16 %v373, %v373
    %v377 = vpack.c.b16 %v374, %v374
    %v573 = vunpack.c.l.b16 %v160
    %v574 = vunpack.c.h.b16 %v160
    %v575 = vunpack.c.l.b16 %v161
    %v576 = vunpack.c.h.b16 %v161
    %v577 = vunpack.c.l.b16 %v162
    %v578 = vunpack.c.h.b16 %v162
    %v579 = vunpack.c.l.b16 %v163
    %v580 = vunpack.c.h.b16 %v163
    %v581 = vunpack.c.l.b16 %v164
    %v582 = vunpack.c.h.b16 %v164
    %v583 = vunpack.c.l.b16 %v165
    %v584 = vunpack.c.h.b16 %v165
    %v585 = vunpack.c.l.b16 %v166
    %v586 = vunpack.c.h.b16 %v166
    %v587 = vunpack.c.l.b16 %v167
    %v588 = vunpack.c.h.b16 %v167
    %v589 = vunpack.c.l.b16 %v168
    %v590 = vunpack.c.h.b16 %v168
    %v591 = vunpack.c.l.b16 %v169
    %v592 = vunpack.c.h.b16 %v169
    %v593 = vunpack.c.l.b16 %v170
    %v594 = vunpack.c.h.b16 %v170
    %v595 = vunpack.c.l.b16 %v171
    %v596 = vunpack.c.h.b16 %v171
    %v597 = vunpack.c.l.b16 %v172
    %v598 = vunpack.c.h.b16 %v172
    %v599 = vunpack.c.l.b16 %v173
    %v600 = vunpack.c.h.b16 %v173
    %v601 = vunpack.c.l.b16 %v174
    %v602 = vunpack.c.h.b16 %v174
    %v603 = vunpack.c.l.b16 %v175
    %v604 = vunpack.c.h.b16 %v175
    %v605 = vunpack.c.l.b16 %v176
    %v606 = vunpack.c.h.b16 %v176
    %v607 = vunpack.c.l.b16 %v177
    %v608 = vunpack.c.h.b16 %v177
    %v609 = vunpack.c.l.b16 %v178
    %v610 = vunpack.c.h.b16 %v178
    %v611 = vunpack.c.l.b16 %v179
    %v612 = vunpack.c.h.b16 %v179
    %v613 = vunpack.c.l.b16 %v180
    %v614 = vunpack.c.h.b16 %v180
    %v615 = vunpack.c.l.b16 %v181
    %v616 = vunpack.c.h.b16 %v181
    %v617 = vunpack.c.l.b16 %v182
    %v618 = vunpack.c.h.b16 %v182
    %v619 = vunpack.c.l.b16 %v183
    %v620 = vunpack.c.h.b16 %v183
    %v621 = vunpack.c.l.b16 %v184
    %v622 = vunpack.c.h.b16 %v184
    %v623 = vunpack.c.l.b16 %v185
    %v624 = vunpack.c.h.b16 %v185
    %v625 = vunpack.c.l.b16 %v186
    %v626 = vunpack.c.h.b16 %v186
    %v627 = vunpack.c.l.b16 %v187
    %v628 = vunpack.c.h.b16 %v187
    %v629 = vunpack.c.l.b16 %v188
    %v630 = vunpack.c.h.b16 %v188
    %v631 = vunpack.c.l.b16 %v189
    %v632 = vunpack.c.h.b16 %v189
    %v633 = vunpack.c.l.b16 %v190
    %v634 = vunpack.c.h.b16 %v190
    %v635 = vunpack.c.l.b16 %v191
    %v636 = vunpack.c.h.b16 %v191
    %v637 = vunpack.c.l.b16 %v192
    %v638 = vunpack.c.h.b16 %v192
    %v639 = vunpack.c.l.b16 %v193
    %v640 = vunpack.c.h.b16 %v193
    %v641 = vunpack.c.l.b16 %v194
    %v642 = vunpack.c.h.b16 %v194
    %v643 = vunpack.c.l.b16 %v195
    %v644 = vunpack.c.h.b16 %v195
    %v645 = vunpack.c.l.b16 %v196
    %v646 = vunpack.c.h.b16 %v196
    %v647 = vunpack.c.l.b16 %v197
    %v648 = vunpack.c.h.b16 %v197
    %v649 = vunpack.c.l.b16 %v198
    %v650 = vunpack.c.h.b16 %v198
    %v651 = vunpack.c.l.b16 %v199
    %v652 = vunpack.c.h.b16 %v199
    %v653 = vunpack.c.l.b16 %v200
    %v654 = vunpack.c.h.b16 %v200
    %v655 = vunpack.c.l.b16 %v201
    %v656 = vunpack.c.h.b16 %v201
    %v657 = vunpack.c.l.b16 %v202
    %v658 = vunpack.c.h.b16 %v202
    %v659 = vunpack.c.l.b16 %v203
    %v660 = vunpack.c.h.b16 %v203
    %v661 = vunpack.c.l.b16 %v204
    %v662 = vunpack.c.h.b16 %v204
    %v663 = vunpack.c.l.b16 %v205
    %v664 = vunpack.c.h.b16 %v205
    %v665 = vunpack.c.l.b16 %v206
    %v666 = vunpack.c.h.b16 %v206
    %v667 = vunpack.c.l.b16 %v207
    %v668 = vunpack.c.h.b16 %v207
    %v669 = vunpack.c.l.b16 %v208
    %v670 = vunpack.c.h.b16 %v208
    %v671 = vunpack.c.l.b16 %v209
    %v672 = vunpack.c.h.b16 %v209
    %v673 = vunpack.c.l.b16 %v210
    %v674 = vunpack.c.h.b16 %v210
    %v675 = vunpack.c.l.b16 %v211
    %v676 = vunpack.c.h.b16 %v211
    %v677 = vunpack.c.l.b16 %v212
    %v678 = vunpack.c.h.b16 %v212
    %v679 = vunpack.c.l.b16 %v213
    %v680 = vunpack.c.h.b16 %v213
    %v681 = vunpack.c.l.b16 %v214
    %v682 = vunpack.c.h.b16 %v214
    %v683 = vunpack.c.l.b16 %v215
    %v684 = vunpack.c.h.b16 %v215
    %v685 = vunpack.c.l.b16 %v216
    %v686 = vunpack.c.h.b16 %v216
    %v687 = vunpack.c.l.b16 %v217
    %v688 = vunpack.c.h.b16 %v217
    %v689 = vunpack.c.l.b16 %v218
    %v690 = vunpack.c.h.b16 %v218
    %v691 = vunpack.c.l.b16 %v219
    %v692 = vunpack.c.h.b16 %v219
    %v693 = vunpack.c.l.b16 %v220
    %v694 = vunpack.c.h.b16 %v220
    %v695 = vunpack.c.l.b16 %v221
    %v696 = vunpack.c.h.b16 %v221
    %v697 = vunpack.c.l.b16 %v222
    %v698 = vunpack.c.h.b16 %v222
    %v699 = vunpack.c.l.b16 %v223
    %v700 = vunpack.c.h.b16 %v223
    %v701 = vunpack.c.l.b16 %v224
    %v702 = vunpack.c.h.b16 %v224
    %v703 = vunpack.c.l.b16 %v225
    %v704 = vunpack.c.h.b16 %v225
    %v705 = vunpack.c.l.b16 %v226
    %v706 = vunpack.c.h.b16 %v226
    %v707 = vunpack.c.l.b16 %v227
    %v708 = vunpack.c.h.b16 %v227
    %v709 = vunpack.c.l.b16 %v228
    %v710 = vunpack.c.h.b16 %v228
    %v711 = vunpack.c.l.b16 %v229
    %v712 = vunpack.c.h.b16 %v229
    %v713 = vunpack.c.l.b16 %v230
    %v714 = vunpack.c.h.b16 %v230
    %v715 = vunpack.c.l.b16 %v231
    %v716 = vunpack.c.h.b16 %v231
    %v717 = vunpack.c.l.b16 %v232
    %v718 = vunpack.c.h.b16 %v232
    %v719 = vunpack.c.l.b16 %v233
    %v720 = vunpack.c.h.b16 %v233
    %v721 = vunpack.c.l.b16 %v234
    %v722 = vunpack.c.h.b16 %v234
    %v723 = vunpack.c.l.b16 %v235
    %v724 = vunpack.c.h.b16 %v235
    %v725 = vunpack.c.l.b16 %v236
    %v726 = vunpack.c.h.b16 %v236
    %v727 = vunpack.c.l.b16 %v237
    %v728 = vunpack.c.h.b16 %v237
    %v729 = vunpack.c.l.b16 %v238
    %v730 = vunpack.c.h.b16 %v238
    %v731 = vunpack.c.l.b16 %v239
    %v732 = vunpack.c.h.b16 %v239
    %v733 = vunpack.c.l.b16 %v240
    %v734 = vunpack.c.h.b16 %v240
    %v735 = vunpack.c.l.b16 %v241
    %v736 = vunpack.c.h.b16 %v241
    %v737 = vunpack.c.l.b16 %v242
    %v738 = vunpack.c.h.b16 %v242
    %v739 = vunpack.c.l.b16 %v243
    %v740 = vunpack.c.h.b16 %v243
    %v741 = vunpack.c.l.b16 %v244
    %v742 = vunpack.c.h.b16 %v244
    %v743 = vunpack.c.l.b16 %v245
    %v744 = vunpack.c.h.b16 %v245
    %v745 = vunpack.c.l.b16 %v246
    %v746 = vunpack.c.h.b16 %v246
    %v747 = vunpack.c.l.b16 %v247
    %v748 = vunpack.c.h.b16 %v247
    %v749 = vunpack.c.l.b16 %v248
    %v750 = vunpack.c.h.b16 %v248
    %v751 = vunpack.c.l.b16 %v249
    %v752 = vunpack.c.h.b16 %v249
    %v753 = vunpack.c.l.b16 %v250
    %v754 = vunpack.c.h.b16 %v250
    %v755 = vunpack.c.l.b16 %v251
    %v756 = vunpack.c.h.b16 %v251
    %v757 = vunpack.c.l.b16 %v252
    %v758 = vunpack.c.h.b16 %v252
    %v759 = vunpack.c.l.b16 %v253
    %v760 = vunpack.c.h.b16 %v253
    %v761 = vunpack.c.l.b16 %v254
    %v762 = vunpack.c.h.b16 %v254
    %v763 = vunpack.c.l.b16 %v255
    %v764 = vunpack.c.h.b16 %v255
    %v765 = vunpack.c.l.b16 %v256
    %v766 = vunpack.c.h.b16 %v256
    %v767 = vunpack.c.l.b16 %v257
    %v768 = vunpack.c.h.b16 %v257
    %v769 = vunpack.c.l.b16 %v258
    %v770 = vunpack.c.h.b16 %v258
    %v771 = vunpack.c.l.b16 %v259
    %v772 = vunpack.c.h.b16 %v259
    %v773 = vunpack.c.l.b16 %v260
    %v774 = vunpack.c.h.b16 %v260
    %v775 = vunpack.c.l.b16 %v261
    %v776 = vunpack.c.h.b16 %v261
    %v777 = vunpack.c.l.b16 %v262
    %v778 = vunpack.c.h.b16 %v262
    %v779 = vunpack.c.l.b16 %v263
    %v780 = vunpack.c.h.b16 %v263
    %v781 = vunpack.c.l.b16 %v264
    %v782 = vunpack.c.h.b16 %v264
    %v783 = vunpack.c.l.b16 %v265
    %v784 = vunpack.c.h.b16 %v265
    %v785 = vunpack.c.l.b16 %v266
    %v786 = vunpack.c.h.b16 %v266
    %v787 = vunpack.c.l.b16 %v267
    %v788 = vunpack.c.h.b16 %v267
    %v789 = vunpack.c.l.b16 %v268
    %v790 = vunpack.c.h.b16 %v268
    %v791 = vunpack.c.l.b16 %v269
    %v792 = vunpack.c.h.b16 %v269
    %v793 = vunpack.c.l.b16 %v270
    %v794 = vunpack.c.h.b16 %v270
    %v795 = vunpack.c.l.b16 %v271
    %v796 = vunpack.c.h.b16 %v271
    %v797 = vunpack.c.l.b16 %v272
    %v798 = vunpack.c.h.b16 %v272
    %v799 = vunpack.c.l.b16 %v273
    %v800 = vunpack.c.h.b16 %v273
    %v801 = vunpack.c.l.b16 %v274
    %v802 = vunpack.c.h.b16 %v274
    %v803 = vunpack.c.l.b16 %v275
    %v804 = vunpack.c.h.b16 %v275
    %v805 = vunpack.c.l.b16 %v276
    %v806 = vunpack.c.h.b16 %v276
    %v807 = vunpack.c.l.b16 %v277
    %v808 = vunpack.c.h.b16 %v277
    %v809 = vunpack.c.l.b16 %v278
    %v810 = vunpack.c.h.b16 %v278
    %v811 = vunpack.c.l.b16 %v279
    %v812 = vunpack.c.h.b16 %v279
    %v813 = vunpack.c.l.b16 %v280
    %v814 = vunpack.c.h.b16 %v280
    %v815 = vunpack.c.l.b16 %v281
    %v816 = vunpack.c.h.b16 %v281
    %v817 = vunpack.c.l.b16 %v282
    %v818 = vunpack.c.h.b16 %v282
    %v819 = vunpack.c.l.b16 %v283
    %v820 = vunpack.c.h.b16 %v283
    %v821 = vunpack.c.l.b16 %v284
    %v822 = vunpack.c.h.b16 %v284
    %v823 = vunpack.c.l.b16 %v285
    %v824 = vunpack.c.h.b16 %v285
    %v825 = vunpack.c.l.b16 %v286
    %v826 = vunpack.c.h.b16 %v286
    %v827 = vunpack.c.l.b16 %v287
    %v828 = vunpack.c.h.b16 %v287
    %v829 = vunpack.c.l.b16 %v288
    %v830 = vunpack.c.h.b16 %v288
    %v831 = vunpack.c.l.b16 %v289
    %v832 = vunpack.c.h.b16 %v289
    %v833 = vunpack.c.l.b16 %v290
    %v834 = vunpack.c.h.b16 %v290
    %v835 = vunpack.c.l.b16 %v291
    %v836 = vunpack.c.h.b16 %v291
    %v837 = vunpack.c.l.b16 %v292
    %v838 = vunpack.c.h.b16 %v292
    %v839 = vunpack.c.l.b16 %v293
    %v840 = vunpack.c.h.b16 %v293
    %v841 = vunpack.c.l.b16 %v294
    %v842 = vunpack.c.h.b16 %v294
    %v843 = vunpack.c.l.b16 %v295
    %v844 = vunpack.c.h.b16 %v295
    %v845 = vunpack.c.l.b16 %v296
    %v846 = vunpack.c.h.b16 %v296
    %v847 = vunpack.c.l.b16 %v297
    %v848 = vunpack.c.h.b16 %v297
    %v849 = vunpack.c.l.b16 %v298
    %v850 = vunpack.c.h.b16 %v298
    %v851 = vunpack.c.l.b16 %v299
    %v852 = vunpack.c.h.b16 %v299
    %v853 = vunpack.c.l.b16 %v300
    %v854 = vunpack.c.h.b16 %v300
    %v855 = vunpack.c.l.b16 %v301
    %v856 = vunpack.c.h.b16 %v301
    %v857 = vunpack.c.l.b16 %v302
    %v858 = vunpack.c.h.b16 %v302
    %v859 = vunpack.c.l.b16 %v303
    %v860 = vunpack.c.h.b16 %v303
    %v861 = vunpack.c.l.b16 %v304
    %v862 = vunpack.c.h.b16 %v304
    %v863 = vunpack.c.l.b16 %v305
    %v864 = vunpack.c.h.b16 %v305
    %v865 = vunpack.c.l.b16 %v306
    %v866 = vunpack.c.h.b16 %v306
    %v867 = vunpack.c.l.b16 %v307
    %v868 = vunpack.c.h.b16 %v307
    %v869 = vunpack.c.l.b16 %v308
    %v870 = vunpack.c.h.b16 %v308
    %v871 = vunpack.c.l.b16 %v309
    %v872 = vunpack.c.h.b16 %v309
    %v873 = vunpack.c.l.b16 %v310
    %v874 = vunpack.c.h.b16 %v310
    %v875 = vunpack.c.l.b16 %v311
    %v876 = vunpack.c.h.b16 %v311
    %v877 = vunpack.c.l.b16 %v312
    %v878 = vunpack.c.h.b16 %v312
    %v879 = vunpack.c.l.b16 %v313
    %v880 = vunpack.c.h.b16 %v313
    %v881 = vunpack.c.l.b16 %v314
    %v882 = vunpack.c.h.b16 %v314
    %v883 = vunpack.c.l.b16 %v315
    %v884 = vunpack.c.h.b16 %v315
    %v885 = vunpack.c.l.b16 %v316
    %v886 = vunpack.c.h.b16 %v316
    %v887 = vunpack.c.l.b16 %v317
    %v888 = vunpack.c.h.b16 %v317
    %v889 = vunpack.c.l.b16 %v318
    %v890 = vunpack.c.h.b16 %v318
    %v891 = vunpack.c.l.b16 %v319
    %v892 = vunpack.c.h.b16 %v319
    %v893 = vunpack.c.l.b16 %v320
    %v894 = vunpack.c.h.b16 %v320
    %v895 = vunpack.c.l.b16 %v321
    %v896 = vunpack.c.h.b16 %v321
    %v897 = vunpack.c.l.b16 %v322
    %v898 = vunpack.c.h.b16 %v322
    %v899 = vunpack.c.l.b16 %v323
    %v900 = vunpack.c.h.b16 %v323
    %v901 = vunpack.c.l.b16 %v324
    %v902 = vunpack.c.h.b16 %v324
    %v903 = vunpack.c.l.b16 %v325
    %v904 = vunpack.c.h.b16 %v325
    %v905 = vunpack.c.l.b16 %v326
    %v906 = vunpack.c.h.b16 %v326
    %v907 = vunpack.c.l.b16 %v327
    %v908 = vunpack.c.h.b16 %v327
    %v909 = vunpack.c.l.b16 %v328
    %v910 = vunpack.c.h.b16 %v328
    %v911 = vunpack.c.l.b16 %v329
    %v912 = vunpack.c.h.b16 %v329
    %v913 = vunpack.c.l.b16 %v330
    %v914 = vunpack.c.h.b16 %v330
    %v915 = vunpack.c.l.b16 %v331
    %v916 = vunpack.c.h.b16 %v331
    %v917 = vunpack.c.l.b16 %v332
    %v918 = vunpack.c.h.b16 %v332
    %v919 = vunpack.c.l.b16 %v333
    %v920 = vunpack.c.h.b16 %v333
    %v921 = vunpack.c.l.b16 %v334
    %v922 = vunpack.c.h.b16 %v334
    %v923 = vunpack.c.l.b16 %v335
    %v924 = vunpack.c.h.b16 %v335
    %v925 = vunpack.c.l.b16 %v336
    %v926 = vunpack.c.h.b16 %v336
    %v927 = vunpack.c.l.b16 %v337
    %v928 = vunpack.c.h.b16 %v337
    %v929 = vunpack.c.l.b16 %v338
    %v930 = vunpack.c.h.b16 %v338
    %v931 = vunpack.c.l.b16 %v339
    %v932 = vunpack.c.h.b16 %v339
    %v933 = vunpack.c.l.b16 %v340
    %v934 = vunpack.c.h.b16 %v340
    %v935 = vunpack.c.l.b16 %v341
    %v936 = vunpack.c.h.b16 %v341
    %v937 = vunpack.c.l.b16 %v342
    %v938 = vunpack.c.h.b16 %v342
    %v939 = vunpack.c.l.b16 %v343
    %v940 = vunpack.c.h.b16 %v343
    %v941 = vunpack.c.l.b16 %v344
    %v942 = vunpack.c.h.b16 %v344
    %v943 = vunpack.c.l.b16 %v345
    %v944 = vunpack.c.h.b16 %v345
    %v945 = vunpack.c.l.b16 %v346
    %v946 = vunpack.c.h.b16 %v346
    %v947 = vunpack.c.l.b16 %v347
    %v948 = vunpack.c.h.b16 %v347
    %v949 = vunpack.c.l.b16 %v348
    %v950 = vunpack.c.h.b16 %v348
    %v951 = vunpack.c.l.b16 %v349
    %v952 = vunpack.c.h.b16 %v349
    %v953 = vunpack.c.l.b16 %v350
    %v954 = vunpack.c.h.b16 %v350
    %v955 = vunpack.c.l.b16 %v351
    %v956 = vunpack.c.h.b16 %v351
    %v957 = vpack.c.b16 %v581, %v573
    %v958 = vpack.c.b16 %v582, %v574
    %v959 = vpack.c.b16 %v583, %v575
    %v960 = vpack.c.b16 %v584, %v576
    %v961 = vpack.c.b16 %v585, %v577
    %v962 = vpack.c.b16 %v586, %v578
    %v963 = vpack.c.b16 %v587, %v579
    %v964 = vpack.c.b16 %v588, %v580
    %v965 = vpack.c.b16 %v597, %v589
    %v966 = vpack.c.b16 %v598, %v590
    %v967 = vpack.c.b16 %v599, %v591
    %v968 = vpack.c.b16 %v600, %v592
    %v969 = vpack.c.b16 %v601, %v593
    %v970 = vpack.c.b16 %v602, %v594
    %v971 = vpack.c.b16 %v603, %v595
    %v972 = vpack.c.b16 %v604, %v596
    %v973 = vpack.c.b16 %v613, %v605
    %v974 = vpack.c.b16 %v614, %v606
    %v975 = vpack.c.b16 %v615, %v607
    %v976 = vpack.c.b16 %v616, %v608
    %v977 = vpack.c.b16 %v617, %v609
    %v978 = vpack.c.b16 %v618, %v610
    %v979 = vpack.c.b16 %v619, %v611
    %v980 = vpack.c.b16 %v620, %v612
    %v981 = vpack.c.b16 %v629, %v621
    %v982 = vpack.c.b16 %v630, %v622
    %v983 = vpack.c.b16 %v631, %v623
    %v984 = vpack.c.b16 %v632, %v624
    %v985 = vpack.c.b16 %v633, %v625
    %v986 = vpack.c.b16 %v634, %v626
    %v987 = vpack.c.b16 %v635, %v627
    %v988 = vpack.c.b16 %v636, %v628
    %v989 = vpack.c.b16 %v645, %v637
    %v990 = vpack.c.b16 %v646, %v638
    %v991 = vpack.c.b16 %v647, %v639
    %v992 = vpack.c.b16 %v648, %v640
    %v993 = vpack.c.b16 %v649, %v641
    %v994 = vpack.c.b16 %v650, %v642
    %v995 = vpack.c.b16 %v651, %v643
    %v996 = vpack.c.b16 %v652, %v644
    %v997 = vpack.c.b16 %v661, %v653
    %v998 = vpack.c.b16 %v662, %v654
    %v999 = vpack.c.b16 %v663, %v655
    %v1000 = vpack.c.b16 %v664, %v656
    %v1001 = vpack.c.b16 %v665, %v657
    %v1002 = vpack.c.b16 %v666, %v658
    %v1003 = vpack.c.b16 %v667, %v659
    %v1004 = vpack.c.b16 %v668, %v660
    %v1005 = vpack.c.b16 %v677, %v669
    %v1006 = vpack.c.b16 %v678, %v670
    %v1007 = vpack.c.b16 %v679, %v671
    %v1008 = vpack.c.b16 %v680, %v672
    %v1009 = vpack.c.b16 %v681, %v673
    %v1010 = vpack.c.b16 %v682, %v674
    %v1011 = vpack.c.b16 %v683, %v675
    %v1012 = vpack.c.b16 %v684, %v676
    %v1013 = vpack.c.b16 %v693, %v685
    %v1014 = vpack.c.b16 %v694, %v686
    %v1015 = vpack.c.b16 %v695, %v687
    %v1016 = vpack.c.b16 %v696, %v688
    %v1017 = vpack.c.b16 %v697, %v689
    %v1018 = vpack.c.b16 %v698, %v690
    %v1019 = vpack.c.b16 %v699, %v691
    %v1020 = vpack.c.b16 %v700, %v692
    %v1021 = vpack.c.b16 %v709, %v701
    %v1022 = vpack.c.b16 %v710, %v702
    %v1023 = vpack.c.b16 %v711, %v703
    %v1024 = vpack.c.b16 %v712, %v704
    %v1025 = vpack.c.b16 %v713, %v705
    %v1026 = vpack.c.b16 %v714, %v706
    %v1027 = vpack.c.b16 %v715, %v707
    %v1028 = vpack.c.b16 %v716, %v708
    %v1029 = vpack.c.b16 %v725, %v717
    %v1030 = vpack.c.b16 %v726, %v718
    %v1031 = vpack.c.b16 %v727, %v719
    %v1032 = vpack.c.b16 %v728, %v720
    %v1033 = vpack.c.b16 %v729, %v721
    %v1034 = vpack.c.b16 %v730, %v722
    %v1035 = vpack.c.b16 %v731, %v723
    %v1036 = vpack.c.b16 %v732, %v724
    %v1037 = vpack.c.b16 %v741, %v733
    %v1038 = vpack.c.b16 %v742, %v734
    %v1039 = vpack.c.b16 %v743, %v735
    %v1040 = vpack.c.b16 %v744, %v736
    %v1041 = vpack.c.b16 %v745, %v737
    %v1042 = vpack.c.b16 %v746, %v738
    %v1043 = vpack.c.b16 %v747, %v739
    %v1044 = vpack.c.b16 %v748, %v740
    %v1045 = vpack.c.b16 %v757, %v749
    %v1046 = vpack.c.b16 %v758, %v750
    %v1047 = vpack.c.b16 %v759, %v751
    %v1048 = vpack.c.b16 %v760, %v752
    %v1049 = vpack.c.b16 %v761, %v753
    %v1050 = vpack.c.b16 %v762, %v754
    %v1051 = vpack.c.b16 %v763, %v755
    %v1052 = vpack.c.b16 %v764, %v756
    %v1053 = vpack.c.b16 %v773, %v765
    %v1054 = vpack.c.b16 %v774, %v766
    %v1055 = vpack.c.b16 %v775, %v767
    %v1056 = vpack.c.b16 %v776, %v768
    %v1057 = vpack.c.b16 %v777, %v769
    %v1058 = vpack.c.b16 %v778, %v770
    %v1059 = vpack.c.b16 %v779, %v771
    %v1060 = vpack.c.b16 %v780, %v772
    %v1061 = vpack.c.b16 %v789, %v781
    %v1062 = vpack.c.b16 %v790, %v782
    %v1063 = vpack.c.b16 %v791, %v783
    %v1064 = vpack.c.b16 %v792, %v784
    %v1065 = vpack.c.b16 %v793, %v785
    %v1066 = vpack.c.b16 %v794, %v786
    %v1067 = vpack.c.b16 %v795, %v787
    %v1068 = vpack.c.b16 %v796, %v788
    %v1069 = vpack.c.b16 %v805, %v797
    %v1070 = vpack.c.b16 %v806, %v798
    %v1071 = vpack.c.b16 %v807, %v799
    %v1072 = vpack.c.b16 %v808, %v800
    %v1073 = vpack.c.b16 %v809, %v801
    %v1074 = vpack.c.b16 %v810, %v802
    %v1075 = vpack.c.b16 %v811, %v803
    %v1076 = vpack.c.b16 %v812, %v804
    %v1077 = vpack.c.b16 %v821, %v813
    %v1078 = vpack.c.b16 %v822, %v814
    %v1079 = vpack.c.b16 %v823, %v815
    %v1080 = vpack.c.b16 %v824, %v816
    %v1081 = vpack.c.b16 %v825, %v817
    %v1082 = vpack.c.b16 %v826, %v818
    %v1083 = vpack.c.b16 %v827, %v819
    %v1084 = vpack.c.b16 %v828, %v820
    %v1085 = vpack.c.b16 %v837, %v829
    %v1086 = vpack.c.b16 %v838, %v830
    %v1087 = vpack.c.b16 %v839, %v831
    %v1088 = vpack.c.b16 %v840, %v832
    %v1089 = vpack.c.b16 %v841, %v833
    %v1090 = vpack.c.b16 %v842, %v834
    %v1091 = vpack.c.b16 %v843, %v835
    %v1092 = vpack.c.b16 %v844, %v836
    %v1093 = vpack.c.b16 %v853, %v845
    %v1094 = vpack.c.b16 %v854, %v846
    %v1095 = vpack.c.b16 %v855, %v847
    %v1096 = vpack.c.b16 %v856, %v848
    %v1097 = vpack.c.b16 %v857, %v849
    %v1098 = vpack.c.b16 %v858, %v850
    %v1099 = vpack.c.b16 %v859, %v851
    %v1100 = vpack.c.b16 %v860, %v852
    %v1101 = vpack.c.b16 %v869, %v861
    %v1102 = vpack.c.b16 %v870, %v862
    %v1103 = vpack.c.b16 %v871, %v863
    %v1104 = vpack.c.b16 %v872, %v864
    %v1105 = vpack.c.b16 %v873, %v865
    %v1106 = vpack.c.b16 %v874, %v866
    %v1107 = vpack.c.b16 %v875, %v867
    %v1108 = vpack.c.b16 %v876, %v868
    %v1109 = vpack.c.b16 %v885, %v877
    %v1110 = vpack.c.b16 %v886, %v878
    %v1111 = vpack.c.b16 %v887, %v879
    %v1112 = vpack.c.b16 %v888, %v880
    %v1113 = vpack.c.b16 %v889, %v881
    %v1114 = vpack.c.b16 %v890, %v882
    %v1115 = vpack.c.b16 %v891, %v883
    %v1116 = vpack.c.b16 %v892, %v884
    %v1117 = vpack.c.b16 %v901, %v893
    %v1118 = vpack.c.b16 %v902, %v894
    %v1119 = vpack.c.b16 %v903, %v895
    %v1120 = vpack.c.b16 %v904, %v896
    %v1121 = vpack.c.b16 %v905, %v897
    %v1122 = vpack.c.b16 %v906, %v898
    %v1123 = vpack.c.b16 %v907, %v899
    %v1124 = vpack.c.b16 %v908, %v900
    %v1125 = vpack.c.b16 %v917, %v909
    %v1126 = vpack.c.b16 %v918, %v910
    %v1127 = vpack.c.b16 %v919, %v911
    %v1128 = vpack.c.b16 %v920, %v912
    %v1129 = vpack.c.b16 %v921, %v913
    %v1130 = vpack.c.b16 %v922, %v914
    %v1131 = vpack.c.b16 %v923, %v915
    %v1132 = vpack.c.b16 %v924, %v916
    %v1133 = vpack.c.b16 %v933, %v925
    %v1134 = vpack.c.b16 %v934, %v926
    %v1135 = vpack.c.b16 %v935, %v927
    %v1136 = vpack.c.b16 %v936, %v928
    %v1137 = vpack.c.b16 %v937, %v929
    %v1138 = vpack.c.b16 %v938, %v930
    %v1139 = vpack.c.b16 %v939, %v931
    %v1140 = vpack.c.b16 %v940, %v932
    %v1141 = vpack.c.b16 %v949, %v941
    %v1142 = vpack.c.b16 %v950, %v942
    %v1143 = vpack.c.b16 %v951, %v943
    %v1144 = vpack.c.b16 %v952, %v944
    %v1145 = vpack.c.b16 %v953, %v945
    %v1146 = vpack.c.b16 %v954, %v946
    %v1147 = vpack.c.b16 %v955, %v947
    %v1148 = vpack.c.b16 %v956, %v948
    %1341 = vmatpush.bf16.msra.mxu0 %v1013
    %1342 = vmatpush.bf16.msra.mxu0 %v1005
    %1343 = vmatpush.bf16.msra.mxu0 %v997
    %1344 = vmatpush.bf16.msra.mxu0 %v989
    %1345 = vmatpush.bf16.msra.mxu0 %v981
    %1346 = vmatpush.bf16.msra.mxu0 %v973
    %1347 = vmatpush.bf16.msra.mxu0 %v965
    %1348 = vmatpush.bf16.msra.mxu0 %v957
    %1349 = vmatmul.bf16.gmra.mxu0 %v375
    %v1350 = vpop.f32.mrf.mxu0
    %v1351 = vadd.f32 %v354, %v1350
    %v1352 = vpop.f32.mrf.mxu0
    %1353 = vdwg.mxu0
    %1354 = vmatpush.bf16.msra.mxu0 %v1077
    %1355 = vmatpush.bf16.msra.mxu0 %v1069
    %1356 = vmatpush.bf16.msra.mxu0 %v1061
    %1357 = vmatpush.bf16.msra.mxu0 %v1053
    %1358 = vmatpush.bf16.msra.mxu0 %v1045
    %1359 = vmatpush.bf16.msra.mxu0 %v1037
    %1360 = vmatpush.bf16.msra.mxu0 %v1029
    %1361 = vmatpush.bf16.msra.mxu0 %v1021
    %1362 = vmatmul.bf16.gmra.mxu0 %v376
    %v1363 = vpop.f32.mrf.mxu0
    %v1364 = vadd.f32 %v1351, %v1363
    %v1365 = vpop.f32.mrf.mxu0
    %1366 = vdwg.mxu0
    %1367 = vmatpush.bf16.msra.mxu0 %v1141
    %1368 = vmatpush.bf16.msra.mxu0 %v1133
    %1369 = vmatpush.bf16.msra.mxu0 %v1125
    %1370 = vmatpush.bf16.msra.mxu0 %v1117
    %1371 = vmatpush.bf16.msra.mxu0 %v1109
    %1372 = vmatpush.bf16.msra.mxu0 %v1101
    %1373 = vmatpush.bf16.msra.mxu0 %v1093
    %1374 = vmatpush.bf16.msra.mxu0 %v1085
    %1375 = vmatmul.bf16.gmra.mxu0 %v377
    %v1376 = vpop.f32.mrf.mxu0
    %v1377 = vadd.f32 %v1364, %v1376
    %v1378 = vpop.f32.mrf.mxu0
    %1379 = vdwg.mxu0
    %1380 = vmatpush.bf16.msra.mxu0 %v1014
    %1381 = vmatpush.bf16.msra.mxu0 %v1006
    %1382 = vmatpush.bf16.msra.mxu0 %v998
    %1383 = vmatpush.bf16.msra.mxu0 %v990
    %1384 = vmatpush.bf16.msra.mxu0 %v982
    %1385 = vmatpush.bf16.msra.mxu0 %v974
    %1386 = vmatpush.bf16.msra.mxu0 %v966
    %1387 = vmatpush.bf16.msra.mxu0 %v958
    %1388 = vmatmul.bf16.gmra.mxu0 %v375
    %v1389 = vpop.f32.mrf.mxu0
    %v1390 = vadd.f32 %v355, %v1389
    %v1391 = vpop.f32.mrf.mxu0
    %1392 = vdwg.mxu0
    %1393 = vmatpush.bf16.msra.mxu0 %v1078
    %1394 = vmatpush.bf16.msra.mxu0 %v1070
    %1395 = vmatpush.bf16.msra.mxu0 %v1062
    %1396 = vmatpush.bf16.msra.mxu0 %v1054
    %1397 = vmatpush.bf16.msra.mxu0 %v1046
    %1398 = vmatpush.bf16.msra.mxu0 %v1038
    %1399 = vmatpush.bf16.msra.mxu0 %v1030
    %1400 = vmatpush.bf16.msra.mxu0 %v1022
    %1401 = vmatmul.bf16.gmra.mxu0 %v376
    %v1402 = vpop.f32.mrf.mxu0
    %v1403 = vadd.f32 %v1390, %v1402
    %v1404 = vpop.f32.mrf.mxu0
    %1405 = vdwg.mxu0
    %1406 = vmatpush.bf16.msra.mxu0 %v1142
    %1407 = vmatpush.bf16.msra.mxu0 %v1134
    %1408 = vmatpush.bf16.msra.mxu0 %v1126
    %1409 = vmatpush.bf16.msra.mxu0 %v1118
    %1410 = vmatpush.bf16.msra.mxu0 %v1110
    %1411 = vmatpush.bf16.msra.mxu0 %v1102
    %1412 = vmatpush.bf16.msra.mxu0 %v1094
    %1413 = vmatpush.bf16.msra.mxu0 %v1086
    %1414 = vmatmul.bf16.gmra.mxu0 %v377
    %v1415 = vpop.f32.mrf.mxu0
    %v1416 = vadd.f32 %v1403, %v1415
    %v1417 = vpop.f32.mrf.mxu0
    %1418 = vdwg.mxu0
    %1419 = vmatpush.bf16.msra.mxu0 %v1015
    %1420 = vmatpush.bf16.msra.mxu0 %v1007
    %1421 = vmatpush.bf16.msra.mxu0 %v999
    %1422 = vmatpush.bf16.msra.mxu0 %v991
    %1423 = vmatpush.bf16.msra.mxu0 %v983
    %1424 = vmatpush.bf16.msra.mxu0 %v975
    %1425 = vmatpush.bf16.msra.mxu0 %v967
    %1426 = vmatpush.bf16.msra.mxu0 %v959
    %1427 = vmatmul.bf16.gmra.mxu0 %v375
    %v1428 = vpop.f32.mrf.mxu0
    %v1429 = vadd.f32 %v356, %v1428
    %v1430 = vpop.f32.mrf.mxu0
    %1431 = vdwg.mxu0
    %1432 = vmatpush.bf16.msra.mxu0 %v1079
    %1433 = vmatpush.bf16.msra.mxu0 %v1071
    %1434 = vmatpush.bf16.msra.mxu0 %v1063
    %1435 = vmatpush.bf16.msra.mxu0 %v1055
    %1436 = vmatpush.bf16.msra.mxu0 %v1047
    %1437 = vmatpush.bf16.msra.mxu0 %v1039
    %1438 = vmatpush.bf16.msra.mxu0 %v1031
    %1439 = vmatpush.bf16.msra.mxu0 %v1023
    %1440 = vmatmul.bf16.gmra.mxu0 %v376
    %v1441 = vpop.f32.mrf.mxu0
    %v1442 = vadd.f32 %v1429, %v1441
    %v1443 = vpop.f32.mrf.mxu0
    %1444 = vdwg.mxu0
    %1445 = vmatpush.bf16.msra.mxu0 %v1143
    %1446 = vmatpush.bf16.msra.mxu0 %v1135
    %1447 = vmatpush.bf16.msra.mxu0 %v1127
    %1448 = vmatpush.bf16.msra.mxu0 %v1119
    %1449 = vmatpush.bf16.msra.mxu0 %v1111
    %1450 = vmatpush.bf16.msra.mxu0 %v1103
    %1451 = vmatpush.bf16.msra.mxu0 %v1095
    %1452 = vmatpush.bf16.msra.mxu0 %v1087
    %1453 = vmatmul.bf16.gmra.mxu0 %v377
    %v1454 = vpop.f32.mrf.mxu0
    %v1455 = vadd.f32 %v1442, %v1454
    %v1456 = vpop.f32.mrf.mxu0
    %1457 = vdwg.mxu0
    %1458 = vmatpush.bf16.msra.mxu0 %v1016
    %1459 = vmatpush.bf16.msra.mxu0 %v1008
    %1460 = vmatpush.bf16.msra.mxu0 %v1000
    %1461 = vmatpush.bf16.msra.mxu0 %v992
    %1462 = vmatpush.bf16.msra.mxu0 %v984
    %1463 = vmatpush.bf16.msra.mxu0 %v976
    %1464 = vmatpush.bf16.msra.mxu0 %v968
    %1465 = vmatpush.bf16.msra.mxu0 %v960
    %1466 = vmatmul.bf16.gmra.mxu0 %v375
    %v1467 = vpop.f32.mrf.mxu0
    %v1468 = vadd.f32 %v357, %v1467
    %v1469 = vpop.f32.mrf.mxu0
    %1470 = vdwg.mxu0
    %1471 = vmatpush.bf16.msra.mxu0 %v1080
    %1472 = vmatpush.bf16.msra.mxu0 %v1072
    %1473 = vmatpush.bf16.msra.mxu0 %v1064
    %1474 = vmatpush.bf16.msra.mxu0 %v1056
    %1475 = vmatpush.bf16.msra.mxu0 %v1048
    %1476 = vmatpush.bf16.msra.mxu0 %v1040
    %1477 = vmatpush.bf16.msra.mxu0 %v1032
    %1478 = vmatpush.bf16.msra.mxu0 %v1024
    %1479 = vmatmul.bf16.gmra.mxu0 %v376
    %v1480 = vpop.f32.mrf.mxu0
    %v1481 = vadd.f32 %v1468, %v1480
    %v1482 = vpop.f32.mrf.mxu0
    %1483 = vdwg.mxu0
    %1484 = vmatpush.bf16.msra.mxu0 %v1144
    %1485 = vmatpush.bf16.msra.mxu0 %v1136
    %1486 = vmatpush.bf16.msra.mxu0 %v1128
    %1487 = vmatpush.bf16.msra.mxu0 %v1120
    %1488 = vmatpush.bf16.msra.mxu0 %v1112
    %1489 = vmatpush.bf16.msra.mxu0 %v1104
    %1490 = vmatpush.bf16.msra.mxu0 %v1096
    %1491 = vmatpush.bf16.msra.mxu0 %v1088
    %1492 = vmatmul.bf16.gmra.mxu0 %v377
    %v1493 = vpop.f32.mrf.mxu0
    %v1494 = vadd.f32 %v1481, %v1493
    %v1495 = vpop.f32.mrf.mxu0
    %1496 = vdwg.mxu0
    %1497 = vmatpush.bf16.msra.mxu0 %v1017
    %1498 = vmatpush.bf16.msra.mxu0 %v1009
    %1499 = vmatpush.bf16.msra.mxu0 %v1001
    %1500 = vmatpush.bf16.msra.mxu0 %v993
    %1501 = vmatpush.bf16.msra.mxu0 %v985
    %1502 = vmatpush.bf16.msra.mxu0 %v977
    %1503 = vmatpush.bf16.msra.mxu0 %v969
    %1504 = vmatpush.bf16.msra.mxu0 %v961
    %1505 = vmatmul.bf16.gmra.mxu0 %v375
    %v1506 = vpop.f32.mrf.mxu0
    %v1507 = vadd.f32 %v358, %v1506
    %v1508 = vpop.f32.mrf.mxu0
    %1509 = vdwg.mxu0
    %1510 = vmatpush.bf16.msra.mxu0 %v1081
    %1511 = vmatpush.bf16.msra.mxu0 %v1073
    %1512 = vmatpush.bf16.msra.mxu0 %v1065
    %1513 = vmatpush.bf16.msra.mxu0 %v1057
    %1514 = vmatpush.bf16.msra.mxu0 %v1049
    %1515 = vmatpush.bf16.msra.mxu0 %v1041
    %1516 = vmatpush.bf16.msra.mxu0 %v1033
    %1517 = vmatpush.bf16.msra.mxu0 %v1025
    %1518 = vmatmul.bf16.gmra.mxu0 %v376
    %v1519 = vpop.f32.mrf.mxu0
    %v1520 = vadd.f32 %v1507, %v1519
    %v1521 = vpop.f32.mrf.mxu0
    %1522 = vdwg.mxu0
    %1523 = vmatpush.bf16.msra.mxu0 %v1145
    %1524 = vmatpush.bf16.msra.mxu0 %v1137
    %1525 = vmatpush.bf16.msra.mxu0 %v1129
    %1526 = vmatpush.bf16.msra.mxu0 %v1121
    %1527 = vmatpush.bf16.msra.mxu0 %v1113
    %1528 = vmatpush.bf16.msra.mxu0 %v1105
    %1529 = vmatpush.bf16.msra.mxu0 %v1097
    %1530 = vmatpush.bf16.msra.mxu0 %v1089
    %1531 = vmatmul.bf16.gmra.mxu0 %v377
    %v1532 = vpop.f32.mrf.mxu0
    %v1533 = vadd.f32 %v1520, %v1532
    %v1534 = vpop.f32.mrf.mxu0
    %1535 = vdwg.mxu0
    %1536 = vmatpush.bf16.msra.mxu0 %v1018
    %1537 = vmatpush.bf16.msra.mxu0 %v1010
    %1538 = vmatpush.bf16.msra.mxu0 %v1002
    %1539 = vmatpush.bf16.msra.mxu0 %v994
    %1540 = vmatpush.bf16.msra.mxu0 %v986
    %1541 = vmatpush.bf16.msra.mxu0 %v978
    %1542 = vmatpush.bf16.msra.mxu0 %v970
    %1543 = vmatpush.bf16.msra.mxu0 %v962
    %1544 = vmatmul.bf16.gmra.mxu0 %v375
    %v1545 = vpop.f32.mrf.mxu0
    %v1546 = vadd.f32 %v359, %v1545
    %v1547 = vpop.f32.mrf.mxu0
    %1548 = vdwg.mxu0
    %1549 = vmatpush.bf16.msra.mxu0 %v1082
    %1550 = vmatpush.bf16.msra.mxu0 %v1074
    %1551 = vmatpush.bf16.msra.mxu0 %v1066
    %1552 = vmatpush.bf16.msra.mxu0 %v1058
    %1553 = vmatpush.bf16.msra.mxu0 %v1050
    %1554 = vmatpush.bf16.msra.mxu0 %v1042
    %1555 = vmatpush.bf16.msra.mxu0 %v1034
    %1556 = vmatpush.bf16.msra.mxu0 %v1026
    %1557 = vmatmul.bf16.gmra.mxu0 %v376
    %v1558 = vpop.f32.mrf.mxu0
    %v1559 = vadd.f32 %v1546, %v1558
    %v1560 = vpop.f32.mrf.mxu0
    %1561 = vdwg.mxu0
    %1562 = vmatpush.bf16.msra.mxu0 %v1146
    %1563 = vmatpush.bf16.msra.mxu0 %v1138
    %1564 = vmatpush.bf16.msra.mxu0 %v1130
    %1565 = vmatpush.bf16.msra.mxu0 %v1122
    %1566 = vmatpush.bf16.msra.mxu0 %v1114
    %1567 = vmatpush.bf16.msra.mxu0 %v1106
    %1568 = vmatpush.bf16.msra.mxu0 %v1098
    %1569 = vmatpush.bf16.msra.mxu0 %v1090
    %1570 = vmatmul.bf16.gmra.mxu0 %v377
    %v1571 = vpop.f32.mrf.mxu0
    %v1572 = vadd.f32 %v1559, %v1571
    %v1573 = vpop.f32.mrf.mxu0
    %1574 = vdwg.mxu0
    %1575 = vmatpush.bf16.msra.mxu0 %v1019
    %1576 = vmatpush.bf16.msra.mxu0 %v1011
    %1577 = vmatpush.bf16.msra.mxu0 %v1003
    %1578 = vmatpush.bf16.msra.mxu0 %v995
    %1579 = vmatpush.bf16.msra.mxu0 %v987
    %1580 = vmatpush.bf16.msra.mxu0 %v979
    %1581 = vmatpush.bf16.msra.mxu0 %v971
    %1582 = vmatpush.bf16.msra.mxu0 %v963
    %1583 = vmatmul.bf16.gmra.mxu0 %v375
    %v1584 = vpop.f32.mrf.mxu0
    %v1585 = vadd.f32 %v360, %v1584
    %v1586 = vpop.f32.mrf.mxu0
    %1587 = vdwg.mxu0
    %1588 = vmatpush.bf16.msra.mxu0 %v1083
    %1589 = vmatpush.bf16.msra.mxu0 %v1075
    %1590 = vmatpush.bf16.msra.mxu0 %v1067
    %1591 = vmatpush.bf16.msra.mxu0 %v1059
    %1592 = vmatpush.bf16.msra.mxu0 %v1051
    %1593 = vmatpush.bf16.msra.mxu0 %v1043
    %1594 = vmatpush.bf16.msra.mxu0 %v1035
    %1595 = vmatpush.bf16.msra.mxu0 %v1027
    %1596 = vmatmul.bf16.gmra.mxu0 %v376
    %v1597 = vpop.f32.mrf.mxu0
    %v1598 = vadd.f32 %v1585, %v1597
    %v1599 = vpop.f32.mrf.mxu0
    %1600 = vdwg.mxu0
    %1601 = vmatpush.bf16.msra.mxu0 %v1147
    %1602 = vmatpush.bf16.msra.mxu0 %v1139
    %1603 = vmatpush.bf16.msra.mxu0 %v1131
    %1604 = vmatpush.bf16.msra.mxu0 %v1123
    %1605 = vmatpush.bf16.msra.mxu0 %v1115
    %1606 = vmatpush.bf16.msra.mxu0 %v1107
    %1607 = vmatpush.bf16.msra.mxu0 %v1099
    %1608 = vmatpush.bf16.msra.mxu0 %v1091
    %1609 = vmatmul.bf16.gmra.mxu0 %v377
    %v1610 = vpop.f32.mrf.mxu0
    %v1611 = vadd.f32 %v1598, %v1610
    %v1612 = vpop.f32.mrf.mxu0
    %1613 = vdwg.mxu0
    %1614 = vmatpush.bf16.msra.mxu0 %v1020
    %1615 = vmatpush.bf16.msra.mxu0 %v1012
    %1616 = vmatpush.bf16.msra.mxu0 %v1004
    %1617 = vmatpush.bf16.msra.mxu0 %v996
    %1618 = vmatpush.bf16.msra.mxu0 %v988
    %1619 = vmatpush.bf16.msra.mxu0 %v980
    %1620 = vmatpush.bf16.msra.mxu0 %v972
    %1621 = vmatpush.bf16.msra.mxu0 %v964
    %1622 = vmatmul.bf16.gmra.mxu0 %v375
    %v1623 = vpop.f32.mrf.mxu0
    %v1624 = vadd.f32 %v361, %v1623
    %v1625 = vpop.f32.mrf.mxu0
    %1626 = vdwg.mxu0
    %1627 = vmatpush.bf16.msra.mxu0 %v1084
    %1628 = vmatpush.bf16.msra.mxu0 %v1076
    %1629 = vmatpush.bf16.msra.mxu0 %v1068
    %1630 = vmatpush.bf16.msra.mxu0 %v1060
    %1631 = vmatpush.bf16.msra.mxu0 %v1052
    %1632 = vmatpush.bf16.msra.mxu0 %v1044
    %1633 = vmatpush.bf16.msra.mxu0 %v1036
    %1634 = vmatpush.bf16.msra.mxu0 %v1028
    %1635 = vmatmul.bf16.gmra.mxu0 %v376
    %v1636 = vpop.f32.mrf.mxu0
    %v1637 = vadd.f32 %v1624, %v1636
    %v1638 = vpop.f32.mrf.mxu0
    %1639 = vdwg.mxu0
    %1640 = vmatpush.bf16.msra.mxu0 %v1148
    %1641 = vmatpush.bf16.msra.mxu0 %v1140
    %1642 = vmatpush.bf16.msra.mxu0 %v1132
    %1643 = vmatpush.bf16.msra.mxu0 %v1124
    %1644 = vmatpush.bf16.msra.mxu0 %v1116
    %1645 = vmatpush.bf16.msra.mxu0 %v1108
    %1646 = vmatpush.bf16.msra.mxu0 %v1100
    %1647 = vmatpush.bf16.msra.mxu0 %v1092
    %1648 = vmatmul.bf16.gmra.mxu0 %v377
    %v1649 = vpop.f32.mrf.mxu0
    %v1650 = vadd.f32 %v1637, %v1649
    %v1651 = vpop.f32.mrf.mxu0
    %1652 = vdwg.mxu0
    %v1653 = vmax.f32 %v1377, 0.0
    %v1654 = vmax.f32 %v1416, 0.0
    %v1655 = vmax.f32 %v1455, 0.0
    %v1656 = vmax.f32 %v1494, 0.0
    %v1657 = vmax.f32 %v1533, 0.0
    %v1658 = vmax.f32 %v1572, 0.0
    %v1659 = vmax.f32 %v1611, 0.0
    %v1660 = vmax.f32 %v1650, 0.0
    %v1661 = vpack.c.bf16 %v1653, %v1653
    %v1662 = vpack.c.bf16 %v1654, %v1654
    %v1663 = vpack.c.bf16 %v1655, %v1655
    %v1664 = vpack.c.bf16 %v1656, %v1656
    %v1665 = vpack.c.bf16 %v1657, %v1657
    %v1666 = vpack.c.bf16 %v1658, %v1658
    %v1667 = vpack.c.bf16 %v1659, %v1659
    %v1668 = vpack.c.bf16 %v1660, %v1660
    %v1669 = vld [vmem:[#allocation8] sm:$0xff]
    %v1670 = vld [vmem:[#allocation8 + $0x8] sm:$0xff]
    %v1671 = vld [vmem:[#allocation8 + $0x10] sm:$0xff]
    %v1672 = vld [vmem:[#allocation8 + $0x18] sm:$0xff]
    %v1673 = vld [vmem:[#allocation8 + $0x20] sm:$0xff]
    %v1674 = vld [vmem:[#allocation8 + $0x28] sm:$0xff]
    %v1675 = vld [vmem:[#allocation8 + $0x30] sm:$0xff]
    %v1676 = vld [vmem:[#allocation8 + $0x38] sm:$0xff]
    %v1677 = vld [vmem:[#allocation8 + $0x40] sm:$0xff]
    %v1678 = vld [vmem:[#allocation8 + $0x48] sm:$0xff]
    %v1679 = vld [vmem:[#allocation8 + $0x50] sm:$0xff]
    %v1680 = vld [vmem:[#allocation8 + $0x58] sm:$0xff]
    %v1681 = vld [vmem:[#allocation8 + $0x60] sm:$0xff]
    %v1682 = vld [vmem:[#allocation8 + $0x68] sm:$0xff]
    %v1683 = vld [vmem:[#allocation8 + $0x70] sm:$0xff]
    %v1684 = vld [vmem:[#allocation8 + $0x78] sm:$0xff]
    %v1685 = vld [vmem:[#allocation8 + $0x80] sm:$0xff]
    %v1686 = vld [vmem:[#allocation8 + $0x88] sm:$0xff]
    %v1687 = vld [vmem:[#allocation8 + $0x90] sm:$0xff]
    %v1688 = vld [vmem:[#allocation8 + $0x98] sm:$0xff]
    %v1689 = vld [vmem:[#allocation8 + $0xa0] sm:$0xff]
    %v1690 = vld [vmem:[#allocation8 + $0xa8] sm:$0xff]
    %v1691 = vld [vmem:[#allocation8 + $0xb0] sm:$0xff]
    %v1692 = vld [vmem:[#allocation8 + $0xb8] sm:$0xff]
    %v1693 = vld [vmem:[#allocation8 + $0xc0] sm:$0xff]
    %v1694 = vld [vmem:[#allocation8 + $0xc8] sm:$0xff]
    %v1695 = vld [vmem:[#allocation8 + $0xd0] sm:$0xff]
    %v1696 = vld [vmem:[#allocation8 + $0xd8] sm:$0xff]
    %v1697 = vld [vmem:[#allocation8 + $0xe0] sm:$0xff]
    %v1698 = vld [vmem:[#allocation8 + $0xe8] sm:$0xff]
    %v1699 = vld [vmem:[#allocation8 + $0xf0] sm:$0xff]
    %v1700 = vld [vmem:[#allocation8 + $0xf8] sm:$0xff]
    %v1701 = vld [vmem:[#allocation8 + $0x100] sm:$0xff]
    %v1702 = vld [vmem:[#allocation8 + $0x108] sm:$0xff]
    %v1703 = vld [vmem:[#allocation8 + $0x110] sm:$0xff]
    %v1704 = vld [vmem:[#allocation8 + $0x118] sm:$0xff]
    %v1705 = vld [vmem:[#allocation8 + $0x120] sm:$0xff]
    %v1706 = vld [vmem:[#allocation8 + $0x128] sm:$0xff]
    %v1707 = vld [vmem:[#allocation8 + $0x130] sm:$0xff]
    %v1708 = vld [vmem:[#allocation8 + $0x138] sm:$0xff]
    %v1709 = vld [vmem:[#allocation8 + $0x140] sm:$0xff]
    %v1710 = vld [vmem:[#allocation8 + $0x148] sm:$0xff]
    %v1711 = vld [vmem:[#allocation8 + $0x150] sm:$0xff]
    %v1712 = vld [vmem:[#allocation8 + $0x158] sm:$0xff]
    %v1713 = vld [vmem:[#allocation8 + $0x160] sm:$0xff]
    %v1714 = vld [vmem:[#allocation8 + $0x168] sm:$0xff]
    %v1715 = vld [vmem:[#allocation8 + $0x170] sm:$0xff]
    %v1716 = vld [vmem:[#allocation8 + $0x178] sm:$0xff]
    %v1717 = vld [vmem:[#allocation8 + $0x180] sm:$0xff]
    %v1718 = vld [vmem:[#allocation8 + $0x188] sm:$0xff]
    %v1719 = vld [vmem:[#allocation8 + $0x190] sm:$0xff]
    %v1720 = vld [vmem:[#allocation8 + $0x198] sm:$0xff]
    %v1721 = vld [vmem:[#allocation8 + $0x1a0] sm:$0xff]
    %v1722 = vld [vmem:[#allocation8 + $0x1a8] sm:$0xff]
    %v1723 = vld [vmem:[#allocation8 + $0x1b0] sm:$0xff]
    %v1724 = vld [vmem:[#allocation8 + $0x1b8] sm:$0xff]
    %v1725 = vld [vmem:[#allocation8 + $0x1c0] sm:$0xff]
    %v1726 = vld [vmem:[#allocation8 + $0x1c8] sm:$0xff]
    %v1727 = vld [vmem:[#allocation8 + $0x1d0] sm:$0xff]
    %v1728 = vld [vmem:[#allocation8 + $0x1d8] sm:$0xff]
    %v1729 = vld [vmem:[#allocation8 + $0x1e0] sm:$0xff]
    %v1730 = vld [vmem:[#allocation8 + $0x1e8] sm:$0xff]
    %v1731 = vld [vmem:[#allocation8 + $0x1f0] sm:$0xff]
    %v1732 = vld [vmem:[#allocation8 + $0x1f8] sm:$0xff]
    %v1733 = vld [vmem:[#allocation8 + $0x200] sm:$0xff]
    %v1734 = vld [vmem:[#allocation8 + $0x208] sm:$0xff]
    %v1735 = vld [vmem:[#allocation8 + $0x210] sm:$0xff]
    %v1736 = vld [vmem:[#allocation8 + $0x218] sm:$0xff]
    %v1737 = vld [vmem:[#allocation8 + $0x220] sm:$0xff]
    %v1738 = vld [vmem:[#allocation8 + $0x228] sm:$0xff]
    %v1739 = vld [vmem:[#allocation8 + $0x230] sm:$0xff]
    %v1740 = vld [vmem:[#allocation8 + $0x238] sm:$0xff]
    %v1741 = vld [vmem:[#allocation8 + $0x240] sm:$0xff]
    %v1742 = vld [vmem:[#allocation8 + $0x248] sm:$0xff]
    %v1743 = vld [vmem:[#allocation8 + $0x250] sm:$0xff]
    %v1744 = vld [vmem:[#allocation8 + $0x258] sm:$0xff]
    %v1745 = vld [vmem:[#allocation8 + $0x260] sm:$0xff]
    %v1746 = vld [vmem:[#allocation8 + $0x268] sm:$0xff]
    %v1747 = vld [vmem:[#allocation8 + $0x270] sm:$0xff]
    %v1748 = vld [vmem:[#allocation8 + $0x278] sm:$0xff]
    %v1749 = vld [vmem:[#allocation8 + $0x280] sm:$0xff]
    %v1750 = vld [vmem:[#allocation8 + $0x288] sm:$0xff]
    %v1751 = vld [vmem:[#allocation8 + $0x290] sm:$0xff]
    %v1752 = vld [vmem:[#allocation8 + $0x298] sm:$0xff]
    %v1753 = vld [vmem:[#allocation8 + $0x2a0] sm:$0xff]
    %v1754 = vld [vmem:[#allocation8 + $0x2a8] sm:$0xff]
    %v1755 = vld [vmem:[#allocation8 + $0x2b0] sm:$0xff]
    %v1756 = vld [vmem:[#allocation8 + $0x2b8] sm:$0xff]
    %v1757 = vld [vmem:[#allocation8 + $0x2c0] sm:$0xff]
    %v1758 = vld [vmem:[#allocation8 + $0x2c8] sm:$0xff]
    %v1759 = vld [vmem:[#allocation8 + $0x2d0] sm:$0xff]
    %v1760 = vld [vmem:[#allocation8 + $0x2d8] sm:$0xff]
    %v1761 = vld [vmem:[#allocation8 + $0x2e0] sm:$0xff]
    %v1762 = vld [vmem:[#allocation8 + $0x2e8] sm:$0xff]
    %v1763 = vld [vmem:[#allocation8 + $0x2f0] sm:$0xff]
    %v1764 = vld [vmem:[#allocation8 + $0x2f8] sm:$0xff]
    %v1765 = vld [vmem:[#allocation8 + $0x300] sm:$0xff]
    %v1766 = vld [vmem:[#allocation8 + $0x308] sm:$0xff]
    %v1767 = vld [vmem:[#allocation8 + $0x310] sm:$0xff]
    %v1768 = vld [vmem:[#allocation8 + $0x318] sm:$0xff]
    %v1769 = vld [vmem:[#allocation8 + $0x320] sm:$0xff]
    %v1770 = vld [vmem:[#allocation8 + $0x328] sm:$0xff]
    %v1771 = vld [vmem:[#allocation8 + $0x330] sm:$0xff]
    %v1772 = vld [vmem:[#allocation8 + $0x338] sm:$0xff]
    %v1773 = vld [vmem:[#allocation8 + $0x340] sm:$0xff]
    %v1774 = vld [vmem:[#allocation8 + $0x348] sm:$0xff]
    %v1775 = vld [vmem:[#allocation8 + $0x350] sm:$0xff]
    %v1776 = vld [vmem:[#allocation8 + $0x358] sm:$0xff]
    %v1777 = vld [vmem:[#allocation8 + $0x360] sm:$0xff]
    %v1778 = vld [vmem:[#allocation8 + $0x368] sm:$0xff]
    %v1779 = vld [vmem:[#allocation8 + $0x370] sm:$0xff]
    %v1780 = vld [vmem:[#allocation8 + $0x378] sm:$0xff]
    %v1781 = vld [vmem:[#allocation8 + $0x380] sm:$0xff]
    %v1782 = vld [vmem:[#allocation8 + $0x388] sm:$0xff]
    %v1783 = vld [vmem:[#allocation8 + $0x390] sm:$0xff]
    %v1784 = vld [vmem:[#allocation8 + $0x398] sm:$0xff]
    %v1785 = vld [vmem:[#allocation8 + $0x3a0] sm:$0xff]
    %v1786 = vld [vmem:[#allocation8 + $0x3a8] sm:$0xff]
    %v1787 = vld [vmem:[#allocation8 + $0x3b0] sm:$0xff]
    %v1788 = vld [vmem:[#allocation8 + $0x3b8] sm:$0xff]
    %v1789 = vld [vmem:[#allocation8 + $0x3c0] sm:$0xff]
    %v1790 = vld [vmem:[#allocation8 + $0x3c8] sm:$0xff]
    %v1791 = vld [vmem:[#allocation8 + $0x3d0] sm:$0xff]
    %v1792 = vld [vmem:[#allocation8 + $0x3d8] sm:$0xff]
    %v1793 = vld [vmem:[#allocation8 + $0x3e0] sm:$0xff]
    %v1794 = vld [vmem:[#allocation8 + $0x3e8] sm:$0xff]
    %v1795 = vld [vmem:[#allocation8 + $0x3f0] sm:$0xff]
    %v1796 = vld [vmem:[#allocation8 + $0x3f8] sm:$0xff]
    %v1797 = vld [vmem:[#allocation8 + $0x400] sm:$0xff]
    %v1798 = vld [vmem:[#allocation8 + $0x408] sm:$0xff]
    %v1799 = vld [vmem:[#allocation8 + $0x410] sm:$0xff]
    %v1800 = vld [vmem:[#allocation8 + $0x418] sm:$0xff]
    %v1801 = vld [vmem:[#allocation8 + $0x420] sm:$0xff]
    %v1802 = vld [vmem:[#allocation8 + $0x428] sm:$0xff]
    %v1803 = vld [vmem:[#allocation8 + $0x430] sm:$0xff]
    %v1804 = vld [vmem:[#allocation8 + $0x438] sm:$0xff]
    %v1805 = vld [vmem:[#allocation8 + $0x440] sm:$0xff]
    %v1806 = vld [vmem:[#allocation8 + $0x448] sm:$0xff]
    %v1807 = vld [vmem:[#allocation8 + $0x450] sm:$0xff]
    %v1808 = vld [vmem:[#allocation8 + $0x458] sm:$0xff]
    %v1809 = vld [vmem:[#allocation8 + $0x460] sm:$0xff]
    %v1810 = vld [vmem:[#allocation8 + $0x468] sm:$0xff]
    %v1811 = vld [vmem:[#allocation8 + $0x470] sm:$0xff]
    %v1812 = vld [vmem:[#allocation8 + $0x478] sm:$0xff]
    %v1813 = vld [vmem:[#allocation8 + $0x480] sm:$0xff]
    %v1814 = vld [vmem:[#allocation8 + $0x488] sm:$0xff]
    %v1815 = vld [vmem:[#allocation8 + $0x490] sm:$0xff]
    %v1816 = vld [vmem:[#allocation8 + $0x498] sm:$0xff]
    %v1817 = vld [vmem:[#allocation8 + $0x4a0] sm:$0xff]
    %v1818 = vld [vmem:[#allocation8 + $0x4a8] sm:$0xff]
    %v1819 = vld [vmem:[#allocation8 + $0x4b0] sm:$0xff]
    %v1820 = vld [vmem:[#allocation8 + $0x4b8] sm:$0xff]
    %v1821 = vld [vmem:[#allocation8 + $0x4c0] sm:$0xff]
    %v1822 = vld [vmem:[#allocation8 + $0x4c8] sm:$0xff]
    %v1823 = vld [vmem:[#allocation8 + $0x4d0] sm:$0xff]
    %v1824 = vld [vmem:[#allocation8 + $0x4d8] sm:$0xff]
    %v1825 = vld [vmem:[#allocation8 + $0x4e0] sm:$0xff]
    %v1826 = vld [vmem:[#allocation8 + $0x4e8] sm:$0xff]
    %v1827 = vld [vmem:[#allocation8 + $0x4f0] sm:$0xff]
    %v1828 = vld [vmem:[#allocation8 + $0x4f8] sm:$0xff]
    %v1829 = vld [vmem:[#allocation8 + $0x500] sm:$0xff]
    %v1830 = vld [vmem:[#allocation8 + $0x508] sm:$0xff]
    %v1831 = vld [vmem:[#allocation8 + $0x510] sm:$0xff]
    %v1832 = vld [vmem:[#allocation8 + $0x518] sm:$0xff]
    %v1833 = vld [vmem:[#allocation8 + $0x520] sm:$0xff]
    %v1834 = vld [vmem:[#allocation8 + $0x528] sm:$0xff]
    %v1835 = vld [vmem:[#allocation8 + $0x530] sm:$0xff]
    %v1836 = vld [vmem:[#allocation8 + $0x538] sm:$0xff]
    %v1837 = vld [vmem:[#allocation8 + $0x540] sm:$0xff]
    %v1838 = vld [vmem:[#allocation8 + $0x548] sm:$0xff]
    %v1839 = vld [vmem:[#allocation8 + $0x550] sm:$0xff]
    %v1840 = vld [vmem:[#allocation8 + $0x558] sm:$0xff]
    %v1841 = vld [vmem:[#allocation8 + $0x560] sm:$0xff]
    %v1842 = vld [vmem:[#allocation8 + $0x568] sm:$0xff]
    %v1843 = vld [vmem:[#allocation8 + $0x570] sm:$0xff]
    %v1844 = vld [vmem:[#allocation8 + $0x578] sm:$0xff]
    %v1845 = vld [vmem:[#allocation8 + $0x580] sm:$0xff]
    %v1846 = vld [vmem:[#allocation8 + $0x588] sm:$0xff]
    %v1847 = vld [vmem:[#allocation8 + $0x590] sm:$0xff]
    %v1848 = vld [vmem:[#allocation8 + $0x598] sm:$0xff]
    %v1849 = vld [vmem:[#allocation8 + $0x5a0] sm:$0xff]
    %v1850 = vld [vmem:[#allocation8 + $0x5a8] sm:$0xff]
    %v1851 = vld [vmem:[#allocation8 + $0x5b0] sm:$0xff]
    %v1852 = vld [vmem:[#allocation8 + $0x5b8] sm:$0xff]
    %v1853 = vld [vmem:[#allocation8 + $0x5c0] sm:$0xff]
    %v1854 = vld [vmem:[#allocation8 + $0x5c8] sm:$0xff]
    %v1855 = vld [vmem:[#allocation8 + $0x5d0] sm:$0xff]
    %v1856 = vld [vmem:[#allocation8 + $0x5d8] sm:$0xff]
    %v1857 = vld [vmem:[#allocation8 + $0x5e0] sm:$0xff]
    %v1858 = vld [vmem:[#allocation8 + $0x5e8] sm:$0xff]
    %v1859 = vld [vmem:[#allocation8 + $0x5f0] sm:$0xff]
    %v1860 = vld [vmem:[#allocation8 + $0x5f8] sm:$0xff]
    %v1861 = vld [vmem:[#allocation8 + $0x600] sm:$0xff]
    %v1862 = vld [vmem:[#allocation8 + $0x608] sm:$0xff]
    %v1863 = vld [vmem:[#allocation8 + $0x610] sm:$0xff]
    %v1864 = vld [vmem:[#allocation8 + $0x618] sm:$0xff]
    %v1865 = vld [vmem:[#allocation8 + $0x620] sm:$0xff]
    %v1866 = vld [vmem:[#allocation8 + $0x628] sm:$0xff]
    %v1867 = vld [vmem:[#allocation8 + $0x630] sm:$0xff]
    %v1868 = vld [vmem:[#allocation8 + $0x638] sm:$0xff]
    %v1869 = vld [vmem:[#allocation8 + $0x640] sm:$0xff]
    %v1870 = vld [vmem:[#allocation8 + $0x648] sm:$0xff]
    %v1871 = vld [vmem:[#allocation8 + $0x650] sm:$0xff]
    %v1872 = vld [vmem:[#allocation8 + $0x658] sm:$0xff]
    %v1873 = vld [vmem:[#allocation8 + $0x660] sm:$0xff]
    %v1874 = vld [vmem:[#allocation8 + $0x668] sm:$0xff]
    %v1875 = vld [vmem:[#allocation8 + $0x670] sm:$0xff]
    %v1876 = vld [vmem:[#allocation8 + $0x678] sm:$0xff]
    %v1877 = vld [vmem:[#allocation8 + $0x680] sm:$0xff]
    %v1878 = vld [vmem:[#allocation8 + $0x688] sm:$0xff]
    %v1879 = vld [vmem:[#allocation8 + $0x690] sm:$0xff]
    %v1880 = vld [vmem:[#allocation8 + $0x698] sm:$0xff]
    %v1881 = vld [vmem:[#allocation8 + $0x6a0] sm:$0xff]
    %v1882 = vld [vmem:[#allocation8 + $0x6a8] sm:$0xff]
    %v1883 = vld [vmem:[#allocation8 + $0x6b0] sm:$0xff]
    %v1884 = vld [vmem:[#allocation8 + $0x6b8] sm:$0xff]
    %v1885 = vld [vmem:[#allocation8 + $0x6c0] sm:$0xff]
    %v1886 = vld [vmem:[#allocation8 + $0x6c8] sm:$0xff]
    %v1887 = vld [vmem:[#allocation8 + $0x6d0] sm:$0xff]
    %v1888 = vld [vmem:[#allocation8 + $0x6d8] sm:$0xff]
    %v1889 = vld [vmem:[#allocation8 + $0x6e0] sm:$0xff]
    %v1890 = vld [vmem:[#allocation8 + $0x6e8] sm:$0xff]
    %v1891 = vld [vmem:[#allocation8 + $0x6f0] sm:$0xff]
    %v1892 = vld [vmem:[#allocation8 + $0x6f8] sm:$0xff]
    %v1893 = vld [vmem:[#allocation8 + $0x700] sm:$0xff]
    %v1894 = vld [vmem:[#allocation8 + $0x708] sm:$0xff]
    %v1895 = vld [vmem:[#allocation8 + $0x710] sm:$0xff]
    %v1896 = vld [vmem:[#allocation8 + $0x718] sm:$0xff]
    %v1897 = vld [vmem:[#allocation8 + $0x720] sm:$0xff]
    %v1898 = vld [vmem:[#allocation8 + $0x728] sm:$0xff]
    %v1899 = vld [vmem:[#allocation8 + $0x730] sm:$0xff]
    %v1900 = vld [vmem:[#allocation8 + $0x738] sm:$0xff]
    %v1901 = vld [vmem:[#allocation8 + $0x740] sm:$0xff]
    %v1902 = vld [vmem:[#allocation8 + $0x748] sm:$0xff]
    %v1903 = vld [vmem:[#allocation8 + $0x750] sm:$0xff]
    %v1904 = vld [vmem:[#allocation8 + $0x758] sm:$0xff]
    %v1905 = vld [vmem:[#allocation8 + $0x760] sm:$0xff]
    %v1906 = vld [vmem:[#allocation8 + $0x768] sm:$0xff]
    %v1907 = vld [vmem:[#allocation8 + $0x770] sm:$0xff]
    %v1908 = vld [vmem:[#allocation8 + $0x778] sm:$0xff]
    %v1909 = vld [vmem:[#allocation8 + $0x780] sm:$0xff]
    %v1910 = vld [vmem:[#allocation8 + $0x788] sm:$0xff]
    %v1911 = vld [vmem:[#allocation8 + $0x790] sm:$0xff]
    %v1912 = vld [vmem:[#allocation8 + $0x798] sm:$0xff]
    %v1913 = vld [vmem:[#allocation8 + $0x7a0] sm:$0xff]
    %v1914 = vld [vmem:[#allocation8 + $0x7a8] sm:$0xff]
    %v1915 = vld [vmem:[#allocation8 + $0x7b0] sm:$0xff]
    %v1916 = vld [vmem:[#allocation8 + $0x7b8] sm:$0xff]
    %v1917 = vld [vmem:[#allocation8 + $0x7c0] sm:$0xff]
    %v1918 = vld [vmem:[#allocation8 + $0x7c8] sm:$0xff]
    %v1919 = vld [vmem:[#allocation8 + $0x7d0] sm:$0xff]
    %v1920 = vld [vmem:[#allocation8 + $0x7d8] sm:$0xff]
    %v1921 = vld [vmem:[#allocation8 + $0x7e0] sm:$0xff]
    %v1922 = vld [vmem:[#allocation8 + $0x7e8] sm:$0xff]
    %v1923 = vld [vmem:[#allocation8 + $0x7f0] sm:$0xff]
    %v1924 = vld [vmem:[#allocation8 + $0x7f8] sm:$0xff]
    %v1925 = vld [vmem:[#allocation10] sm:$0xf]
    %v1927 = vperm.slane %v1925, 0
    %v1928 = vperm.slane %v1925, 1
    %v1929 = vperm.slane %v1925, 2
    %v1930 = vperm.slane %v1925, 3
    %v2191 = vunpack.c.l.b16 %v1669
    %v2192 = vunpack.c.h.b16 %v1669
    %v2193 = vunpack.c.l.b16 %v1670
    %v2194 = vunpack.c.h.b16 %v1670
    %v2195 = vunpack.c.l.b16 %v1671
    %v2196 = vunpack.c.h.b16 %v1671
    %v2197 = vunpack.c.l.b16 %v1672
    %v2198 = vunpack.c.h.b16 %v1672
    %v2199 = vunpack.c.l.b16 %v1673
    %v2200 = vunpack.c.h.b16 %v1673
    %v2201 = vunpack.c.l.b16 %v1674
    %v2202 = vunpack.c.h.b16 %v1674
    %v2203 = vunpack.c.l.b16 %v1675
    %v2204 = vunpack.c.h.b16 %v1675
    %v2205 = vunpack.c.l.b16 %v1676
    %v2206 = vunpack.c.h.b16 %v1676
    %v2207 = vunpack.c.l.b16 %v1677
    %v2208 = vunpack.c.h.b16 %v1677
    %v2209 = vunpack.c.l.b16 %v1678
    %v2210 = vunpack.c.h.b16 %v1678
    %v2211 = vunpack.c.l.b16 %v1679
    %v2212 = vunpack.c.h.b16 %v1679
    %v2213 = vunpack.c.l.b16 %v1680
    %v2214 = vunpack.c.h.b16 %v1680
    %v2215 = vunpack.c.l.b16 %v1681
    %v2216 = vunpack.c.h.b16 %v1681
    %v2217 = vunpack.c.l.b16 %v1682
    %v2218 = vunpack.c.h.b16 %v1682
    %v2219 = vunpack.c.l.b16 %v1683
    %v2220 = vunpack.c.h.b16 %v1683
    %v2221 = vunpack.c.l.b16 %v1684
    %v2222 = vunpack.c.h.b16 %v1684
    %v2223 = vunpack.c.l.b16 %v1685
    %v2224 = vunpack.c.h.b16 %v1685
    %v2225 = vunpack.c.l.b16 %v1686
    %v2226 = vunpack.c.h.b16 %v1686
    %v2227 = vunpack.c.l.b16 %v1687
    %v2228 = vunpack.c.h.b16 %v1687
    %v2229 = vunpack.c.l.b16 %v1688
    %v2230 = vunpack.c.h.b16 %v1688
    %v2231 = vunpack.c.l.b16 %v1689
    %v2232 = vunpack.c.h.b16 %v1689
    %v2233 = vunpack.c.l.b16 %v1690
    %v2234 = vunpack.c.h.b16 %v1690
    %v2235 = vunpack.c.l.b16 %v1691
    %v2236 = vunpack.c.h.b16 %v1691
    %v2237 = vunpack.c.l.b16 %v1692
    %v2238 = vunpack.c.h.b16 %v1692
    %v2239 = vunpack.c.l.b16 %v1693
    %v2240 = vunpack.c.h.b16 %v1693
    %v2241 = vunpack.c.l.b16 %v1694
    %v2242 = vunpack.c.h.b16 %v1694
    %v2243 = vunpack.c.l.b16 %v1695
    %v2244 = vunpack.c.h.b16 %v1695
    %v2245 = vunpack.c.l.b16 %v1696
    %v2246 = vunpack.c.h.b16 %v1696
    %v2247 = vunpack.c.l.b16 %v1697
    %v2248 = vunpack.c.h.b16 %v1697
    %v2249 = vunpack.c.l.b16 %v1698
    %v2250 = vunpack.c.h.b16 %v1698
    %v2251 = vunpack.c.l.b16 %v1699
    %v2252 = vunpack.c.h.b16 %v1699
    %v2253 = vunpack.c.l.b16 %v1700
    %v2254 = vunpack.c.h.b16 %v1700
    %v2255 = vunpack.c.l.b16 %v1701
    %v2256 = vunpack.c.h.b16 %v1701
    %v2257 = vunpack.c.l.b16 %v1702
    %v2258 = vunpack.c.h.b16 %v1702
    %v2259 = vunpack.c.l.b16 %v1703
    %v2260 = vunpack.c.h.b16 %v1703
    %v2261 = vunpack.c.l.b16 %v1704
    %v2262 = vunpack.c.h.b16 %v1704
    %v2263 = vunpack.c.l.b16 %v1705
    %v2264 = vunpack.c.h.b16 %v1705
    %v2265 = vunpack.c.l.b16 %v1706
    %v2266 = vunpack.c.h.b16 %v1706
    %v2267 = vunpack.c.l.b16 %v1707
    %v2268 = vunpack.c.h.b16 %v1707
    %v2269 = vunpack.c.l.b16 %v1708
    %v2270 = vunpack.c.h.b16 %v1708
    %v2271 = vunpack.c.l.b16 %v1709
    %v2272 = vunpack.c.h.b16 %v1709
    %v2273 = vunpack.c.l.b16 %v1710
    %v2274 = vunpack.c.h.b16 %v1710
    %v2275 = vunpack.c.l.b16 %v1711
    %v2276 = vunpack.c.h.b16 %v1711
    %v2277 = vunpack.c.l.b16 %v1712
    %v2278 = vunpack.c.h.b16 %v1712
    %v2279 = vunpack.c.l.b16 %v1713
    %v2280 = vunpack.c.h.b16 %v1713
    %v2281 = vunpack.c.l.b16 %v1714
    %v2282 = vunpack.c.h.b16 %v1714
    %v2283 = vunpack.c.l.b16 %v1715
    %v2284 = vunpack.c.h.b16 %v1715
    %v2285 = vunpack.c.l.b16 %v1716
    %v2286 = vunpack.c.h.b16 %v1716
    %v2287 = vunpack.c.l.b16 %v1717
    %v2288 = vunpack.c.h.b16 %v1717
    %v2289 = vunpack.c.l.b16 %v1718
    %v2290 = vunpack.c.h.b16 %v1718
    %v2291 = vunpack.c.l.b16 %v1719
    %v2292 = vunpack.c.h.b16 %v1719
    %v2293 = vunpack.c.l.b16 %v1720
    %v2294 = vunpack.c.h.b16 %v1720
    %v2295 = vunpack.c.l.b16 %v1721
    %v2296 = vunpack.c.h.b16 %v1721
    %v2297 = vunpack.c.l.b16 %v1722
    %v2298 = vunpack.c.h.b16 %v1722
    %v2299 = vunpack.c.l.b16 %v1723
    %v2300 = vunpack.c.h.b16 %v1723
    %v2301 = vunpack.c.l.b16 %v1724
    %v2302 = vunpack.c.h.b16 %v1724
    %v2303 = vunpack.c.l.b16 %v1725
    %v2304 = vunpack.c.h.b16 %v1725
    %v2305 = vunpack.c.l.b16 %v1726
    %v2306 = vunpack.c.h.b16 %v1726
    %v2307 = vunpack.c.l.b16 %v1727
    %v2308 = vunpack.c.h.b16 %v1727
    %v2309 = vunpack.c.l.b16 %v1728
    %v2310 = vunpack.c.h.b16 %v1728
    %v2311 = vunpack.c.l.b16 %v1729
    %v2312 = vunpack.c.h.b16 %v1729
    %v2313 = vunpack.c.l.b16 %v1730
    %v2314 = vunpack.c.h.b16 %v1730
    %v2315 = vunpack.c.l.b16 %v1731
    %v2316 = vunpack.c.h.b16 %v1731
    %v2317 = vunpack.c.l.b16 %v1732
    %v2318 = vunpack.c.h.b16 %v1732
    %v2319 = vunpack.c.l.b16 %v1733
    %v2320 = vunpack.c.h.b16 %v1733
    %v2321 = vunpack.c.l.b16 %v1734
    %v2322 = vunpack.c.h.b16 %v1734
    %v2323 = vunpack.c.l.b16 %v1735
    %v2324 = vunpack.c.h.b16 %v1735
    %v2325 = vunpack.c.l.b16 %v1736
    %v2326 = vunpack.c.h.b16 %v1736
    %v2327 = vunpack.c.l.b16 %v1737
    %v2328 = vunpack.c.h.b16 %v1737
    %v2329 = vunpack.c.l.b16 %v1738
    %v2330 = vunpack.c.h.b16 %v1738
    %v2331 = vunpack.c.l.b16 %v1739
    %v2332 = vunpack.c.h.b16 %v1739
    %v2333 = vunpack.c.l.b16 %v1740
    %v2334 = vunpack.c.h.b16 %v1740
    %v2335 = vunpack.c.l.b16 %v1741
    %v2336 = vunpack.c.h.b16 %v1741
    %v2337 = vunpack.c.l.b16 %v1742
    %v2338 = vunpack.c.h.b16 %v1742
    %v2339 = vunpack.c.l.b16 %v1743
    %v2340 = vunpack.c.h.b16 %v1743
    %v2341 = vunpack.c.l.b16 %v1744
    %v2342 = vunpack.c.h.b16 %v1744
    %v2343 = vunpack.c.l.b16 %v1745
    %v2344 = vunpack.c.h.b16 %v1745
    %v2345 = vunpack.c.l.b16 %v1746
    %v2346 = vunpack.c.h.b16 %v1746
    %v2347 = vunpack.c.l.b16 %v1747
    %v2348 = vunpack.c.h.b16 %v1747
    %v2349 = vunpack.c.l.b16 %v1748
    %v2350 = vunpack.c.h.b16 %v1748
    %v2351 = vunpack.c.l.b16 %v1749
    %v2352 = vunpack.c.h.b16 %v1749
    %v2353 = vunpack.c.l.b16 %v1750
    %v2354 = vunpack.c.h.b16 %v1750
    %v2355 = vunpack.c.l.b16 %v1751
    %v2356 = vunpack.c.h.b16 %v1751
    %v2357 = vunpack.c.l.b16 %v1752
    %v2358 = vunpack.c.h.b16 %v1752
    %v2359 = vunpack.c.l.b16 %v1753
    %v2360 = vunpack.c.h.b16 %v1753
    %v2361 = vunpack.c.l.b16 %v1754
    %v2362 = vunpack.c.h.b16 %v1754
    %v2363 = vunpack.c.l.b16 %v1755
    %v2364 = vunpack.c.h.b16 %v1755
    %v2365 = vunpack.c.l.b16 %v1756
    %v2366 = vunpack.c.h.b16 %v1756
    %v2367 = vunpack.c.l.b16 %v1757
    %v2368 = vunpack.c.h.b16 %v1757
    %v2369 = vunpack.c.l.b16 %v1758
    %v2370 = vunpack.c.h.b16 %v1758
    %v2371 = vunpack.c.l.b16 %v1759
    %v2372 = vunpack.c.h.b16 %v1759
    %v2373 = vunpack.c.l.b16 %v1760
    %v2374 = vunpack.c.h.b16 %v1760
    %v2375 = vunpack.c.l.b16 %v1761
    %v2376 = vunpack.c.h.b16 %v1761
    %v2377 = vunpack.c.l.b16 %v1762
    %v2378 = vunpack.c.h.b16 %v1762
    %v2379 = vunpack.c.l.b16 %v1763
    %v2380 = vunpack.c.h.b16 %v1763
    %v2381 = vunpack.c.l.b16 %v1764
    %v2382 = vunpack.c.h.b16 %v1764
    %v2383 = vunpack.c.l.b16 %v1765
    %v2384 = vunpack.c.h.b16 %v1765
    %v2385 = vunpack.c.l.b16 %v1766
    %v2386 = vunpack.c.h.b16 %v1766
    %v2387 = vunpack.c.l.b16 %v1767
    %v2388 = vunpack.c.h.b16 %v1767
    %v2389 = vunpack.c.l.b16 %v1768
    %v2390 = vunpack.c.h.b16 %v1768
    %v2391 = vunpack.c.l.b16 %v1769
    %v2392 = vunpack.c.h.b16 %v1769
    %v2393 = vunpack.c.l.b16 %v1770
    %v2394 = vunpack.c.h.b16 %v1770
    %v2395 = vunpack.c.l.b16 %v1771
    %v2396 = vunpack.c.h.b16 %v1771
    %v2397 = vunpack.c.l.b16 %v1772
    %v2398 = vunpack.c.h.b16 %v1772
    %v2399 = vunpack.c.l.b16 %v1773
    %v2400 = vunpack.c.h.b16 %v1773
    %v2401 = vunpack.c.l.b16 %v1774
    %v2402 = vunpack.c.h.b16 %v1774
    %v2403 = vunpack.c.l.b16 %v1775
    %v2404 = vunpack.c.h.b16 %v1775
    %v2405 = vunpack.c.l.b16 %v1776
    %v2406 = vunpack.c.h.b16 %v1776
    %v2407 = vunpack.c.l.b16 %v1777
    %v2408 = vunpack.c.h.b16 %v1777
    %v2409 = vunpack.c.l.b16 %v1778
    %v2410 = vunpack.c.h.b16 %v1778
    %v2411 = vunpack.c.l.b16 %v1779
    %v2412 = vunpack.c.h.b16 %v1779
    %v2413 = vunpack.c.l.b16 %v1780
    %v2414 = vunpack.c.h.b16 %v1780
    %v2415 = vunpack.c.l.b16 %v1781
    %v2416 = vunpack.c.h.b16 %v1781
    %v2417 = vunpack.c.l.b16 %v1782
    %v2418 = vunpack.c.h.b16 %v1782
    %v2419 = vunpack.c.l.b16 %v1783
    %v2420 = vunpack.c.h.b16 %v1783
    %v2421 = vunpack.c.l.b16 %v1784
    %v2422 = vunpack.c.h.b16 %v1784
    %v2423 = vunpack.c.l.b16 %v1785
    %v2424 = vunpack.c.h.b16 %v1785
    %v2425 = vunpack.c.l.b16 %v1786
    %v2426 = vunpack.c.h.b16 %v1786
    %v2427 = vunpack.c.l.b16 %v1787
    %v2428 = vunpack.c.h.b16 %v1787
    %v2429 = vunpack.c.l.b16 %v1788
    %v2430 = vunpack.c.h.b16 %v1788
    %v2431 = vunpack.c.l.b16 %v1789
    %v2432 = vunpack.c.h.b16 %v1789
    %v2433 = vunpack.c.l.b16 %v1790
    %v2434 = vunpack.c.h.b16 %v1790
    %v2435 = vunpack.c.l.b16 %v1791
    %v2436 = vunpack.c.h.b16 %v1791
    %v2437 = vunpack.c.l.b16 %v1792
    %v2438 = vunpack.c.h.b16 %v1792
    %v2439 = vunpack.c.l.b16 %v1793
    %v2440 = vunpack.c.h.b16 %v1793
    %v2441 = vunpack.c.l.b16 %v1794
    %v2442 = vunpack.c.h.b16 %v1794
    %v2443 = vunpack.c.l.b16 %v1795
    %v2444 = vunpack.c.h.b16 %v1795
    %v2445 = vunpack.c.l.b16 %v1796
    %v2446 = vunpack.c.h.b16 %v1796
    %v2447 = vunpack.c.l.b16 %v1797
    %v2448 = vunpack.c.h.b16 %v1797
    %v2449 = vunpack.c.l.b16 %v1798
    %v2450 = vunpack.c.h.b16 %v1798
    %v2451 = vunpack.c.l.b16 %v1799
    %v2452 = vunpack.c.h.b16 %v1799
    %v2453 = vunpack.c.l.b16 %v1800
    %v2454 = vunpack.c.h.b16 %v1800
    %v2455 = vunpack.c.l.b16 %v1801
    %v2456 = vunpack.c.h.b16 %v1801
    %v2457 = vunpack.c.l.b16 %v1802
    %v2458 = vunpack.c.h.b16 %v1802
    %v2459 = vunpack.c.l.b16 %v1803
    %v2460 = vunpack.c.h.b16 %v1803
    %v2461 = vunpack.c.l.b16 %v1804
    %v2462 = vunpack.c.h.b16 %v1804
    %v2463 = vunpack.c.l.b16 %v1805
    %v2464 = vunpack.c.h.b16 %v1805
    %v2465 = vunpack.c.l.b16 %v1806
    %v2466 = vunpack.c.h.b16 %v1806
    %v2467 = vunpack.c.l.b16 %v1807
    %v2468 = vunpack.c.h.b16 %v1807
    %v2469 = vunpack.c.l.b16 %v1808
    %v2470 = vunpack.c.h.b16 %v1808
    %v2471 = vunpack.c.l.b16 %v1809
    %v2472 = vunpack.c.h.b16 %v1809
    %v2473 = vunpack.c.l.b16 %v1810
    %v2474 = vunpack.c.h.b16 %v1810
    %v2475 = vunpack.c.l.b16 %v1811
    %v2476 = vunpack.c.h.b16 %v1811
    %v2477 = vunpack.c.l.b16 %v1812
    %v2478 = vunpack.c.h.b16 %v1812
    %v2479 = vunpack.c.l.b16 %v1813
    %v2480 = vunpack.c.h.b16 %v1813
    %v2481 = vunpack.c.l.b16 %v1814
    %v2482 = vunpack.c.h.b16 %v1814
    %v2483 = vunpack.c.l.b16 %v1815
    %v2484 = vunpack.c.h.b16 %v1815
    %v2485 = vunpack.c.l.b16 %v1816
    %v2486 = vunpack.c.h.b16 %v1816
    %v2487 = vunpack.c.l.b16 %v1817
    %v2488 = vunpack.c.h.b16 %v1817
    %v2489 = vunpack.c.l.b16 %v1818
    %v2490 = vunpack.c.h.b16 %v1818
    %v2491 = vunpack.c.l.b16 %v1819
    %v2492 = vunpack.c.h.b16 %v1819
    %v2493 = vunpack.c.l.b16 %v1820
    %v2494 = vunpack.c.h.b16 %v1820
    %v2495 = vunpack.c.l.b16 %v1821
    %v2496 = vunpack.c.h.b16 %v1821
    %v2497 = vunpack.c.l.b16 %v1822
    %v2498 = vunpack.c.h.b16 %v1822
    %v2499 = vunpack.c.l.b16 %v1823
    %v2500 = vunpack.c.h.b16 %v1823
    %v2501 = vunpack.c.l.b16 %v1824
    %v2502 = vunpack.c.h.b16 %v1824
    %v2503 = vunpack.c.l.b16 %v1825
    %v2504 = vunpack.c.h.b16 %v1825
    %v2505 = vunpack.c.l.b16 %v1826
    %v2506 = vunpack.c.h.b16 %v1826
    %v2507 = vunpack.c.l.b16 %v1827
    %v2508 = vunpack.c.h.b16 %v1827
    %v2509 = vunpack.c.l.b16 %v1828
    %v2510 = vunpack.c.h.b16 %v1828
    %v2511 = vunpack.c.l.b16 %v1829
    %v2512 = vunpack.c.h.b16 %v1829
    %v2513 = vunpack.c.l.b16 %v1830
    %v2514 = vunpack.c.h.b16 %v1830
    %v2515 = vunpack.c.l.b16 %v1831
    %v2516 = vunpack.c.h.b16 %v1831
    %v2517 = vunpack.c.l.b16 %v1832
    %v2518 = vunpack.c.h.b16 %v1832
    %v2519 = vunpack.c.l.b16 %v1833
    %v2520 = vunpack.c.h.b16 %v1833
    %v2521 = vunpack.c.l.b16 %v1834
    %v2522 = vunpack.c.h.b16 %v1834
    %v2523 = vunpack.c.l.b16 %v1835
    %v2524 = vunpack.c.h.b16 %v1835
    %v2525 = vunpack.c.l.b16 %v1836
    %v2526 = vunpack.c.h.b16 %v1836
    %v2527 = vunpack.c.l.b16 %v1837
    %v2528 = vunpack.c.h.b16 %v1837
    %v2529 = vunpack.c.l.b16 %v1838
    %v2530 = vunpack.c.h.b16 %v1838
    %v2531 = vunpack.c.l.b16 %v1839
    %v2532 = vunpack.c.h.b16 %v1839
    %v2533 = vunpack.c.l.b16 %v1840
    %v2534 = vunpack.c.h.b16 %v1840
    %v2535 = vunpack.c.l.b16 %v1841
    %v2536 = vunpack.c.h.b16 %v1841
    %v2537 = vunpack.c.l.b16 %v1842
    %v2538 = vunpack.c.h.b16 %v1842
    %v2539 = vunpack.c.l.b16 %v1843
    %v2540 = vunpack.c.h.b16 %v1843
    %v2541 = vunpack.c.l.b16 %v1844
    %v2542 = vunpack.c.h.b16 %v1844
    %v2543 = vunpack.c.l.b16 %v1845
    %v2544 = vunpack.c.h.b16 %v1845
    %v2545 = vunpack.c.l.b16 %v1846
    %v2546 = vunpack.c.h.b16 %v1846
    %v2547 = vunpack.c.l.b16 %v1847
    %v2548 = vunpack.c.h.b16 %v1847
    %v2549 = vunpack.c.l.b16 %v1848
    %v2550 = vunpack.c.h.b16 %v1848
    %v2551 = vunpack.c.l.b16 %v1849
    %v2552 = vunpack.c.h.b16 %v1849
    %v2553 = vunpack.c.l.b16 %v1850
    %v2554 = vunpack.c.h.b16 %v1850
    %v2555 = vunpack.c.l.b16 %v1851
    %v2556 = vunpack.c.h.b16 %v1851
    %v2557 = vunpack.c.l.b16 %v1852
    %v2558 = vunpack.c.h.b16 %v1852
    %v2559 = vunpack.c.l.b16 %v1853
    %v2560 = vunpack.c.h.b16 %v1853
    %v2561 = vunpack.c.l.b16 %v1854
    %v2562 = vunpack.c.h.b16 %v1854
    %v2563 = vunpack.c.l.b16 %v1855
    %v2564 = vunpack.c.h.b16 %v1855
    %v2565 = vunpack.c.l.b16 %v1856
    %v2566 = vunpack.c.h.b16 %v1856
    %v2567 = vunpack.c.l.b16 %v1857
    %v2568 = vunpack.c.h.b16 %v1857
    %v2569 = vunpack.c.l.b16 %v1858
    %v2570 = vunpack.c.h.b16 %v1858
    %v2571 = vunpack.c.l.b16 %v1859
    %v2572 = vunpack.c.h.b16 %v1859
    %v2573 = vunpack.c.l.b16 %v1860
    %v2574 = vunpack.c.h.b16 %v1860
    %v2575 = vunpack.c.l.b16 %v1861
    %v2576 = vunpack.c.h.b16 %v1861
    %v2577 = vunpack.c.l.b16 %v1862
    %v2578 = vunpack.c.h.b16 %v1862
    %v2579 = vunpack.c.l.b16 %v1863
    %v2580 = vunpack.c.h.b16 %v1863
    %v2581 = vunpack.c.l.b16 %v1864
    %v2582 = vunpack.c.h.b16 %v1864
    %v2583 = vunpack.c.l.b16 %v1865
    %v2584 = vunpack.c.h.b16 %v1865
    %v2585 = vunpack.c.l.b16 %v1866
    %v2586 = vunpack.c.h.b16 %v1866
    %v2587 = vunpack.c.l.b16 %v1867
    %v2588 = vunpack.c.h.b16 %v1867
    %v2589 = vunpack.c.l.b16 %v1868
    %v2590 = vunpack.c.h.b16 %v1868
    %v2591 = vunpack.c.l.b16 %v1869
    %v2592 = vunpack.c.h.b16 %v1869
    %v2593 = vunpack.c.l.b16 %v1870
    %v2594 = vunpack.c.h.b16 %v1870
    %v2595 = vunpack.c.l.b16 %v1871
    %v2596 = vunpack.c.h.b16 %v1871
    %v2597 = vunpack.c.l.b16 %v1872
    %v2598 = vunpack.c.h.b16 %v1872
    %v2599 = vunpack.c.l.b16 %v1873
    %v2600 = vunpack.c.h.b16 %v1873
    %v2601 = vunpack.c.l.b16 %v1874
    %v2602 = vunpack.c.h.b16 %v1874
    %v2603 = vunpack.c.l.b16 %v1875
    %v2604 = vunpack.c.h.b16 %v1875
    %v2605 = vunpack.c.l.b16 %v1876
    %v2606 = vunpack.c.h.b16 %v1876
    %v2607 = vunpack.c.l.b16 %v1877
    %v2608 = vunpack.c.h.b16 %v1877
    %v2609 = vunpack.c.l.b16 %v1878
    %v2610 = vunpack.c.h.b16 %v1878
    %v2611 = vunpack.c.l.b16 %v1879
    %v2612 = vunpack.c.h.b16 %v1879
    %v2613 = vunpack.c.l.b16 %v1880
    %v2614 = vunpack.c.h.b16 %v1880
    %v2615 = vunpack.c.l.b16 %v1881
    %v2616 = vunpack.c.h.b16 %v1881
    %v2617 = vunpack.c.l.b16 %v1882
    %v2618 = vunpack.c.h.b16 %v1882
    %v2619 = vunpack.c.l.b16 %v1883
    %v2620 = vunpack.c.h.b16 %v1883
    %v2621 = vunpack.c.l.b16 %v1884
    %v2622 = vunpack.c.h.b16 %v1884
    %v2623 = vunpack.c.l.b16 %v1885
    %v2624 = vunpack.c.h.b16 %v1885
    %v2625 = vunpack.c.l.b16 %v1886
    %v2626 = vunpack.c.h.b16 %v1886
    %v2627 = vunpack.c.l.b16 %v1887
    %v2628 = vunpack.c.h.b16 %v1887
    %v2629 = vunpack.c.l.b16 %v1888
    %v2630 = vunpack.c.h.b16 %v1888
    %v2631 = vunpack.c.l.b16 %v1889
    %v2632 = vunpack.c.h.b16 %v1889
    %v2633 = vunpack.c.l.b16 %v1890
    %v2634 = vunpack.c.h.b16 %v1890
    %v2635 = vunpack.c.l.b16 %v1891
    %v2636 = vunpack.c.h.b16 %v1891
    %v2637 = vunpack.c.l.b16 %v1892
    %v2638 = vunpack.c.h.b16 %v1892
    %v2639 = vunpack.c.l.b16 %v1893
    %v2640 = vunpack.c.h.b16 %v1893
    %v2641 = vunpack.c.l.b16 %v1894
    %v2642 = vunpack.c.h.b16 %v1894
    %v2643 = vunpack.c.l.b16 %v1895
    %v2644 = vunpack.c.h.b16 %v1895
    %v2645 = vunpack.c.l.b16 %v1896
    %v2646 = vunpack.c.h.b16 %v1896
    %v2647 = vunpack.c.l.b16 %v1897
    %v2648 = vunpack.c.h.b16 %v1897
    %v2649 = vunpack.c.l.b16 %v1898
    %v2650 = vunpack.c.h.b16 %v1898
    %v2651 = vunpack.c.l.b16 %v1899
    %v2652 = vunpack.c.h.b16 %v1899
    %v2653 = vunpack.c.l.b16 %v1900
    %v2654 = vunpack.c.h.b16 %v1900
    %v2655 = vunpack.c.l.b16 %v1901
    %v2656 = vunpack.c.h.b16 %v1901
    %v2657 = vunpack.c.l.b16 %v1902
    %v2658 = vunpack.c.h.b16 %v1902
    %v2659 = vunpack.c.l.b16 %v1903
    %v2660 = vunpack.c.h.b16 %v1903
    %v2661 = vunpack.c.l.b16 %v1904
    %v2662 = vunpack.c.h.b16 %v1904
    %v2663 = vunpack.c.l.b16 %v1905
    %v2664 = vunpack.c.h.b16 %v1905
    %v2665 = vunpack.c.l.b16 %v1906
    %v2666 = vunpack.c.h.b16 %v1906
    %v2667 = vunpack.c.l.b16 %v1907
    %v2668 = vunpack.c.h.b16 %v1907
    %v2669 = vunpack.c.l.b16 %v1908
    %v2670 = vunpack.c.h.b16 %v1908
    %v2671 = vunpack.c.l.b16 %v1909
    %v2672 = vunpack.c.h.b16 %v1909
    %v2673 = vunpack.c.l.b16 %v1910
    %v2674 = vunpack.c.h.b16 %v1910
    %v2675 = vunpack.c.l.b16 %v1911
    %v2676 = vunpack.c.h.b16 %v1911
    %v2677 = vunpack.c.l.b16 %v1912
    %v2678 = vunpack.c.h.b16 %v1912
    %v2679 = vunpack.c.l.b16 %v1913
    %v2680 = vunpack.c.h.b16 %v1913
    %v2681 = vunpack.c.l.b16 %v1914
    %v2682 = vunpack.c.h.b16 %v1914
    %v2683 = vunpack.c.l.b16 %v1915
    %v2684 = vunpack.c.h.b16 %v1915
    %v2685 = vunpack.c.l.b16 %v1916
    %v2686 = vunpack.c.h.b16 %v1916
    %v2687 = vunpack.c.l.b16 %v1917
    %v2688 = vunpack.c.h.b16 %v1917
    %v2689 = vunpack.c.l.b16 %v1918
    %v2690 = vunpack.c.h.b16 %v1918
    %v2691 = vunpack.c.l.b16 %v1919
    %v2692 = vunpack.c.h.b16 %v1919
    %v2693 = vunpack.c.l.b16 %v1920
    %v2694 = vunpack.c.h.b16 %v1920
    %v2695 = vunpack.c.l.b16 %v1921
    %v2696 = vunpack.c.h.b16 %v1921
    %v2697 = vunpack.c.l.b16 %v1922
    %v2698 = vunpack.c.h.b16 %v1922
    %v2699 = vunpack.c.l.b16 %v1923
    %v2700 = vunpack.c.h.b16 %v1923
    %v2701 = vunpack.c.l.b16 %v1924
    %v2702 = vunpack.c.h.b16 %v1924
    %v2703 = vpack.c.b16 %v2195, %v2191
    %v2704 = vpack.c.b16 %v2196, %v2192
    %v2705 = vpack.c.b16 %v2197, %v2193
    %v2706 = vpack.c.b16 %v2198, %v2194
    %v2707 = vpack.c.b16 %v2203, %v2199
    %v2708 = vpack.c.b16 %v2204, %v2200
    %v2709 = vpack.c.b16 %v2205, %v2201
    %v2710 = vpack.c.b16 %v2206, %v2202
    %v2711 = vpack.c.b16 %v2211, %v2207
    %v2712 = vpack.c.b16 %v2212, %v2208
    %v2713 = vpack.c.b16 %v2213, %v2209
    %v2714 = vpack.c.b16 %v2214, %v2210
    %v2715 = vpack.c.b16 %v2219, %v2215
    %v2716 = vpack.c.b16 %v2220, %v2216
    %v2717 = vpack.c.b16 %v2221, %v2217
    %v2718 = vpack.c.b16 %v2222, %v2218
    %v2719 = vpack.c.b16 %v2227, %v2223
    %v2720 = vpack.c.b16 %v2228, %v2224
    %v2721 = vpack.c.b16 %v2229, %v2225
    %v2722 = vpack.c.b16 %v2230, %v2226
    %v2723 = vpack.c.b16 %v2235, %v2231
    %v2724 = vpack.c.b16 %v2236, %v2232
    %v2725 = vpack.c.b16 %v2237, %v2233
    %v2726 = vpack.c.b16 %v2238, %v2234
    %v2727 = vpack.c.b16 %v2243, %v2239
    %v2728 = vpack.c.b16 %v2244, %v2240
    %v2729 = vpack.c.b16 %v2245, %v2241
    %v2730 = vpack.c.b16 %v2246, %v2242
    %v2731 = vpack.c.b16 %v2251, %v2247
    %v2732 = vpack.c.b16 %v2252, %v2248
    %v2733 = vpack.c.b16 %v2253, %v2249
    %v2734 = vpack.c.b16 %v2254, %v2250
    %v2735 = vpack.c.b16 %v2259, %v2255
    %v2736 = vpack.c.b16 %v2260, %v2256
    %v2737 = vpack.c.b16 %v2261, %v2257
    %v2738 = vpack.c.b16 %v2262, %v2258
    %v2739 = vpack.c.b16 %v2267, %v2263
    %v2740 = vpack.c.b16 %v2268, %v2264
    %v2741 = vpack.c.b16 %v2269, %v2265
    %v2742 = vpack.c.b16 %v2270, %v2266
    %v2743 = vpack.c.b16 %v2275, %v2271
    %v2744 = vpack.c.b16 %v2276, %v2272
    %v2745 = vpack.c.b16 %v2277, %v2273
    %v2746 = vpack.c.b16 %v2278, %v2274
    %v2747 = vpack.c.b16 %v2283, %v2279
    %v2748 = vpack.c.b16 %v2284, %v2280
    %v2749 = vpack.c.b16 %v2285, %v2281
    %v2750 = vpack.c.b16 %v2286, %v2282
    %v2751 = vpack.c.b16 %v2291, %v2287
    %v2752 = vpack.c.b16 %v2292, %v2288
    %v2753 = vpack.c.b16 %v2293, %v2289
    %v2754 = vpack.c.b16 %v2294, %v2290
    %v2755 = vpack.c.b16 %v2299, %v2295
    %v2756 = vpack.c.b16 %v2300, %v2296
    %v2757 = vpack.c.b16 %v2301, %v2297
    %v2758 = vpack.c.b16 %v2302, %v2298
    %v2759 = vpack.c.b16 %v2307, %v2303
    %v2760 = vpack.c.b16 %v2308, %v2304
    %v2761 = vpack.c.b16 %v2309, %v2305
    %v2762 = vpack.c.b16 %v2310, %v2306
    %v2763 = vpack.c.b16 %v2315, %v2311
    %v2764 = vpack.c.b16 %v2316, %v2312
    %v2765 = vpack.c.b16 %v2317, %v2313
    %v2766 = vpack.c.b16 %v2318, %v2314
    %v2767 = vpack.c.b16 %v2323, %v2319
    %v2768 = vpack.c.b16 %v2324, %v2320
    %v2769 = vpack.c.b16 %v2325, %v2321
    %v2770 = vpack.c.b16 %v2326, %v2322
    %v2771 = vpack.c.b16 %v2331, %v2327
    %v2772 = vpack.c.b16 %v2332, %v2328
    %v2773 = vpack.c.b16 %v2333, %v2329
    %v2774 = vpack.c.b16 %v2334, %v2330
    %v2775 = vpack.c.b16 %v2339, %v2335
    %v2776 = vpack.c.b16 %v2340, %v2336
    %v2777 = vpack.c.b16 %v2341, %v2337
    %v2778 = vpack.c.b16 %v2342, %v2338
    %v2779 = vpack.c.b16 %v2347, %v2343
    %v2780 = vpack.c.b16 %v2348, %v2344
    %v2781 = vpack.c.b16 %v2349, %v2345
    %v2782 = vpack.c.b16 %v2350, %v2346
    %v2783 = vpack.c.b16 %v2355, %v2351
    %v2784 = vpack.c.b16 %v2356, %v2352
    %v2785 = vpack.c.b16 %v2357, %v2353
    %v2786 = vpack.c.b16 %v2358, %v2354
    %v2787 = vpack.c.b16 %v2363, %v2359
    %v2788 = vpack.c.b16 %v2364, %v2360
    %v2789 = vpack.c.b16 %v2365, %v2361
    %v2790 = vpack.c.b16 %v2366, %v2362
    %v2791 = vpack.c.b16 %v2371, %v2367
    %v2792 = vpack.c.b16 %v2372, %v2368
    %v2793 = vpack.c.b16 %v2373, %v2369
    %v2794 = vpack.c.b16 %v2374, %v2370
    %v2795 = vpack.c.b16 %v2379, %v2375
    %v2796 = vpack.c.b16 %v2380, %v2376
    %v2797 = vpack.c.b16 %v2381, %v2377
    %v2798 = vpack.c.b16 %v2382, %v2378
    %v2799 = vpack.c.b16 %v2387, %v2383
    %v2800 = vpack.c.b16 %v2388, %v2384
    %v2801 = vpack.c.b16 %v2389, %v2385
    %v2802 = vpack.c.b16 %v2390, %v2386
    %v2803 = vpack.c.b16 %v2395, %v2391
    %v2804 = vpack.c.b16 %v2396, %v2392
    %v2805 = vpack.c.b16 %v2397, %v2393
    %v2806 = vpack.c.b16 %v2398, %v2394
    %v2807 = vpack.c.b16 %v2403, %v2399
    %v2808 = vpack.c.b16 %v2404, %v2400
    %v2809 = vpack.c.b16 %v2405, %v2401
    %v2810 = vpack.c.b16 %v2406, %v2402
    %v2811 = vpack.c.b16 %v2411, %v2407
    %v2812 = vpack.c.b16 %v2412, %v2408
    %v2813 = vpack.c.b16 %v2413, %v2409
    %v2814 = vpack.c.b16 %v2414, %v2410
    %v2815 = vpack.c.b16 %v2419, %v2415
    %v2816 = vpack.c.b16 %v2420, %v2416
    %v2817 = vpack.c.b16 %v2421, %v2417
    %v2818 = vpack.c.b16 %v2422, %v2418
    %v2819 = vpack.c.b16 %v2427, %v2423
    %v2820 = vpack.c.b16 %v2428, %v2424
    %v2821 = vpack.c.b16 %v2429, %v2425
    %v2822 = vpack.c.b16 %v2430, %v2426
    %v2823 = vpack.c.b16 %v2435, %v2431
    %v2824 = vpack.c.b16 %v2436, %v2432
    %v2825 = vpack.c.b16 %v2437, %v2433
    %v2826 = vpack.c.b16 %v2438, %v2434
    %v2827 = vpack.c.b16 %v2443, %v2439
    %v2828 = vpack.c.b16 %v2444, %v2440
    %v2829 = vpack.c.b16 %v2445, %v2441
    %v2830 = vpack.c.b16 %v2446, %v2442
    %v2831 = vpack.c.b16 %v2451, %v2447
    %v2832 = vpack.c.b16 %v2452, %v2448
    %v2833 = vpack.c.b16 %v2453, %v2449
    %v2834 = vpack.c.b16 %v2454, %v2450
    %v2835 = vpack.c.b16 %v2459, %v2455
    %v2836 = vpack.c.b16 %v2460, %v2456
    %v2837 = vpack.c.b16 %v2461, %v2457
    %v2838 = vpack.c.b16 %v2462, %v2458
    %v2839 = vpack.c.b16 %v2467, %v2463
    %v2840 = vpack.c.b16 %v2468, %v2464
    %v2841 = vpack.c.b16 %v2469, %v2465
    %v2842 = vpack.c.b16 %v2470, %v2466
    %v2843 = vpack.c.b16 %v2475, %v2471
    %v2844 = vpack.c.b16 %v2476, %v2472
    %v2845 = vpack.c.b16 %v2477, %v2473
    %v2846 = vpack.c.b16 %v2478, %v2474
    %v2847 = vpack.c.b16 %v2483, %v2479
    %v2848 = vpack.c.b16 %v2484, %v2480
    %v2849 = vpack.c.b16 %v2485, %v2481
    %v2850 = vpack.c.b16 %v2486, %v2482
    %v2851 = vpack.c.b16 %v2491, %v2487
    %v2852 = vpack.c.b16 %v2492, %v2488
    %v2853 = vpack.c.b16 %v2493, %v2489
    %v2854 = vpack.c.b16 %v2494, %v2490
    %v2855 = vpack.c.b16 %v2499, %v2495
    %v2856 = vpack.c.b16 %v2500, %v2496
    %v2857 = vpack.c.b16 %v2501, %v2497
    %v2858 = vpack.c.b16 %v2502, %v2498
    %v2859 = vpack.c.b16 %v2507, %v2503
    %v2860 = vpack.c.b16 %v2508, %v2504
    %v2861 = vpack.c.b16 %v2509, %v2505
    %v2862 = vpack.c.b16 %v2510, %v2506
    %v2863 = vpack.c.b16 %v2515, %v2511
    %v2864 = vpack.c.b16 %v2516, %v2512
    %v2865 = vpack.c.b16 %v2517, %v2513
    %v2866 = vpack.c.b16 %v2518, %v2514
    %v2867 = vpack.c.b16 %v2523, %v2519
    %v2868 = vpack.c.b16 %v2524, %v2520
    %v2869 = vpack.c.b16 %v2525, %v2521
    %v2870 = vpack.c.b16 %v2526, %v2522
    %v2871 = vpack.c.b16 %v2531, %v2527
    %v2872 = vpack.c.b16 %v2532, %v2528
    %v2873 = vpack.c.b16 %v2533, %v2529
    %v2874 = vpack.c.b16 %v2534, %v2530
    %v2875 = vpack.c.b16 %v2539, %v2535
    %v2876 = vpack.c.b16 %v2540, %v2536
    %v2877 = vpack.c.b16 %v2541, %v2537
    %v2878 = vpack.c.b16 %v2542, %v2538
    %v2879 = vpack.c.b16 %v2547, %v2543
    %v2880 = vpack.c.b16 %v2548, %v2544
    %v2881 = vpack.c.b16 %v2549, %v2545
    %v2882 = vpack.c.b16 %v2550, %v2546
    %v2883 = vpack.c.b16 %v2555, %v2551
    %v2884 = vpack.c.b16 %v2556, %v2552
    %v2885 = vpack.c.b16 %v2557, %v2553
    %v2886 = vpack.c.b16 %v2558, %v2554
    %v2887 = vpack.c.b16 %v2563, %v2559
    %v2888 = vpack.c.b16 %v2564, %v2560
    %v2889 = vpack.c.b16 %v2565, %v2561
    %v2890 = vpack.c.b16 %v2566, %v2562
    %v2891 = vpack.c.b16 %v2571, %v2567
    %v2892 = vpack.c.b16 %v2572, %v2568
    %v2893 = vpack.c.b16 %v2573, %v2569
    %v2894 = vpack.c.b16 %v2574, %v2570
    %v2895 = vpack.c.b16 %v2579, %v2575
    %v2896 = vpack.c.b16 %v2580, %v2576
    %v2897 = vpack.c.b16 %v2581, %v2577
    %v2898 = vpack.c.b16 %v2582, %v2578
    %v2899 = vpack.c.b16 %v2587, %v2583
    %v2900 = vpack.c.b16 %v2588, %v2584
    %v2901 = vpack.c.b16 %v2589, %v2585
    %v2902 = vpack.c.b16 %v2590, %v2586
    %v2903 = vpack.c.b16 %v2595, %v2591
    %v2904 = vpack.c.b16 %v2596, %v2592
    %v2905 = vpack.c.b16 %v2597, %v2593
    %v2906 = vpack.c.b16 %v2598, %v2594
    %v2907 = vpack.c.b16 %v2603, %v2599
    %v2908 = vpack.c.b16 %v2604, %v2600
    %v2909 = vpack.c.b16 %v2605, %v2601
    %v2910 = vpack.c.b16 %v2606, %v2602
    %v2911 = vpack.c.b16 %v2611, %v2607
    %v2912 = vpack.c.b16 %v2612, %v2608
    %v2913 = vpack.c.b16 %v2613, %v2609
    %v2914 = vpack.c.b16 %v2614, %v2610
    %v2915 = vpack.c.b16 %v2619, %v2615
    %v2916 = vpack.c.b16 %v2620, %v2616
    %v2917 = vpack.c.b16 %v2621, %v2617
    %v2918 = vpack.c.b16 %v2622, %v2618
    %v2919 = vpack.c.b16 %v2627, %v2623
    %v2920 = vpack.c.b16 %v2628, %v2624
    %v2921 = vpack.c.b16 %v2629, %v2625
    %v2922 = vpack.c.b16 %v2630, %v2626
    %v2923 = vpack.c.b16 %v2635, %v2631
    %v2924 = vpack.c.b16 %v2636, %v2632
    %v2925 = vpack.c.b16 %v2637, %v2633
    %v2926 = vpack.c.b16 %v2638, %v2634
    %v2927 = vpack.c.b16 %v2643, %v2639
    %v2928 = vpack.c.b16 %v2644, %v2640
    %v2929 = vpack.c.b16 %v2645, %v2641
    %v2930 = vpack.c.b16 %v2646, %v2642
    %v2931 = vpack.c.b16 %v2651, %v2647
    %v2932 = vpack.c.b16 %v2652, %v2648
    %v2933 = vpack.c.b16 %v2653, %v2649
    %v2934 = vpack.c.b16 %v2654, %v2650
    %v2935 = vpack.c.b16 %v2659, %v2655
    %v2936 = vpack.c.b16 %v2660, %v2656
    %v2937 = vpack.c.b16 %v2661, %v2657
    %v2938 = vpack.c.b16 %v2662, %v2658
    %v2939 = vpack.c.b16 %v2667, %v2663
    %v2940 = vpack.c.b16 %v2668, %v2664
    %v2941 = vpack.c.b16 %v2669, %v2665
    %v2942 = vpack.c.b16 %v2670, %v2666
    %v2943 = vpack.c.b16 %v2675, %v2671
    %v2944 = vpack.c.b16 %v2676, %v2672
    %v2945 = vpack.c.b16 %v2677, %v2673
    %v2946 = vpack.c.b16 %v2678, %v2674
    %v2947 = vpack.c.b16 %v2683, %v2679
    %v2948 = vpack.c.b16 %v2684, %v2680
    %v2949 = vpack.c.b16 %v2685, %v2681
    %v2950 = vpack.c.b16 %v2686, %v2682
    %v2951 = vpack.c.b16 %v2691, %v2687
    %v2952 = vpack.c.b16 %v2692, %v2688
    %v2953 = vpack.c.b16 %v2693, %v2689
    %v2954 = vpack.c.b16 %v2694, %v2690
    %v2955 = vpack.c.b16 %v2699, %v2695
    %v2956 = vpack.c.b16 %v2700, %v2696
    %v2957 = vpack.c.b16 %v2701, %v2697
    %v2958 = vpack.c.b16 %v2702, %v2698
    %3215 = vmatpush.bf16.msra.mxu0 %v2731
    %3216 = vmatpush.bf16.msra.mxu0 %v2727
    %3217 = vmatpush.bf16.msra.mxu0 %v2723
    %3218 = vmatpush.bf16.msra.mxu0 %v2719
    %3219 = vmatpush.bf16.msra.mxu0 %v2715
    %3220 = vmatpush.bf16.msra.mxu0 %v2711
    %3221 = vmatpush.bf16.msra.mxu0 %v2707
    %3222 = vmatpush.bf16.msra.mxu0 %v2703
    %3223 = vmatmul.bf16.gmra.mxu0 %v1661
    %v3224 = vpop.f32.mrf.mxu0
    %v3225 = vadd.f32 %v1927, %v3224
    %v3226 = vpop.f32.mrf.mxu0
    %3227 = vdwg.mxu0
    %3228 = vmatpush.bf16.msra.mxu0 %v2763
    %3229 = vmatpush.bf16.msra.mxu0 %v2759
    %3230 = vmatpush.bf16.msra.mxu0 %v2755
    %3231 = vmatpush.bf16.msra.mxu0 %v2751
    %3232 = vmatpush.bf16.msra.mxu0 %v2747
    %3233 = vmatpush.bf16.msra.mxu0 %v2743
    %3234 = vmatpush.bf16.msra.mxu0 %v2739
    %3235 = vmatpush.bf16.msra.mxu0 %v2735
    %3236 = vmatmul.bf16.gmra.mxu0 %v1662
    %v3237 = vpop.f32.mrf.mxu0
    %v3238 = vadd.f32 %v3225, %v3237
    %v3239 = vpop.f32.mrf.mxu0
    %3240 = vdwg.mxu0
    %3241 = vmatpush.bf16.msra.mxu0 %v2795
    %3242 = vmatpush.bf16.msra.mxu0 %v2791
    %3243 = vmatpush.bf16.msra.mxu0 %v2787
    %3244 = vmatpush.bf16.msra.mxu0 %v2783
    %3245 = vmatpush.bf16.msra.mxu0 %v2779
    %3246 = vmatpush.bf16.msra.mxu0 %v2775
    %3247 = vmatpush.bf16.msra.mxu0 %v2771
    %3248 = vmatpush.bf16.msra.mxu0 %v2767
    %3249 = vmatmul.bf16.gmra.mxu0 %v1663
    %v3250 = vpop.f32.mrf.mxu0
    %v3251 = vadd.f32 %v3238, %v3250
    %v3252 = vpop.f32.mrf.mxu0
    %3253 = vdwg.mxu0
    %3254 = vmatpush.bf16.msra.mxu0 %v2827
    %3255 = vmatpush.bf16.msra.mxu0 %v2823
    %3256 = vmatpush.bf16.msra.mxu0 %v2819
    %3257 = vmatpush.bf16.msra.mxu0 %v2815
    %3258 = vmatpush.bf16.msra.mxu0 %v2811
    %3259 = vmatpush.bf16.msra.mxu0 %v2807
    %3260 = vmatpush.bf16.msra.mxu0 %v2803
    %3261 = vmatpush.bf16.msra.mxu0 %v2799
    %3262 = vmatmul.bf16.gmra.mxu0 %v1664
    %v3263 = vpop.f32.mrf.mxu0
    %v3264 = vadd.f32 %v3251, %v3263
    %v3265 = vpop.f32.mrf.mxu0
    %3266 = vdwg.mxu0
    %3267 = vmatpush.bf16.msra.mxu0 %v2859
    %3268 = vmatpush.bf16.msra.mxu0 %v2855
    %3269 = vmatpush.bf16.msra.mxu0 %v2851
    %3270 = vmatpush.bf16.msra.mxu0 %v2847
    %3271 = vmatpush.bf16.msra.mxu0 %v2843
    %3272 = vmatpush.bf16.msra.mxu0 %v2839
    %3273 = vmatpush.bf16.msra.mxu0 %v2835
    %3274 = vmatpush.bf16.msra.mxu0 %v2831
    %3275 = vmatmul.bf16.gmra.mxu0 %v1665
    %v3276 = vpop.f32.mrf.mxu0
    %v3277 = vadd.f32 %v3264, %v3276
    %v3278 = vpop.f32.mrf.mxu0
    %3279 = vdwg.mxu0
    %3280 = vmatpush.bf16.msra.mxu0 %v2891
    %3281 = vmatpush.bf16.msra.mxu0 %v2887
    %3282 = vmatpush.bf16.msra.mxu0 %v2883
    %3283 = vmatpush.bf16.msra.mxu0 %v2879
    %3284 = vmatpush.bf16.msra.mxu0 %v2875
    %3285 = vmatpush.bf16.msra.mxu0 %v2871
    %3286 = vmatpush.bf16.msra.mxu0 %v2867
    %3287 = vmatpush.bf16.msra.mxu0 %v2863
    %3288 = vmatmul.bf16.gmra.mxu0 %v1666
    %v3289 = vpop.f32.mrf.mxu0
    %v3290 = vadd.f32 %v3277, %v3289
    %v3291 = vpop.f32.mrf.mxu0
    %3292 = vdwg.mxu0
    %3293 = vmatpush.bf16.msra.mxu0 %v2923
    %3294 = vmatpush.bf16.msra.mxu0 %v2919
    %3295 = vmatpush.bf16.msra.mxu0 %v2915
    %3296 = vmatpush.bf16.msra.mxu0 %v2911
    %3297 = vmatpush.bf16.msra.mxu0 %v2907
    %3298 = vmatpush.bf16.msra.mxu0 %v2903
    %3299 = vmatpush.bf16.msra.mxu0 %v2899
    %3300 = vmatpush.bf16.msra.mxu0 %v2895
    %3301 = vmatmul.bf16.gmra.mxu0 %v1667
    %v3302 = vpop.f32.mrf.mxu0
    %v3303 = vadd.f32 %v3290, %v3302
    %v3304 = vpop.f32.mrf.mxu0
    %3305 = vdwg.mxu0
    %3306 = vmatpush.bf16.msra.mxu0 %v2955
    %3307 = vmatpush.bf16.msra.mxu0 %v2951
    %3308 = vmatpush.bf16.msra.mxu0 %v2947
    %3309 = vmatpush.bf16.msra.mxu0 %v2943
    %3310 = vmatpush.bf16.msra.mxu0 %v2939
    %3311 = vmatpush.bf16.msra.mxu0 %v2935
    %3312 = vmatpush.bf16.msra.mxu0 %v2931
    %3313 = vmatpush.bf16.msra.mxu0 %v2927
    %3314 = vmatmul.bf16.gmra.mxu0 %v1668
    %v3315 = vpop.f32.mrf.mxu0
    %v3316 = vadd.f32 %v3303, %v3315
    %v3317 = vpop.f32.mrf.mxu0
    %3318 = vdwg.mxu0
    %3319 = vmatpush.bf16.msra.mxu0 %v2732
    %3320 = vmatpush.bf16.msra.mxu0 %v2728
    %3321 = vmatpush.bf16.msra.mxu0 %v2724
    %3322 = vmatpush.bf16.msra.mxu0 %v2720
    %3323 = vmatpush.bf16.msra.mxu0 %v2716
    %3324 = vmatpush.bf16.msra.mxu0 %v2712
    %3325 = vmatpush.bf16.msra.mxu0 %v2708
    %3326 = vmatpush.bf16.msra.mxu0 %v2704
    %3327 = vmatmul.bf16.gmra.mxu0 %v1661
    %v3328 = vpop.f32.mrf.mxu0
    %v3329 = vadd.f32 %v1928, %v3328
    %v3330 = vpop.f32.mrf.mxu0
    %3331 = vdwg.mxu0
    %3332 = vmatpush.bf16.msra.mxu0 %v2764
    %3333 = vmatpush.bf16.msra.mxu0 %v2760
    %3334 = vmatpush.bf16.msra.mxu0 %v2756
    %3335 = vmatpush.bf16.msra.mxu0 %v2752
    %3336 = vmatpush.bf16.msra.mxu0 %v2748
    %3337 = vmatpush.bf16.msra.mxu0 %v2744
    %3338 = vmatpush.bf16.msra.mxu0 %v2740
    %3339 = vmatpush.bf16.msra.mxu0 %v2736
    %3340 = vmatmul.bf16.gmra.mxu0 %v1662
    %v3341 = vpop.f32.mrf.mxu0
    %v3342 = vadd.f32 %v3329, %v3341
    %v3343 = vpop.f32.mrf.mxu0
    %3344 = vdwg.mxu0
    %3345 = vmatpush.bf16.msra.mxu0 %v2796
    %3346 = vmatpush.bf16.msra.mxu0 %v2792
    %3347 = vmatpush.bf16.msra.mxu0 %v2788
    %3348 = vmatpush.bf16.msra.mxu0 %v2784
    %3349 = vmatpush.bf16.msra.mxu0 %v2780
    %3350 = vmatpush.bf16.msra.mxu0 %v2776
    %3351 = vmatpush.bf16.msra.mxu0 %v2772
    %3352 = vmatpush.bf16.msra.mxu0 %v2768
    %3353 = vmatmul.bf16.gmra.mxu0 %v1663
    %v3354 = vpop.f32.mrf.mxu0
    %v3355 = vadd.f32 %v3342, %v3354
    %v3356 = vpop.f32.mrf.mxu0
    %3357 = vdwg.mxu0
    %3358 = vmatpush.bf16.msra.mxu0 %v2828
    %3359 = vmatpush.bf16.msra.mxu0 %v2824
    %3360 = vmatpush.bf16.msra.mxu0 %v2820
    %3361 = vmatpush.bf16.msra.mxu0 %v2816
    %3362 = vmatpush.bf16.msra.mxu0 %v2812
    %3363 = vmatpush.bf16.msra.mxu0 %v2808
    %3364 = vmatpush.bf16.msra.mxu0 %v2804
    %3365 = vmatpush.bf16.msra.mxu0 %v2800
    %3366 = vmatmul.bf16.gmra.mxu0 %v1664
    %v3367 = vpop.f32.mrf.mxu0
    %v3368 = vadd.f32 %v3355, %v3367
    %v3369 = vpop.f32.mrf.mxu0
    %3370 = vdwg.mxu0
    %3371 = vmatpush.bf16.msra.mxu0 %v2860
    %3372 = vmatpush.bf16.msra.mxu0 %v2856
    %3373 = vmatpush.bf16.msra.mxu0 %v2852
    %3374 = vmatpush.bf16.msra.mxu0 %v2848
    %3375 = vmatpush.bf16.msra.mxu0 %v2844
    %3376 = vmatpush.bf16.msra.mxu0 %v2840
    %3377 = vmatpush.bf16.msra.mxu0 %v2836
    %3378 = vmatpush.bf16.msra.mxu0 %v2832
    %3379 = vmatmul.bf16.gmra.mxu0 %v1665
    %v3380 = vpop.f32.mrf.mxu0
    %v3381 = vadd.f32 %v3368, %v3380
    %v3382 = vpop.f32.mrf.mxu0
    %3383 = vdwg.mxu0
    %3384 = vmatpush.bf16.msra.mxu0 %v2892
    %3385 = vmatpush.bf16.msra.mxu0 %v2888
    %3386 = vmatpush.bf16.msra.mxu0 %v2884
    %3387 = vmatpush.bf16.msra.mxu0 %v2880
    %3388 = vmatpush.bf16.msra.mxu0 %v2876
    %3389 = vmatpush.bf16.msra.mxu0 %v2872
    %3390 = vmatpush.bf16.msra.mxu0 %v2868
    %3391 = vmatpush.bf16.msra.mxu0 %v2864
    %3392 = vmatmul.bf16.gmra.mxu0 %v1666
    %v3393 = vpop.f32.mrf.mxu0
    %v3394 = vadd.f32 %v3381, %v3393
    %v3395 = vpop.f32.mrf.mxu0
    %3396 = vdwg.mxu0
    %3397 = vmatpush.bf16.msra.mxu0 %v2924
    %3398 = vmatpush.bf16.msra.mxu0 %v2920
    %3399 = vmatpush.bf16.msra.mxu0 %v2916
    %3400 = vmatpush.bf16.msra.mxu0 %v2912
    %3401 = vmatpush.bf16.msra.mxu0 %v2908
    %3402 = vmatpush.bf16.msra.mxu0 %v2904
    %3403 = vmatpush.bf16.msra.mxu0 %v2900
    %3404 = vmatpush.bf16.msra.mxu0 %v2896
    %3405 = vmatmul.bf16.gmra.mxu0 %v1667
    %v3406 = vpop.f32.mrf.mxu0
    %v3407 = vadd.f32 %v3394, %v3406
    %v3408 = vpop.f32.mrf.mxu0
    %3409 = vdwg.mxu0
    %3410 = vmatpush.bf16.msra.mxu0 %v2956
    %3411 = vmatpush.bf16.msra.mxu0 %v2952
    %3412 = vmatpush.bf16.msra.mxu0 %v2948
    %3413 = vmatpush.bf16.msra.mxu0 %v2944
    %3414 = vmatpush.bf16.msra.mxu0 %v2940
    %3415 = vmatpush.bf16.msra.mxu0 %v2936
    %3416 = vmatpush.bf16.msra.mxu0 %v2932
    %3417 = vmatpush.bf16.msra.mxu0 %v2928
    %3418 = vmatmul.bf16.gmra.mxu0 %v1668
    %v3419 = vpop.f32.mrf.mxu0
    %v3420 = vadd.f32 %v3407, %v3419
    %v3421 = vpop.f32.mrf.mxu0
    %3422 = vdwg.mxu0
    %3423 = vmatpush.bf16.msra.mxu0 %v2733
    %3424 = vmatpush.bf16.msra.mxu0 %v2729
    %3425 = vmatpush.bf16.msra.mxu0 %v2725
    %3426 = vmatpush.bf16.msra.mxu0 %v2721
    %3427 = vmatpush.bf16.msra.mxu0 %v2717
    %3428 = vmatpush.bf16.msra.mxu0 %v2713
    %3429 = vmatpush.bf16.msra.mxu0 %v2709
    %3430 = vmatpush.bf16.msra.mxu0 %v2705
    %3431 = vmatmul.bf16.gmra.mxu0 %v1661
    %v3432 = vpop.f32.mrf.mxu0
    %v3433 = vadd.f32 %v1929, %v3432
    %v3434 = vpop.f32.mrf.mxu0
    %3435 = vdwg.mxu0
    %3436 = vmatpush.bf16.msra.mxu0 %v2765
    %3437 = vmatpush.bf16.msra.mxu0 %v2761
    %3438 = vmatpush.bf16.msra.mxu0 %v2757
    %3439 = vmatpush.bf16.msra.mxu0 %v2753
    %3440 = vmatpush.bf16.msra.mxu0 %v2749
    %3441 = vmatpush.bf16.msra.mxu0 %v2745
    %3442 = vmatpush.bf16.msra.mxu0 %v2741
    %3443 = vmatpush.bf16.msra.mxu0 %v2737
    %3444 = vmatmul.bf16.gmra.mxu0 %v1662
    %v3445 = vpop.f32.mrf.mxu0
    %v3446 = vadd.f32 %v3433, %v3445
    %v3447 = vpop.f32.mrf.mxu0
    %3448 = vdwg.mxu0
    %3449 = vmatpush.bf16.msra.mxu0 %v2797
    %3450 = vmatpush.bf16.msra.mxu0 %v2793
    %3451 = vmatpush.bf16.msra.mxu0 %v2789
    %3452 = vmatpush.bf16.msra.mxu0 %v2785
    %3453 = vmatpush.bf16.msra.mxu0 %v2781
    %3454 = vmatpush.bf16.msra.mxu0 %v2777
    %3455 = vmatpush.bf16.msra.mxu0 %v2773
    %3456 = vmatpush.bf16.msra.mxu0 %v2769
    %3457 = vmatmul.bf16.gmra.mxu0 %v1663
    %v3458 = vpop.f32.mrf.mxu0
    %v3459 = vadd.f32 %v3446, %v3458
    %v3460 = vpop.f32.mrf.mxu0
    %3461 = vdwg.mxu0
    %3462 = vmatpush.bf16.msra.mxu0 %v2829
    %3463 = vmatpush.bf16.msra.mxu0 %v2825
    %3464 = vmatpush.bf16.msra.mxu0 %v2821
    %3465 = vmatpush.bf16.msra.mxu0 %v2817
    %3466 = vmatpush.bf16.msra.mxu0 %v2813
    %3467 = vmatpush.bf16.msra.mxu0 %v2809
    %3468 = vmatpush.bf16.msra.mxu0 %v2805
    %3469 = vmatpush.bf16.msra.mxu0 %v2801
    %3470 = vmatmul.bf16.gmra.mxu0 %v1664
    %v3471 = vpop.f32.mrf.mxu0
    %v3472 = vadd.f32 %v3459, %v3471
    %v3473 = vpop.f32.mrf.mxu0
    %3474 = vdwg.mxu0
    %3475 = vmatpush.bf16.msra.mxu0 %v2861
    %3476 = vmatpush.bf16.msra.mxu0 %v2857
    %3477 = vmatpush.bf16.msra.mxu0 %v2853
    %3478 = vmatpush.bf16.msra.mxu0 %v2849
    %3479 = vmatpush.bf16.msra.mxu0 %v2845
    %3480 = vmatpush.bf16.msra.mxu0 %v2841
    %3481 = vmatpush.bf16.msra.mxu0 %v2837
    %3482 = vmatpush.bf16.msra.mxu0 %v2833
    %3483 = vmatmul.bf16.gmra.mxu0 %v1665
    %v3484 = vpop.f32.mrf.mxu0
    %v3485 = vadd.f32 %v3472, %v3484
    %v3486 = vpop.f32.mrf.mxu0
    %3487 = vdwg.mxu0
    %3488 = vmatpush.bf16.msra.mxu0 %v2893
    %3489 = vmatpush.bf16.msra.mxu0 %v2889
    %3490 = vmatpush.bf16.msra.mxu0 %v2885
    %3491 = vmatpush.bf16.msra.mxu0 %v2881
    %3492 = vmatpush.bf16.msra.mxu0 %v2877
    %3493 = vmatpush.bf16.msra.mxu0 %v2873
    %3494 = vmatpush.bf16.msra.mxu0 %v2869
    %3495 = vmatpush.bf16.msra.mxu0 %v2865
    %3496 = vmatmul.bf16.gmra.mxu0 %v1666
    %v3497 = vpop.f32.mrf.mxu0
    %v3498 = vadd.f32 %v3485, %v3497
    %v3499 = vpop.f32.mrf.mxu0
    %3500 = vdwg.mxu0
    %3501 = vmatpush.bf16.msra.mxu0 %v2925
    %3502 = vmatpush.bf16.msra.mxu0 %v2921
    %3503 = vmatpush.bf16.msra.mxu0 %v2917
    %3504 = vmatpush.bf16.msra.mxu0 %v2913
    %3505 = vmatpush.bf16.msra.mxu0 %v2909
    %3506 = vmatpush.bf16.msra.mxu0 %v2905
    %3507 = vmatpush.bf16.msra.mxu0 %v2901
    %3508 = vmatpush.bf16.msra.mxu0 %v2897
    %3509 = vmatmul.bf16.gmra.mxu0 %v1667
    %v3510 = vpop.f32.mrf.mxu0
    %v3511 = vadd.f32 %v3498, %v3510
    %v3512 = vpop.f32.mrf.mxu0
    %3513 = vdwg.mxu0
    %3514 = vmatpush.bf16.msra.mxu0 %v2957
    %3515 = vmatpush.bf16.msra.mxu0 %v2953
    %3516 = vmatpush.bf16.msra.mxu0 %v2949
    %3517 = vmatpush.bf16.msra.mxu0 %v2945
    %3518 = vmatpush.bf16.msra.mxu0 %v2941
    %3519 = vmatpush.bf16.msra.mxu0 %v2937
    %3520 = vmatpush.bf16.msra.mxu0 %v2933
    %3521 = vmatpush.bf16.msra.mxu0 %v2929
    %3522 = vmatmul.bf16.gmra.mxu0 %v1668
    %v3523 = vpop.f32.mrf.mxu0
    %v3524 = vadd.f32 %v3511, %v3523
    %v3525 = vpop.f32.mrf.mxu0
    %3526 = vdwg.mxu0
    %3527 = vmatpush.bf16.msra.mxu0 %v2734
    %3528 = vmatpush.bf16.msra.mxu0 %v2730
    %3529 = vmatpush.bf16.msra.mxu0 %v2726
    %3530 = vmatpush.bf16.msra.mxu0 %v2722
    %3531 = vmatpush.bf16.msra.mxu0 %v2718
    %3532 = vmatpush.bf16.msra.mxu0 %v2714
    %3533 = vmatpush.bf16.msra.mxu0 %v2710
    %3534 = vmatpush.bf16.msra.mxu0 %v2706
    %3535 = vmatmul.bf16.gmra.mxu0 %v1661
    %v3536 = vpop.f32.mrf.mxu0
    %v3537 = vadd.f32 %v1930, %v3536
    %v3538 = vpop.f32.mrf.mxu0
    %3539 = vdwg.mxu0
    %3540 = vmatpush.bf16.msra.mxu0 %v2766
    %3541 = vmatpush.bf16.msra.mxu0 %v2762
    %3542 = vmatpush.bf16.msra.mxu0 %v2758
    %3543 = vmatpush.bf16.msra.mxu0 %v2754
    %3544 = vmatpush.bf16.msra.mxu0 %v2750
    %3545 = vmatpush.bf16.msra.mxu0 %v2746
    %3546 = vmatpush.bf16.msra.mxu0 %v2742
    %3547 = vmatpush.bf16.msra.mxu0 %v2738
    %3548 = vmatmul.bf16.gmra.mxu0 %v1662
    %v3549 = vpop.f32.mrf.mxu0
    %v3550 = vadd.f32 %v3537, %v3549
    %v3551 = vpop.f32.mrf.mxu0
    %3552 = vdwg.mxu0
    %3553 = vmatpush.bf16.msra.mxu0 %v2798
    %3554 = vmatpush.bf16.msra.mxu0 %v2794
    %3555 = vmatpush.bf16.msra.mxu0 %v2790
    %3556 = vmatpush.bf16.msra.mxu0 %v2786
    %3557 = vmatpush.bf16.msra.mxu0 %v2782
    %3558 = vmatpush.bf16.msra.mxu0 %v2778
    %3559 = vmatpush.bf16.msra.mxu0 %v2774
    %3560 = vmatpush.bf16.msra.mxu0 %v2770
    %3561 = vmatmul.bf16.gmra.mxu0 %v1663
    %v3562 = vpop.f32.mrf.mxu0
    %v3563 = vadd.f32 %v3550, %v3562
    %v3564 = vpop.f32.mrf.mxu0
    %3565 = vdwg.mxu0
    %3566 = vmatpush.bf16.msra.mxu0 %v2830
    %3567 = vmatpush.bf16.msra.mxu0 %v2826
    %3568 = vmatpush.bf16.msra.mxu0 %v2822
    %3569 = vmatpush.bf16.msra.mxu0 %v2818
    %3570 = vmatpush.bf16.msra.mxu0 %v2814
    %3571 = vmatpush.bf16.msra.mxu0 %v2810
    %3572 = vmatpush.bf16.msra.mxu0 %v2806
    %3573 = vmatpush.bf16.msra.mxu0 %v2802
    %3574 = vmatmul.bf16.gmra.mxu0 %v1664
    %v3575 = vpop.f32.mrf.mxu0
    %v3576 = vadd.f32 %v3563, %v3575
    %v3577 = vpop.f32.mrf.mxu0
    %3578 = vdwg.mxu0
    %3579 = vmatpush.bf16.msra.mxu0 %v2862
    %3580 = vmatpush.bf16.msra.mxu0 %v2858
    %3581 = vmatpush.bf16.msra.mxu0 %v2854
    %3582 = vmatpush.bf16.msra.mxu0 %v2850
    %3583 = vmatpush.bf16.msra.mxu0 %v2846
    %3584 = vmatpush.bf16.msra.mxu0 %v2842
    %3585 = vmatpush.bf16.msra.mxu0 %v2838
    %3586 = vmatpush.bf16.msra.mxu0 %v2834
    %3587 = vmatmul.bf16.gmra.mxu0 %v1665
    %v3588 = vpop.f32.mrf.mxu0
    %v3589 = vadd.f32 %v3576, %v3588
    %v3590 = vpop.f32.mrf.mxu0
    %3591 = vdwg.mxu0
    %3592 = vmatpush.bf16.msra.mxu0 %v2894
    %3593 = vmatpush.bf16.msra.mxu0 %v2890
    %3594 = vmatpush.bf16.msra.mxu0 %v2886
    %3595 = vmatpush.bf16.msra.mxu0 %v2882
    %3596 = vmatpush.bf16.msra.mxu0 %v2878
    %3597 = vmatpush.bf16.msra.mxu0 %v2874
    %3598 = vmatpush.bf16.msra.mxu0 %v2870
    %3599 = vmatpush.bf16.msra.mxu0 %v2866
    %3600 = vmatmul.bf16.gmra.mxu0 %v1666
    %v3601 = vpop.f32.mrf.mxu0
    %v3602 = vadd.f32 %v3589, %v3601
    %v3603 = vpop.f32.mrf.mxu0
    %3604 = vdwg.mxu0
    %3605 = vmatpush.bf16.msra.mxu0 %v2926
    %3606 = vmatpush.bf16.msra.mxu0 %v2922
    %3607 = vmatpush.bf16.msra.mxu0 %v2918
    %3608 = vmatpush.bf16.msra.mxu0 %v2914
    %3609 = vmatpush.bf16.msra.mxu0 %v2910
    %3610 = vmatpush.bf16.msra.mxu0 %v2906
    %3611 = vmatpush.bf16.msra.mxu0 %v2902
    %3612 = vmatpush.bf16.msra.mxu0 %v2898
    %3613 = vmatmul.bf16.gmra.mxu0 %v1667
    %v3614 = vpop.f32.mrf.mxu0
    %v3615 = vadd.f32 %v3602, %v3614
    %v3616 = vpop.f32.mrf.mxu0
    %3617 = vdwg.mxu0
    %3618 = vmatpush.bf16.msra.mxu0 %v2958
    %3619 = vmatpush.bf16.msra.mxu0 %v2954
    %3620 = vmatpush.bf16.msra.mxu0 %v2950
    %3621 = vmatpush.bf16.msra.mxu0 %v2946
    %3622 = vmatpush.bf16.msra.mxu0 %v2942
    %3623 = vmatpush.bf16.msra.mxu0 %v2938
    %3624 = vmatpush.bf16.msra.mxu0 %v2934
    %3625 = vmatpush.bf16.msra.mxu0 %v2930
    %3626 = vmatmul.bf16.gmra.mxu0 %v1668
    %v3627 = vpop.f32.mrf.mxu0
    %v3628 = vadd.f32 %v3615, %v3627
    %v3629 = vpop.f32.mrf.mxu0
    %3630 = vdwg.mxu0
    %v3631 = vmax.f32 %v3316, 0.0
    %v3632 = vmax.f32 %v3420, 0.0
    %v3633 = vmax.f32 %v3524, 0.0
    %v3634 = vmax.f32 %v3628, 0.0
    %v3635 = vpack.c.bf16 %v3631, %v3631
    %v3636 = vpack.c.bf16 %v3632, %v3632
    %v3637 = vpack.c.bf16 %v3633, %v3633
    %v3638 = vpack.c.bf16 %v3634, %v3634
    %v3639 = vld [vmem:[#allocation11] sm:$0xf]
    %v3640 = vld [vmem:[#allocation11 + $0x4] sm:$0xf]
    %v3641 = vld [vmem:[#allocation11 + $0x8] sm:$0xf]
    %v3642 = vld [vmem:[#allocation11 + $0xc] sm:$0xf]
    %v3643 = vld [vmem:[#allocation11 + $0x10] sm:$0xf]
    %v3644 = vld [vmem:[#allocation11 + $0x14] sm:$0xf]
    %v3645 = vld [vmem:[#allocation11 + $0x18] sm:$0xf]
    %v3646 = vld [vmem:[#allocation11 + $0x1c] sm:$0xf]
    %v3647 = vld [vmem:[#allocation11 + $0x20] sm:$0xf]
    %v3648 = vld [vmem:[#allocation11 + $0x24] sm:$0xf]
    %v3649 = vld [vmem:[#allocation11 + $0x28] sm:$0xf]
    %v3650 = vld [vmem:[#allocation11 + $0x2c] sm:$0xf]
    %v3651 = vld [vmem:[#allocation11 + $0x30] sm:$0xf]
    %v3652 = vld [vmem:[#allocation11 + $0x34] sm:$0xf]
    %v3653 = vld [vmem:[#allocation11 + $0x38] sm:$0xf]
    %v3654 = vld [vmem:[#allocation11 + $0x3c] sm:$0xf]
    %v3655 = vld [vmem:[#allocation11 + $0x40] sm:$0xf]
    %v3656 = vld [vmem:[#allocation11 + $0x44] sm:$0xf]
    %v3657 = vld [vmem:[#allocation11 + $0x48] sm:$0xf]
    %v3658 = vld [vmem:[#allocation11 + $0x4c] sm:$0xf]
    %v3659 = vld [vmem:[#allocation11 + $0x50] sm:$0xf]
    %v3660 = vld [vmem:[#allocation11 + $0x54] sm:$0xf]
    %v3661 = vld [vmem:[#allocation11 + $0x58] sm:$0xf]
    %v3662 = vld [vmem:[#allocation11 + $0x5c] sm:$0xf]
    %v3663 = vld [vmem:[#allocation11 + $0x60] sm:$0xf]
    %v3664 = vld [vmem:[#allocation11 + $0x64] sm:$0xf]
    %v3665 = vld [vmem:[#allocation11 + $0x68] sm:$0xf]
    %v3666 = vld [vmem:[#allocation11 + $0x6c] sm:$0xf]
    %v3667 = vld [vmem:[#allocation11 + $0x70] sm:$0xf]
    %v3668 = vld [vmem:[#allocation11 + $0x74] sm:$0xf]
    %v3669 = vld [vmem:[#allocation11 + $0x78] sm:$0xf]
    %v3670 = vld [vmem:[#allocation11 + $0x7c] sm:$0xf]
    %v3671 = vld [vmem:[#allocation11 + $0x80] sm:$0xf]
    %v3672 = vld [vmem:[#allocation11 + $0x84] sm:$0xf]
    %v3673 = vld [vmem:[#allocation11 + $0x88] sm:$0xf]
    %v3674 = vld [vmem:[#allocation11 + $0x8c] sm:$0xf]
    %v3675 = vld [vmem:[#allocation11 + $0x90] sm:$0xf]
    %v3676 = vld [vmem:[#allocation11 + $0x94] sm:$0xf]
    %v3677 = vld [vmem:[#allocation11 + $0x98] sm:$0xf]
    %v3678 = vld [vmem:[#allocation11 + $0x9c] sm:$0xf]
    %v3679 = vld [vmem:[#allocation11 + $0xa0] sm:$0xf]
    %v3680 = vld [vmem:[#allocation11 + $0xa4] sm:$0xf]
    %v3681 = vld [vmem:[#allocation11 + $0xa8] sm:$0xf]
    %v3682 = vld [vmem:[#allocation11 + $0xac] sm:$0xf]
    %v3683 = vld [vmem:[#allocation11 + $0xb0] sm:$0xf]
    %v3684 = vld [vmem:[#allocation11 + $0xb4] sm:$0xf]
    %v3685 = vld [vmem:[#allocation11 + $0xb8] sm:$0xf]
    %v3686 = vld [vmem:[#allocation11 + $0xbc] sm:$0xf]
    %v3687 = vld [vmem:[#allocation11 + $0xc0] sm:$0xf]
    %v3688 = vld [vmem:[#allocation11 + $0xc4] sm:$0xf]
    %v3689 = vld [vmem:[#allocation11 + $0xc8] sm:$0xf]
    %v3690 = vld [vmem:[#allocation11 + $0xcc] sm:$0xf]
    %v3691 = vld [vmem:[#allocation11 + $0xd0] sm:$0xf]
    %v3692 = vld [vmem:[#allocation11 + $0xd4] sm:$0xf]
    %v3693 = vld [vmem:[#allocation11 + $0xd8] sm:$0xf]
    %v3694 = vld [vmem:[#allocation11 + $0xdc] sm:$0xf]
    %v3695 = vld [vmem:[#allocation11 + $0xe0] sm:$0xf]
    %v3696 = vld [vmem:[#allocation11 + $0xe4] sm:$0xf]
    %v3697 = vld [vmem:[#allocation11 + $0xe8] sm:$0xf]
    %v3698 = vld [vmem:[#allocation11 + $0xec] sm:$0xf]
    %v3699 = vld [vmem:[#allocation11 + $0xf0] sm:$0xf]
    %v3700 = vld [vmem:[#allocation11 + $0xf4] sm:$0xf]
    %v3701 = vld [vmem:[#allocation11 + $0xf8] sm:$0xf]
    %v3702 = vld [vmem:[#allocation11 + $0xfc] sm:$0xf]
    %v3703 = vld [vmem:[%s6] sm:$0x1]
    %v3705 = vperm.slane %v3703, 0
    %v3771 = vunpack.c.l.b16 %v3639
    %v3772 = vunpack.c.l.b16 %v3640
    %v3773 = vunpack.c.l.b16 %v3641
    %v3774 = vunpack.c.l.b16 %v3642
    %v3775 = vunpack.c.l.b16 %v3643
    %v3776 = vunpack.c.l.b16 %v3644
    %v3777 = vunpack.c.l.b16 %v3645
    %v3778 = vunpack.c.l.b16 %v3646
    %v3779 = vunpack.c.l.b16 %v3647
    %v3780 = vunpack.c.l.b16 %v3648
    %v3781 = vunpack.c.l.b16 %v3649
    %v3782 = vunpack.c.l.b16 %v3650
    %v3783 = vunpack.c.l.b16 %v3651
    %v3784 = vunpack.c.l.b16 %v3652
    %v3785 = vunpack.c.l.b16 %v3653
    %v3786 = vunpack.c.l.b16 %v3654
    %v3787 = vunpack.c.l.b16 %v3655
    %v3788 = vunpack.c.l.b16 %v3656
    %v3789 = vunpack.c.l.b16 %v3657
    %v3790 = vunpack.c.l.b16 %v3658
    %v3791 = vunpack.c.l.b16 %v3659
    %v3792 = vunpack.c.l.b16 %v3660
    %v3793 = vunpack.c.l.b16 %v3661
    %v3794 = vunpack.c.l.b16 %v3662
    %v3795 = vunpack.c.l.b16 %v3663
    %v3796 = vunpack.c.l.b16 %v3664
    %v3797 = vunpack.c.l.b16 %v3665
    %v3798 = vunpack.c.l.b16 %v3666
    %v3799 = vunpack.c.l.b16 %v3667
    %v3800 = vunpack.c.l.b16 %v3668
    %v3801 = vunpack.c.l.b16 %v3669
    %v3802 = vunpack.c.l.b16 %v3670
    %v3803 = vunpack.c.l.b16 %v3671
    %v3804 = vunpack.c.l.b16 %v3672
    %v3805 = vunpack.c.l.b16 %v3673
    %v3806 = vunpack.c.l.b16 %v3674
    %v3807 = vunpack.c.l.b16 %v3675
    %v3808 = vunpack.c.l.b16 %v3676
    %v3809 = vunpack.c.l.b16 %v3677
    %v3810 = vunpack.c.l.b16 %v3678
    %v3811 = vunpack.c.l.b16 %v3679
    %v3812 = vunpack.c.l.b16 %v3680
    %v3813 = vunpack.c.l.b16 %v3681
    %v3814 = vunpack.c.l.b16 %v3682
    %v3815 = vunpack.c.l.b16 %v3683
    %v3816 = vunpack.c.l.b16 %v3684
    %v3817 = vunpack.c.l.b16 %v3685
    %v3818 = vunpack.c.l.b16 %v3686
    %v3819 = vunpack.c.l.b16 %v3687
    %v3820 = vunpack.c.l.b16 %v3688
    %v3821 = vunpack.c.l.b16 %v3689
    %v3822 = vunpack.c.l.b16 %v3690
    %v3823 = vunpack.c.l.b16 %v3691
    %v3824 = vunpack.c.l.b16 %v3692
    %v3825 = vunpack.c.l.b16 %v3693
    %v3826 = vunpack.c.l.b16 %v3694
    %v3827 = vunpack.c.l.b16 %v3695
    %v3828 = vunpack.c.l.b16 %v3696
    %v3829 = vunpack.c.l.b16 %v3697
    %v3830 = vunpack.c.l.b16 %v3698
    %v3831 = vunpack.c.l.b16 %v3699
    %v3832 = vunpack.c.l.b16 %v3700
    %v3833 = vunpack.c.l.b16 %v3701
    %v3834 = vunpack.c.l.b16 %v3702
    %v3835 = vpack.c.b16 %v3772, %v3771
    %v3836 = vpack.c.b16 %v3774, %v3773
    %v3837 = vpack.c.b16 %v3776, %v3775
    %v3838 = vpack.c.b16 %v3778, %v3777
    %v3839 = vpack.c.b16 %v3780, %v3779
    %v3840 = vpack.c.b16 %v3782, %v3781
    %v3841 = vpack.c.b16 %v3784, %v3783
    %v3842 = vpack.c.b16 %v3786, %v3785
    %v3843 = vpack.c.b16 %v3788, %v3787
    %v3844 = vpack.c.b16 %v3790, %v3789
    %v3845 = vpack.c.b16 %v3792, %v3791
    %v3846 = vpack.c.b16 %v3794, %v3793
    %v3847 = vpack.c.b16 %v3796, %v3795
    %v3848 = vpack.c.b16 %v3798, %v3797
    %v3849 = vpack.c.b16 %v3800, %v3799
    %v3850 = vpack.c.b16 %v3802, %v3801
    %v3851 = vpack.c.b16 %v3804, %v3803
    %v3852 = vpack.c.b16 %v3806, %v3805
    %v3853 = vpack.c.b16 %v3808, %v3807
    %v3854 = vpack.c.b16 %v3810, %v3809
    %v3855 = vpack.c.b16 %v3812, %v3811
    %v3856 = vpack.c.b16 %v3814, %v3813
    %v3857 = vpack.c.b16 %v3816, %v3815
    %v3858 = vpack.c.b16 %v3818, %v3817
    %v3859 = vpack.c.b16 %v3820, %v3819
    %v3860 = vpack.c.b16 %v3822, %v3821
    %v3861 = vpack.c.b16 %v3824, %v3823
    %v3862 = vpack.c.b16 %v3826, %v3825
    %v3863 = vpack.c.b16 %v3828, %v3827
    %v3864 = vpack.c.b16 %v3830, %v3829
    %v3865 = vpack.c.b16 %v3832, %v3831
    %v3866 = vpack.c.b16 %v3834, %v3833
    %3899 = vmatpush.bf16.msra.mxu0 %v3842
    %3900 = vmatpush.bf16.msra.mxu0 %v3841
    %3901 = vmatpush.bf16.msra.mxu0 %v3840
    %3902 = vmatpush.bf16.msra.mxu0 %v3839
    %3903 = vmatpush.bf16.msra.mxu0 %v3838
    %3904 = vmatpush.bf16.msra.mxu0 %v3837
    %3905 = vmatpush.bf16.msra.mxu0 %v3836
    %3906 = vmatpush.bf16.msra.mxu0 %v3835
    %3907 = vmatmul.bf16.gmra.mxu0 %v3635
    %v3908 = vpop.f32.mrf.mxu0
    %v3909 = vadd.f32 %v3705, %v3908
    %v3910 = vpop.f32.mrf.mxu0
    %3911 = vdwg.mxu0
    %3912 = vmatpush.bf16.msra.mxu0 %v3850
    %3913 = vmatpush.bf16.msra.mxu0 %v3849
    %3914 = vmatpush.bf16.msra.mxu0 %v3848
    %3915 = vmatpush.bf16.msra.mxu0 %v3847
    %3916 = vmatpush.bf16.msra.mxu0 %v3846
    %3917 = vmatpush.bf16.msra.mxu0 %v3845
    %3918 = vmatpush.bf16.msra.mxu0 %v3844
    %3919 = vmatpush.bf16.msra.mxu0 %v3843
    %3920 = vmatmul.bf16.gmra.mxu0 %v3636
    %v3921 = vpop.f32.mrf.mxu0
    %v3922 = vadd.f32 %v3909, %v3921
    %v3923 = vpop.f32.mrf.mxu0
    %3924 = vdwg.mxu0
    %3925 = vmatpush.bf16.msra.mxu0 %v3858
    %3926 = vmatpush.bf16.msra.mxu0 %v3857
    %3927 = vmatpush.bf16.msra.mxu0 %v3856
    %3928 = vmatpush.bf16.msra.mxu0 %v3855
    %3929 = vmatpush.bf16.msra.mxu0 %v3854
    %3930 = vmatpush.bf16.msra.mxu0 %v3853
    %3931 = vmatpush.bf16.msra.mxu0 %v3852
    %3932 = vmatpush.bf16.msra.mxu0 %v3851
    %3933 = vmatmul.bf16.gmra.mxu0 %v3637
    %v3934 = vpop.f32.mrf.mxu0
    %v3935 = vadd.f32 %v3922, %v3934
    %v3936 = vpop.f32.mrf.mxu0
    %3937 = vdwg.mxu0
    %3938 = vmatpush.bf16.msra.mxu0 %v3866
    %3939 = vmatpush.bf16.msra.mxu0 %v3865
    %3940 = vmatpush.bf16.msra.mxu0 %v3864
    %3941 = vmatpush.bf16.msra.mxu0 %v3863
    %3942 = vmatpush.bf16.msra.mxu0 %v3862
    %3943 = vmatpush.bf16.msra.mxu0 %v3861
    %3944 = vmatpush.bf16.msra.mxu0 %v3860
    %3945 = vmatpush.bf16.msra.mxu0 %v3859
    %3946 = vmatmul.bf16.gmra.mxu0 %v3638
    %v3947 = vpop.f32.mrf.mxu0
    %v3948 = vadd.f32 %v3935, %v3947
    %v3949 = vpop.f32.mrf.mxu0
    %3950 = vdwg.mxu0
    %v3951 = vmax.f32 %v3948, 0.0
    %v3952 = vpack.c.bf16 %v3951, %v3951
    %v3953 = vld [vmem:[#allocation13] sm:$0xf]
    %v3954 = vld [vmem:[#allocation13 + $0x4] sm:$0xf]
    %v3955 = vld [vmem:[#allocation13 + $0x8] sm:$0xf]
    %v3956 = vld [vmem:[#allocation13 + $0xc] sm:$0xf]
    %v3957 = vld [vmem:[#allocation13 + $0x10] sm:$0xf]
    %v3958 = vld [vmem:[#allocation13 + $0x14] sm:$0xf]
    %v3959 = vld [vmem:[#allocation13 + $0x18] sm:$0xf]
    %v3960 = vld [vmem:[#allocation13 + $0x1c] sm:$0xf]
    %v3961 = vld [vmem:[#allocation13 + $0x20] sm:$0xf]
    %v3962 = vld [vmem:[#allocation13 + $0x24] sm:$0xf]
    %v3963 = vld [vmem:[#allocation13 + $0x28] sm:$0xf]
    %v3964 = vld [vmem:[#allocation13 + $0x2c] sm:$0xf]
    %v3965 = vld [vmem:[#allocation13 + $0x30] sm:$0xf]
    %v3966 = vld [vmem:[#allocation13 + $0x34] sm:$0xf]
    %v3967 = vld [vmem:[#allocation13 + $0x38] sm:$0xf]
    %v3968 = vld [vmem:[#allocation13 + $0x3c] sm:$0xf]
    %v3969 = vld [vmem:[%s8] sm:$0x1]
    %v3971 = vperm.slane %v3969, 0
    %v3989 = vunpack.c.l.b16 %v3953
    %v3990 = vunpack.c.l.b16 %v3954
    %v3991 = vunpack.c.l.b16 %v3955
    %v3992 = vunpack.c.l.b16 %v3956
    %v3993 = vunpack.c.l.b16 %v3957
    %v3994 = vunpack.c.l.b16 %v3958
    %v3995 = vunpack.c.l.b16 %v3959
    %v3996 = vunpack.c.l.b16 %v3960
    %v3997 = vunpack.c.l.b16 %v3961
    %v3998 = vunpack.c.l.b16 %v3962
    %v3999 = vunpack.c.l.b16 %v3963
    %v4000 = vunpack.c.l.b16 %v3964
    %v4001 = vunpack.c.l.b16 %v3965
    %v4002 = vunpack.c.l.b16 %v3966
    %v4003 = vunpack.c.l.b16 %v3967
    %v4004 = vunpack.c.l.b16 %v3968
    %v4005 = vpack.c.b16 %v3990, %v3989
    %v4006 = vpack.c.b16 %v3992, %v3991
    %v4007 = vpack.c.b16 %v3994, %v3993
    %v4008 = vpack.c.b16 %v3996, %v3995
    %v4009 = vpack.c.b16 %v3998, %v3997
    %v4010 = vpack.c.b16 %v4000, %v3999
    %v4011 = vpack.c.b16 %v4002, %v4001
    %v4012 = vpack.c.b16 %v4004, %v4003
    %4021 = vmatpush.bf16.msra.mxu0 %v4012
    %4022 = vmatpush.bf16.msra.mxu0 %v4011
    %4023 = vmatpush.bf16.msra.mxu0 %v4010
    %4024 = vmatpush.bf16.msra.mxu0 %v4009
    %4025 = vmatpush.bf16.msra.mxu0 %v4008
    %4026 = vmatpush.bf16.msra.mxu0 %v4007
    %4027 = vmatpush.bf16.msra.mxu0 %v4006
    %4028 = vmatpush.bf16.msra.mxu0 %v4005
    %4029 = vmatmul.bf16.gmra.mxu0 %v3952
    %v4030 = vpop.f32.mrf.mxu0
    %v4031 = vadd.f32 %v3971, %v4030
    %v4032 = vpop.f32.mrf.mxu0
    %4033 = vdwg.mxu0
    %v4034 = vmax.f32 %v4031, 0.0
    %v4035 = vpack.c.bf16 %v4034, %v4034
    %v4036 = vld [vmem:[#allocation14] sm:$0xf]
    %v4037 = vld [vmem:[#allocation14 + $0x4] sm:$0xf]
    %v4038 = vld [vmem:[#allocation14 + $0x8] sm:$0xf]
    %v4039 = vld [vmem:[#allocation14 + $0xc] sm:$0xf]
    %v4040 = vld [vmem:[#allocation14 + $0x10] sm:$0xf]
    %v4041 = vld [vmem:[#allocation14 + $0x14] sm:$0xf]
    %v4042 = vld [vmem:[#allocation14 + $0x18] sm:$0xf]
    %v4043 = vld [vmem:[#allocation14 + $0x1c] sm:$0xf]
    %v4044 = vld [vmem:[#allocation14 + $0x20] sm:$0xf]
    %v4045 = vld [vmem:[#allocation14 + $0x24] sm:$0xf]
    %v4046 = vld [vmem:[#allocation14 + $0x28] sm:$0xf]
    %v4047 = vld [vmem:[#allocation14 + $0x2c] sm:$0xf]
    %v4048 = vld [vmem:[#allocation14 + $0x30] sm:$0xf]
    %v4049 = vld [vmem:[#allocation14 + $0x34] sm:$0xf]
    %v4050 = vld [vmem:[#allocation14 + $0x38] sm:$0xf]
    %v4051 = vld [vmem:[#allocation14 + $0x3c] sm:$0xf]
    %v4052 = vld [vmem:[%s10] sm:$0x1]
    %v4054 = vperm.slane %v4052, 0
    %v4072 = vunpack.c.l.b16 %v4036
    %v4073 = vunpack.c.l.b16 %v4037
    %v4074 = vunpack.c.l.b16 %v4038
    %v4075 = vunpack.c.l.b16 %v4039
    %v4076 = vunpack.c.l.b16 %v4040
    %v4077 = vunpack.c.l.b16 %v4041
    %v4078 = vunpack.c.l.b16 %v4042
    %v4079 = vunpack.c.l.b16 %v4043
    %v4080 = vunpack.c.l.b16 %v4044
    %v4081 = vunpack.c.l.b16 %v4045
    %v4082 = vunpack.c.l.b16 %v4046
    %v4083 = vunpack.c.l.b16 %v4047
    %v4084 = vunpack.c.l.b16 %v4048
    %v4085 = vunpack.c.l.b16 %v4049
    %v4086 = vunpack.c.l.b16 %v4050
    %v4087 = vunpack.c.l.b16 %v4051
    %v4088 = vpack.c.b16 %v4073, %v4072
    %v4089 = vpack.c.b16 %v4075, %v4074
    %v4090 = vpack.c.b16 %v4077, %v4076
    %v4091 = vpack.c.b16 %v4079, %v4078
    %v4092 = vpack.c.b16 %v4081, %v4080
    %v4093 = vpack.c.b16 %v4083, %v4082
    %v4094 = vpack.c.b16 %v4085, %v4084
    %v4095 = vpack.c.b16 %v4087, %v4086
    %4104 = vmatpush.bf16.msra.mxu0 %v4095
    %4105 = vmatpush.bf16.msra.mxu0 %v4094
    %4106 = vmatpush.bf16.msra.mxu0 %v4093
    %4107 = vmatpush.bf16.msra.mxu0 %v4092
    %4108 = vmatpush.bf16.msra.mxu0 %v4091
    %4109 = vmatpush.bf16.msra.mxu0 %v4090
    %4110 = vmatpush.bf16.msra.mxu0 %v4089
    %4111 = vmatpush.bf16.msra.mxu0 %v4088
    %4112 = vmatmul.bf16.gmra.mxu0 %v4035
    %v4113 = vpop.f32.mrf.mxu0
    %v4114 = vadd.f32 %v4054, %v4113
    %v4115 = vpop.f32.mrf.mxu0
    %4116 = vdwg.mxu0
    %v4117 = vxor.u32 %v4114, 2147483648
    %v4118 = vmul.f32 %v4117, 1.442695
    %v4119 = vpow.pop %v4118
    %v4120 = vadd.f32 %v4119, 1.0
    %v4121 = vrcp.pop %v4120
    %v4122 = vmul.f32 %v4120, %v4121
    %v4123 = vsub.f32 1.0, %v4122
    %v4124 = vmul.f32 %v4121, %v4123
    %v4125 = vadd.f32 %v4121, %v4124
    %vm4126 = vweird.f32 %v4120
    %vm4127 = vweird.f32 %v4121
    %vm4128 = vmor %vm4126, %vm4127
    %v4129 = vsel %vm4128, %v4121, %v4125
    %v4130 = vand.u32 2147483647, %v4120
    %vm4131 = vcmp.eq.f32.partialorder %v4130, 8.507059e+37
    %v4132 = vand.u32 %v4120, 2147483648
    %v4133 = vor.u32 1.1754944e-38, %v4132
    %v4134 = vsel %vm4131, %v4133, %v4129
    %v4135 = vmul.f32 1.0, %v4134
    %v4136 = vpack.c.bf16 %v4135, %v4135
    %4137 = vst [vmem:[#allocation16] sm:$0xf] %v4136
    // Predicated region
    $region78: #{tpu_custom_call.1} parent=1 // pred_check
      _
    $region79: #{tpu_custom_call.1} parent=1 // pred_check_branch
      %4139 = sbr.rel (0) target = $region81
    $region80: #{tpu_custom_call.1} parent=1 // pred_region
      %4141 = vsyncadd [#allocation4], 0
      %s4143 = sshll.u32 [#allocation16], 4
      %s4144 = int_to_ptr.vmem [resolvable:$true] %s4143
      %s4145 = sshll.u32 %s11, 4
      %s4146 = int_to_ptr.hbm [resolvable:$true] %s4145
      %4148 = dma.vmem_to_hbm [thread:$0]  %s4144, 64, %s4146, [#allocation4]
    $region81: #{tpu_custom_call.1} parent=1 // pred_fallthru
      _
    // Predicated region
    $region82: #{tpu_custom_call.1} parent=1 // pred_check
      _
    $region83: #{tpu_custom_call.1} parent=1 // pred_check_branch
      %4150 = sbr.rel (0) target = $region85
    $region84: #{tpu_custom_call.1} parent=1 // pred_region
      %4152 = dma.done [#allocation4], 64
    $region85: #{tpu_custom_call.1} parent=1 // pred_fallthru
      _
    %4153 = vsyncpa [#allocation3], 1
    %4154 = vsyncpa [#allocation6], 1
    %4155 = vsyncpa [#allocation9], 1
    %4156 = vsyncpa [#allocation12], 1
    %4157 = vsyncpa [#allocation15], 1
    %4158 = vsyncpa [#allocation4], 1

// kernel: tpu_custom_call.1
$region0: #{tpu_custom_call.1}
  #allocation0 [shape = 'u32[]', space=smem, size = 0x4, offset = 0x4, fixed_abs, tag = 'smem constant byte address 0x4 - core index']
  #allocation1 [shape = 'u32[72,128]{1,0:T(1,128)}', space=vmem, size = 0x9000, scoped, tag = 'internal scratch']
  %s0 = inlined_call_operand.hbm [shape: bf16[8,384], index: 0, kind: input, shape index: {}]
  %s1 = inlined_call_operand.hbm [shape: bf16[384,1024], index: 1, kind: input, shape index: {}]
  %s2 = inlined_call_operand.hbm [shape: f32[1,1024], index: 2, kind: input, shape index: {}]
  %s3 = inlined_call_operand.hbm [shape: bf16[1024,512], index: 3, kind: input, shape index: {}]
  %s4 = inlined_call_operand.hbm [shape: f32[1,512], index: 4, kind: input, shape index: {}]
  %s5 = inlined_call_operand.hbm [shape: bf16[512,128], index: 5, kind: input, shape index: {}]
  %s6 = inlined_call_operand.vmem [shape: f32[1,128], index: 6, kind: input, shape index: {}]
  %s7 = inlined_call_operand.hbm [shape: bf16[128,128], index: 7, kind: input, shape index: {}]
  %s8 = inlined_call_operand.vmem [shape: f32[1,128], index: 8, kind: input, shape index: {}]
  %s9 = inlined_call_operand.hbm [shape: bf16[128,128], index: 9, kind: input, shape index: {}]
  %s10 = inlined_call_operand.vmem [shape: f32[1,128], index: 10, kind: input, shape index: {}]
  %s11 = inlined_call_operand.hbm [shape: bf16[8,128], index: 11, kind: output, shape index: {}]
  %s12 = sld [smem:[#allocation0]]
  $region86: #{tpu_custom_call.1} parent=0
    _
  %s14 = ssub.s32 1, %s12
  %s15 = scalar_select 0, %s14, %s12
  $region1: #{tpu_custom_call.1} parent=0
    #allocation2 [shape = 'u8[6144]{0}', space=vmem, size = 0x1800, scoped, tag = 'input window, operand 0, single buffered']
    #allocation3 [shape = 's32[1]{0}', space=sflag, size = 0x4, scoped, tag = 'scoped memory for tpu_custom_call.1']
    #allocation4 [shape = 's32[1]{0}', space=sflag, size = 0x4, scoped, tag = 'scoped memory for tpu_custom_call.1']
    #allocation5 [shape = 'u8[786432]{0}', space=vmem, size = 0xc0000, scoped, tag = 'input window, operand 1, single buffered']
    #allocation6 [shape = 's32[1]{0}', space=sflag, size = 0x4, scoped, tag = 'scoped memory for tpu_custom_call.1']
    #allocation7 [shape = 'u8[4096]{0}', space=vmem, size = 0x1000, scoped, tag = 'input window, operand 2, single buffered']
    #allocation8 [shape = 'u8[1048576]{0}', space=vmem, size = 0x100000, scoped, tag = 'input window, operand 3, single buffered']
    #allocation9 [shape = 's32[1]{0}', space=sflag, size = 0x4, scoped, tag = 'scoped memory for tpu_custom_call.1']
    #allocation10 [shape = 'u8[2048]{0}', space=vmem, size = 0x800, scoped, tag = 'input window, operand 4, single buffered']
    #allocation11 [shape = 'u8[131072]{0}', space=vmem, size = 0x20000, scoped, tag = 'input window, operand 5, single buffered']
    #allocation12 [shape = 's32[1]{0}', space=sflag, size = 0x4, scoped, tag = 'scoped memory for tpu_custom_call.1']
    #allocation13 [shape = 'u8[32768]{0}', space=vmem, size = 0x8000, scoped, tag = 'input window, operand 7, single buffered']
    #allocation14 [shape = 'u8[32768]{0}', space=vmem, size = 0x8000, scoped, tag = 'input window, operand 9, single buffered']
    #allocation15 [shape = 's32[1]{0}', space=sflag, size = 0x4, scoped, tag = 'scoped memory for tpu_custom_call.1']
    #allocation16 [shape = 'u8[2048]{0}', space=vmem, size = 0x800, scoped, tag = 'output window, operand 0, single buffered']
    %16 = vsyncpa [#allocation3], 0
    %17 = vsyncpa [#allocation6], 0
    %18 = vsyncpa [#allocation9], 0
    %19 = vsyncpa [#allocation12], 0
    %20 = vsyncpa [#allocation15], 0
    %21 = vsyncpa [#allocation4], 0
    // Predicated region
    $region2: #{tpu_custom_call.1} parent=1 // pred_check
      _
    $region3: #{tpu_custom_call.1} parent=1 // pred_check_branch
      %23 = sbr.rel (0) target = $region5
    $region4: #{tpu_custom_call.1} parent=1 // pred_region
      %25 = vsyncadd [#allocation3], 0
      %s27 = sshll.u32 %s0, 4
      %s28 = int_to_ptr.hbm [resolvable:$true] %s27
      %s29 = sshll.u32 [#allocation2], 4
      %s30 = int_to_ptr.vmem [resolvable:$true] %s29
      %32 = dma.hbm_to_vmem [thread:$0]  %s28, 192, %s30, [#allocation3]
    $region5: #{tpu_custom_call.1} parent=1 // pred_fallthru
      _
    // Predicated region
    $region6: #{tpu_custom_call.1} parent=1 // pred_check
      _
    $region7: #{tpu_custom_call.1} parent=1 // pred_check_branch
      %34 = sbr.rel (0) target = $region9
    $region8: #{tpu_custom_call.1} parent=1 // pred_region
      %36 = vsyncadd [#allocation6], 0
      %s37 = sshll.u32 %s1, 4
      %s38 = int_to_ptr.hbm [resolvable:$true] %s37
      %s39 = sshll.u32 [#allocation5], 4
      %s40 = int_to_ptr.vmem [resolvable:$true] %s39
      %45 = dma.hbm_to_vmem [thread:$0]  %s38, 24576, %s40, [#allocation6], 512, 512, 32
    $region9: #{tpu_custom_call.1} parent=1 // pred_fallthru
      _
    // Predicated region
    $region10: #{tpu_custom_call.1} parent=1 // pred_check
      _
    $region11: #{tpu_custom_call.1} parent=1 // pred_check_branch
      %47 = sbr.rel (0) target = $region13
    $region12: #{tpu_custom_call.1} parent=1 // pred_region
      %49 = vsyncadd [#allocation6], 0
      %s51 = sshll.u32 %s2, 4
      %s52 = int_to_ptr.hbm [resolvable:$true] %s51
      %s53 = sshll.u32 [#allocation7], 4
      %s54 = int_to_ptr.vmem [resolvable:$true] %s53
      %56 = dma.hbm_to_vmem [thread:$0]  %s52, 128, %s54, [#allocation6]
    $region13: #{tpu_custom_call.1} parent=1 // pred_fallthru
      _
    // Predicated region
    $region14: #{tpu_custom_call.1} parent=1 // pred_check
      _
    $region15: #{tpu_custom_call.1} parent=1 // pred_check_branch
      %58 = sbr.rel (0) target = $region17
    $region16: #{tpu_custom_call.1} parent=1 // pred_region
      %60 = vsyncadd [#allocation9], 0
      %s61 = sshll.u32 %s3, 4
      %s62 = int_to_ptr.hbm [resolvable:$true] %s61
      %s63 = sshll.u32 [#allocation8], 4
      %s64 = int_to_ptr.vmem [resolvable:$true] %s63
      %69 = dma.hbm_to_vmem [thread:$0]  %s62, 32768, %s64, [#allocation9], 256, 256, 16
    $region17: #{tpu_custom_call.1} parent=1 // pred_fallthru
      _
    // Predicated region
    $region18: #{tpu_custom_call.1} parent=1 // pred_check
      _
    $region19: #{tpu_custom_call.1} parent=1 // pred_check_branch
      %71 = sbr.rel (0) target = $region21
    $region20: #{tpu_custom_call.1} parent=1 // pred_region
      %73 = vsyncadd [#allocation9], 0
      %s75 = sshll.u32 %s4, 4
      %s76 = int_to_ptr.hbm [resolvable:$true] %s75
      %s77 = sshll.u32 [#allocation10], 4
      %s78 = int_to_ptr.vmem [resolvable:$true] %s77
      %80 = dma.hbm_to_vmem [thread:$0]  %s76, 64, %s78, [#allocation9]
    $region21: #{tpu_custom_call.1} parent=1 // pred_fallthru
      _
    // Predicated region
    $region22: #{tpu_custom_call.1} parent=1 // pred_check
      _
    $region23: #{tpu_custom_call.1} parent=1 // pred_check_branch
      %82 = sbr.rel (0) target = $region25
    $region24: #{tpu_custom_call.1} parent=1 // pred_region
      %84 = vsyncadd [#allocation12], 0
      %s85 = sshll.u32 %s5, 4
      %s86 = int_to_ptr.hbm [resolvable:$true] %s85
      %s87 = sshll.u32 [#allocation11], 4
      %s88 = int_to_ptr.vmem [resolvable:$true] %s87
      %93 = dma.hbm_to_vmem [thread:$0]  %s86, 4096, %s88, [#allocation12], 64, 64, 4
    $region25: #{tpu_custom_call.1} parent=1 // pred_fallthru
      _
    // Predicated region
    $region26: #{tpu_custom_call.1} parent=1 // pred_check
      _
    $region27: #{tpu_custom_call.1} parent=1 // pred_check_branch
      %95 = sbr.rel (0) target = $region29
    $region28: #{tpu_custom_call.1} parent=1 // pred_region
      _
    $region29: #{tpu_custom_call.1} parent=1 // pred_fallthru
      _
    // Predicated region
    $region30: #{tpu_custom_call.1} parent=1 // pred_check
      _
    $region31: #{tpu_custom_call.1} parent=1 // pred_check_branch
      %97 = sbr.rel (0) target = $region33
    $region32: #{tpu_custom_call.1} parent=1 // pred_region
      %99 = vsyncadd [#allocation12], 0
      %s100 = sshll.u32 %s7, 4
      %s101 = int_to_ptr.hbm [resolvable:$true] %s100
      %s102 = sshll.u32 [#allocation13], 4
      %s103 = int_to_ptr.vmem [resolvable:$true] %s102
      %108 = dma.hbm_to_vmem [thread:$0]  %s101, 1024, %s103, [#allocation12], 64, 64, 4
    $region33: #{tpu_custom_call.1} parent=1 // pred_fallthru
      _
    // Predicated region
    $region34: #{tpu_custom_call.1} parent=1 // pred_check
      _
    $region35: #{tpu_custom_call.1} parent=1 // pred_check_branch
      %110 = sbr.rel (0) target = $region37
    $region36: #{tpu_custom_call.1} parent=1 // pred_region
      _
    $region37: #{tpu_custom_call.1} parent=1 // pred_fallthru
      _
    // Predicated region
    $region38: #{tpu_custom_call.1} parent=1 // pred_check
      _
    $region39: #{tpu_custom_call.1} parent=1 // pred_check_branch
      %112 = sbr.rel (0) target = $region41
    $region40: #{tpu_custom_call.1} parent=1 // pred_region
      %114 = vsyncadd [#allocation15], 0
      %s115 = sshll.u32 %s9, 4
      %s116 = int_to_ptr.hbm [resolvable:$true] %s115
      %s117 = sshll.u32 [#allocation14], 4
      %s118 = int_to_ptr.vmem [resolvable:$true] %s117
      %123 = dma.hbm_to_vmem [thread:$0]  %s116, 1024, %s118, [#allocation15], 64, 64, 4
    $region41: #{tpu_custom_call.1} parent=1 // pred_fallthru
      _
    // Predicated region
    $region42: #{tpu_custom_call.1} parent=1 // pred_check
      _
    $region43: #{tpu_custom_call.1} parent=1 // pred_check_branch
      %125 = sbr.rel (0) target = $region45
    $region44: #{tpu_custom_call.1} parent=1 // pred_region
      _
    $region45: #{tpu_custom_call.1} parent=1 // pred_fallthru
      _
    // Predicated region
    $region46: #{tpu_custom_call.1} parent=1 // pred_check
      _
    $region47: #{tpu_custom_call.1} parent=1 // pred_check_branch
      %127 = sbr.rel (0) target = $region49
    $region48: #{tpu_custom_call.1} parent=1 // pred_region
      %129 = dma.done [#allocation3], 192
    $region49: #{tpu_custom_call.1} parent=1 // pred_fallthru
      _
    // Predicated region
    $region50: #{tpu_custom_call.1} parent=1 // pred_check
      _
    $region51: #{tpu_custom_call.1} parent=1 // pred_check_branch
      %131 = sbr.rel (0) target = $region53
    $region52: #{tpu_custom_call.1} parent=1 // pred_region
      %133 = dma.done [#allocation6], 24576
    $region53: #{tpu_custom_call.1} parent=1 // pred_fallthru
      _
    // Predicated region
    $region54: #{tpu_custom_call.1} parent=1 // pred_check
      _
    $region55: #{tpu_custom_call.1} parent=1 // pred_check_branch
      %135 = sbr.rel (0) target = $region57
    $region56: #{tpu_custom_call.1} parent=1 // pred_region
      %137 = dma.done [#allocation6], 128
    $region57: #{tpu_custom_call.1} parent=1 // pred_fallthru
      _
    // Predicated region
    $region58: #{tpu_custom_call.1} parent=1 // pred_check
      _
    $region59: #{tpu_custom_call.1} parent=1 // pred_check_branch
      %139 = sbr.rel (0) target = $region61
    $region60: #{tpu_custom_call.1} parent=1 // pred_region
      %141 = dma.done [#allocation9], 32768
    $region61: #{tpu_custom_call.1} parent=1 // pred_fallthru
      _
    // Predicated region
    $region62: #{tpu_custom_call.1} parent=1 // pred_check
      _
    $region63: #{tpu_custom_call.1} parent=1 // pred_check_branch
      %143 = sbr.rel (0) target = $region65
    $region64: #{tpu_custom_call.1} parent=1 // pred_region
      %145 = dma.done [#allocation9], 64
    $region65: #{tpu_custom_call.1} parent=1 // pred_fallthru
      _
    // Predicated region
    $region66: #{tpu_custom_call.1} parent=1 // pred_check
      _
    $region67: #{tpu_custom_call.1} parent=1 // pred_check_branch
      %147 = sbr.rel (0) target = $region69
    $region68: #{tpu_custom_call.1} parent=1 // pred_region
      %149 = dma.done [#allocation12], 4096
    $region69: #{tpu_custom_call.1} parent=1 // pred_fallthru
      _
    // Predicated region
    $region70: #{tpu_custom_call.1} parent=1 // pred_check
      _
    $region71: #{tpu_custom_call.1} parent=1 // pred_check_branch
      %151 = sbr.rel (0) target = $region73
    $region72: #{tpu_custom_call.1} parent=1 // pred_region
      %153 = dma.done [#allocation12], 1024
    $region73: #{tpu_custom_call.1} parent=1 // pred_fallthru
      _
    // Predicated region
    $region74: #{tpu_custom_call.1} parent=1 // pred_check
      _
    $region75: #{tpu_custom_call.1} parent=1 // pred_check_branch
      %155 = sbr.rel (0) target = $region77
    $region76: #{tpu_custom_call.1} parent=1 // pred_region
      %157 = dma.done [#allocation15], 1024
    $region77: #{tpu_custom_call.1} parent=1 // pred_fallthru
      _
    %v158 = vld [vmem:[#allocation2] sm:$0xff]
    %v159 = vld [vmem:[#allocation2 + $0x8] sm:$0xf]
    %v160 = vld [vmem:[#allocation5] sm:$0xff]
    %v161 = vld [vmem:[#allocation5 + $0x8] sm:$0xff]
    %v162 = vld [vmem:[#allocation5 + $0x10] sm:$0xff]
    %v163 = vld [vmem:[#allocation5 + $0x18] sm:$0xff]
    %v164 = vld [vmem:[#allocation5 + $0x20] sm:$0xff]
    %v165 = vld [vmem:[#allocation5 + $0x28] sm:$0xff]
    %v166 = vld [vmem:[#allocation5 + $0x30] sm:$0xff]
    %v167 = vld [vmem:[#allocation5 + $0x38] sm:$0xff]
    %v168 = vld [vmem:[#allocation5 + $0x40] sm:$0xff]
    %v169 = vld [vmem:[#allocation5 + $0x48] sm:$0xff]
    %v170 = vld [vmem:[#allocation5 + $0x50] sm:$0xff]
    %v171 = vld [vmem:[#allocation5 + $0x58] sm:$0xff]
    %v172 = vld [vmem:[#allocation5 + $0x60] sm:$0xff]
    %v173 = vld [vmem:[#allocation5 + $0x68] sm:$0xff]
    %v174 = vld [vmem:[#allocation5 + $0x70] sm:$0xff]
    %v175 = vld [vmem:[#allocation5 + $0x78] sm:$0xff]
    %v176 = vld [vmem:[#allocation5 + $0x80] sm:$0xff]
    %v177 = vld [vmem:[#allocation5 + $0x88] sm:$0xff]
    %v178 = vld [vmem:[#allocation5 + $0x90] sm:$0xff]
    %v179 = vld [vmem:[#allocation5 + $0x98] sm:$0xff]
    %v180 = vld [vmem:[#allocation5 + $0xa0] sm:$0xff]
    %v181 = vld [vmem:[#allocation5 + $0xa8] sm:$0xff]
    %v182 = vld [vmem:[#allocation5 + $0xb0] sm:$0xff]
    %v183 = vld [vmem:[#allocation5 + $0xb8] sm:$0xff]
    %v184 = vld [vmem:[#allocation5 + $0xc0] sm:$0xff]
    %v185 = vld [vmem:[#allocation5 + $0xc8] sm:$0xff]
    %v186 = vld [vmem:[#allocation5 + $0xd0] sm:$0xff]
    %v187 = vld [vmem:[#allocation5 + $0xd8] sm:$0xff]
    %v188 = vld [vmem:[#allocation5 + $0xe0] sm:$0xff]
    %v189 = vld [vmem:[#allocation5 + $0xe8] sm:$0xff]
    %v190 = vld [vmem:[#allocation5 + $0xf0] sm:$0xff]
    %v191 = vld [vmem:[#allocation5 + $0xf8] sm:$0xff]
    %v192 = vld [vmem:[#allocation5 + $0x100] sm:$0xff]
    %v193 = vld [vmem:[#allocation5 + $0x108] sm:$0xff]
    %v194 = vld [vmem:[#allocation5 + $0x110] sm:$0xff]
    %v195 = vld [vmem:[#allocation5 + $0x118] sm:$0xff]
    %v196 = vld [vmem:[#allocation5 + $0x120] sm:$0xff]
    %v197 = vld [vmem:[#allocation5 + $0x128] sm:$0xff]
    %v198 = vld [vmem:[#allocation5 + $0x130] sm:$0xff]
    %v199 = vld [vmem:[#allocation5 + $0x138] sm:$0xff]
    %v200 = vld [vmem:[#allocation5 + $0x140] sm:$0xff]
    %v201 = vld [vmem:[#allocation5 + $0x148] sm:$0xff]
    %v202 = vld [vmem:[#allocation5 + $0x150] sm:$0xff]
    %v203 = vld [vmem:[#allocation5 + $0x158] sm:$0xff]
    %v204 = vld [vmem:[#allocation5 + $0x160] sm:$0xff]
    %v205 = vld [vmem:[#allocation5 + $0x168] sm:$0xff]
    %v206 = vld [vmem:[#allocation5 + $0x170] sm:$0xff]
    %v207 = vld [vmem:[#allocation5 + $0x178] sm:$0xff]
    %v208 = vld [vmem:[#allocation5 + $0x180] sm:$0xff]
    %v209 = vld [vmem:[#allocation5 + $0x188] sm:$0xff]
    %v210 = vld [vmem:[#allocation5 + $0x190] sm:$0xff]
    %v211 = vld [vmem:[#allocation5 + $0x198] sm:$0xff]
    %v212 = vld [vmem:[#allocation5 + $0x1a0] sm:$0xff]
    %v213 = vld [vmem:[#allocation5 + $0x1a8] sm:$0xff]
    %v214 = vld [vmem:[#allocation5 + $0x1b0] sm:$0xff]
    %v215 = vld [vmem:[#allocation5 + $0x1b8] sm:$0xff]
    %v216 = vld [vmem:[#allocation5 + $0x1c0] sm:$0xff]
    %v217 = vld [vmem:[#allocation5 + $0x1c8] sm:$0xff]
    %v218 = vld [vmem:[#allocation5 + $0x1d0] sm:$0xff]
    %v219 = vld [vmem:[#allocation5 + $0x1d8] sm:$0xff]
    %v220 = vld [vmem:[#allocation5 + $0x1e0] sm:$0xff]
    %v221 = vld [vmem:[#allocation5 + $0x1e8] sm:$0xff]
    %v222 = vld [vmem:[#allocation5 + $0x1f0] sm:$0xff]
    %v223 = vld [vmem:[#allocation5 + $0x1f8] sm:$0xff]
    %v224 = vld [vmem:[#allocation5 + $0x200] sm:$0xff]
    %v225 = vld [vmem:[#allocation5 + $0x208] sm:$0xff]
    %v226 = vld [vmem:[#allocation5 + $0x210] sm:$0xff]
    %v227 = vld [vmem:[#allocation5 + $0x218] sm:$0xff]
    %v228 = vld [vmem:[#allocation5 + $0x220] sm:$0xff]
    %v229 = vld [vmem:[#allocation5 + $0x228] sm:$0xff]
    %v230 = vld [vmem:[#allocation5 + $0x230] sm:$0xff]
    %v231 = vld [vmem:[#allocation5 + $0x238] sm:$0xff]
    %v232 = vld [vmem:[#allocation5 + $0x240] sm:$0xff]
    %v233 = vld [vmem:[#allocation5 + $0x248] sm:$0xff]
    %v234 = vld [vmem:[#allocation5 + $0x250] sm:$0xff]
    %v235 = vld [vmem:[#allocation5 + $0x258] sm:$0xff]
    %v236 = vld [vmem:[#allocation5 + $0x260] sm:$0xff]
    %v237 = vld [vmem:[#allocation5 + $0x268] sm:$0xff]
    %v238 = vld [vmem:[#allocation5 + $0x270] sm:$0xff]
    %v239 = vld [vmem:[#allocation5 + $0x278] sm:$0xff]
    %v240 = vld [vmem:[#allocation5 + $0x280] sm:$0xff]
    %v241 = vld [vmem:[#allocation5 + $0x288] sm:$0xff]
    %v242 = vld [vmem:[#allocation5 + $0x290] sm:$0xff]
    %v243 = vld [vmem:[#allocation5 + $0x298] sm:$0xff]
    %v244 = vld [vmem:[#allocation5 + $0x2a0] sm:$0xff]
    %v245 = vld [vmem:[#allocation5 + $0x2a8] sm:$0xff]
    %v246 = vld [vmem:[#allocation5 + $0x2b0] sm:$0xff]
    %v247 = vld [vmem:[#allocation5 + $0x2b8] sm:$0xff]
    %v248 = vld [vmem:[#allocation5 + $0x2c0] sm:$0xff]
    %v249 = vld [vmem:[#allocation5 + $0x2c8] sm:$0xff]
    %v250 = vld [vmem:[#allocation5 + $0x2d0] sm:$0xff]
    %v251 = vld [vmem:[#allocation5 + $0x2d8] sm:$0xff]
    %v252 = vld [vmem:[#allocation5 + $0x2e0] sm:$0xff]
    %v253 = vld [vmem:[#allocation5 + $0x2e8] sm:$0xff]
    %v254 = vld [vmem:[#allocation5 + $0x2f0] sm:$0xff]
    %v255 = vld [vmem:[#allocation5 + $0x2f8] sm:$0xff]
    %v256 = vld [vmem:[#allocation5 + $0x300] sm:$0xff]
    %v257 = vld [vmem:[#allocation5 + $0x308] sm:$0xff]
    %v258 = vld [vmem:[#allocation5 + $0x310] sm:$0xff]
    %v259 = vld [vmem:[#allocation5 + $0x318] sm:$0xff]
    %v260 = vld [vmem:[#allocation5 + $0x320] sm:$0xff]
    %v261 = vld [vmem:[#allocation5 + $0x328] sm:$0xff]
    %v262 = vld [vmem:[#allocation5 + $0x330] sm:$0xff]
    %v263 = vld [vmem:[#allocation5 + $0x338] sm:$0xff]
    %v264 = vld [vmem:[#allocation5 + $0x340] sm:$0xff]
    %v265 = vld [vmem:[#allocation5 + $0x348] sm:$0xff]
    %v266 = vld [vmem:[#allocation5 + $0x350] sm:$0xff]
    %v267 = vld [vmem:[#allocation5 + $0x358] sm:$0xff]
    %v268 = vld [vmem:[#allocation5 + $0x360] sm:$0xff]
    %v269 = vld [vmem:[#allocation5 + $0x368] sm:$0xff]
    %v270 = vld [vmem:[#allocation5 + $0x370] sm:$0xff]
    %v271 = vld [vmem:[#allocation5 + $0x378] sm:$0xff]
    %v272 = vld [vmem:[#allocation5 + $0x380] sm:$0xff]
    %v273 = vld [vmem:[#allocation5 + $0x388] sm:$0xff]
    %v274 = vld [vmem:[#allocation5 + $0x390] sm:$0xff]
    %v275 = vld [vmem:[#allocation5 + $0x398] sm:$0xff]
    %v276 = vld [vmem:[#allocation5 + $0x3a0] sm:$0xff]
    %v277 = vld [vmem:[#allocation5 + $0x3a8] sm:$0xff]
    %v278 = vld [vmem:[#allocation5 + $0x3b0] sm:$0xff]
    %v279 = vld [vmem:[#allocation5 + $0x3b8] sm:$0xff]
    %v280 = vld [vmem:[#allocation5 + $0x3c0] sm:$0xff]
    %v281 = vld [vmem:[#allocation5 + $0x3c8] sm:$0xff]
    %v282 = vld [vmem:[#allocation5 + $0x3d0] sm:$0xff]
    %v283 = vld [vmem:[#allocation5 + $0x3d8] sm:$0xff]
    %v284 = vld [vmem:[#allocation5 + $0x3e0] sm:$0xff]
    %v285 = vld [vmem:[#allocation5 + $0x3e8] sm:$0xff]
    %v286 = vld [vmem:[#allocation5 + $0x3f0] sm:$0xff]
    %v287 = vld [vmem:[#allocation5 + $0x3f8] sm:$0xff]
    %v288 = vld [vmem:[#allocation5 + $0x400] sm:$0xff]
    %v289 = vld [vmem:[#allocation5 + $0x408] sm:$0xff]
    %v290 = vld [vmem:[#allocation5 + $0x410] sm:$0xff]
    %v291 = vld [vmem:[#allocation5 + $0x418] sm:$0xff]
    %v292 = vld [vmem:[#allocation5 + $0x420] sm:$0xff]
    %v293 = vld [vmem:[#allocation5 + $0x428] sm:$0xff]
    %v294 = vld [vmem:[#allocation5 + $0x430] sm:$0xff]
    %v295 = vld [vmem:[#allocation5 + $0x438] sm:$0xff]
    %v296 = vld [vmem:[#allocation5 + $0x440] sm:$0xff]
    %v297 = vld [vmem:[#allocation5 + $0x448] sm:$0xff]
    %v298 = vld [vmem:[#allocation5 + $0x450] sm:$0xff]
    %v299 = vld [vmem:[#allocation5 + $0x458] sm:$0xff]
    %v300 = vld [vmem:[#allocation5 + $0x460] sm:$0xff]
    %v301 = vld [vmem:[#allocation5 + $0x468] sm:$0xff]
    %v302 = vld [vmem:[#allocation5 + $0x470] sm:$0xff]
    %v303 = vld [vmem:[#allocation5 + $0x478] sm:$0xff]
    %v304 = vld [vmem:[#allocation5 + $0x480] sm:$0xff]
    %v305 = vld [vmem:[#allocation5 + $0x488] sm:$0xff]
    %v306 = vld [vmem:[#allocation5 + $0x490] sm:$0xff]
    %v307 = vld [vmem:[#allocation5 + $0x498] sm:$0xff]
    %v308 = vld [vmem:[#allocation5 + $0x4a0] sm:$0xff]
    %v309 = vld [vmem:[#allocation5 + $0x4a8] sm:$0xff]
    %v310 = vld [vmem:[#allocation5 + $0x4b0] sm:$0xff]
    %v311 = vld [vmem:[#allocation5 + $0x4b8] sm:$0xff]
    %v312 = vld [vmem:[#allocation5 + $0x4c0] sm:$0xff]
    %v313 = vld [vmem:[#allocation5 + $0x4c8] sm:$0xff]
    %v314 = vld [vmem:[#allocation5 + $0x4d0] sm:$0xff]
    %v315 = vld [vmem:[#allocation5 + $0x4d8] sm:$0xff]
    %v316 = vld [vmem:[#allocation5 + $0x4e0] sm:$0xff]
    %v317 = vld [vmem:[#allocation5 + $0x4e8] sm:$0xff]
    %v318 = vld [vmem:[#allocation5 + $0x4f0] sm:$0xff]
    %v319 = vld [vmem:[#allocation5 + $0x4f8] sm:$0xff]
    %v320 = vld [vmem:[#allocation5 + $0x500] sm:$0xff]
    %v321 = vld [vmem:[#allocation5 + $0x508] sm:$0xff]
    %v322 = vld [vmem:[#allocation5 + $0x510] sm:$0xff]
    %v323 = vld [vmem:[#allocation5 + $0x518] sm:$0xff]
    %v324 = vld [vmem:[#allocation5 + $0x520] sm:$0xff]
    %v325 = vld [vmem:[#allocation5 + $0x528] sm:$0xff]
    %v326 = vld [vmem:[#allocation5 + $0x530] sm:$0xff]
    %v327 = vld [vmem:[#allocation5 + $0x538] sm:$0xff]
    %v328 = vld [vmem:[#allocation5 + $0x540] sm:$0xff]
    %v329 = vld [vmem:[#allocation5 + $0x548] sm:$0xff]
    %v330 = vld [vmem:[#allocation5 + $0x550] sm:$0xff]
    %v331 = vld [vmem:[#allocation5 + $0x558] sm:$0xff]
    %v332 = vld [vmem:[#allocation5 + $0x560] sm:$0xff]
    %v333 = vld [vmem:[#allocation5 + $0x568] sm:$0xff]
    %v334 = vld [vmem:[#allocation5 + $0x570] sm:$0xff]
    %v335 = vld [vmem:[#allocation5 + $0x578] sm:$0xff]
    %v336 = vld [vmem:[#allocation5 + $0x580] sm:$0xff]
    %v337 = vld [vmem:[#allocation5 + $0x588] sm:$0xff]
    %v338 = vld [vmem:[#allocation5 + $0x590] sm:$0xff]
    %v339 = vld [vmem:[#allocation5 + $0x598] sm:$0xff]
    %v340 = vld [vmem:[#allocation5 + $0x5a0] sm:$0xff]
    %v341 = vld [vmem:[#allocation5 + $0x5a8] sm:$0xff]
    %v342 = vld [vmem:[#allocation5 + $0x5b0] sm:$0xff]
    %v343 = vld [vmem:[#allocation5 + $0x5b8] sm:$0xff]
    %v344 = vld [vmem:[#allocation5 + $0x5c0] sm:$0xff]
    %v345 = vld [vmem:[#allocation5 + $0x5c8] sm:$0xff]
    %v346 = vld [vmem:[#allocation5 + $0x5d0] sm:$0xff]
    %v347 = vld [vmem:[#allocation5 + $0x5d8] sm:$0xff]
    %v348 = vld [vmem:[#allocation5 + $0x5e0] sm:$0xff]
    %v349 = vld [vmem:[#allocation5 + $0x5e8] sm:$0xff]
    %v350 = vld [vmem:[#allocation5 + $0x5f0] sm:$0xff]
    %v351 = vld [vmem:[#allocation5 + $0x5f8] sm:$0xff]
    %v352 = vld [vmem:[#allocation7] sm:$0xff]
    %v354 = vperm.slane %v352, 0
    %v355 = vperm.slane %v352, 1
    %v356 = vperm.slane %v352, 2
    %v357 = vperm.slane %v352, 3
    %v358 = vperm.slane %v352, 4
    %v359 = vperm.slane %v352, 5
    %v360 = vperm.slane %v352, 6
    %v361 = vperm.slane %v352, 7
    %v372 = vunpack.c.l.b16 %v158
    %v373 = vunpack.c.h.b16 %v158
    %v374 = vunpack.c.l.b16 %v159
    %v375 = vpack.c.b16 %v372, %v372
    %v376 = vpack.c.b16 %v373, %v373
    %v377 = vpack.c.b16 %v374, %v374
    %v573 = vunpack.c.l.b16 %v160
    %v574 = vunpack.c.h.b16 %v160
    %v575 = vunpack.c.l.b16 %v161
    %v576 = vunpack.c.h.b16 %v161
    %v577 = vunpack.c.l.b16 %v162
    %v578 = vunpack.c.h.b16 %v162
    %v579 = vunpack.c.l.b16 %v163
    %v580 = vunpack.c.h.b16 %v163
    %v581 = vunpack.c.l.b16 %v164
    %v582 = vunpack.c.h.b16 %v164
    %v583 = vunpack.c.l.b16 %v165
    %v584 = vunpack.c.h.b16 %v165
    %v585 = vunpack.c.l.b16 %v166
    %v586 = vunpack.c.h.b16 %v166
    %v587 = vunpack.c.l.b16 %v167
    %v588 = vunpack.c.h.b16 %v167
    %v589 = vunpack.c.l.b16 %v168
    %v590 = vunpack.c.h.b16 %v168
    %v591 = vunpack.c.l.b16 %v169
    %v592 = vunpack.c.h.b16 %v169
    %v593 = vunpack.c.l.b16 %v170
    %v594 = vunpack.c.h.b16 %v170
    %v595 = vunpack.c.l.b16 %v171
    %v596 = vunpack.c.h.b16 %v171
    %v597 = vunpack.c.l.b16 %v172
    %v598 = vunpack.c.h.b16 %v172
    %v599 = vunpack.c.l.b16 %v173
    %v600 = vunpack.c.h.b16 %v173
    %v601 = vunpack.c.l.b16 %v174
    %v602 = vunpack.c.h.b16 %v174
    %v603 = vunpack.c.l.b16 %v175
    %v604 = vunpack.c.h.b16 %v175
    %v605 = vunpack.c.l.b16 %v176
    %v606 = vunpack.c.h.b16 %v176
    %v607 = vunpack.c.l.b16 %v177
    %v608 = vunpack.c.h.b16 %v177
    %v609 = vunpack.c.l.b16 %v178
    %v610 = vunpack.c.h.b16 %v178
    %v611 = vunpack.c.l.b16 %v179
    %v612 = vunpack.c.h.b16 %v179
    %v613 = vunpack.c.l.b16 %v180
    %v614 = vunpack.c.h.b16 %v180
    %v615 = vunpack.c.l.b16 %v181
    %v616 = vunpack.c.h.b16 %v181
    %v617 = vunpack.c.l.b16 %v182
    %v618 = vunpack.c.h.b16 %v182
    %v619 = vunpack.c.l.b16 %v183
    %v620 = vunpack.c.h.b16 %v183
    %v621 = vunpack.c.l.b16 %v184
    %v622 = vunpack.c.h.b16 %v184
    %v623 = vunpack.c.l.b16 %v185
    %v624 = vunpack.c.h.b16 %v185
    %v625 = vunpack.c.l.b16 %v186
    %v626 = vunpack.c.h.b16 %v186
    %v627 = vunpack.c.l.b16 %v187
    %v628 = vunpack.c.h.b16 %v187
    %v629 = vunpack.c.l.b16 %v188
    %v630 = vunpack.c.h.b16 %v188
    %v631 = vunpack.c.l.b16 %v189
    %v632 = vunpack.c.h.b16 %v189
    %v633 = vunpack.c.l.b16 %v190
    %v634 = vunpack.c.h.b16 %v190
    %v635 = vunpack.c.l.b16 %v191
    %v636 = vunpack.c.h.b16 %v191
    %v637 = vunpack.c.l.b16 %v192
    %v638 = vunpack.c.h.b16 %v192
    %v639 = vunpack.c.l.b16 %v193
    %v640 = vunpack.c.h.b16 %v193
    %v641 = vunpack.c.l.b16 %v194
    %v642 = vunpack.c.h.b16 %v194
    %v643 = vunpack.c.l.b16 %v195
    %v644 = vunpack.c.h.b16 %v195
    %v645 = vunpack.c.l.b16 %v196
    %v646 = vunpack.c.h.b16 %v196
    %v647 = vunpack.c.l.b16 %v197
    %v648 = vunpack.c.h.b16 %v197
    %v649 = vunpack.c.l.b16 %v198
    %v650 = vunpack.c.h.b16 %v198
    %v651 = vunpack.c.l.b16 %v199
    %v652 = vunpack.c.h.b16 %v199
    %v653 = vunpack.c.l.b16 %v200
    %v654 = vunpack.c.h.b16 %v200
    %v655 = vunpack.c.l.b16 %v201
    %v656 = vunpack.c.h.b16 %v201
    %v657 = vunpack.c.l.b16 %v202
    %v658 = vunpack.c.h.b16 %v202
    %v659 = vunpack.c.l.b16 %v203
    %v660 = vunpack.c.h.b16 %v203
    %v661 = vunpack.c.l.b16 %v204
    %v662 = vunpack.c.h.b16 %v204
    %v663 = vunpack.c.l.b16 %v205
    %v664 = vunpack.c.h.b16 %v205
    %v665 = vunpack.c.l.b16 %v206
    %v666 = vunpack.c.h.b16 %v206
    %v667 = vunpack.c.l.b16 %v207
    %v668 = vunpack.c.h.b16 %v207
    %v669 = vunpack.c.l.b16 %v208
    %v670 = vunpack.c.h.b16 %v208
    %v671 = vunpack.c.l.b16 %v209
    %v672 = vunpack.c.h.b16 %v209
    %v673 = vunpack.c.l.b16 %v210
    %v674 = vunpack.c.h.b16 %v210
    %v675 = vunpack.c.l.b16 %v211
    %v676 = vunpack.c.h.b16 %v211
    %v677 = vunpack.c.l.b16 %v212
    %v678 = vunpack.c.h.b16 %v212
    %v679 = vunpack.c.l.b16 %v213
    %v680 = vunpack.c.h.b16 %v213
    %v681 = vunpack.c.l.b16 %v214
    %v682 = vunpack.c.h.b16 %v214
    %v683 = vunpack.c.l.b16 %v215
    %v684 = vunpack.c.h.b16 %v215
    %v685 = vunpack.c.l.b16 %v216
    %v686 = vunpack.c.h.b16 %v216
    %v687 = vunpack.c.l.b16 %v217
    %v688 = vunpack.c.h.b16 %v217
    %v689 = vunpack.c.l.b16 %v218
    %v690 = vunpack.c.h.b16 %v218
    %v691 = vunpack.c.l.b16 %v219
    %v692 = vunpack.c.h.b16 %v219
    %v693 = vunpack.c.l.b16 %v220
    %v694 = vunpack.c.h.b16 %v220
    %v695 = vunpack.c.l.b16 %v221
    %v696 = vunpack.c.h.b16 %v221
    %v697 = vunpack.c.l.b16 %v222
    %v698 = vunpack.c.h.b16 %v222
    %v699 = vunpack.c.l.b16 %v223
    %v700 = vunpack.c.h.b16 %v223
    %v701 = vunpack.c.l.b16 %v224
    %v702 = vunpack.c.h.b16 %v224
    %v703 = vunpack.c.l.b16 %v225
    %v704 = vunpack.c.h.b16 %v225
    %v705 = vunpack.c.l.b16 %v226
    %v706 = vunpack.c.h.b16 %v226
    %v707 = vunpack.c.l.b16 %v227
    %v708 = vunpack.c.h.b16 %v227
    %v709 = vunpack.c.l.b16 %v228
    %v710 = vunpack.c.h.b16 %v228
    %v711 = vunpack.c.l.b16 %v229
    %v712 = vunpack.c.h.b16 %v229
    %v713 = vunpack.c.l.b16 %v230
    %v714 = vunpack.c.h.b16 %v230
    %v715 = vunpack.c.l.b16 %v231
    %v716 = vunpack.c.h.b16 %v231
    %v717 = vunpack.c.l.b16 %v232
    %v718 = vunpack.c.h.b16 %v232
    %v719 = vunpack.c.l.b16 %v233
    %v720 = vunpack.c.h.b16 %v233
    %v721 = vunpack.c.l.b16 %v234
    %v722 = vunpack.c.h.b16 %v234
    %v723 = vunpack.c.l.b16 %v235
    %v724 = vunpack.c.h.b16 %v235
    %v725 = vunpack.c.l.b16 %v236
    %v726 = vunpack.c.h.b16 %v236
    %v727 = vunpack.c.l.b16 %v237
    %v728 = vunpack.c.h.b16 %v237
    %v729 = vunpack.c.l.b16 %v238
    %v730 = vunpack.c.h.b16 %v238
    %v731 = vunpack.c.l.b16 %v239
    %v732 = vunpack.c.h.b16 %v239
    %v733 = vunpack.c.l.b16 %v240
    %v734 = vunpack.c.h.b16 %v240
    %v735 = vunpack.c.l.b16 %v241
    %v736 = vunpack.c.h.b16 %v241
    %v737 = vunpack.c.l.b16 %v242
    %v738 = vunpack.c.h.b16 %v242
    %v739 = vunpack.c.l.b16 %v243
    %v740 = vunpack.c.h.b16 %v243
    %v741 = vunpack.c.l.b16 %v244
    %v742 = vunpack.c.h.b16 %v244
    %v743 = vunpack.c.l.b16 %v245
    %v744 = vunpack.c.h.b16 %v245
    %v745 = vunpack.c.l.b16 %v246
    %v746 = vunpack.c.h.b16 %v246
    %v747 = vunpack.c.l.b16 %v247
    %v748 = vunpack.c.h.b16 %v247
    %v749 = vunpack.c.l.b16 %v248
    %v750 = vunpack.c.h.b16 %v248
    %v751 = vunpack.c.l.b16 %v249
    %v752 = vunpack.c.h.b16 %v249
    %v753 = vunpack.c.l.b16 %v250
    %v754 = vunpack.c.h.b16 %v250
    %v755 = vunpack.c.l.b16 %v251
    %v756 = vunpack.c.h.b16 %v251
    %v757 = vunpack.c.l.b16 %v252
    %v758 = vunpack.c.h.b16 %v252
    %v759 = vunpack.c.l.b16 %v253
    %v760 = vunpack.c.h.b16 %v253
    %v761 = vunpack.c.l.b16 %v254
    %v762 = vunpack.c.h.b16 %v254
    %v763 = vunpack.c.l.b16 %v255
    %v764 = vunpack.c.h.b16 %v255
    %v765 = vunpack.c.l.b16 %v256
    %v766 = vunpack.c.h.b16 %v256
    %v767 = vunpack.c.l.b16 %v257
    %v768 = vunpack.c.h.b16 %v257
    %v769 = vunpack.c.l.b16 %v258
    %v770 = vunpack.c.h.b16 %v258
    %v771 = vunpack.c.l.b16 %v259
    %v772 = vunpack.c.h.b16 %v259
    %v773 = vunpack.c.l.b16 %v260
    %v774 = vunpack.c.h.b16 %v260
    %v775 = vunpack.c.l.b16 %v261
    %v776 = vunpack.c.h.b16 %v261
    %v777 = vunpack.c.l.b16 %v262
    %v778 = vunpack.c.h.b16 %v262
    %v779 = vunpack.c.l.b16 %v263
    %v780 = vunpack.c.h.b16 %v263
    %v781 = vunpack.c.l.b16 %v264
    %v782 = vunpack.c.h.b16 %v264
    %v783 = vunpack.c.l.b16 %v265
    %v784 = vunpack.c.h.b16 %v265
    %v785 = vunpack.c.l.b16 %v266
    %v786 = vunpack.c.h.b16 %v266
    %v787 = vunpack.c.l.b16 %v267
    %v788 = vunpack.c.h.b16 %v267
    %v789 = vunpack.c.l.b16 %v268
    %v790 = vunpack.c.h.b16 %v268
    %v791 = vunpack.c.l.b16 %v269
    %v792 = vunpack.c.h.b16 %v269
    %v793 = vunpack.c.l.b16 %v270
    %v794 = vunpack.c.h.b16 %v270
    %v795 = vunpack.c.l.b16 %v271
    %v796 = vunpack.c.h.b16 %v271
    %v797 = vunpack.c.l.b16 %v272
    %v798 = vunpack.c.h.b16 %v272
    %v799 = vunpack.c.l.b16 %v273
    %v800 = vunpack.c.h.b16 %v273
    %v801 = vunpack.c.l.b16 %v274
    %v802 = vunpack.c.h.b16 %v274
    %v803 = vunpack.c.l.b16 %v275
    %v804 = vunpack.c.h.b16 %v275
    %v805 = vunpack.c.l.b16 %v276
    %v806 = vunpack.c.h.b16 %v276
    %v807 = vunpack.c.l.b16 %v277
    %v808 = vunpack.c.h.b16 %v277
    %v809 = vunpack.c.l.b16 %v278
    %v810 = vunpack.c.h.b16 %v278
    %v811 = vunpack.c.l.b16 %v279
    %v812 = vunpack.c.h.b16 %v279
    %v813 = vunpack.c.l.b16 %v280
    %v814 = vunpack.c.h.b16 %v280
    %v815 = vunpack.c.l.b16 %v281
    %v816 = vunpack.c.h.b16 %v281
    %v817 = vunpack.c.l.b16 %v282
    %v818 = vunpack.c.h.b16 %v282
    %v819 = vunpack.c.l.b16 %v283
    %v820 = vunpack.c.h.b16 %v283
    %v821 = vunpack.c.l.b16 %v284
    %v822 = vunpack.c.h.b16 %v284
    %v823 = vunpack.c.l.b16 %v285
    %v824 = vunpack.c.h.b16 %v285
    %v825 = vunpack.c.l.b16 %v286
    %v826 = vunpack.c.h.b16 %v286
    %v827 = vunpack.c.l.b16 %v287
    %v828 = vunpack.c.h.b16 %v287
    %v829 = vunpack.c.l.b16 %v288
    %v830 = vunpack.c.h.b16 %v288
    %v831 = vunpack.c.l.b16 %v289
    %v832 = vunpack.c.h.b16 %v289
    %v833 = vunpack.c.l.b16 %v290
    %v834 = vunpack.c.h.b16 %v290
    %v835 = vunpack.c.l.b16 %v291
    %v836 = vunpack.c.h.b16 %v291
    %v837 = vunpack.c.l.b16 %v292
    %v838 = vunpack.c.h.b16 %v292
    %v839 = vunpack.c.l.b16 %v293
    %v840 = vunpack.c.h.b16 %v293
    %v841 = vunpack.c.l.b16 %v294
    %v842 = vunpack.c.h.b16 %v294
    %v843 = vunpack.c.l.b16 %v295
    %v844 = vunpack.c.h.b16 %v295
    %v845 = vunpack.c.l.b16 %v296
    %v846 = vunpack.c.h.b16 %v296
    %v847 = vunpack.c.l.b16 %v297
    %v848 = vunpack.c.h.b16 %v297
    %v849 = vunpack.c.l.b16 %v298
    %v850 = vunpack.c.h.b16 %v298
    %v851 = vunpack.c.l.b16 %v299
    %v852 = vunpack.c.h.b16 %v299
    %v853 = vunpack.c.l.b16 %v300
    %v854 = vunpack.c.h.b16 %v300
    %v855 = vunpack.c.l.b16 %v301
    %v856 = vunpack.c.h.b16 %v301
    %v857 = vunpack.c.l.b16 %v302
    %v858 = vunpack.c.h.b16 %v302
    %v859 = vunpack.c.l.b16 %v303
    %v860 = vunpack.c.h.b16 %v303
    %v861 = vunpack.c.l.b16 %v304
    %v862 = vunpack.c.h.b16 %v304
    %v863 = vunpack.c.l.b16 %v305
    %v864 = vunpack.c.h.b16 %v305
    %v865 = vunpack.c.l.b16 %v306
    %v866 = vunpack.c.h.b16 %v306
    %v867 = vunpack.c.l.b16 %v307
    %v868 = vunpack.c.h.b16 %v307
    %v869 = vunpack.c.l.b16 %v308
    %v870 = vunpack.c.h.b16 %v308
    %v871 = vunpack.c.l.b16 %v309
    %v872 = vunpack.c.h.b16 %v309
    %v873 = vunpack.c.l.b16 %v310
    %v874 = vunpack.c.h.b16 %v310
    %v875 = vunpack.c.l.b16 %v311
    %v876 = vunpack.c.h.b16 %v311
    %v877 = vunpack.c.l.b16 %v312
    %v878 = vunpack.c.h.b16 %v312
    %v879 = vunpack.c.l.b16 %v313
    %v880 = vunpack.c.h.b16 %v313
    %v881 = vunpack.c.l.b16 %v314
    %v882 = vunpack.c.h.b16 %v314
    %v883 = vunpack.c.l.b16 %v315
    %v884 = vunpack.c.h.b16 %v315
    %v885 = vunpack.c.l.b16 %v316
    %v886 = vunpack.c.h.b16 %v316
    %v887 = vunpack.c.l.b16 %v317
    %v888 = vunpack.c.h.b16 %v317
    %v889 = vunpack.c.l.b16 %v318
    %v890 = vunpack.c.h.b16 %v318
    %v891 = vunpack.c.l.b16 %v319
    %v892 = vunpack.c.h.b16 %v319
    %v893 = vunpack.c.l.b16 %v320
    %v894 = vunpack.c.h.b16 %v320
    %v895 = vunpack.c.l.b16 %v321
    %v896 = vunpack.c.h.b16 %v321
    %v897 = vunpack.c.l.b16 %v322
    %v898 = vunpack.c.h.b16 %v322
    %v899 = vunpack.c.l.b16 %v323
    %v900 = vunpack.c.h.b16 %v323
    %v901 = vunpack.c.l.b16 %v324
    %v902 = vunpack.c.h.b16 %v324
    %v903 = vunpack.c.l.b16 %v325
    %v904 = vunpack.c.h.b16 %v325
    %v905 = vunpack.c.l.b16 %v326
    %v906 = vunpack.c.h.b16 %v326
    %v907 = vunpack.c.l.b16 %v327
    %v908 = vunpack.c.h.b16 %v327
    %v909 = vunpack.c.l.b16 %v328
    %v910 = vunpack.c.h.b16 %v328
    %v911 = vunpack.c.l.b16 %v329
    %v912 = vunpack.c.h.b16 %v329
    %v913 = vunpack.c.l.b16 %v330
    %v914 = vunpack.c.h.b16 %v330
    %v915 = vunpack.c.l.b16 %v331
    %v916 = vunpack.c.h.b16 %v331
    %v917 = vunpack.c.l.b16 %v332
    %v918 = vunpack.c.h.b16 %v332
    %v919 = vunpack.c.l.b16 %v333
    %v920 = vunpack.c.h.b16 %v333
    %v921 = vunpack.c.l.b16 %v334
    %v922 = vunpack.c.h.b16 %v334
    %v923 = vunpack.c.l.b16 %v335
    %v924 = vunpack.c.h.b16 %v335
    %v925 = vunpack.c.l.b16 %v336
    %v926 = vunpack.c.h.b16 %v336
    %v927 = vunpack.c.l.b16 %v337
    %v928 = vunpack.c.h.b16 %v337
    %v929 = vunpack.c.l.b16 %v338
    %v930 = vunpack.c.h.b16 %v338
    %v931 = vunpack.c.l.b16 %v339
    %v932 = vunpack.c.h.b16 %v339
    %v933 = vunpack.c.l.b16 %v340
    %v934 = vunpack.c.h.b16 %v340
    %v935 = vunpack.c.l.b16 %v341
    %v936 = vunpack.c.h.b16 %v341
    %v937 = vunpack.c.l.b16 %v342
    %v938 = vunpack.c.h.b16 %v342
    %v939 = vunpack.c.l.b16 %v343
    %v940 = vunpack.c.h.b16 %v343
    %v941 = vunpack.c.l.b16 %v344
    %v942 = vunpack.c.h.b16 %v344
    %v943 = vunpack.c.l.b16 %v345
    %v944 = vunpack.c.h.b16 %v345
    %v945 = vunpack.c.l.b16 %v346
    %v946 = vunpack.c.h.b16 %v346
    %v947 = vunpack.c.l.b16 %v347
    %v948 = vunpack.c.h.b16 %v347
    %v949 = vunpack.c.l.b16 %v348
    %v950 = vunpack.c.h.b16 %v348
    %v951 = vunpack.c.l.b16 %v349
    %v952 = vunpack.c.h.b16 %v349
    %v953 = vunpack.c.l.b16 %v350
    %v954 = vunpack.c.h.b16 %v350
    %v955 = vunpack.c.l.b16 %v351
    %v956 = vunpack.c.h.b16 %v351
    %v957 = vpack.c.b16 %v581, %v573
    %v958 = vpack.c.b16 %v582, %v574
    %v959 = vpack.c.b16 %v583, %v575
    %v960 = vpack.c.b16 %v584, %v576
    %v961 = vpack.c.b16 %v585, %v577
    %v962 = vpack.c.b16 %v586, %v578
    %v963 = vpack.c.b16 %v587, %v579
    %v964 = vpack.c.b16 %v588, %v580
    %v965 = vpack.c.b16 %v597, %v589
    %v966 = vpack.c.b16 %v598, %v590
    %v967 = vpack.c.b16 %v599, %v591
    %v968 = vpack.c.b16 %v600, %v592
    %v969 = vpack.c.b16 %v601, %v593
    %v970 = vpack.c.b16 %v602, %v594
    %v971 = vpack.c.b16 %v603, %v595
    %v972 = vpack.c.b16 %v604, %v596
    %v973 = vpack.c.b16 %v613, %v605
    %v974 = vpack.c.b16 %v614, %v606
    %v975 = vpack.c.b16 %v615, %v607
    %v976 = vpack.c.b16 %v616, %v608
    %v977 = vpack.c.b16 %v617, %v609
    %v978 = vpack.c.b16 %v618, %v610
    %v979 = vpack.c.b16 %v619, %v611
    %v980 = vpack.c.b16 %v620, %v612
    %v981 = vpack.c.b16 %v629, %v621
    %v982 = vpack.c.b16 %v630, %v622
    %v983 = vpack.c.b16 %v631, %v623
    %v984 = vpack.c.b16 %v632, %v624
    %v985 = vpack.c.b16 %v633, %v625
    %v986 = vpack.c.b16 %v634, %v626
    %v987 = vpack.c.b16 %v635, %v627
    %v988 = vpack.c.b16 %v636, %v628
    %v989 = vpack.c.b16 %v645, %v637
    %v990 = vpack.c.b16 %v646, %v638
    %v991 = vpack.c.b16 %v647, %v639
    %v992 = vpack.c.b16 %v648, %v640
    %v993 = vpack.c.b16 %v649, %v641
    %v994 = vpack.c.b16 %v650, %v642
    %v995 = vpack.c.b16 %v651, %v643
    %v996 = vpack.c.b16 %v652, %v644
    %v997 = vpack.c.b16 %v661, %v653
    %v998 = vpack.c.b16 %v662, %v654
    %v999 = vpack.c.b16 %v663, %v655
    %v1000 = vpack.c.b16 %v664, %v656
    %v1001 = vpack.c.b16 %v665, %v657
    %v1002 = vpack.c.b16 %v666, %v658
    %v1003 = vpack.c.b16 %v667, %v659
    %v1004 = vpack.c.b16 %v668, %v660
    %v1005 = vpack.c.b16 %v677, %v669
    %v1006 = vpack.c.b16 %v678, %v670
    %v1007 = vpack.c.b16 %v679, %v671
    %v1008 = vpack.c.b16 %v680, %v672
    %v1009 = vpack.c.b16 %v681, %v673
    %v1010 = vpack.c.b16 %v682, %v674
    %v1011 = vpack.c.b16 %v683, %v675
    %v1012 = vpack.c.b16 %v684, %v676
    %v1013 = vpack.c.b16 %v693, %v685
    %v1014 = vpack.c.b16 %v694, %v686
    %v1015 = vpack.c.b16 %v695, %v687
    %v1016 = vpack.c.b16 %v696, %v688
    %v1017 = vpack.c.b16 %v697, %v689
    %v1018 = vpack.c.b16 %v698, %v690
    %v1019 = vpack.c.b16 %v699, %v691
    %v1020 = vpack.c.b16 %v700, %v692
    %v1021 = vpack.c.b16 %v709, %v701
    %v1022 = vpack.c.b16 %v710, %v702
    %v1023 = vpack.c.b16 %v711, %v703
    %v1024 = vpack.c.b16 %v712, %v704
    %v1025 = vpack.c.b16 %v713, %v705
    %v1026 = vpack.c.b16 %v714, %v706
    %v1027 = vpack.c.b16 %v715, %v707
    %v1028 = vpack.c.b16 %v716, %v708
    %v1029 = vpack.c.b16 %v725, %v717
    %v1030 = vpack.c.b16 %v726, %v718
    %v1031 = vpack.c.b16 %v727, %v719
    %v1032 = vpack.c.b16 %v728, %v720
    %v1033 = vpack.c.b16 %v729, %v721
    %v1034 = vpack.c.b16 %v730, %v722
    %v1035 = vpack.c.b16 %v731, %v723
    %v1036 = vpack.c.b16 %v732, %v724
    %v1037 = vpack.c.b16 %v741, %v733
    %v1038 = vpack.c.b16 %v742, %v734
    %v1039 = vpack.c.b16 %v743, %v735
    %v1040 = vpack.c.b16 %v744, %v736
    %v1041 = vpack.c.b16 %v745, %v737
    %v1042 = vpack.c.b16 %v746, %v738
    %v1043 = vpack.c.b16 %v747, %v739
    %v1044 = vpack.c.b16 %v748, %v740
    %v1045 = vpack.c.b16 %v757, %v749
    %v1046 = vpack.c.b16 %v758, %v750
    %v1047 = vpack.c.b16 %v759, %v751
    %v1048 = vpack.c.b16 %v760, %v752
    %v1049 = vpack.c.b16 %v761, %v753
    %v1050 = vpack.c.b16 %v762, %v754
    %v1051 = vpack.c.b16 %v763, %v755
    %v1052 = vpack.c.b16 %v764, %v756
    %v1053 = vpack.c.b16 %v773, %v765
    %v1054 = vpack.c.b16 %v774, %v766
    %v1055 = vpack.c.b16 %v775, %v767
    %v1056 = vpack.c.b16 %v776, %v768
    %v1057 = vpack.c.b16 %v777, %v769
    %v1058 = vpack.c.b16 %v778, %v770
    %v1059 = vpack.c.b16 %v779, %v771
    %v1060 = vpack.c.b16 %v780, %v772
    %v1061 = vpack.c.b16 %v789, %v781
    %v1062 = vpack.c.b16 %v790, %v782
    %v1063 = vpack.c.b16 %v791, %v783
    %v1064 = vpack.c.b16 %v792, %v784
    %v1065 = vpack.c.b16 %v793, %v785
    %v1066 = vpack.c.b16 %v794, %v786
    %v1067 = vpack.c.b16 %v795, %v787
    %v1068 = vpack.c.b16 %v796, %v788
    %v1069 = vpack.c.b16 %v805, %v797
    %v1070 = vpack.c.b16 %v806, %v798
    %v1071 = vpack.c.b16 %v807, %v799
    %v1072 = vpack.c.b16 %v808, %v800
    %v1073 = vpack.c.b16 %v809, %v801
    %v1074 = vpack.c.b16 %v810, %v802
    %v1075 = vpack.c.b16 %v811, %v803
    %v1076 = vpack.c.b16 %v812, %v804
    %v1077 = vpack.c.b16 %v821, %v813
    %v1078 = vpack.c.b16 %v822, %v814
    %v1079 = vpack.c.b16 %v823, %v815
    %v1080 = vpack.c.b16 %v824, %v816
    %v1081 = vpack.c.b16 %v825, %v817
    %v1082 = vpack.c.b16 %v826, %v818
    %v1083 = vpack.c.b16 %v827, %v819
    %v1084 = vpack.c.b16 %v828, %v820
    %v1085 = vpack.c.b16 %v837, %v829
    %v1086 = vpack.c.b16 %v838, %v830
    %v1087 = vpack.c.b16 %v839, %v831
    %v1088 = vpack.c.b16 %v840, %v832
    %v1089 = vpack.c.b16 %v841, %v833
    %v1090 = vpack.c.b16 %v842, %v834
    %v1091 = vpack.c.b16 %v843, %v835
    %v1092 = vpack.c.b16 %v844, %v836
    %v1093 = vpack.c.b16 %v853, %v845
    %v1094 = vpack.c.b16 %v854, %v846
    %v1095 = vpack.c.b16 %v855, %v847
    %v1096 = vpack.c.b16 %v856, %v848
    %v1097 = vpack.c.b16 %v857, %v849
    %v1098 = vpack.c.b16 %v858, %v850
    %v1099 = vpack.c.b16 %v859, %v851
    %v1100 = vpack.c.b16 %v860, %v852
    %v1101 = vpack.c.b16 %v869, %v861
    %v1102 = vpack.c.b16 %v870, %v862
    %v1103 = vpack.c.b16 %v871, %v863
    %v1104 = vpack.c.b16 %v872, %v864
    %v1105 = vpack.c.b16 %v873, %v865
    %v1106 = vpack.c.b16 %v874, %v866
    %v1107 = vpack.c.b16 %v875, %v867
    %v1108 = vpack.c.b16 %v876, %v868
    %v1109 = vpack.c.b16 %v885, %v877
    %v1110 = vpack.c.b16 %v886, %v878
    %v1111 = vpack.c.b16 %v887, %v879
    %v1112 = vpack.c.b16 %v888, %v880
    %v1113 = vpack.c.b16 %v889, %v881
    %v1114 = vpack.c.b16 %v890, %v882
    %v1115 = vpack.c.b16 %v891, %v883
    %v1116 = vpack.c.b16 %v892, %v884
    %v1117 = vpack.c.b16 %v901, %v893
    %v1118 = vpack.c.b16 %v902, %v894
    %v1119 = vpack.c.b16 %v903, %v895
    %v1120 = vpack.c.b16 %v904, %v896
    %v1121 = vpack.c.b16 %v905, %v897
    %v1122 = vpack.c.b16 %v906, %v898
    %v1123 = vpack.c.b16 %v907, %v899
    %v1124 = vpack.c.b16 %v908, %v900
    %v1125 = vpack.c.b16 %v917, %v909
    %v1126 = vpack.c.b16 %v918, %v910
    %v1127 = vpack.c.b16 %v919, %v911
    %v1128 = vpack.c.b16 %v920, %v912
    %v1129 = vpack.c.b16 %v921, %v913
    %v1130 = vpack.c.b16 %v922, %v914
    %v1131 = vpack.c.b16 %v923, %v915
    %v1132 = vpack.c.b16 %v924, %v916
    %v1133 = vpack.c.b16 %v933, %v925
    %v1134 = vpack.c.b16 %v934, %v926
    %v1135 = vpack.c.b16 %v935, %v927
    %v1136 = vpack.c.b16 %v936, %v928
    %v1137 = vpack.c.b16 %v937, %v929
    %v1138 = vpack.c.b16 %v938, %v930
    %v1139 = vpack.c.b16 %v939, %v931
    %v1140 = vpack.c.b16 %v940, %v932
    %v1141 = vpack.c.b16 %v949, %v941
    %v1142 = vpack.c.b16 %v950, %v942
    %v1143 = vpack.c.b16 %v951, %v943
    %v1144 = vpack.c.b16 %v952, %v944
    %v1145 = vpack.c.b16 %v953, %v945
    %v1146 = vpack.c.b16 %v954, %v946
    %v1147 = vpack.c.b16 %v955, %v947
    %v1148 = vpack.c.b16 %v956, %v948
    %1341 = vmatpush.bf16.msra.mxu0 %v1013
    %1342 = vmatpush.bf16.msra.mxu0 %v1005
    %1343 = vmatpush.bf16.msra.mxu0 %v997
    %1344 = vmatpush.bf16.msra.mxu0 %v989
    %1345 = vmatpush.bf16.msra.mxu0 %v981
    %1346 = vmatpush.bf16.msra.mxu0 %v973
    %1347 = vmatpush.bf16.msra.mxu0 %v965
    %1348 = vmatpush.bf16.msra.mxu0 %v957
    %1349 = vmatmul.bf16.gmra.mxu0 %v375
    %v1350 = vpop.f32.mrf.mxu0
    %v1351 = vadd.f32 %v354, %v1350
    %v1352 = vpop.f32.mrf.mxu0
    %1353 = vdwg.mxu0
    %1354 = vmatpush.bf16.msra.mxu0 %v1077
    %1355 = vmatpush.bf16.msra.mxu0 %v1069
    %1356 = vmatpush.bf16.msra.mxu0 %v1061
    %1357 = vmatpush.bf16.msra.mxu0 %v1053
    %1358 = vmatpush.bf16.msra.mxu0 %v1045
    %1359 = vmatpush.bf16.msra.mxu0 %v1037
    %1360 = vmatpush.bf16.msra.mxu0 %v1029
    %1361 = vmatpush.bf16.msra.mxu0 %v1021
    %1362 = vmatmul.bf16.gmra.mxu0 %v376
    %v1363 = vpop.f32.mrf.mxu0
    %v1364 = vadd.f32 %v1351, %v1363
    %v1365 = vpop.f32.mrf.mxu0
    %1366 = vdwg.mxu0
    %1367 = vmatpush.bf16.msra.mxu0 %v1141
    %1368 = vmatpush.bf16.msra.mxu0 %v1133
    %1369 = vmatpush.bf16.msra.mxu0 %v1125
    %1370 = vmatpush.bf16.msra.mxu0 %v1117
    %1371 = vmatpush.bf16.msra.mxu0 %v1109
    %1372 = vmatpush.bf16.msra.mxu0 %v1101
    %1373 = vmatpush.bf16.msra.mxu0 %v1093
    %1374 = vmatpush.bf16.msra.mxu0 %v1085
    %1375 = vmatmul.bf16.gmra.mxu0 %v377
    %v1376 = vpop.f32.mrf.mxu0
    %v1377 = vadd.f32 %v1364, %v1376
    %v1378 = vpop.f32.mrf.mxu0
    %1379 = vdwg.mxu0
    %1380 = vmatpush.bf16.msra.mxu0 %v1014
    %1381 = vmatpush.bf16.msra.mxu0 %v1006
    %1382 = vmatpush.bf16.msra.mxu0 %v998
    %1383 = vmatpush.bf16.msra.mxu0 %v990
    %1384 = vmatpush.bf16.msra.mxu0 %v982
    %1385 = vmatpush.bf16.msra.mxu0 %v974
    %1386 = vmatpush.bf16.msra.mxu0 %v966
    %1387 = vmatpush.bf16.msra.mxu0 %v958
    %1388 = vmatmul.bf16.gmra.mxu0 %v375
    %v1389 = vpop.f32.mrf.mxu0
    %v1390 = vadd.f32 %v355, %v1389
    %v1391 = vpop.f32.mrf.mxu0
    %1392 = vdwg.mxu0
    %1393 = vmatpush.bf16.msra.mxu0 %v1078
    %1394 = vmatpush.bf16.msra.mxu0 %v1070
    %1395 = vmatpush.bf16.msra.mxu0 %v1062
    %1396 = vmatpush.bf16.msra.mxu0 %v1054
    %1397 = vmatpush.bf16.msra.mxu0 %v1046
    %1398 = vmatpush.bf16.msra.mxu0 %v1038
    %1399 = vmatpush.bf16.msra.mxu0 %v1030
    %1400 = vmatpush.bf16.msra.mxu0 %v1022
    %1401 = vmatmul.bf16.gmra.mxu0 %v376
    %v1402 = vpop.f32.mrf.mxu0
    %v1403 = vadd.f32 %v1390, %v1402
    %v1404 = vpop.f32.mrf.mxu0
    %1405 = vdwg.mxu0
    %1406 = vmatpush.bf16.msra.mxu0 %v1142
    %1407 = vmatpush.bf16.msra.mxu0 %v1134
    %1408 = vmatpush.bf16.msra.mxu0 %v1126
    %1409 = vmatpush.bf16.msra.mxu0 %v1118
    %1410 = vmatpush.bf16.msra.mxu0 %v1110
    %1411 = vmatpush.bf16.msra.mxu0 %v1102
    %1412 = vmatpush.bf16.msra.mxu0 %v1094
    %1413 = vmatpush.bf16.msra.mxu0 %v1086
    %1414 = vmatmul.bf16.gmra.mxu0 %v377
    %v1415 = vpop.f32.mrf.mxu0
    %v1416 = vadd.f32 %v1403, %v1415
    %v1417 = vpop.f32.mrf.mxu0
    %1418 = vdwg.mxu0
    %1419 = vmatpush.bf16.msra.mxu0 %v1015
    %1420 = vmatpush.bf16.msra.mxu0 %v1007
    %1421 = vmatpush.bf16.msra.mxu0 %v999
    %1422 = vmatpush.bf16.msra.mxu0 %v991
    %1423 = vmatpush.bf16.msra.mxu0 %v983
    %1424 = vmatpush.bf16.msra.mxu0 %v975
    %1425 = vmatpush.bf16.msra.mxu0 %v967
    %1426 = vmatpush.bf16.msra.mxu0 %v959
    %1427 = vmatmul.bf16.gmra.mxu0 %v375
    %v1428 = vpop.f32.mrf.mxu0
    %v1429 = vadd.f32 %v356, %v1428
    %v1430 = vpop.f32.mrf.mxu0
    %1431 = vdwg.mxu0
    %1432 = vmatpush.bf16.msra.mxu0 %v1079
    %1433 = vmatpush.bf16.msra.mxu0 %v1071
    %1434 = vmatpush.bf16.msra.mxu0 %v1063
    %1435 = vmatpush.bf16.msra.mxu0 %v1055
    %1436 = vmatpush.bf16.msra.mxu0 %v1047
    %1437 = vmatpush.bf16.msra.mxu0 %v1039
    %1438 = vmatpush.bf16.msra.mxu0 %v1031
    %1439 = vmatpush.bf16.msra.mxu0 %v1023
    %1440 = vmatmul.bf16.gmra.mxu0 %v376
    %v1441 = vpop.f32.mrf.mxu0
    %v1442 = vadd.f32 %v1429, %v1441
    %v1443 = vpop.f32.mrf.mxu0
    %1444 = vdwg.mxu0
    %1445 = vmatpush.bf16.msra.mxu0 %v1143
    %1446 = vmatpush.bf16.msra.mxu0 %v1135
    %1447 = vmatpush.bf16.msra.mxu0 %v1127
    %1448 = vmatpush.bf16.msra.mxu0 %v1119
    %1449 = vmatpush.bf16.msra.mxu0 %v1111
    %1450 = vmatpush.bf16.msra.mxu0 %v1103
    %1451 = vmatpush.bf16.msra.mxu0 %v1095
    %1452 = vmatpush.bf16.msra.mxu0 %v1087
    %1453 = vmatmul.bf16.gmra.mxu0 %v377
    %v1454 = vpop.f32.mrf.mxu0
    %v1455 = vadd.f32 %v1442, %v1454
    %v1456 = vpop.f32.mrf.mxu0
    %1457 = vdwg.mxu0
    %1458 = vmatpush.bf16.msra.mxu0 %v1016
    %1459 = vmatpush.bf16.msra.mxu0 %v1008
    %1460 = vmatpush.bf16.msra.mxu0 %v1000
    %1461 = vmatpush.bf16.msra.mxu0 %v992
    %1462 = vmatpush.bf16.msra.mxu0 %v984
    %1463 = vmatpush.bf16.msra.mxu0 %v976
    %1464 = vmatpush.bf16.msra.mxu0 %v968
    %1465 = vmatpush.bf16.msra.mxu0 %v960
    %1466 = vmatmul.bf16.gmra.mxu0 %v375
    %v1467 = vpop.f32.mrf.mxu0
    %v1468 = vadd.f32 %v357, %v1467
    %v1469 = vpop.f32.mrf.mxu0
    %1470 = vdwg.mxu0
    %1471 = vmatpush.bf16.msra.mxu0 %v1080
    %1472 = vmatpush.bf16.msra.mxu0 %v1072
    %1473 = vmatpush.bf16.msra.mxu0 %v1064
    %1474 = vmatpush.bf16.msra.mxu0 %v1056
    %1475 = vmatpush.bf16.msra.mxu0 %v1048
    %1476 = vmatpush.bf16.msra.mxu0 %v1040
    %1477 = vmatpush.bf16.msra.mxu0 %v1032
    %1478 = vmatpush.bf16.msra.mxu0 %v1024
    %1479 = vmatmul.bf16.gmra.mxu0 %v376
    %v1480 = vpop.f32.mrf.mxu0
    %v1481 = vadd.f32 %v1468, %v1480
    %v1482 = vpop.f32.mrf.mxu0
    %1483 = vdwg.mxu0
    %1484 = vmatpush.bf16.msra.mxu0 %v1144
    %1485 = vmatpush.bf16.msra.mxu0 %v1136
    %1486 = vmatpush.bf16.msra.mxu0 %v1128
    %1487 = vmatpush.bf16.msra.mxu0 %v1120
    %1488 = vmatpush.bf16.msra.mxu0 %v1112
    %1489 = vmatpush.bf16.msra.mxu0 %v1104
    %1490 = vmatpush.bf16.msra.mxu0 %v1096
    %1491 = vmatpush.bf16.msra.mxu0 %v1088
    %1492 = vmatmul.bf16.gmra.mxu0 %v377
    %v1493 = vpop.f32.mrf.mxu0
    %v1494 = vadd.f32 %v1481, %v1493
    %v1495 = vpop.f32.mrf.mxu0
    %1496 = vdwg.mxu0
    %1497 = vmatpush.bf16.msra.mxu0 %v1017
    %1498 = vmatpush.bf16.msra.mxu0 %v1009
    %1499 = vmatpush.bf16.msra.mxu0 %v1001
    %1500 = vmatpush.bf16.msra.mxu0 %v993
    %1501 = vmatpush.bf16.msra.mxu0 %v985
    %1502 = vmatpush.bf16.msra.mxu0 %v977
    %1503 = vmatpush.bf16.msra.mxu0 %v969
    %1504 = vmatpush.bf16.msra.mxu0 %v961
    %1505 = vmatmul.bf16.gmra.mxu0 %v375
    %v1506 = vpop.f32.mrf.mxu0
    %v1507 = vadd.f32 %v358, %v1506
    %v1508 = vpop.f32.mrf.mxu0
    %1509 = vdwg.mxu0
    %1510 = vmatpush.bf16.msra.mxu0 %v1081
    %1511 = vmatpush.bf16.msra.mxu0 %v1073
    %1512 = vmatpush.bf16.msra.mxu0 %v1065
    %1513 = vmatpush.bf16.msra.mxu0 %v1057
    %1514 = vmatpush.bf16.msra.mxu0 %v1049
    %1515 = vmatpush.bf16.msra.mxu0 %v1041
    %1516 = vmatpush.bf16.msra.mxu0 %v1033
    %1517 = vmatpush.bf16.msra.mxu0 %v1025
    %1518 = vmatmul.bf16.gmra.mxu0 %v376
    %v1519 = vpop.f32.mrf.mxu0
    %v1520 = vadd.f32 %v1507, %v1519
    %v1521 = vpop.f32.mrf.mxu0
    %1522 = vdwg.mxu0
    %1523 = vmatpush.bf16.msra.mxu0 %v1145
    %1524 = vmatpush.bf16.msra.mxu0 %v1137
    %1525 = vmatpush.bf16.msra.mxu0 %v1129
    %1526 = vmatpush.bf16.msra.mxu0 %v1121
    %1527 = vmatpush.bf16.msra.mxu0 %v1113
    %1528 = vmatpush.bf16.msra.mxu0 %v1105
    %1529 = vmatpush.bf16.msra.mxu0 %v1097
    %1530 = vmatpush.bf16.msra.mxu0 %v1089
    %1531 = vmatmul.bf16.gmra.mxu0 %v377
    %v1532 = vpop.f32.mrf.mxu0
    %v1533 = vadd.f32 %v1520, %v1532
    %v1534 = vpop.f32.mrf.mxu0
    %1535 = vdwg.mxu0
    %1536 = vmatpush.bf16.msra.mxu0 %v1018
    %1537 = vmatpush.bf16.msra.mxu0 %v1010
    %1538 = vmatpush.bf16.msra.mxu0 %v1002
    %1539 = vmatpush.bf16.msra.mxu0 %v994
    %1540 = vmatpush.bf16.msra.mxu0 %v986
    %1541 = vmatpush.bf16.msra.mxu0 %v978
    %1542 = vmatpush.bf16.msra.mxu0 %v970
    %1543 = vmatpush.bf16.msra.mxu0 %v962
    %1544 = vmatmul.bf16.gmra.mxu0 %v375
    %v1545 = vpop.f32.mrf.mxu0
    %v1546 = vadd.f32 %v359, %v1545
    %v1547 = vpop.f32.mrf.mxu0
    %1548 = vdwg.mxu0
    %1549 = vmatpush.bf16.msra.mxu0 %v1082
    %1550 = vmatpush.bf16.msra.mxu0 %v1074
    %1551 = vmatpush.bf16.msra.mxu0 %v1066
    %1552 = vmatpush.bf16.msra.mxu0 %v1058
    %1553 = vmatpush.bf16.msra.mxu0 %v1050
    %1554 = vmatpush.bf16.msra.mxu0 %v1042
    %1555 = vmatpush.bf16.msra.mxu0 %v1034
    %1556 = vmatpush.bf16.msra.mxu0 %v1026
    %1557 = vmatmul.bf16.gmra.mxu0 %v376
    %v1558 = vpop.f32.mrf.mxu0
    %v1559 = vadd.f32 %v1546, %v1558
    %v1560 = vpop.f32.mrf.mxu0
    %1561 = vdwg.mxu0
    %1562 = vmatpush.bf16.msra.mxu0 %v1146
    %1563 = vmatpush.bf16.msra.mxu0 %v1138
    %1564 = vmatpush.bf16.msra.mxu0 %v1130
    %1565 = vmatpush.bf16.msra.mxu0 %v1122
    %1566 = vmatpush.bf16.msra.mxu0 %v1114
    %1567 = vmatpush.bf16.msra.mxu0 %v1106
    %1568 = vmatpush.bf16.msra.mxu0 %v1098
    %1569 = vmatpush.bf16.msra.mxu0 %v1090
    %1570 = vmatmul.bf16.gmra.mxu0 %v377
    %v1571 = vpop.f32.mrf.mxu0
    %v1572 = vadd.f32 %v1559, %v1571
    %v1573 = vpop.f32.mrf.mxu0
    %1574 = vdwg.mxu0
    %1575 = vmatpush.bf16.msra.mxu0 %v1019
    %1576 = vmatpush.bf16.msra.mxu0 %v1011
    %1577 = vmatpush.bf16.msra.mxu0 %v1003
    %1578 = vmatpush.bf16.msra.mxu0 %v995
    %1579 = vmatpush.bf16.msra.mxu0 %v987
    %1580 = vmatpush.bf16.msra.mxu0 %v979
    %1581 = vmatpush.bf16.msra.mxu0 %v971
    %1582 = vmatpush.bf16.msra.mxu0 %v963
    %1583 = vmatmul.bf16.gmra.mxu0 %v375
    %v1584 = vpop.f32.mrf.mxu0
    %v1585 = vadd.f32 %v360, %v1584
    %v1586 = vpop.f32.mrf.mxu0
    %1587 = vdwg.mxu0
    %1588 = vmatpush.bf16.msra.mxu0 %v1083
    %1589 = vmatpush.bf16.msra.mxu0 %v1075
    %1590 = vmatpush.bf16.msra.mxu0 %v1067
    %1591 = vmatpush.bf16.msra.mxu0 %v1059
    %1592 = vmatpush.bf16.msra.mxu0 %v1051
    %1593 = vmatpush.bf16.msra.mxu0 %v1043
    %1594 = vmatpush.bf16.msra.mxu0 %v1035
    %1595 = vmatpush.bf16.msra.mxu0 %v1027
    %1596 = vmatmul.bf16.gmra.mxu0 %v376
    %v1597 = vpop.f32.mrf.mxu0
    %v1598 = vadd.f32 %v1585, %v1597
    %v1599 = vpop.f32.mrf.mxu0
    %1600 = vdwg.mxu0
    %1601 = vmatpush.bf16.msra.mxu0 %v1147
    %1602 = vmatpush.bf16.msra.mxu0 %v1139
    %1603 = vmatpush.bf16.msra.mxu0 %v1131
    %1604 = vmatpush.bf16.msra.mxu0 %v1123
    %1605 = vmatpush.bf16.msra.mxu0 %v1115
    %1606 = vmatpush.bf16.msra.mxu0 %v1107
    %1607 = vmatpush.bf16.msra.mxu0 %v1099
    %1608 = vmatpush.bf16.msra.mxu0 %v1091
    %1609 = vmatmul.bf16.gmra.mxu0 %v377
    %v1610 = vpop.f32.mrf.mxu0
    %v1611 = vadd.f32 %v1598, %v1610
    %v1612 = vpop.f32.mrf.mxu0
    %1613 = vdwg.mxu0
    %1614 = vmatpush.bf16.msra.mxu0 %v1020
    %1615 = vmatpush.bf16.msra.mxu0 %v1012
    %1616 = vmatpush.bf16.msra.mxu0 %v1004
    %1617 = vmatpush.bf16.msra.mxu0 %v996
    %1618 = vmatpush.bf16.msra.mxu0 %v988
    %1619 = vmatpush.bf16.msra.mxu0 %v980
    %1620 = vmatpush.bf16.msra.mxu0 %v972
    %1621 = vmatpush.bf16.msra.mxu0 %v964
    %1622 = vmatmul.bf16.gmra.mxu0 %v375
    %v1623 = vpop.f32.mrf.mxu0
    %v1624 = vadd.f32 %v361, %v1623
    %v1625 = vpop.f32.mrf.mxu0
    %1626 = vdwg.mxu0
    %1627 = vmatpush.bf16.msra.mxu0 %v1084
    %1628 = vmatpush.bf16.msra.mxu0 %v1076
    %1629 = vmatpush.bf16.msra.mxu0 %v1068
    %1630 = vmatpush.bf16.msra.mxu0 %v1060
    %1631 = vmatpush.bf16.msra.mxu0 %v1052
    %1632 = vmatpush.bf16.msra.mxu0 %v1044
    %1633 = vmatpush.bf16.msra.mxu0 %v1036
    %1634 = vmatpush.bf16.msra.mxu0 %v1028
    %1635 = vmatmul.bf16.gmra.mxu0 %v376
    %v1636 = vpop.f32.mrf.mxu0
    %v1637 = vadd.f32 %v1624, %v1636
    %v1638 = vpop.f32.mrf.mxu0
    %1639 = vdwg.mxu0
    %1640 = vmatpush.bf16.msra.mxu0 %v1148
    %1641 = vmatpush.bf16.msra.mxu0 %v1140
    %1642 = vmatpush.bf16.msra.mxu0 %v1132
    %1643 = vmatpush.bf16.msra.mxu0 %v1124
    %1644 = vmatpush.bf16.msra.mxu0 %v1116
    %1645 = vmatpush.bf16.msra.mxu0 %v1108
    %1646 = vmatpush.bf16.msra.mxu0 %v1100
    %1647 = vmatpush.bf16.msra.mxu0 %v1092
    %1648 = vmatmul.bf16.gmra.mxu0 %v377
    %v1649 = vpop.f32.mrf.mxu0
    %v1650 = vadd.f32 %v1637, %v1649
    %v1651 = vpop.f32.mrf.mxu0
    %1652 = vdwg.mxu0
    %v1653 = vmax.f32 %v1377, 0.0
    %v1654 = vmax.f32 %v1416, 0.0
    %v1655 = vmax.f32 %v1455, 0.0
    %v1656 = vmax.f32 %v1494, 0.0
    %v1657 = vmax.f32 %v1533, 0.0
    %v1658 = vmax.f32 %v1572, 0.0
    %v1659 = vmax.f32 %v1611, 0.0
    %v1660 = vmax.f32 %v1650, 0.0
    %v1661 = vpack.c.bf16 %v1653, %v1653
    %v1662 = vpack.c.bf16 %v1654, %v1654
    %v1663 = vpack.c.bf16 %v1655, %v1655
    %v1664 = vpack.c.bf16 %v1656, %v1656
    %v1665 = vpack.c.bf16 %v1657, %v1657
    %v1666 = vpack.c.bf16 %v1658, %v1658
    %v1667 = vpack.c.bf16 %v1659, %v1659
    %v1668 = vpack.c.bf16 %v1660, %v1660
    %v1669 = vld [vmem:[#allocation8] sm:$0xff]
    %v1670 = vld [vmem:[#allocation8 + $0x8] sm:$0xff]
    %v1671 = vld [vmem:[#allocation8 + $0x10] sm:$0xff]
    %v1672 = vld [vmem:[#allocation8 + $0x18] sm:$0xff]
    %v1673 = vld [vmem:[#allocation8 + $0x20] sm:$0xff]
    %v1674 = vld [vmem:[#allocation8 + $0x28] sm:$0xff]
    %v1675 = vld [vmem:[#allocation8 + $0x30] sm:$0xff]
    %v1676 = vld [vmem:[#allocation8 + $0x38] sm:$0xff]
    %v1677 = vld [vmem:[#allocation8 + $0x40] sm:$0xff]
    %v1678 = vld [vmem:[#allocation8 + $0x48] sm:$0xff]
    %v1679 = vld [vmem:[#allocation8 + $0x50] sm:$0xff]
    %v1680 = vld [vmem:[#allocation8 + $0x58] sm:$0xff]
    %v1681 = vld [vmem:[#allocation8 + $0x60] sm:$0xff]
    %v1682 = vld [vmem:[#allocation8 + $0x68] sm:$0xff]
    %v1683 = vld [vmem:[#allocation8 + $0x70] sm:$0xff]
    %v1684 = vld [vmem:[#allocation8 + $0x78] sm:$0xff]
    %v1685 = vld [vmem:[#allocation8 + $0x80] sm:$0xff]
    %v1686 = vld [vmem:[#allocation8 + $0x88] sm:$0xff]
    %v1687 = vld [vmem:[#allocation8 + $0x90] sm:$0xff]
    %v1688 = vld [vmem:[#allocation8 + $0x98] sm:$0xff]
    %v1689 = vld [vmem:[#allocation8 + $0xa0] sm:$0xff]
    %v1690 = vld [vmem:[#allocation8 + $0xa8] sm:$0xff]
    %v1691 = vld [vmem:[#allocation8 + $0xb0] sm:$0xff]
    %v1692 = vld [vmem:[#allocation8 + $0xb8] sm:$0xff]
    %v1693 = vld [vmem:[#allocation8 + $0xc0] sm:$0xff]
    %v1694 = vld [vmem:[#allocation8 + $0xc8] sm:$0xff]
    %v1695 = vld [vmem:[#allocation8 + $0xd0] sm:$0xff]
    %v1696 = vld [vmem:[#allocation8 + $0xd8] sm:$0xff]
    %v1697 = vld [vmem:[#allocation8 + $0xe0] sm:$0xff]
    %v1698 = vld [vmem:[#allocation8 + $0xe8] sm:$0xff]
    %v1699 = vld [vmem:[#allocation8 + $0xf0] sm:$0xff]
    %v1700 = vld [vmem:[#allocation8 + $0xf8] sm:$0xff]
    %v1701 = vld [vmem:[#allocation8 + $0x100] sm:$0xff]
    %v1702 = vld [vmem:[#allocation8 + $0x108] sm:$0xff]
    %v1703 = vld [vmem:[#allocation8 + $0x110] sm:$0xff]
    %v1704 = vld [vmem:[#allocation8 + $0x118] sm:$0xff]
    %v1705 = vld [vmem:[#allocation8 + $0x120] sm:$0xff]
    %v1706 = vld [vmem:[#allocation8 + $0x128] sm:$0xff]
    %v1707 = vld [vmem:[#allocation8 + $0x130] sm:$0xff]
    %v1708 = vld [vmem:[#allocation8 + $0x138] sm:$0xff]
    %v1709 = vld [vmem:[#allocation8 + $0x140] sm:$0xff]
    %v1710 = vld [vmem:[#allocation8 + $0x148] sm:$0xff]
    %v1711 = vld [vmem:[#allocation8 + $0x150] sm:$0xff]
    %v1712 = vld [vmem:[#allocation8 + $0x158] sm:$0xff]
    %v1713 = vld [vmem:[#allocation8 + $0x160] sm:$0xff]
    %v1714 = vld [vmem:[#allocation8 + $0x168] sm:$0xff]
    %v1715 = vld [vmem:[#allocation8 + $0x170] sm:$0xff]
    %v1716 = vld [vmem:[#allocation8 + $0x178] sm:$0xff]
    %v1717 = vld [vmem:[#allocation8 + $0x180] sm:$0xff]
    %v1718 = vld [vmem:[#allocation8 + $0x188] sm:$0xff]
    %v1719 = vld [vmem:[#allocation8 + $0x190] sm:$0xff]
    %v1720 = vld [vmem:[#allocation8 + $0x198] sm:$0xff]
    %v1721 = vld [vmem:[#allocation8 + $0x1a0] sm:$0xff]
    %v1722 = vld [vmem:[#allocation8 + $0x1a8] sm:$0xff]
    %v1723 = vld [vmem:[#allocation8 + $0x1b0] sm:$0xff]
    %v1724 = vld [vmem:[#allocation8 + $0x1b8] sm:$0xff]
    %v1725 = vld [vmem:[#allocation8 + $0x1c0] sm:$0xff]
    %v1726 = vld [vmem:[#allocation8 + $0x1c8] sm:$0xff]
    %v1727 = vld [vmem:[#allocation8 + $0x1d0] sm:$0xff]
    %v1728 = vld [vmem:[#allocation8 + $0x1d8] sm:$0xff]
    %v1729 = vld [vmem:[#allocation8 + $0x1e0] sm:$0xff]
    %v1730 = vld [vmem:[#allocation8 + $0x1e8] sm:$0xff]
    %v1731 = vld [vmem:[#allocation8 + $0x1f0] sm:$0xff]
    %v1732 = vld [vmem:[#allocation8 + $0x1f8] sm:$0xff]
    %v1733 = vld [vmem:[#allocation8 + $0x200] sm:$0xff]
    %v1734 = vld [vmem:[#allocation8 + $0x208] sm:$0xff]
    %v1735 = vld [vmem:[#allocation8 + $0x210] sm:$0xff]
    %v1736 = vld [vmem:[#allocation8 + $0x218] sm:$0xff]
    %v1737 = vld [vmem:[#allocation8 + $0x220] sm:$0xff]
    %v1738 = vld [vmem:[#allocation8 + $0x228] sm:$0xff]
    %v1739 = vld [vmem:[#allocation8 + $0x230] sm:$0xff]
    %v1740 = vld [vmem:[#allocation8 + $0x238] sm:$0xff]
    %v1741 = vld [vmem:[#allocation8 + $0x240] sm:$0xff]
    %v1742 = vld [vmem:[#allocation8 + $0x248] sm:$0xff]
    %v1743 = vld [vmem:[#allocation8 + $0x250] sm:$0xff]
    %v1744 = vld [vmem:[#allocation8 + $0x258] sm:$0xff]
    %v1745 = vld [vmem:[#allocation8 + $0x260] sm:$0xff]
    %v1746 = vld [vmem:[#allocation8 + $0x268] sm:$0xff]
    %v1747 = vld [vmem:[#allocation8 + $0x270] sm:$0xff]
    %v1748 = vld [vmem:[#allocation8 + $0x278] sm:$0xff]
    %v1749 = vld [vmem:[#allocation8 + $0x280] sm:$0xff]
    %v1750 = vld [vmem:[#allocation8 + $0x288] sm:$0xff]
    %v1751 = vld [vmem:[#allocation8 + $0x290] sm:$0xff]
    %v1752 = vld [vmem:[#allocation8 + $0x298] sm:$0xff]
    %v1753 = vld [vmem:[#allocation8 + $0x2a0] sm:$0xff]
    %v1754 = vld [vmem:[#allocation8 + $0x2a8] sm:$0xff]
    %v1755 = vld [vmem:[#allocation8 + $0x2b0] sm:$0xff]
    %v1756 = vld [vmem:[#allocation8 + $0x2b8] sm:$0xff]
    %v1757 = vld [vmem:[#allocation8 + $0x2c0] sm:$0xff]
    %v1758 = vld [vmem:[#allocation8 + $0x2c8] sm:$0xff]
    %v1759 = vld [vmem:[#allocation8 + $0x2d0] sm:$0xff]
    %v1760 = vld [vmem:[#allocation8 + $0x2d8] sm:$0xff]
    %v1761 = vld [vmem:[#allocation8 + $0x2e0] sm:$0xff]
    %v1762 = vld [vmem:[#allocation8 + $0x2e8] sm:$0xff]
    %v1763 = vld [vmem:[#allocation8 + $0x2f0] sm:$0xff]
    %v1764 = vld [vmem:[#allocation8 + $0x2f8] sm:$0xff]
    %v1765 = vld [vmem:[#allocation8 + $0x300] sm:$0xff]
    %v1766 = vld [vmem:[#allocation8 + $0x308] sm:$0xff]
    %v1767 = vld [vmem:[#allocation8 + $0x310] sm:$0xff]
    %v1768 = vld [vmem:[#allocation8 + $0x318] sm:$0xff]
    %v1769 = vld [vmem:[#allocation8 + $0x320] sm:$0xff]
    %v1770 = vld [vmem:[#allocation8 + $0x328] sm:$0xff]
    %v1771 = vld [vmem:[#allocation8 + $0x330] sm:$0xff]
    %v1772 = vld [vmem:[#allocation8 + $0x338] sm:$0xff]
    %v1773 = vld [vmem:[#allocation8 + $0x340] sm:$0xff]
    %v1774 = vld [vmem:[#allocation8 + $0x348] sm:$0xff]
    %v1775 = vld [vmem:[#allocation8 + $0x350] sm:$0xff]
    %v1776 = vld [vmem:[#allocation8 + $0x358] sm:$0xff]
    %v1777 = vld [vmem:[#allocation8 + $0x360] sm:$0xff]
    %v1778 = vld [vmem:[#allocation8 + $0x368] sm:$0xff]
    %v1779 = vld [vmem:[#allocation8 + $0x370] sm:$0xff]
    %v1780 = vld [vmem:[#allocation8 + $0x378] sm:$0xff]
    %v1781 = vld [vmem:[#allocation8 + $0x380] sm:$0xff]
    %v1782 = vld [vmem:[#allocation8 + $0x388] sm:$0xff]
    %v1783 = vld [vmem:[#allocation8 + $0x390] sm:$0xff]
    %v1784 = vld [vmem:[#allocation8 + $0x398] sm:$0xff]
    %v1785 = vld [vmem:[#allocation8 + $0x3a0] sm:$0xff]
    %v1786 = vld [vmem:[#allocation8 + $0x3a8] sm:$0xff]
    %v1787 = vld [vmem:[#allocation8 + $0x3b0] sm:$0xff]
    %v1788 = vld [vmem:[#allocation8 + $0x3b8] sm:$0xff]
    %v1789 = vld [vmem:[#allocation8 + $0x3c0] sm:$0xff]
    %v1790 = vld [vmem:[#allocation8 + $0x3c8] sm:$0xff]
    %v1791 = vld [vmem:[#allocation8 + $0x3d0] sm:$0xff]
    %v1792 = vld [vmem:[#allocation8 + $0x3d8] sm:$0xff]
    %v1793 = vld [vmem:[#allocation8 + $0x3e0] sm:$0xff]
    %v1794 = vld [vmem:[#allocation8 + $0x3e8] sm:$0xff]
    %v1795 = vld [vmem:[#allocation8 + $0x3f0] sm:$0xff]
    %v1796 = vld [vmem:[#allocation8 + $0x3f8] sm:$0xff]
    %v1797 = vld [vmem:[#allocation8 + $0x400] sm:$0xff]
    %v1798 = vld [vmem:[#allocation8 + $0x408] sm:$0xff]
    %v1799 = vld [vmem:[#allocation8 + $0x410] sm:$0xff]
    %v1800 = vld [vmem:[#allocation8 + $0x418] sm:$0xff]
    %v1801 = vld [vmem:[#allocation8 + $0x420] sm:$0xff]
    %v1802 = vld [vmem:[#allocation8 + $0x428] sm:$0xff]
    %v1803 = vld [vmem:[#allocation8 + $0x430] sm:$0xff]
    %v1804 = vld [vmem:[#allocation8 + $0x438] sm:$0xff]
    %v1805 = vld [vmem:[#allocation8 + $0x440] sm:$0xff]
    %v1806 = vld [vmem:[#allocation8 + $0x448] sm:$0xff]
    %v1807 = vld [vmem:[#allocation8 + $0x450] sm:$0xff]
    %v1808 = vld [vmem:[#allocation8 + $0x458] sm:$0xff]
    %v1809 = vld [vmem:[#allocation8 + $0x460] sm:$0xff]
    %v1810 = vld [vmem:[#allocation8 + $0x468] sm:$0xff]
    %v1811 = vld [vmem:[#allocation8 + $0x470] sm:$0xff]
    %v1812 = vld [vmem:[#allocation8 + $0x478] sm:$0xff]
    %v1813 = vld [vmem:[#allocation8 + $0x480] sm:$0xff]
    %v1814 = vld [vmem:[#allocation8 + $0x488] sm:$0xff]
    %v1815 = vld [vmem:[#allocation8 + $0x490] sm:$0xff]
    %v1816 = vld [vmem:[#allocation8 + $0x498] sm:$0xff]
    %v1817 = vld [vmem:[#allocation8 + $0x4a0] sm:$0xff]
    %v1818 = vld [vmem:[#allocation8 + $0x4a8] sm:$0xff]
    %v1819 = vld [vmem:[#allocation8 + $0x4b0] sm:$0xff]
    %v1820 = vld [vmem:[#allocation8 + $0x4b8] sm:$0xff]
    %v1821 = vld [vmem:[#allocation8 + $0x4c0] sm:$0xff]
    %v1822 = vld [vmem:[#allocation8 + $0x4c8] sm:$0xff]
    %v1823 = vld [vmem:[#allocation8 + $0x4d0] sm:$0xff]
    %v1824 = vld [vmem:[#allocation8 + $0x4d8] sm:$0xff]
    %v1825 = vld [vmem:[#allocation8 + $0x4e0] sm:$0xff]
    %v1826 = vld [vmem:[#allocation8 + $0x4e8] sm:$0xff]
    %v1827 = vld [vmem:[#allocation8 + $0x4f0] sm:$0xff]
    %v1828 = vld [vmem:[#allocation8 + $0x4f8] sm:$0xff]
    %v1829 = vld [vmem:[#allocation8 + $0x500] sm:$0xff]
    %v1830 = vld [vmem:[#allocation8 + $0x508] sm:$0xff]
    %v1831 = vld [vmem:[#allocation8 + $0x510] sm:$0xff]
    %v1832 = vld [vmem:[#allocation8 + $0x518] sm:$0xff]
    %v1833 = vld [vmem:[#allocation8 + $0x520] sm:$0xff]
    %v1834 = vld [vmem:[#allocation8 + $0x528] sm:$0xff]
    %v1835 = vld [vmem:[#allocation8 + $0x530] sm:$0xff]
    %v1836 = vld [vmem:[#allocation8 + $0x538] sm:$0xff]
    %v1837 = vld [vmem:[#allocation8 + $0x540] sm:$0xff]
    %v1838 = vld [vmem:[#allocation8 + $0x548] sm:$0xff]
    %v1839 = vld [vmem:[#allocation8 + $0x550] sm:$0xff]
    %v1840 = vld [vmem:[#allocation8 + $0x558] sm:$0xff]
    %v1841 = vld [vmem:[#allocation8 + $0x560] sm:$0xff]
    %v1842 = vld [vmem:[#allocation8 + $0x568] sm:$0xff]
    %v1843 = vld [vmem:[#allocation8 + $0x570] sm:$0xff]
    %v1844 = vld [vmem:[#allocation8 + $0x578] sm:$0xff]
    %v1845 = vld [vmem:[#allocation8 + $0x580] sm:$0xff]
    %v1846 = vld [vmem:[#allocation8 + $0x588] sm:$0xff]
    %v1847 = vld [vmem:[#allocation8 + $0x590] sm:$0xff]
    %v1848 = vld [vmem:[#allocation8 + $0x598] sm:$0xff]
    %v1849 = vld [vmem:[#allocation8 + $0x5a0] sm:$0xff]
    %v1850 = vld [vmem:[#allocation8 + $0x5a8] sm:$0xff]
    %v1851 = vld [vmem:[#allocation8 + $0x5b0] sm:$0xff]
    %v1852 = vld [vmem:[#allocation8 + $0x5b8] sm:$0xff]
    %v1853 = vld [vmem:[#allocation8 + $0x5c0] sm:$0xff]
    %v1854 = vld [vmem:[#allocation8 + $0x5c8] sm:$0xff]
    %v1855 = vld [vmem:[#allocation8 + $0x5d0] sm:$0xff]
    %v1856 = vld [vmem:[#allocation8 + $0x5d8] sm:$0xff]
    %v1857 = vld [vmem:[#allocation8 + $0x5e0] sm:$0xff]
    %v1858 = vld [vmem:[#allocation8 + $0x5e8] sm:$0xff]
    %v1859 = vld [vmem:[#allocation8 + $0x5f0] sm:$0xff]
    %v1860 = vld [vmem:[#allocation8 + $0x5f8] sm:$0xff]
    %v1861 = vld [vmem:[#allocation8 + $0x600] sm:$0xff]
    %v1862 = vld [vmem:[#allocation8 + $0x608] sm:$0xff]
    %v1863 = vld [vmem:[#allocation8 + $0x610] sm:$0xff]
    %v1864 = vld [vmem:[#allocation8 + $0x618] sm:$0xff]
    %v1865 = vld [vmem:[#allocation8 + $0x620] sm:$0xff]
    %v1866 = vld [vmem:[#allocation8 + $0x628] sm:$0xff]
    %v1867 = vld [vmem:[#allocation8 + $0x630] sm:$0xff]
    %v1868 = vld [vmem:[#allocation8 + $0x638] sm:$0xff]
    %v1869 = vld [vmem:[#allocation8 + $0x640] sm:$0xff]
    %v1870 = vld [vmem:[#allocation8 + $0x648] sm:$0xff]
    %v1871 = vld [vmem:[#allocation8 + $0x650] sm:$0xff]
    %v1872 = vld [vmem:[#allocation8 + $0x658] sm:$0xff]
    %v1873 = vld [vmem:[#allocation8 + $0x660] sm:$0xff]
    %v1874 = vld [vmem:[#allocation8 + $0x668] sm:$0xff]
    %v1875 = vld [vmem:[#allocation8 + $0x670] sm:$0xff]
    %v1876 = vld [vmem:[#allocation8 + $0x678] sm:$0xff]
    %v1877 = vld [vmem:[#allocation8 + $0x680] sm:$0xff]
    %v1878 = vld [vmem:[#allocation8 + $0x688] sm:$0xff]
    %v1879 = vld [vmem:[#allocation8 + $0x690] sm:$0xff]
    %v1880 = vld [vmem:[#allocation8 + $0x698] sm:$0xff]
    %v1881 = vld [vmem:[#allocation8 + $0x6a0] sm:$0xff]
    %v1882 = vld [vmem:[#allocation8 + $0x6a8] sm:$0xff]
    %v1883 = vld [vmem:[#allocation8 + $0x6b0] sm:$0xff]
    %v1884 = vld [vmem:[#allocation8 + $0x6b8] sm:$0xff]
    %v1885 = vld [vmem:[#allocation8 + $0x6c0] sm:$0xff]
    %v1886 = vld [vmem:[#allocation8 + $0x6c8] sm:$0xff]
    %v1887 = vld [vmem:[#allocation8 + $0x6d0] sm:$0xff]
    %v1888 = vld [vmem:[#allocation8 + $0x6d8] sm:$0xff]
    %v1889 = vld [vmem:[#allocation8 + $0x6e0] sm:$0xff]
    %v1890 = vld [vmem:[#allocation8 + $0x6e8] sm:$0xff]
    %v1891 = vld [vmem:[#allocation8 + $0x6f0] sm:$0xff]
    %v1892 = vld [vmem:[#allocation8 + $0x6f8] sm:$0xff]
    %v1893 = vld [vmem:[#allocation8 + $0x700] sm:$0xff]
    %v1894 = vld [vmem:[#allocation8 + $0x708] sm:$0xff]
    %v1895 = vld [vmem:[#allocation8 + $0x710] sm:$0xff]
    %v1896 = vld [vmem:[#allocation8 + $0x718] sm:$0xff]
    %v1897 = vld [vmem:[#allocation8 + $0x720] sm:$0xff]
    %v1898 = vld [vmem:[#allocation8 + $0x728] sm:$0xff]
    %v1899 = vld [vmem:[#allocation8 + $0x730] sm:$0xff]
    %v1900 = vld [vmem:[#allocation8 + $0x738] sm:$0xff]
    %v1901 = vld [vmem:[#allocation8 + $0x740] sm:$0xff]
    %v1902 = vld [vmem:[#allocation8 + $0x748] sm:$0xff]
    %v1903 = vld [vmem:[#allocation8 + $0x750] sm:$0xff]
    %v1904 = vld [vmem:[#allocation8 + $0x758] sm:$0xff]
    %v1905 = vld [vmem:[#allocation8 + $0x760] sm:$0xff]
    %v1906 = vld [vmem:[#allocation8 + $0x768] sm:$0xff]
    %v1907 = vld [vmem:[#allocation8 + $0x770] sm:$0xff]
    %v1908 = vld [vmem:[#allocation8 + $0x778] sm:$0xff]
    %v1909 = vld [vmem:[#allocation8 + $0x780] sm:$0xff]
    %v1910 = vld [vmem:[#allocation8 + $0x788] sm:$0xff]
    %v1911 = vld [vmem:[#allocation8 + $0x790] sm:$0xff]
    %v1912 = vld [vmem:[#allocation8 + $0x798] sm:$0xff]
    %v1913 = vld [vmem:[#allocation8 + $0x7a0] sm:$0xff]
    %v1914 = vld [vmem:[#allocation8 + $0x7a8] sm:$0xff]
    %v1915 = vld [vmem:[#allocation8 + $0x7b0] sm:$0xff]
    %v1916 = vld [vmem:[#allocation8 + $0x7b8] sm:$0xff]
    %v1917 = vld [vmem:[#allocation8 + $0x7c0] sm:$0xff]
    %v1918 = vld [vmem:[#allocation8 + $0x7c8] sm:$0xff]
    %v1919 = vld [vmem:[#allocation8 + $0x7d0] sm:$0xff]
    %v1920 = vld [vmem:[#allocation8 + $0x7d8] sm:$0xff]
    %v1921 = vld [vmem:[#allocation8 + $0x7e0] sm:$0xff]
    %v1922 = vld [vmem:[#allocation8 + $0x7e8] sm:$0xff]
    %v1923 = vld [vmem:[#allocation8 + $0x7f0] sm:$0xff]
    %v1924 = vld [vmem:[#allocation8 + $0x7f8] sm:$0xff]
    %v1925 = vld [vmem:[#allocation10] sm:$0xf]
    %v1927 = vperm.slane %v1925, 0
    %v1928 = vperm.slane %v1925, 1
    %v1929 = vperm.slane %v1925, 2
    %v1930 = vperm.slane %v1925, 3
    %v2191 = vunpack.c.l.b16 %v1669
    %v2192 = vunpack.c.h.b16 %v1669
    %v2193 = vunpack.c.l.b16 %v1670
    %v2194 = vunpack.c.h.b16 %v1670
    %v2195 = vunpack.c.l.b16 %v1671
    %v2196 = vunpack.c.h.b16 %v1671
    %v2197 = vunpack.c.l.b16 %v1672
    %v2198 = vunpack.c.h.b16 %v1672
    %v2199 = vunpack.c.l.b16 %v1673
    %v2200 = vunpack.c.h.b16 %v1673
    %v2201 = vunpack.c.l.b16 %v1674
    %v2202 = vunpack.c.h.b16 %v1674
    %v2203 = vunpack.c.l.b16 %v1675
    %v2204 = vunpack.c.h.b16 %v1675
    %v2205 = vunpack.c.l.b16 %v1676
    %v2206 = vunpack.c.h.b16 %v1676
    %v2207 = vunpack.c.l.b16 %v1677
    %v2208 = vunpack.c.h.b16 %v1677
    %v2209 = vunpack.c.l.b16 %v1678
    %v2210 = vunpack.c.h.b16 %v1678
    %v2211 = vunpack.c.l.b16 %v1679
    %v2212 = vunpack.c.h.b16 %v1679
    %v2213 = vunpack.c.l.b16 %v1680
    %v2214 = vunpack.c.h.b16 %v1680
    %v2215 = vunpack.c.l.b16 %v1681
    %v2216 = vunpack.c.h.b16 %v1681
    %v2217 = vunpack.c.l.b16 %v1682
    %v2218 = vunpack.c.h.b16 %v1682
    %v2219 = vunpack.c.l.b16 %v1683
    %v2220 = vunpack.c.h.b16 %v1683
    %v2221 = vunpack.c.l.b16 %v1684
    %v2222 = vunpack.c.h.b16 %v1684
    %v2223 = vunpack.c.l.b16 %v1685
    %v2224 = vunpack.c.h.b16 %v1685
    %v2225 = vunpack.c.l.b16 %v1686
    %v2226 = vunpack.c.h.b16 %v1686
    %v2227 = vunpack.c.l.b16 %v1687
    %v2228 = vunpack.c.h.b16 %v1687
    %v2229 = vunpack.c.l.b16 %v1688
    %v2230 = vunpack.c.h.b16 %v1688
    %v2231 = vunpack.c.l.b16 %v1689
    %v2232 = vunpack.c.h.b16 %v1689
    %v2233 = vunpack.c.l.b16 %v1690
    %v2234 = vunpack.c.h.b16 %v1690
    %v2235 = vunpack.c.l.b16 %v1691
    %v2236 = vunpack.c.h.b16 %v1691
    %v2237 = vunpack.c.l.b16 %v1692
    %v2238 = vunpack.c.h.b16 %v1692
    %v2239 = vunpack.c.l.b16 %v1693
    %v2240 = vunpack.c.h.b16 %v1693
    %v2241 = vunpack.c.l.b16 %v1694
    %v2242 = vunpack.c.h.b16 %v1694
    %v2243 = vunpack.c.l.b16 %v1695
    %v2244 = vunpack.c.h.b16 %v1695
    %v2245 = vunpack.c.l.b16 %v1696
    %v2246 = vunpack.c.h.b16 %v1696
    %v2247 = vunpack.c.l.b16 %v1697
    %v2248 = vunpack.c.h.b16 %v1697
    %v2249 = vunpack.c.l.b16 %v1698
    %v2250 = vunpack.c.h.b16 %v1698
    %v2251 = vunpack.c.l.b16 %v1699
    %v2252 = vunpack.c.h.b16 %v1699
    %v2253 = vunpack.c.l.b16 %v1700
    %v2254 = vunpack.c.h.b16 %v1700
    %v2255 = vunpack.c.l.b16 %v1701
    %v2256 = vunpack.c.h.b16 %v1701
    %v2257 = vunpack.c.l.b16 %v1702
    %v2258 = vunpack.c.h.b16 %v1702
    %v2259 = vunpack.c.l.b16 %v1703
    %v2260 = vunpack.c.h.b16 %v1703
    %v2261 = vunpack.c.l.b16 %v1704
    %v2262 = vunpack.c.h.b16 %v1704
    %v2263 = vunpack.c.l.b16 %v1705
    %v2264 = vunpack.c.h.b16 %v1705
    %v2265 = vunpack.c.l.b16 %v1706
    %v2266 = vunpack.c.h.b16 %v1706
    %v2267 = vunpack.c.l.b16 %v1707
    %v2268 = vunpack.c.h.b16 %v1707
    %v2269 = vunpack.c.l.b16 %v1708
    %v2270 = vunpack.c.h.b16 %v1708
    %v2271 = vunpack.c.l.b16 %v1709
    %v2272 = vunpack.c.h.b16 %v1709
    %v2273 = vunpack.c.l.b16 %v1710
    %v2274 = vunpack.c.h.b16 %v1710
    %v2275 = vunpack.c.l.b16 %v1711
    %v2276 = vunpack.c.h.b16 %v1711
    %v2277 = vunpack.c.l.b16 %v1712
    %v2278 = vunpack.c.h.b16 %v1712
    %v2279 = vunpack.c.l.b16 %v1713
    %v2280 = vunpack.c.h.b16 %v1713
    %v2281 = vunpack.c.l.b16 %v1714
    %v2282 = vunpack.c.h.b16 %v1714
    %v2283 = vunpack.c.l.b16 %v1715
    %v2284 = vunpack.c.h.b16 %v1715
    %v2285 = vunpack.c.l.b16 %v1716
    %v2286 = vunpack.c.h.b16 %v1716
    %v2287 = vunpack.c.l.b16 %v1717
    %v2288 = vunpack.c.h.b16 %v1717
    %v2289 = vunpack.c.l.b16 %v1718
    %v2290 = vunpack.c.h.b16 %v1718
    %v2291 = vunpack.c.l.b16 %v1719
    %v2292 = vunpack.c.h.b16 %v1719
    %v2293 = vunpack.c.l.b16 %v1720
    %v2294 = vunpack.c.h.b16 %v1720
    %v2295 = vunpack.c.l.b16 %v1721
    %v2296 = vunpack.c.h.b16 %v1721
    %v2297 = vunpack.c.l.b16 %v1722
    %v2298 = vunpack.c.h.b16 %v1722
    %v2299 = vunpack.c.l.b16 %v1723
    %v2300 = vunpack.c.h.b16 %v1723
    %v2301 = vunpack.c.l.b16 %v1724
    %v2302 = vunpack.c.h.b16 %v1724
    %v2303 = vunpack.c.l.b16 %v1725
    %v2304 = vunpack.c.h.b16 %v1725
    %v2305 = vunpack.c.l.b16 %v1726
    %v2306 = vunpack.c.h.b16 %v1726
    %v2307 = vunpack.c.l.b16 %v1727
    %v2308 = vunpack.c.h.b16 %v1727
    %v2309 = vunpack.c.l.b16 %v1728
    %v2310 = vunpack.c.h.b16 %v1728
    %v2311 = vunpack.c.l.b16 %v1729
    %v2312 = vunpack.c.h.b16 %v1729
    %v2313 = vunpack.c.l.b16 %v1730
    %v2314 = vunpack.c.h.b16 %v1730
    %v2315 = vunpack.c.l.b16 %v1731
    %v2316 = vunpack.c.h.b16 %v1731
    %v2317 = vunpack.c.l.b16 %v1732
    %v2318 = vunpack.c.h.b16 %v1732
    %v2319 = vunpack.c.l.b16 %v1733
    %v2320 = vunpack.c.h.b16 %v1733
    %v2321 = vunpack.c.l.b16 %v1734
    %v2322 = vunpack.c.h.b16 %v1734
    %v2323 = vunpack.c.l.b16 %v1735
    %v2324 = vunpack.c.h.b16 %v1735
    %v2325 = vunpack.c.l.b16 %v1736
    %v2326 = vunpack.c.h.b16 %v1736
    %v2327 = vunpack.c.l.b16 %v1737
    %v2328 = vunpack.c.h.b16 %v1737
    %v2329 = vunpack.c.l.b16 %v1738
    %v2330 = vunpack.c.h.b16 %v1738
    %v2331 = vunpack.c.l.b16 %v1739
    %v2332 = vunpack.c.h.b16 %v1739
    %v2333 = vunpack.c.l.b16 %v1740
    %v2334 = vunpack.c.h.b16 %v1740
    %v2335 = vunpack.c.l.b16 %v1741
    %v2336 = vunpack.c.h.b16 %v1741
    %v2337 = vunpack.c.l.b16 %v1742
    %v2338 = vunpack.c.h.b16 %v1742
    %v2339 = vunpack.c.l.b16 %v1743
    %v2340 = vunpack.c.h.b16 %v1743
    %v2341 = vunpack.c.l.b16 %v1744
    %v2342 = vunpack.c.h.b16 %v1744
    %v2343 = vunpack.c.l.b16 %v1745
    %v2344 = vunpack.c.h.b16 %v1745
    %v2345 = vunpack.c.l.b16 %v1746
    %v2346 = vunpack.c.h.b16 %v1746
    %v2347 = vunpack.c.l.b16 %v1747
    %v2348 = vunpack.c.h.b16 %v1747
    %v2349 = vunpack.c.l.b16 %v1748
    %v2350 = vunpack.c.h.b16 %v1748
    %v2351 = vunpack.c.l.b16 %v1749
    %v2352 = vunpack.c.h.b16 %v1749
    %v2353 = vunpack.c.l.b16 %v1750
    %v2354 = vunpack.c.h.b16 %v1750
    %v2355 = vunpack.c.l.b16 %v1751
    %v2356 = vunpack.c.h.b16 %v1751
    %v2357 = vunpack.c.l.b16 %v1752
    %v2358 = vunpack.c.h.b16 %v1752
    %v2359 = vunpack.c.l.b16 %v1753
    %v2360 = vunpack.c.h.b16 %v1753
    %v2361 = vunpack.c.l.b16 %v1754
    %v2362 = vunpack.c.h.b16 %v1754
    %v2363 = vunpack.c.l.b16 %v1755
    %v2364 = vunpack.c.h.b16 %v1755
    %v2365 = vunpack.c.l.b16 %v1756
    %v2366 = vunpack.c.h.b16 %v1756
    %v2367 = vunpack.c.l.b16 %v1757
    %v2368 = vunpack.c.h.b16 %v1757
    %v2369 = vunpack.c.l.b16 %v1758
    %v2370 = vunpack.c.h.b16 %v1758
    %v2371 = vunpack.c.l.b16 %v1759
    %v2372 = vunpack.c.h.b16 %v1759
    %v2373 = vunpack.c.l.b16 %v1760
    %v2374 = vunpack.c.h.b16 %v1760
    %v2375 = vunpack.c.l.b16 %v1761
    %v2376 = vunpack.c.h.b16 %v1761
    %v2377 = vunpack.c.l.b16 %v1762
    %v2378 = vunpack.c.h.b16 %v1762
    %v2379 = vunpack.c.l.b16 %v1763
    %v2380 = vunpack.c.h.b16 %v1763
    %v2381 = vunpack.c.l.b16 %v1764
    %v2382 = vunpack.c.h.b16 %v1764
    %v2383 = vunpack.c.l.b16 %v1765
    %v2384 = vunpack.c.h.b16 %v1765
    %v2385 = vunpack.c.l.b16 %v1766
    %v2386 = vunpack.c.h.b16 %v1766
    %v2387 = vunpack.c.l.b16 %v1767
    %v2388 = vunpack.c.h.b16 %v1767
    %v2389 = vunpack.c.l.b16 %v1768
    %v2390 = vunpack.c.h.b16 %v1768
    %v2391 = vunpack.c.l.b16 %v1769
    %v2392 = vunpack.c.h.b16 %v1769
    %v2393 = vunpack.c.l.b16 %v1770
    %v2394 = vunpack.c.h.b16 %v1770
    %v2395 = vunpack.c.l.b16 %v1771
    %v2396 = vunpack.c.h.b16 %v1771
    %v2397 = vunpack.c.l.b16 %v1772
    %v2398 = vunpack.c.h.b16 %v1772
    %v2399 = vunpack.c.l.b16 %v1773
    %v2400 = vunpack.c.h.b16 %v1773
    %v2401 = vunpack.c.l.b16 %v1774
    %v2402 = vunpack.c.h.b16 %v1774
    %v2403 = vunpack.c.l.b16 %v1775
    %v2404 = vunpack.c.h.b16 %v1775
    %v2405 = vunpack.c.l.b16 %v1776
    %v2406 = vunpack.c.h.b16 %v1776
    %v2407 = vunpack.c.l.b16 %v1777
    %v2408 = vunpack.c.h.b16 %v1777
    %v2409 = vunpack.c.l.b16 %v1778
    %v2410 = vunpack.c.h.b16 %v1778
    %v2411 = vunpack.c.l.b16 %v1779
    %v2412 = vunpack.c.h.b16 %v1779
    %v2413 = vunpack.c.l.b16 %v1780
    %v2414 = vunpack.c.h.b16 %v1780
    %v2415 = vunpack.c.l.b16 %v1781
    %v2416 = vunpack.c.h.b16 %v1781
    %v2417 = vunpack.c.l.b16 %v1782
    %v2418 = vunpack.c.h.b16 %v1782
    %v2419 = vunpack.c.l.b16 %v1783
    %v2420 = vunpack.c.h.b16 %v1783
    %v2421 = vunpack.c.l.b16 %v1784
    %v2422 = vunpack.c.h.b16 %v1784
    %v2423 = vunpack.c.l.b16 %v1785
    %v2424 = vunpack.c.h.b16 %v1785
    %v2425 = vunpack.c.l.b16 %v1786
    %v2426 = vunpack.c.h.b16 %v1786
    %v2427 = vunpack.c.l.b16 %v1787
    %v2428 = vunpack.c.h.b16 %v1787
    %v2429 = vunpack.c.l.b16 %v1788
    %v2430 = vunpack.c.h.b16 %v1788
    %v2431 = vunpack.c.l.b16 %v1789
    %v2432 = vunpack.c.h.b16 %v1789
    %v2433 = vunpack.c.l.b16 %v1790
    %v2434 = vunpack.c.h.b16 %v1790
    %v2435 = vunpack.c.l.b16 %v1791
    %v2436 = vunpack.c.h.b16 %v1791
    %v2437 = vunpack.c.l.b16 %v1792
    %v2438 = vunpack.c.h.b16 %v1792
    %v2439 = vunpack.c.l.b16 %v1793
    %v2440 = vunpack.c.h.b16 %v1793
    %v2441 = vunpack.c.l.b16 %v1794
    %v2442 = vunpack.c.h.b16 %v1794
    %v2443 = vunpack.c.l.b16 %v1795
    %v2444 = vunpack.c.h.b16 %v1795
    %v2445 = vunpack.c.l.b16 %v1796
    %v2446 = vunpack.c.h.b16 %v1796
    %v2447 = vunpack.c.l.b16 %v1797
    %v2448 = vunpack.c.h.b16 %v1797
    %v2449 = vunpack.c.l.b16 %v1798
    %v2450 = vunpack.c.h.b16 %v1798
    %v2451 = vunpack.c.l.b16 %v1799
    %v2452 = vunpack.c.h.b16 %v1799
    %v2453 = vunpack.c.l.b16 %v1800
    %v2454 = vunpack.c.h.b16 %v1800
    %v2455 = vunpack.c.l.b16 %v1801
    %v2456 = vunpack.c.h.b16 %v1801
    %v2457 = vunpack.c.l.b16 %v1802
    %v2458 = vunpack.c.h.b16 %v1802
    %v2459 = vunpack.c.l.b16 %v1803
    %v2460 = vunpack.c.h.b16 %v1803
    %v2461 = vunpack.c.l.b16 %v1804
    %v2462 = vunpack.c.h.b16 %v1804
    %v2463 = vunpack.c.l.b16 %v1805
    %v2464 = vunpack.c.h.b16 %v1805
    %v2465 = vunpack.c.l.b16 %v1806
    %v2466 = vunpack.c.h.b16 %v1806
    %v2467 = vunpack.c.l.b16 %v1807
    %v2468 = vunpack.c.h.b16 %v1807
    %v2469 = vunpack.c.l.b16 %v1808
    %v2470 = vunpack.c.h.b16 %v1808
    %v2471 = vunpack.c.l.b16 %v1809
    %v2472 = vunpack.c.h.b16 %v1809
    %v2473 = vunpack.c.l.b16 %v1810
    %v2474 = vunpack.c.h.b16 %v1810
    %v2475 = vunpack.c.l.b16 %v1811
    %v2476 = vunpack.c.h.b16 %v1811
    %v2477 = vunpack.c.l.b16 %v1812
    %v2478 = vunpack.c.h.b16 %v1812
    %v2479 = vunpack.c.l.b16 %v1813
    %v2480 = vunpack.c.h.b16 %v1813
    %v2481 = vunpack.c.l.b16 %v1814
    %v2482 = vunpack.c.h.b16 %v1814
    %v2483 = vunpack.c.l.b16 %v1815
    %v2484 = vunpack.c.h.b16 %v1815
    %v2485 = vunpack.c.l.b16 %v1816
    %v2486 = vunpack.c.h.b16 %v1816
    %v2487 = vunpack.c.l.b16 %v1817
    %v2488 = vunpack.c.h.b16 %v1817
    %v2489 = vunpack.c.l.b16 %v1818
    %v2490 = vunpack.c.h.b16 %v1818
    %v2491 = vunpack.c.l.b16 %v1819
    %v2492 = vunpack.c.h.b16 %v1819
    %v2493 = vunpack.c.l.b16 %v1820
    %v2494 = vunpack.c.h.b16 %v1820
    %v2495 = vunpack.c.l.b16 %v1821
    %v2496 = vunpack.c.h.b16 %v1821
    %v2497 = vunpack.c.l.b16 %v1822
    %v2498 = vunpack.c.h.b16 %v1822
    %v2499 = vunpack.c.l.b16 %v1823
    %v2500 = vunpack.c.h.b16 %v1823
    %v2501 = vunpack.c.l.b16 %v1824
    %v2502 = vunpack.c.h.b16 %v1824
    %v2503 = vunpack.c.l.b16 %v1825
    %v2504 = vunpack.c.h.b16 %v1825
    %v2505 = vunpack.c.l.b16 %v1826
    %v2506 = vunpack.c.h.b16 %v1826
    %v2507 = vunpack.c.l.b16 %v1827
    %v2508 = vunpack.c.h.b16 %v1827
    %v2509 = vunpack.c.l.b16 %v1828
    %v2510 = vunpack.c.h.b16 %v1828
    %v2511 = vunpack.c.l.b16 %v1829
    %v2512 = vunpack.c.h.b16 %v1829
    %v2513 = vunpack.c.l.b16 %v1830
    %v2514 = vunpack.c.h.b16 %v1830
    %v2515 = vunpack.c.l.b16 %v1831
    %v2516 = vunpack.c.h.b16 %v1831
    %v2517 = vunpack.c.l.b16 %v1832
    %v2518 = vunpack.c.h.b16 %v1832
    %v2519 = vunpack.c.l.b16 %v1833
    %v2520 = vunpack.c.h.b16 %v1833
    %v2521 = vunpack.c.l.b16 %v1834
    %v2522 = vunpack.c.h.b16 %v1834
    %v2523 = vunpack.c.l.b16 %v1835
    %v2524 = vunpack.c.h.b16 %v1835
    %v2525 = vunpack.c.l.b16 %v1836
    %v2526 = vunpack.c.h.b16 %v1836
    %v2527 = vunpack.c.l.b16 %v1837
    %v2528 = vunpack.c.h.b16 %v1837
    %v2529 = vunpack.c.l.b16 %v1838
    %v2530 = vunpack.c.h.b16 %v1838
    %v2531 = vunpack.c.l.b16 %v1839
    %v2532 = vunpack.c.h.b16 %v1839
    %v2533 = vunpack.c.l.b16 %v1840
    %v2534 = vunpack.c.h.b16 %v1840
    %v2535 = vunpack.c.l.b16 %v1841
    %v2536 = vunpack.c.h.b16 %v1841
    %v2537 = vunpack.c.l.b16 %v1842
    %v2538 = vunpack.c.h.b16 %v1842
    %v2539 = vunpack.c.l.b16 %v1843
    %v2540 = vunpack.c.h.b16 %v1843
    %v2541 = vunpack.c.l.b16 %v1844
    %v2542 = vunpack.c.h.b16 %v1844
    %v2543 = vunpack.c.l.b16 %v1845
    %v2544 = vunpack.c.h.b16 %v1845
    %v2545 = vunpack.c.l.b16 %v1846
    %v2546 = vunpack.c.h.b16 %v1846
    %v2547 = vunpack.c.l.b16 %v1847
    %v2548 = vunpack.c.h.b16 %v1847
    %v2549 = vunpack.c.l.b16 %v1848
    %v2550 = vunpack.c.h.b16 %v1848
    %v2551 = vunpack.c.l.b16 %v1849
    %v2552 = vunpack.c.h.b16 %v1849
    %v2553 = vunpack.c.l.b16 %v1850
    %v2554 = vunpack.c.h.b16 %v1850
    %v2555 = vunpack.c.l.b16 %v1851
    %v2556 = vunpack.c.h.b16 %v1851
    %v2557 = vunpack.c.l.b16 %v1852
    %v2558 = vunpack.c.h.b16 %v1852
    %v2559 = vunpack.c.l.b16 %v1853
    %v2560 = vunpack.c.h.b16 %v1853
    %v2561 = vunpack.c.l.b16 %v1854
    %v2562 = vunpack.c.h.b16 %v1854
    %v2563 = vunpack.c.l.b16 %v1855
    %v2564 = vunpack.c.h.b16 %v1855
    %v2565 = vunpack.c.l.b16 %v1856
    %v2566 = vunpack.c.h.b16 %v1856
    %v2567 = vunpack.c.l.b16 %v1857
    %v2568 = vunpack.c.h.b16 %v1857
    %v2569 = vunpack.c.l.b16 %v1858
    %v2570 = vunpack.c.h.b16 %v1858
    %v2571 = vunpack.c.l.b16 %v1859
    %v2572 = vunpack.c.h.b16 %v1859
    %v2573 = vunpack.c.l.b16 %v1860
    %v2574 = vunpack.c.h.b16 %v1860
    %v2575 = vunpack.c.l.b16 %v1861
    %v2576 = vunpack.c.h.b16 %v1861
    %v2577 = vunpack.c.l.b16 %v1862
    %v2578 = vunpack.c.h.b16 %v1862
    %v2579 = vunpack.c.l.b16 %v1863
    %v2580 = vunpack.c.h.b16 %v1863
    %v2581 = vunpack.c.l.b16 %v1864
    %v2582 = vunpack.c.h.b16 %v1864
    %v2583 = vunpack.c.l.b16 %v1865
    %v2584 = vunpack.c.h.b16 %v1865
    %v2585 = vunpack.c.l.b16 %v1866
    %v2586 = vunpack.c.h.b16 %v1866
    %v2587 = vunpack.c.l.b16 %v1867
    %v2588 = vunpack.c.h.b16 %v1867
    %v2589 = vunpack.c.l.b16 %v1868
    %v2590 = vunpack.c.h.b16 %v1868
    %v2591 = vunpack.c.l.b16 %v1869
    %v2592 = vunpack.c.h.b16 %v1869
    %v2593 = vunpack.c.l.b16 %v1870
    %v2594 = vunpack.c.h.b16 %v1870
    %v2595 = vunpack.c.l.b16 %v1871
    %v2596 = vunpack.c.h.b16 %v1871
    %v2597 = vunpack.c.l.b16 %v1872
    %v2598 = vunpack.c.h.b16 %v1872
    %v2599 = vunpack.c.l.b16 %v1873
    %v2600 = vunpack.c.h.b16 %v1873
    %v2601 = vunpack.c.l.b16 %v1874
    %v2602 = vunpack.c.h.b16 %v1874
    %v2603 = vunpack.c.l.b16 %v1875
    %v2604 = vunpack.c.h.b16 %v1875
    %v2605 = vunpack.c.l.b16 %v1876
    %v2606 = vunpack.c.h.b16 %v1876
    %v2607 = vunpack.c.l.b16 %v1877
    %v2608 = vunpack.c.h.b16 %v1877
    %v2609 = vunpack.c.l.b16 %v1878
    %v2610 = vunpack.c.h.b16 %v1878
    %v2611 = vunpack.c.l.b16 %v1879
    %v2612 = vunpack.c.h.b16 %v1879
    %v2613 = vunpack.c.l.b16 %v1880
    %v2614 = vunpack.c.h.b16 %v1880
    %v2615 = vunpack.c.l.b16 %v1881
    %v2616 = vunpack.c.h.b16 %v1881
    %v2617 = vunpack.c.l.b16 %v1882
    %v2618 = vunpack.c.h.b16 %v1882
    %v2619 = vunpack.c.l.b16 %v1883
    %v2620 = vunpack.c.h.b16 %v1883
    %v2621 = vunpack.c.l.b16 %v1884
    %v2622 = vunpack.c.h.b16 %v1884
    %v2623 = vunpack.c.l.b16 %v1885
    %v2624 = vunpack.c.h.b16 %v1885
    %v2625 = vunpack.c.l.b16 %v1886
    %v2626 = vunpack.c.h.b16 %v1886
    %v2627 = vunpack.c.l.b16 %v1887
    %v2628 = vunpack.c.h.b16 %v1887
    %v2629 = vunpack.c.l.b16 %v1888
    %v2630 = vunpack.c.h.b16 %v1888
    %v2631 = vunpack.c.l.b16 %v1889
    %v2632 = vunpack.c.h.b16 %v1889
    %v2633 = vunpack.c.l.b16 %v1890
    %v2634 = vunpack.c.h.b16 %v1890
    %v2635 = vunpack.c.l.b16 %v1891
    %v2636 = vunpack.c.h.b16 %v1891
    %v2637 = vunpack.c.l.b16 %v1892
    %v2638 = vunpack.c.h.b16 %v1892
    %v2639 = vunpack.c.l.b16 %v1893
    %v2640 = vunpack.c.h.b16 %v1893
    %v2641 = vunpack.c.l.b16 %v1894
    %v2642 = vunpack.c.h.b16 %v1894
    %v2643 = vunpack.c.l.b16 %v1895
    %v2644 = vunpack.c.h.b16 %v1895
    %v2645 = vunpack.c.l.b16 %v1896
    %v2646 = vunpack.c.h.b16 %v1896
    %v2647 = vunpack.c.l.b16 %v1897
    %v2648 = vunpack.c.h.b16 %v1897
    %v2649 = vunpack.c.l.b16 %v1898
    %v2650 = vunpack.c.h.b16 %v1898
    %v2651 = vunpack.c.l.b16 %v1899
    %v2652 = vunpack.c.h.b16 %v1899
    %v2653 = vunpack.c.l.b16 %v1900
    %v2654 = vunpack.c.h.b16 %v1900
    %v2655 = vunpack.c.l.b16 %v1901
    %v2656 = vunpack.c.h.b16 %v1901
    %v2657 = vunpack.c.l.b16 %v1902
    %v2658 = vunpack.c.h.b16 %v1902
    %v2659 = vunpack.c.l.b16 %v1903
    %v2660 = vunpack.c.h.b16 %v1903
    %v2661 = vunpack.c.l.b16 %v1904
    %v2662 = vunpack.c.h.b16 %v1904
    %v2663 = vunpack.c.l.b16 %v1905
    %v2664 = vunpack.c.h.b16 %v1905
    %v2665 = vunpack.c.l.b16 %v1906
    %v2666 = vunpack.c.h.b16 %v1906
    %v2667 = vunpack.c.l.b16 %v1907
    %v2668 = vunpack.c.h.b16 %v1907
    %v2669 = vunpack.c.l.b16 %v1908
    %v2670 = vunpack.c.h.b16 %v1908
    %v2671 = vunpack.c.l.b16 %v1909
    %v2672 = vunpack.c.h.b16 %v1909
    %v2673 = vunpack.c.l.b16 %v1910
    %v2674 = vunpack.c.h.b16 %v1910
    %v2675 = vunpack.c.l.b16 %v1911
    %v2676 = vunpack.c.h.b16 %v1911
    %v2677 = vunpack.c.l.b16 %v1912
    %v2678 = vunpack.c.h.b16 %v1912
    %v2679 = vunpack.c.l.b16 %v1913
    %v2680 = vunpack.c.h.b16 %v1913
    %v2681 = vunpack.c.l.b16 %v1914
    %v2682 = vunpack.c.h.b16 %v1914
    %v2683 = vunpack.c.l.b16 %v1915
    %v2684 = vunpack.c.h.b16 %v1915
    %v2685 = vunpack.c.l.b16 %v1916
    %v2686 = vunpack.c.h.b16 %v1916
    %v2687 = vunpack.c.l.b16 %v1917
    %v2688 = vunpack.c.h.b16 %v1917
    %v2689 = vunpack.c.l.b16 %v1918
    %v2690 = vunpack.c.h.b16 %v1918
    %v2691 = vunpack.c.l.b16 %v1919
    %v2692 = vunpack.c.h.b16 %v1919
    %v2693 = vunpack.c.l.b16 %v1920
    %v2694 = vunpack.c.h.b16 %v1920
    %v2695 = vunpack.c.l.b16 %v1921
    %v2696 = vunpack.c.h.b16 %v1921
    %v2697 = vunpack.c.l.b16 %v1922
    %v2698 = vunpack.c.h.b16 %v1922
    %v2699 = vunpack.c.l.b16 %v1923
    %v2700 = vunpack.c.h.b16 %v1923
    %v2701 = vunpack.c.l.b16 %v1924
    %v2702 = vunpack.c.h.b16 %v1924
    %v2703 = vpack.c.b16 %v2195, %v2191
    %v2704 = vpack.c.b16 %v2196, %v2192
    %v2705 = vpack.c.b16 %v2197, %v2193
    %v2706 = vpack.c.b16 %v2198, %v2194
    %v2707 = vpack.c.b16 %v2203, %v2199
    %v2708 = vpack.c.b16 %v2204, %v2200
    %v2709 = vpack.c.b16 %v2205, %v2201
    %v2710 = vpack.c.b16 %v2206, %v2202
    %v2711 = vpack.c.b16 %v2211, %v2207
    %v2712 = vpack.c.b16 %v2212, %v2208
    %v2713 = vpack.c.b16 %v2213, %v2209
    %v2714 = vpack.c.b16 %v2214, %v2210
    %v2715 = vpack.c.b16 %v2219, %v2215
    %v2716 = vpack.c.b16 %v2220, %v2216
    %v2717 = vpack.c.b16 %v2221, %v2217
    %v2718 = vpack.c.b16 %v2222, %v2218
    %v2719 = vpack.c.b16 %v2227, %v2223
    %v2720 = vpack.c.b16 %v2228, %v2224
    %v2721 = vpack.c.b16 %v2229, %v2225
    %v2722 = vpack.c.b16 %v2230, %v2226
    %v2723 = vpack.c.b16 %v2235, %v2231
    %v2724 = vpack.c.b16 %v2236, %v2232
    %v2725 = vpack.c.b16 %v2237, %v2233
    %v2726 = vpack.c.b16 %v2238, %v2234
    %v2727 = vpack.c.b16 %v2243, %v2239
    %v2728 = vpack.c.b16 %v2244, %v2240
    %v2729 = vpack.c.b16 %v2245, %v2241
    %v2730 = vpack.c.b16 %v2246, %v2242
    %v2731 = vpack.c.b16 %v2251, %v2247
    %v2732 = vpack.c.b16 %v2252, %v2248
    %v2733 = vpack.c.b16 %v2253, %v2249
    %v2734 = vpack.c.b16 %v2254, %v2250
    %v2735 = vpack.c.b16 %v2259, %v2255
    %v2736 = vpack.c.b16 %v2260, %v2256
    %v2737 = vpack.c.b16 %v2261, %v2257
    %v2738 = vpack.c.b16 %v2262, %v2258
    %v2739 = vpack.c.b16 %v2267, %v2263
    %v2740 = vpack.c.b16 %v2268, %v2264
    %v2741 = vpack.c.b16 %v2269, %v2265
    %v2742 = vpack.c.b16 %v2270, %v2266
    %v2743 = vpack.c.b16 %v2275, %v2271
    %v2744 = vpack.c.b16 %v2276, %v2272
    %v2745 = vpack.c.b16 %v2277, %v2273
    %v2746 = vpack.c.b16 %v2278, %v2274
    %v2747 = vpack.c.b16 %v2283, %v2279
    %v2748 = vpack.c.b16 %v2284, %v2280
    %v2749 = vpack.c.b16 %v2285, %v2281
    %v2750 = vpack.c.b16 %v2286, %v2282
    %v2751 = vpack.c.b16 %v2291, %v2287
    %v2752 = vpack.c.b16 %v2292, %v2288
    %v2753 = vpack.c.b16 %v2293, %v2289
    %v2754 = vpack.c.b16 %v2294, %v2290
    %v2755 = vpack.c.b16 %v2299, %v2295
    %v2756 = vpack.c.b16 %v2300, %v2296
    %v2757 = vpack.c.b16 %v2301, %v2297
    %v2758 = vpack.c.b16 %v2302, %v2298
    %v2759 = vpack.c.b16 %v2307, %v2303
    %v2760 = vpack.c.b16 %v2308, %v2304
    %v2761 = vpack.c.b16 %v2309, %v2305
    %v2762 = vpack.c.b16 %v2310, %v2306
    %v2763 = vpack.c.b16 %v2315, %v2311
    %v2764 = vpack.c.b16 %v2316, %v2312
    %v2765 = vpack.c.b16 %v2317, %v2313
    %v2766 = vpack.c.b16 %v2318, %v2314
    %v2767 = vpack.c.b16 %v2323, %v2319
    %v2768 = vpack.c.b16 %v2324, %v2320
    %v2769 = vpack.c.b16 %v2325, %v2321
    %v2770 = vpack.c.b16 %v2326, %v2322
    %v2771 = vpack.c.b16 %v2331, %v2327
    %v2772 = vpack.c.b16 %v2332, %v2328
    %v2773 = vpack.c.b16 %v2333, %v2329
    %v2774 = vpack.c.b16 %v2334, %v2330
    %v2775 = vpack.c.b16 %v2339, %v2335
    %v2776 = vpack.c.b16 %v2340, %v2336
    %v2777 = vpack.c.b16 %v2341, %v2337
    %v2778 = vpack.c.b16 %v2342, %v2338
    %v2779 = vpack.c.b16 %v2347, %v2343
    %v2780 = vpack.c.b16 %v2348, %v2344
    %v2781 = vpack.c.b16 %v2349, %v2345
    %v2782 = vpack.c.b16 %v2350, %v2346
    %v2783 = vpack.c.b16 %v2355, %v2351
    %v2784 = vpack.c.b16 %v2356, %v2352
    %v2785 = vpack.c.b16 %v2357, %v2353
    %v2786 = vpack.c.b16 %v2358, %v2354
    %v2787 = vpack.c.b16 %v2363, %v2359
    %v2788 = vpack.c.b16 %v2364, %v2360
    %v2789 = vpack.c.b16 %v2365, %v2361
    %v2790 = vpack.c.b16 %v2366, %v2362
    %v2791 = vpack.c.b16 %v2371, %v2367
    %v2792 = vpack.c.b16 %v2372, %v2368
    %v2793 = vpack.c.b16 %v2373, %v2369
    %v2794 = vpack.c.b16 %v2374, %v2370
    %v2795 = vpack.c.b16 %v2379, %v2375
    %v2796 = vpack.c.b16 %v2380, %v2376
    %v2797 = vpack.c.b16 %v2381, %v2377
    %v2798 = vpack.c.b16 %v2382, %v2378
    %v2799 = vpack.c.b16 %v2387, %v2383
    %v2800 = vpack.c.b16 %v2388, %v2384
    %v2801 = vpack.c.b16 %v2389, %v2385
    %v2802 = vpack.c.b16 %v2390, %v2386
    %v2803 = vpack.c.b16 %v2395, %v2391
    %v2804 = vpack.c.b16 %v2396, %v2392
    %v2805 = vpack.c.b16 %v2397, %v2393
    %v2806 = vpack.c.b16 %v2398, %v2394
    %v2807 = vpack.c.b16 %v2403, %v2399
    %v2808 = vpack.c.b16 %v2404, %v2400
    %v2809 = vpack.c.b16 %v2405, %v2401
    %v2810 = vpack.c.b16 %v2406, %v2402
    %v2811 = vpack.c.b16 %v2411, %v2407
    %v2812 = vpack.c.b16 %v2412, %v2408
    %v2813 = vpack.c.b16 %v2413, %v2409
    %v2814 = vpack.c.b16 %v2414, %v2410
    %v2815 = vpack.c.b16 %v2419, %v2415
    %v2816 = vpack.c.b16 %v2420, %v2416
    %v2817 = vpack.c.b16 %v2421, %v2417
    %v2818 = vpack.c.b16 %v2422, %v2418
    %v2819 = vpack.c.b16 %v2427, %v2423
    %v2820 = vpack.c.b16 %v2428, %v2424
    %v2821 = vpack.c.b16 %v2429, %v2425
    %v2822 = vpack.c.b16 %v2430, %v2426
    %v2823 = vpack.c.b16 %v2435, %v2431
    %v2824 = vpack.c.b16 %v2436, %v2432
    %v2825 = vpack.c.b16 %v2437, %v2433
    %v2826 = vpack.c.b16 %v2438, %v2434
    %v2827 = vpack.c.b16 %v2443, %v2439
    %v2828 = vpack.c.b16 %v2444, %v2440
    %v2829 = vpack.c.b16 %v2445, %v2441
    %v2830 = vpack.c.b16 %v2446, %v2442
    %v2831 = vpack.c.b16 %v2451, %v2447
    %v2832 = vpack.c.b16 %v2452, %v2448
    %v2833 = vpack.c.b16 %v2453, %v2449
    %v2834 = vpack.c.b16 %v2454, %v2450
    %v2835 = vpack.c.b16 %v2459, %v2455
    %v2836 = vpack.c.b16 %v2460, %v2456
    %v2837 = vpack.c.b16 %v2461, %v2457
    %v2838 = vpack.c.b16 %v2462, %v2458
    %v2839 = vpack.c.b16 %v2467, %v2463
    %v2840 = vpack.c.b16 %v2468, %v2464
    %v2841 = vpack.c.b16 %v2469, %v2465
    %v2842 = vpack.c.b16 %v2470, %v2466
    %v2843 = vpack.c.b16 %v2475, %v2471
    %v2844 = vpack.c.b16 %v2476, %v2472
    %v2845 = vpack.c.b16 %v2477, %v2473
    %v2846 = vpack.c.b16 %v2478, %v2474
    %v2847 = vpack.c.b16 %v2483, %v2479
    %v2848 = vpack.c.b16 %v2484, %v2480
    %v2849 = vpack.c.b16 %v2485, %v2481
    %v2850 = vpack.c.b16 %v2486, %v2482
    %v2851 = vpack.c.b16 %v2491, %v2487
    %v2852 = vpack.c.b16 %v2492, %v2488
    %v2853 = vpack.c.b16 %v2493, %v2489
    %v2854 = vpack.c.b16 %v2494, %v2490
    %v2855 = vpack.c.b16 %v2499, %v2495
    %v2856 = vpack.c.b16 %v2500, %v2496
    %v2857 = vpack.c.b16 %v2501, %v2497
    %v2858 = vpack.c.b16 %v2502, %v2498
    %v2859 = vpack.c.b16 %v2507, %v2503
    %v2860 = vpack.c.b16 %v2508, %v2504
    %v2861 = vpack.c.b16 %v2509, %v2505
    %v2862 = vpack.c.b16 %v2510, %v2506
    %v2863 = vpack.c.b16 %v2515, %v2511
    %v2864 = vpack.c.b16 %v2516, %v2512
    %v2865 = vpack.c.b16 %v2517, %v2513
    %v2866 = vpack.c.b16 %v2518, %v2514
    %v2867 = vpack.c.b16 %v2523, %v2519
    %v2868 = vpack.c.b16 %v2524, %v2520
    %v2869 = vpack.c.b16 %v2525, %v2521
    %v2870 = vpack.c.b16 %v2526, %v2522
    %v2871 = vpack.c.b16 %v2531, %v2527
    %v2872 = vpack.c.b16 %v2532, %v2528
    %v2873 = vpack.c.b16 %v2533, %v2529
    %v2874 = vpack.c.b16 %v2534, %v2530
    %v2875 = vpack.c.b16 %v2539, %v2535
    %v2876 = vpack.c.b16 %v2540, %v2536
    %v2877 = vpack.c.b16 %v2541, %v2537
    %v2878 = vpack.c.b16 %v2542, %v2538
    %v2879 = vpack.c.b16 %v2547, %v2543
    %v2880 = vpack.c.b16 %v2548, %v2544
    %v2881 = vpack.c.b16 %v2549, %v2545
    %v2882 = vpack.c.b16 %v2550, %v2546
    %v2883 = vpack.c.b16 %v2555, %v2551
    %v2884 = vpack.c.b16 %v2556, %v2552
    %v2885 = vpack.c.b16 %v2557, %v2553
    %v2886 = vpack.c.b16 %v2558, %v2554
    %v2887 = vpack.c.b16 %v2563, %v2559
    %v2888 = vpack.c.b16 %v2564, %v2560
    %v2889 = vpack.c.b16 %v2565, %v2561
    %v2890 = vpack.c.b16 %v2566, %v2562
    %v2891 = vpack.c.b16 %v2571, %v2567
    %v2892 = vpack.c.b16 %v2572, %v2568
    %v2893 = vpack.c.b16 %v2573, %v2569
    %v2894 = vpack.c.b16 %v2574, %v2570
    %v2895 = vpack.c.b16 %v2579, %v2575
    %v2896 = vpack.c.b16 %v2580, %v2576
    %v2897 = vpack.c.b16 %v2581, %v2577
    %v2898 = vpack.c.b16 %v2582, %v2578
    %v2899 = vpack.c.b16 %v2587, %v2583
    %v2900 = vpack.c.b16 %v2588, %v2584
    %v2901 = vpack.c.b16 %v2589, %v2585
    %v2902 = vpack.c.b16 %v2590, %v2586
    %v2903 = vpack.c.b16 %v2595, %v2591
    %v2904 = vpack.c.b16 %v2596, %v2592
    %v2905 = vpack.c.b16 %v2597, %v2593
    %v2906 = vpack.c.b16 %v2598, %v2594
    %v2907 = vpack.c.b16 %v2603, %v2599
    %v2908 = vpack.c.b16 %v2604, %v2600
    %v2909 = vpack.c.b16 %v2605, %v2601
    %v2910 = vpack.c.b16 %v2606, %v2602
    %v2911 = vpack.c.b16 %v2611, %v2607
    %v2912 = vpack.c.b16 %v2612, %v2608
    %v2913 = vpack.c.b16 %v2613, %v2609
    %v2914 = vpack.c.b16 %v2614, %v2610
    %v2915 = vpack.c.b16 %v2619, %v2615
    %v2916 = vpack.c.b16 %v2620, %v2616
    %v2917 = vpack.c.b16 %v2621, %v2617
    %v2918 = vpack.c.b16 %v2622, %v2618
    %v2919 = vpack.c.b16 %v2627, %v2623
    %v2920 = vpack.c.b16 %v2628, %v2624
    %v2921 = vpack.c.b16 %v2629, %v2625
    %v2922 = vpack.c.b16 %v2630, %v2626
    %v2923 = vpack.c.b16 %v2635, %v2631
    %v2924 = vpack.c.b16 %v2636, %v2632
    %v2925 = vpack.c.b16 %v2637, %v2633
    %v2926 = vpack.c.b16 %v2638, %v2634
    %v2927 = vpack.c.b16 %v2643, %v2639
    %v2928 = vpack.c.b16 %v2644, %v2640
    %v2929 = vpack.c.b16 %v2645, %v2641
    %v2930 = vpack.c.b16 %v2646, %v2642
    %v2931 = vpack.c.b16 %v2651, %v2647
    %v2932 = vpack.c.b16 %v2652, %v2648
    %v2933 = vpack.c.b16 %v2653, %v2649
    %v2934 = vpack.c.b16 %v2654, %v2650
    %v2935 = vpack.c.b16 %v2659, %v2655
    %v2936 = vpack.c.b16 %v2660, %v2656
    %v2937 = vpack.c.b16 %v2661, %v2657
    %v2938 = vpack.c.b16 %v2662, %v2658
    %v2939 = vpack.c.b16 %v2667, %v2663
    %v2940 = vpack.c.b16 %v2668, %v2664
    %v2941 = vpack.c.b16 %v2669, %v2665
    %v2942 = vpack.c.b16 %v2670, %v2666
    %v2943 = vpack.c.b16 %v2675, %v2671
    %v2944 = vpack.c.b16 %v2676, %v2672
    %v2945 = vpack.c.b16 %v2677, %v2673
    %v2946 = vpack.c.b16 %v2678, %v2674
    %v2947 = vpack.c.b16 %v2683, %v2679
    %v2948 = vpack.c.b16 %v2684, %v2680
    %v2949 = vpack.c.b16 %v2685, %v2681
    %v2950 = vpack.c.b16 %v2686, %v2682
    %v2951 = vpack.c.b16 %v2691, %v2687
    %v2952 = vpack.c.b16 %v2692, %v2688
    %v2953 = vpack.c.b16 %v2693, %v2689
    %v2954 = vpack.c.b16 %v2694, %v2690
    %v2955 = vpack.c.b16 %v2699, %v2695
    %v2956 = vpack.c.b16 %v2700, %v2696
    %v2957 = vpack.c.b16 %v2701, %v2697
    %v2958 = vpack.c.b16 %v2702, %v2698
    %3215 = vmatpush.bf16.msra.mxu0 %v2731
    %3216 = vmatpush.bf16.msra.mxu0 %v2727
    %3217 = vmatpush.bf16.msra.mxu0 %v2723
    %3218 = vmatpush.bf16.msra.mxu0 %v2719
    %3219 = vmatpush.bf16.msra.mxu0 %v2715
    %3220 = vmatpush.bf16.msra.mxu0 %v2711
    %3221 = vmatpush.bf16.msra.mxu0 %v2707
    %3222 = vmatpush.bf16.msra.mxu0 %v2703
    %3223 = vmatmul.bf16.gmra.mxu0 %v1661
    %v3224 = vpop.f32.mrf.mxu0
    %v3225 = vadd.f32 %v1927, %v3224
    %v3226 = vpop.f32.mrf.mxu0
    %3227 = vdwg.mxu0
    %3228 = vmatpush.bf16.msra.mxu0 %v2763
    %3229 = vmatpush.bf16.msra.mxu0 %v2759
    %3230 = vmatpush.bf16.msra.mxu0 %v2755
    %3231 = vmatpush.bf16.msra.mxu0 %v2751
    %3232 = vmatpush.bf16.msra.mxu0 %v2747
    %3233 = vmatpush.bf16.msra.mxu0 %v2743
    %3234 = vmatpush.bf16.msra.mxu0 %v2739
    %3235 = vmatpush.bf16.msra.mxu0 %v2735
    %3236 = vmatmul.bf16.gmra.mxu0 %v1662
    %v3237 = vpop.f32.mrf.mxu0
    %v3238 = vadd.f32 %v3225, %v3237
    %v3239 = vpop.f32.mrf.mxu0
    %3240 = vdwg.mxu0
    %3241 = vmatpush.bf16.msra.mxu0 %v2795
    %3242 = vmatpush.bf16.msra.mxu0 %v2791
    %3243 = vmatpush.bf16.msra.mxu0 %v2787
    %3244 = vmatpush.bf16.msra.mxu0 %v2783
    %3245 = vmatpush.bf16.msra.mxu0 %v2779
    %3246 = vmatpush.bf16.msra.mxu0 %v2775
    %3247 = vmatpush.bf16.msra.mxu0 %v2771
    %3248 = vmatpush.bf16.msra.mxu0 %v2767
    %3249 = vmatmul.bf16.gmra.mxu0 %v1663
    %v3250 = vpop.f32.mrf.mxu0
    %v3251 = vadd.f32 %v3238, %v3250
    %v3252 = vpop.f32.mrf.mxu0
    %3253 = vdwg.mxu0
    %3254 = vmatpush.bf16.msra.mxu0 %v2827
    %3255 = vmatpush.bf16.msra.mxu0 %v2823
    %3256 = vmatpush.bf16.msra.mxu0 %v2819
    %3257 = vmatpush.bf16.msra.mxu0 %v2815
    %3258 = vmatpush.bf16.msra.mxu0 %v2811
    %3259 = vmatpush.bf16.msra.mxu0 %v2807
    %3260 = vmatpush.bf16.msra.mxu0 %v2803
    %3261 = vmatpush.bf16.msra.mxu0 %v2799
    %3262 = vmatmul.bf16.gmra.mxu0 %v1664
    %v3263 = vpop.f32.mrf.mxu0
    %v3264 = vadd.f32 %v3251, %v3263
    %v3265 = vpop.f32.mrf.mxu0
    %3266 = vdwg.mxu0
    %3267 = vmatpush.bf16.msra.mxu0 %v2859
    %3268 = vmatpush.bf16.msra.mxu0 %v2855
    %3269 = vmatpush.bf16.msra.mxu0 %v2851
    %3270 = vmatpush.bf16.msra.mxu0 %v2847
    %3271 = vmatpush.bf16.msra.mxu0 %v2843
    %3272 = vmatpush.bf16.msra.mxu0 %v2839
    %3273 = vmatpush.bf16.msra.mxu0 %v2835
    %3274 = vmatpush.bf16.msra.mxu0 %v2831
    %3275 = vmatmul.bf16.gmra.mxu0 %v1665
    %v3276 = vpop.f32.mrf.mxu0
    %v3277 = vadd.f32 %v3264, %v3276
    %v3278 = vpop.f32.mrf.mxu0
    %3279 = vdwg.mxu0
    %3280 = vmatpush.bf16.msra.mxu0 %v2891
    %3281 = vmatpush.bf16.msra.mxu0 %v2887
    %3282 = vmatpush.bf16.msra.mxu0 %v2883
    %3283 = vmatpush.bf16.msra.mxu0 %v2879
    %3284 = vmatpush.bf16.msra.mxu0 %v2875
    %3285 = vmatpush.bf16.msra.mxu0 %v2871
    %3286 = vmatpush.bf16.msra.mxu0 %v2867
    %3287 = vmatpush.bf16.msra.mxu0 %v2863
    %3288 = vmatmul.bf16.gmra.mxu0 %v1666
    %v3289 = vpop.f32.mrf.mxu0
    %v3290 = vadd.f32 %v3277, %v3289
    %v3291 = vpop.f32.mrf.mxu0
    %3292 = vdwg.mxu0
    %3293 = vmatpush.bf16.msra.mxu0 %v2923
    %3294 = vmatpush.bf16.msra.mxu0 %v2919
    %3295 = vmatpush.bf16.msra.mxu0 %v2915
    %3296 = vmatpush.bf16.msra.mxu0 %v2911
    %3297 = vmatpush.bf16.msra.mxu0 %v2907
    %3298 = vmatpush.bf16.msra.mxu0 %v2903
    %3299 = vmatpush.bf16.msra.mxu0 %v2899
    %3300 = vmatpush.bf16.msra.mxu0 %v2895
    %3301 = vmatmul.bf16.gmra.mxu0 %v1667
    %v3302 = vpop.f32.mrf.mxu0
    %v3303 = vadd.f32 %v3290, %v3302
    %v3304 = vpop.f32.mrf.mxu0
    %3305 = vdwg.mxu0
    %3306 = vmatpush.bf16.msra.mxu0 %v2955
    %3307 = vmatpush.bf16.msra.mxu0 %v2951
    %3308 = vmatpush.bf16.msra.mxu0 %v2947
    %3309 = vmatpush.bf16.msra.mxu0 %v2943
    %3310 = vmatpush.bf16.msra.mxu0 %v2939
    %3311 = vmatpush.bf16.msra.mxu0 %v2935
    %3312 = vmatpush.bf16.msra.mxu0 %v2931
    %3313 = vmatpush.bf16.msra.mxu0 %v2927
    %3314 = vmatmul.bf16.gmra.mxu0 %v1668
    %v3315 = vpop.f32.mrf.mxu0
    %v3316 = vadd.f32 %v3303, %v3315
    %v3317 = vpop.f32.mrf.mxu0
    %3318 = vdwg.mxu0
    %3319 = vmatpush.bf16.msra.mxu0 %v2732
    %3320 = vmatpush.bf16.msra.mxu0 %v2728
    %3321 = vmatpush.bf16.msra.mxu0 %v2724
    %3322 = vmatpush.bf16.msra.mxu0 %v2720
    %3323 = vmatpush.bf16.msra.mxu0 %v2716
    %3324 = vmatpush.bf16.msra.mxu0 %v2712
    %3325 = vmatpush.bf16.msra.mxu0 %v2708
    %3326 = vmatpush.bf16.msra.mxu0 %v2704
    %3327 = vmatmul.bf16.gmra.mxu0 %v1661
    %v3328 = vpop.f32.mrf.mxu0
    %v3329 = vadd.f32 %v1928, %v3328
    %v3330 = vpop.f32.mrf.mxu0
    %3331 = vdwg.mxu0
    %3332 = vmatpush.bf16.msra.mxu0 %v2764
    %3333 = vmatpush.bf16.msra.mxu0 %v2760
    %3334 = vmatpush.bf16.msra.mxu0 %v2756
    %3335 = vmatpush.bf16.msra.mxu0 %v2752
    %3336 = vmatpush.bf16.msra.mxu0 %v2748
    %3337 = vmatpush.bf16.msra.mxu0 %v2744
    %3338 = vmatpush.bf16.msra.mxu0 %v2740
    %3339 = vmatpush.bf16.msra.mxu0 %v2736
    %3340 = vmatmul.bf16.gmra.mxu0 %v1662
    %v3341 = vpop.f32.mrf.mxu0
    %v3342 = vadd.f32 %v3329, %v3341
    %v3343 = vpop.f32.mrf.mxu0
    %3344 = vdwg.mxu0
    %3345 = vmatpush.bf16.msra.mxu0 %v2796
    %3346 = vmatpush.bf16.msra.mxu0 %v2792
    %3347 = vmatpush.bf16.msra.mxu0 %v2788
    %3348 = vmatpush.bf16.msra.mxu0 %v2784
    %3349 = vmatpush.bf16.msra.mxu0 %v2780
    %3350 = vmatpush.bf16.msra.mxu0 %v2776
    %3351 = vmatpush.bf16.msra.mxu0 %v2772
    %3352 = vmatpush.bf16.msra.mxu0 %v2768
    %3353 = vmatmul.bf16.gmra.mxu0 %v1663
    %v3354 = vpop.f32.mrf.mxu0
    %v3355 = vadd.f32 %v3342, %v3354
    %v3356 = vpop.f32.mrf.mxu0
    %3357 = vdwg.mxu0
    %3358 = vmatpush.bf16.msra.mxu0 %v2828
    %3359 = vmatpush.bf16.msra.mxu0 %v2824
    %3360 = vmatpush.bf16.msra.mxu0 %v2820
    %3361 = vmatpush.bf16.msra.mxu0 %v2816
    %3362 = vmatpush.bf16.msra.mxu0 %v2812
    %3363 = vmatpush.bf16.msra.mxu0 %v2808
    %3364 = vmatpush.bf16.msra.mxu0 %v2804
    %3365 = vmatpush.bf16.msra.mxu0 %v2800
    %3366 = vmatmul.bf16.gmra.mxu0 %v1664
    %v3367 = vpop.f32.mrf.mxu0
    %v3368 = vadd.f32 %v3355, %v3367
    %v3369 = vpop.f32.mrf.mxu0
    %3370 = vdwg.mxu0
    %3371 = vmatpush.bf16.msra.mxu0 %v2860
    %3372 = vmatpush.bf16.msra.mxu0 %v2856
    %3373 = vmatpush.bf16.msra.mxu0 %v2852
    %3374 = vmatpush.bf16.msra.mxu0 %v2848
    %3375 = vmatpush.bf16.msra.mxu0 %v2844
    %3376 = vmatpush.bf16.msra.mxu0 %v2840
    %3377 = vmatpush.bf16.msra.mxu0 %v2836
    %3378 = vmatpush.bf16.msra.mxu0 %v2832
    %3379 = vmatmul.bf16.gmra.mxu0 %v1665
    %v3380 = vpop.f32.mrf.mxu0
    %v3381 = vadd.f32 %v3368, %v3380
    %v3382 = vpop.f32.mrf.mxu0
    %3383 = vdwg.mxu0
    %3384 = vmatpush.bf16.msra.mxu0 %v2892
    %3385 = vmatpush.bf16.msra.mxu0 %v2888
    %3386 = vmatpush.bf16.msra.mxu0 %v2884
    %3387 = vmatpush.bf16.msra.mxu0 %v2880
    %3388 = vmatpush.bf16.msra.mxu0 %v2876
    %3389 = vmatpush.bf16.msra.mxu0 %v2872
    %3390 = vmatpush.bf16.msra.mxu0 %v2868
    %3391 = vmatpush.bf16.msra.mxu0 %v2864
    %3392 = vmatmul.bf16.gmra.mxu0 %v1666
    %v3393 = vpop.f32.mrf.mxu0
    %v3394 = vadd.f32 %v3381, %v3393
    %v3395 = vpop.f32.mrf.mxu0
    %3396 = vdwg.mxu0
    %3397 = vmatpush.bf16.msra.mxu0 %v2924
    %3398 = vmatpush.bf16.msra.mxu0 %v2920
    %3399 = vmatpush.bf16.msra.mxu0 %v2916
    %3400 = vmatpush.bf16.msra.mxu0 %v2912
    %3401 = vmatpush.bf16.msra.mxu0 %v2908
    %3402 = vmatpush.bf16.msra.mxu0 %v2904
    %3403 = vmatpush.bf16.msra.mxu0 %v2900
    %3404 = vmatpush.bf16.msra.mxu0 %v2896
    %3405 = vmatmul.bf16.gmra.mxu0 %v1667
    %v3406 = vpop.f32.mrf.mxu0
    %v3407 = vadd.f32 %v3394, %v3406
    %v3408 = vpop.f32.mrf.mxu0
    %3409 = vdwg.mxu0
    %3410 = vmatpush.bf16.msra.mxu0 %v2956
    %3411 = vmatpush.bf16.msra.mxu0 %v2952
    %3412 = vmatpush.bf16.msra.mxu0 %v2948
    %3413 = vmatpush.bf16.msra.mxu0 %v2944
    %3414 = vmatpush.bf16.msra.mxu0 %v2940
    %3415 = vmatpush.bf16.msra.mxu0 %v2936
    %3416 = vmatpush.bf16.msra.mxu0 %v2932
    %3417 = vmatpush.bf16.msra.mxu0 %v2928
    %3418 = vmatmul.bf16.gmra.mxu0 %v1668
    %v3419 = vpop.f32.mrf.mxu0
    %v3420 = vadd.f32 %v3407, %v3419
    %v3421 = vpop.f32.mrf.mxu0
    %3422 = vdwg.mxu0
    %3423 = vmatpush.bf16.msra.mxu0 %v2733
    %3424 = vmatpush.bf16.msra.mxu0 %v2729
    %3425 = vmatpush.bf16.msra.mxu0 %v2725
    %3426 = vmatpush.bf16.msra.mxu0 %v2721
    %3427 = vmatpush.bf16.msra.mxu0 %v2717
    %3428 = vmatpush.bf16.msra.mxu0 %v2713
    %3429 = vmatpush.bf16.msra.mxu0 %v2709
    %3430 = vmatpush.bf16.msra.mxu0 %v2705
    %3431 = vmatmul.bf16.gmra.mxu0 %v1661
    %v3432 = vpop.f32.mrf.mxu0
    %v3433 = vadd.f32 %v1929, %v3432
    %v3434 = vpop.f32.mrf.mxu0
    %3435 = vdwg.mxu0
    %3436 = vmatpush.bf16.msra.mxu0 %v2765
    %3437 = vmatpush.bf16.msra.mxu0 %v2761
    %3438 = vmatpush.bf16.msra.mxu0 %v2757
    %3439 = vmatpush.bf16.msra.mxu0 %v2753
    %3440 = vmatpush.bf16.msra.mxu0 %v2749
    %3441 = vmatpush.bf16.msra.mxu0 %v2745
    %3442 = vmatpush.bf16.msra.mxu0 %v2741
    %3443 = vmatpush.bf16.msra.mxu0 %v2737
    %3444 = vmatmul.bf16.gmra.mxu0 %v1662
    %v3445 = vpop.f32.mrf.mxu0
    %v3446 = vadd.f32 %v3433, %v3445
    %v3447 = vpop.f32.mrf.mxu0
    %3448 = vdwg.mxu0
    %3449 = vmatpush.bf16.msra.mxu0 %v2797
    %3450 = vmatpush.bf16.msra.mxu0 %v2793
    %3451 = vmatpush.bf16.msra.mxu0 %v2789
    %3452 = vmatpush.bf16.msra.mxu0 %v2785
    %3453 = vmatpush.bf16.msra.mxu0 %v2781
    %3454 = vmatpush.bf16.msra.mxu0 %v2777
    %3455 = vmatpush.bf16.msra.mxu0 %v2773
    %3456 = vmatpush.bf16.msra.mxu0 %v2769
    %3457 = vmatmul.bf16.gmra.mxu0 %v1663
    %v3458 = vpop.f32.mrf.mxu0
    %v3459 = vadd.f32 %v3446, %v3458
    %v3460 = vpop.f32.mrf.mxu0
    %3461 = vdwg.mxu0
    %3462 = vmatpush.bf16.msra.mxu0 %v2829
    %3463 = vmatpush.bf16.msra.mxu0 %v2825
    %3464 = vmatpush.bf16.msra.mxu0 %v2821
    %3465 = vmatpush.bf16.msra.mxu0 %v2817
    %3466 = vmatpush.bf16.msra.mxu0 %v2813
    %3467 = vmatpush.bf16.msra.mxu0 %v2809
    %3468 = vmatpush.bf16.msra.mxu0 %v2805
    %3469 = vmatpush.bf16.msra.mxu0 %v2801
    %3470 = vmatmul.bf16.gmra.mxu0 %v1664
    %v3471 = vpop.f32.mrf.mxu0
    %v3472 = vadd.f32 %v3459, %v3471
    %v3473 = vpop.f32.mrf.mxu0
    %3474 = vdwg.mxu0
    %3475 = vmatpush.bf16.msra.mxu0 %v2861
    %3476 = vmatpush.bf16.msra.mxu0 %v2857
    %3477 = vmatpush.bf16.msra.mxu0 %v2853
    %3478 = vmatpush.bf16.msra.mxu0 %v2849
    %3479 = vmatpush.bf16.msra.mxu0 %v2845
    %3480 = vmatpush.bf16.msra.mxu0 %v2841
    %3481 = vmatpush.bf16.msra.mxu0 %v2837
    %3482 = vmatpush.bf16.msra.mxu0 %v2833
    %3483 = vmatmul.bf16.gmra.mxu0 %v1665
    %v3484 = vpop.f32.mrf.mxu0
    %v3485 = vadd.f32 %v3472, %v3484
    %v3486 = vpop.f32.mrf.mxu0
    %3487 = vdwg.mxu0
    %3488 = vmatpush.bf16.msra.mxu0 %v2893
    %3489 = vmatpush.bf16.msra.mxu0 %v2889
    %3490 = vmatpush.bf16.msra.mxu0 %v2885
    %3491 = vmatpush.bf16.msra.mxu0 %v2881
    %3492 = vmatpush.bf16.msra.mxu0 %v2877
    %3493 = vmatpush.bf16.msra.mxu0 %v2873
    %3494 = vmatpush.bf16.msra.mxu0 %v2869
    %3495 = vmatpush.bf16.msra.mxu0 %v2865
    %3496 = vmatmul.bf16.gmra.mxu0 %v1666
    %v3497 = vpop.f32.mrf.mxu0
    %v3498 = vadd.f32 %v3485, %v3497
    %v3499 = vpop.f32.mrf.mxu0
    %3500 = vdwg.mxu0
    %3501 = vmatpush.bf16.msra.mxu0 %v2925
    %3502 = vmatpush.bf16.msra.mxu0 %v2921
    %3503 = vmatpush.bf16.msra.mxu0 %v2917
    %3504 = vmatpush.bf16.msra.mxu0 %v2913
    %3505 = vmatpush.bf16.msra.mxu0 %v2909
    %3506 = vmatpush.bf16.msra.mxu0 %v2905
    %3507 = vmatpush.bf16.msra.mxu0 %v2901
    %3508 = vmatpush.bf16.msra.mxu0 %v2897
    %3509 = vmatmul.bf16.gmra.mxu0 %v1667
    %v3510 = vpop.f32.mrf.mxu0
    %v3511 = vadd.f32 %v3498, %v3510
    %v3512 = vpop.f32.mrf.mxu0
    %3513 = vdwg.mxu0
    %3514 = vmatpush.bf16.msra.mxu0 %v2957
    %3515 = vmatpush.bf16.msra.mxu0 %v2953
    %3516 = vmatpush.bf16.msra.mxu0 %v2949
    %3517 = vmatpush.bf16.msra.mxu0 %v2945
    %3518 = vmatpush.bf16.msra.mxu0 %v2941
    %3519 = vmatpush.bf16.msra.mxu0 %v2937
    %3520 = vmatpush.bf16.msra.mxu0 %v2933
    %3521 = vmatpush.bf16.msra.mxu0 %v2929
    %3522 = vmatmul.bf16.gmra.mxu0 %v1668
    %v3523 = vpop.f32.mrf.mxu0
    %v3524 = vadd.f32 %v3511, %v3523
    %v3525 = vpop.f32.mrf.mxu0
    %3526 = vdwg.mxu0
    %3527 = vmatpush.bf16.msra.mxu0 %v2734
    %3528 = vmatpush.bf16.msra.mxu0 %v2730
    %3529 = vmatpush.bf16.msra.mxu0 %v2726
    %3530 = vmatpush.bf16.msra.mxu0 %v2722
    %3531 = vmatpush.bf16.msra.mxu0 %v2718
    %3532 = vmatpush.bf16.msra.mxu0 %v2714
    %3533 = vmatpush.bf16.msra.mxu0 %v2710
    %3534 = vmatpush.bf16.msra.mxu0 %v2706
    %3535 = vmatmul.bf16.gmra.mxu0 %v1661
    %v3536 = vpop.f32.mrf.mxu0
    %v3537 = vadd.f32 %v1930, %v3536
    %v3538 = vpop.f32.mrf.mxu0
    %3539 = vdwg.mxu0
    %3540 = vmatpush.bf16.msra.mxu0 %v2766
    %3541 = vmatpush.bf16.msra.mxu0 %v2762
    %3542 = vmatpush.bf16.msra.mxu0 %v2758
    %3543 = vmatpush.bf16.msra.mxu0 %v2754
    %3544 = vmatpush.bf16.msra.mxu0 %v2750
    %3545 = vmatpush.bf16.msra.mxu0 %v2746
    %3546 = vmatpush.bf16.msra.mxu0 %v2742
    %3547 = vmatpush.bf16.msra.mxu0 %v2738
    %3548 = vmatmul.bf16.gmra.mxu0 %v1662
    %v3549 = vpop.f32.mrf.mxu0
    %v3550 = vadd.f32 %v3537, %v3549
    %v3551 = vpop.f32.mrf.mxu0
    %3552 = vdwg.mxu0
    %3553 = vmatpush.bf16.msra.mxu0 %v2798
    %3554 = vmatpush.bf16.msra.mxu0 %v2794
    %3555 = vmatpush.bf16.msra.mxu0 %v2790
    %3556 = vmatpush.bf16.msra.mxu0 %v2786
    %3557 = vmatpush.bf16.msra.mxu0 %v2782
    %3558 = vmatpush.bf16.msra.mxu0 %v2778
    %3559 = vmatpush.bf16.msra.mxu0 %v2774
    %3560 = vmatpush.bf16.msra.mxu0 %v2770
    %3561 = vmatmul.bf16.gmra.mxu0 %v1663
    %v3562 = vpop.f32.mrf.mxu0
    %v3563 = vadd.f32 %v3550, %v3562
    %v3564 = vpop.f32.mrf.mxu0
    %3565 = vdwg.mxu0
    %3566 = vmatpush.bf16.msra.mxu0 %v2830
    %3567 = vmatpush.bf16.msra.mxu0 %v2826
    %3568 = vmatpush.bf16.msra.mxu0 %v2822
    %3569 = vmatpush.bf16.msra.mxu0 %v2818
    %3570 = vmatpush.bf16.msra.mxu0 %v2814
    %3571 = vmatpush.bf16.msra.mxu0 %v2810
    %3572 = vmatpush.bf16.msra.mxu0 %v2806
    %3573 = vmatpush.bf16.msra.mxu0 %v2802
    %3574 = vmatmul.bf16.gmra.mxu0 %v1664
    %v3575 = vpop.f32.mrf.mxu0
    %v3576 = vadd.f32 %v3563, %v3575
    %v3577 = vpop.f32.mrf.mxu0
    %3578 = vdwg.mxu0
    %3579 = vmatpush.bf16.msra.mxu0 %v2862
    %3580 = vmatpush.bf16.msra.mxu0 %v2858
    %3581 = vmatpush.bf16.msra.mxu0 %v2854
    %3582 = vmatpush.bf16.msra.mxu0 %v2850
    %3583 = vmatpush.bf16.msra.mxu0 %v2846
    %3584 = vmatpush.bf16.msra.mxu0 %v2842
    %3585 = vmatpush.bf16.msra.mxu0 %v2838
    %3586 = vmatpush.bf16.msra.mxu0 %v2834
    %3587 = vmatmul.bf16.gmra.mxu0 %v1665
    %v3588 = vpop.f32.mrf.mxu0
    %v3589 = vadd.f32 %v3576, %v3588
    %v3590 = vpop.f32.mrf.mxu0
    %3591 = vdwg.mxu0
    %3592 = vmatpush.bf16.msra.mxu0 %v2894
    %3593 = vmatpush.bf16.msra.mxu0 %v2890
    %3594 = vmatpush.bf16.msra.mxu0 %v2886
    %3595 = vmatpush.bf16.msra.mxu0 %v2882
    %3596 = vmatpush.bf16.msra.mxu0 %v2878
    %3597 = vmatpush.bf16.msra.mxu0 %v2874
    %3598 = vmatpush.bf16.msra.mxu0 %v2870
    %3599 = vmatpush.bf16.msra.mxu0 %v2866
    %3600 = vmatmul.bf16.gmra.mxu0 %v1666
    %v3601 = vpop.f32.mrf.mxu0
    %v3602 = vadd.f32 %v3589, %v3601
    %v3603 = vpop.f32.mrf.mxu0
    %3604 = vdwg.mxu0
    %3605 = vmatpush.bf16.msra.mxu0 %v2926
    %3606 = vmatpush.bf16.msra.mxu0 %v2922
    %3607 = vmatpush.bf16.msra.mxu0 %v2918
    %3608 = vmatpush.bf16.msra.mxu0 %v2914
    %3609 = vmatpush.bf16.msra.mxu0 %v2910
    %3610 = vmatpush.bf16.msra.mxu0 %v2906
    %3611 = vmatpush.bf16.msra.mxu0 %v2902
    %3612 = vmatpush.bf16.msra.mxu0 %v2898
    %3613 = vmatmul.bf16.gmra.mxu0 %v1667
    %v3614 = vpop.f32.mrf.mxu0
    %v3615 = vadd.f32 %v3602, %v3614
    %v3616 = vpop.f32.mrf.mxu0
    %3617 = vdwg.mxu0
    %3618 = vmatpush.bf16.msra.mxu0 %v2958
    %3619 = vmatpush.bf16.msra.mxu0 %v2954
    %3620 = vmatpush.bf16.msra.mxu0 %v2950
    %3621 = vmatpush.bf16.msra.mxu0 %v2946
    %3622 = vmatpush.bf16.msra.mxu0 %v2942
    %3623 = vmatpush.bf16.msra.mxu0 %v2938
    %3624 = vmatpush.bf16.msra.mxu0 %v2934
    %3625 = vmatpush.bf16.msra.mxu0 %v2930
    %3626 = vmatmul.bf16.gmra.mxu0 %v1668
    %v3627 = vpop.f32.mrf.mxu0
    %v3628 = vadd.f32 %v3615, %v3627
    %v3629 = vpop.f32.mrf.mxu0
    %3630 = vdwg.mxu0
    %v3631 = vmax.f32 %v3316, 0.0
    %v3632 = vmax.f32 %v3420, 0.0
    %v3633 = vmax.f32 %v3524, 0.0
    %v3634 = vmax.f32 %v3628, 0.0
    %v3635 = vpack.c.bf16 %v3631, %v3631
    %v3636 = vpack.c.bf16 %v3632, %v3632
    %v3637 = vpack.c.bf16 %v3633, %v3633
    %v3638 = vpack.c.bf16 %v3634, %v3634
    %v3639 = vld [vmem:[#allocation11] sm:$0xf]
    %v3640 = vld [vmem:[#allocation11 + $0x4] sm:$0xf]
    %v3641 = vld [vmem:[#allocation11 + $0x8] sm:$0xf]
    %v3642 = vld [vmem:[#allocation11 + $0xc] sm:$0xf]
    %v3643 = vld [vmem:[#allocation11 + $0x10] sm:$0xf]
    %v3644 = vld [vmem:[#allocation11 + $0x14] sm:$0xf]
    %v3645 = vld [vmem:[#allocation11 + $0x18] sm:$0xf]
    %v3646 = vld [vmem:[#allocation11 + $0x1c] sm:$0xf]
    %v3647 = vld [vmem:[#allocation11 + $0x20] sm:$0xf]
    %v3648 = vld [vmem:[#allocation11 + $0x24] sm:$0xf]
    %v3649 = vld [vmem:[#allocation11 + $0x28] sm:$0xf]
    %v3650 = vld [vmem:[#allocation11 + $0x2c] sm:$0xf]
    %v3651 = vld [vmem:[#allocation11 + $0x30] sm:$0xf]
    %v3652 = vld [vmem:[#allocation11 + $0x34] sm:$0xf]
    %v3653 = vld [vmem:[#allocation11 + $0x38] sm:$0xf]
    %v3654 = vld [vmem:[#allocation11 + $0x3c] sm:$0xf]
    %v3655 = vld [vmem:[#allocation11 + $0x40] sm:$0xf]
    %v3656 = vld [vmem:[#allocation11 + $0x44] sm:$0xf]
    %v3657 = vld [vmem:[#allocation11 + $0x48] sm:$0xf]
    %v3658 = vld [vmem:[#allocation11 + $0x4c] sm:$0xf]
    %v3659 = vld [vmem:[#allocation11 + $0x50] sm:$0xf]
    %v3660 = vld [vmem:[#allocation11 + $0x54] sm:$0xf]
    %v3661 = vld [vmem:[#allocation11 + $0x58] sm:$0xf]
    %v3662 = vld [vmem:[#allocation11 + $0x5c] sm:$0xf]
    %v3663 = vld [vmem:[#allocation11 + $0x60] sm:$0xf]
    %v3664 = vld [vmem:[#allocation11 + $0x64] sm:$0xf]
    %v3665 = vld [vmem:[#allocation11 + $0x68] sm:$0xf]
    %v3666 = vld [vmem:[#allocation11 + $0x6c] sm:$0xf]
    %v3667 = vld [vmem:[#allocation11 + $0x70] sm:$0xf]
    %v3668 = vld [vmem:[#allocation11 + $0x74] sm:$0xf]
    %v3669 = vld [vmem:[#allocation11 + $0x78] sm:$0xf]
    %v3670 = vld [vmem:[#allocation11 + $0x7c] sm:$0xf]
    %v3671 = vld [vmem:[#allocation11 + $0x80] sm:$0xf]
    %v3672 = vld [vmem:[#allocation11 + $0x84] sm:$0xf]
    %v3673 = vld [vmem:[#allocation11 + $0x88] sm:$0xf]
    %v3674 = vld [vmem:[#allocation11 + $0x8c] sm:$0xf]
    %v3675 = vld [vmem:[#allocation11 + $0x90] sm:$0xf]
    %v3676 = vld [vmem:[#allocation11 + $0x94] sm:$0xf]
    %v3677 = vld [vmem:[#allocation11 + $0x98] sm:$0xf]
    %v3678 = vld [vmem:[#allocation11 + $0x9c] sm:$0xf]
    %v3679 = vld [vmem:[#allocation11 + $0xa0] sm:$0xf]
    %v3680 = vld [vmem:[#allocation11 + $0xa4] sm:$0xf]
    %v3681 = vld [vmem:[#allocation11 + $0xa8] sm:$0xf]
    %v3682 = vld [vmem:[#allocation11 + $0xac] sm:$0xf]
    %v3683 = vld [vmem:[#allocation11 + $0xb0] sm:$0xf]
    %v3684 = vld [vmem:[#allocation11 + $0xb4] sm:$0xf]
    %v3685 = vld [vmem:[#allocation11 + $0xb8] sm:$0xf]
    %v3686 = vld [vmem:[#allocation11 + $0xbc] sm:$0xf]
    %v3687 = vld [vmem:[#allocation11 + $0xc0] sm:$0xf]
    %v3688 = vld [vmem:[#allocation11 + $0xc4] sm:$0xf]
    %v3689 = vld [vmem:[#allocation11 + $0xc8] sm:$0xf]
    %v3690 = vld [vmem:[#allocation11 + $0xcc] sm:$0xf]
    %v3691 = vld [vmem:[#allocation11 + $0xd0] sm:$0xf]
    %v3692 = vld [vmem:[#allocation11 + $0xd4] sm:$0xf]
    %v3693 = vld [vmem:[#allocation11 + $0xd8] sm:$0xf]
    %v3694 = vld [vmem:[#allocation11 + $0xdc] sm:$0xf]
    %v3695 = vld [vmem:[#allocation11 + $0xe0] sm:$0xf]
    %v3696 = vld [vmem:[#allocation11 + $0xe4] sm:$0xf]
    %v3697 = vld [vmem:[#allocation11 + $0xe8] sm:$0xf]
    %v3698 = vld [vmem:[#allocation11 + $0xec] sm:$0xf]
    %v3699 = vld [vmem:[#allocation11 + $0xf0] sm:$0xf]
    %v3700 = vld [vmem:[#allocation11 + $0xf4] sm:$0xf]
    %v3701 = vld [vmem:[#allocation11 + $0xf8] sm:$0xf]
    %v3702 = vld [vmem:[#allocation11 + $0xfc] sm:$0xf]
    %v3703 = vld [vmem:[%s6] sm:$0x1]
    %v3705 = vperm.slane %v3703, 0
    %v3771 = vunpack.c.l.b16 %v3639
    %v3772 = vunpack.c.l.b16 %v3640
    %v3773 = vunpack.c.l.b16 %v3641
    %v3774 = vunpack.c.l.b16 %v3642
    %v3775 = vunpack.c.l.b16 %v3643
    %v3776 = vunpack.c.l.b16 %v3644
    %v3777 = vunpack.c.l.b16 %v3645
    %v3778 = vunpack.c.l.b16 %v3646
    %v3779 = vunpack.c.l.b16 %v3647
    %v3780 = vunpack.c.l.b16 %v3648
    %v3781 = vunpack.c.l.b16 %v3649
    %v3782 = vunpack.c.l.b16 %v3650
    %v3783 = vunpack.c.l.b16 %v3651
    %v3784 = vunpack.c.l.b16 %v3652
    %v3785 = vunpack.c.l.b16 %v3653
    %v3786 = vunpack.c.l.b16 %v3654
    %v3787 = vunpack.c.l.b16 %v3655
    %v3788 = vunpack.c.l.b16 %v3656
    %v3789 = vunpack.c.l.b16 %v3657
    %v3790 = vunpack.c.l.b16 %v3658
    %v3791 = vunpack.c.l.b16 %v3659
    %v3792 = vunpack.c.l.b16 %v3660
    %v3793 = vunpack.c.l.b16 %v3661
    %v3794 = vunpack.c.l.b16 %v3662
    %v3795 = vunpack.c.l.b16 %v3663
    %v3796 = vunpack.c.l.b16 %v3664
    %v3797 = vunpack.c.l.b16 %v3665
    %v3798 = vunpack.c.l.b16 %v3666
    %v3799 = vunpack.c.l.b16 %v3667
    %v3800 = vunpack.c.l.b16 %v3668
    %v3801 = vunpack.c.l.b16 %v3669
    %v3802 = vunpack.c.l.b16 %v3670
    %v3803 = vunpack.c.l.b16 %v3671
    %v3804 = vunpack.c.l.b16 %v3672
    %v3805 = vunpack.c.l.b16 %v3673
    %v3806 = vunpack.c.l.b16 %v3674
    %v3807 = vunpack.c.l.b16 %v3675
    %v3808 = vunpack.c.l.b16 %v3676
    %v3809 = vunpack.c.l.b16 %v3677
    %v3810 = vunpack.c.l.b16 %v3678
    %v3811 = vunpack.c.l.b16 %v3679
    %v3812 = vunpack.c.l.b16 %v3680
    %v3813 = vunpack.c.l.b16 %v3681
    %v3814 = vunpack.c.l.b16 %v3682
    %v3815 = vunpack.c.l.b16 %v3683
    %v3816 = vunpack.c.l.b16 %v3684
    %v3817 = vunpack.c.l.b16 %v3685
    %v3818 = vunpack.c.l.b16 %v3686
    %v3819 = vunpack.c.l.b16 %v3687
    %v3820 = vunpack.c.l.b16 %v3688
    %v3821 = vunpack.c.l.b16 %v3689
    %v3822 = vunpack.c.l.b16 %v3690
    %v3823 = vunpack.c.l.b16 %v3691
    %v3824 = vunpack.c.l.b16 %v3692
    %v3825 = vunpack.c.l.b16 %v3693
    %v3826 = vunpack.c.l.b16 %v3694
    %v3827 = vunpack.c.l.b16 %v3695
    %v3828 = vunpack.c.l.b16 %v3696
    %v3829 = vunpack.c.l.b16 %v3697
    %v3830 = vunpack.c.l.b16 %v3698
    %v3831 = vunpack.c.l.b16 %v3699
    %v3832 = vunpack.c.l.b16 %v3700
    %v3833 = vunpack.c.l.b16 %v3701
    %v3834 = vunpack.c.l.b16 %v3702
    %v3835 = vpack.c.b16 %v3772, %v3771
    %v3836 = vpack.c.b16 %v3774, %v3773
    %v3837 = vpack.c.b16 %v3776, %v3775
    %v3838 = vpack.c.b16 %v3778, %v3777
    %v3839 = vpack.c.b16 %v3780, %v3779
    %v3840 = vpack.c.b16 %v3782, %v3781
    %v3841 = vpack.c.b16 %v3784, %v3783
    %v3842 = vpack.c.b16 %v3786, %v3785
    %v3843 = vpack.c.b16 %v3788, %v3787
    %v3844 = vpack.c.b16 %v3790, %v3789
    %v3845 = vpack.c.b16 %v3792, %v3791
    %v3846 = vpack.c.b16 %v3794, %v3793
    %v3847 = vpack.c.b16 %v3796, %v3795
    %v3848 = vpack.c.b16 %v3798, %v3797
    %v3849 = vpack.c.b16 %v3800, %v3799
    %v3850 = vpack.c.b16 %v3802, %v3801
    %v3851 = vpack.c.b16 %v3804, %v3803
    %v3852 = vpack.c.b16 %v3806, %v3805
    %v3853 = vpack.c.b16 %v3808, %v3807
    %v3854 = vpack.c.b16 %v3810, %v3809
    %v3855 = vpack.c.b16 %v3812, %v3811
    %v3856 = vpack.c.b16 %v3814, %v3813
    %v3857 = vpack.c.b16 %v3816, %v3815
    %v3858 = vpack.c.b16 %v3818, %v3817
    %v3859 = vpack.c.b16 %v3820, %v3819
    %v3860 = vpack.c.b16 %v3822, %v3821
    %v3861 = vpack.c.b16 %v3824, %v3823
    %v3862 = vpack.c.b16 %v3826, %v3825
    %v3863 = vpack.c.b16 %v3828, %v3827
    %v3864 = vpack.c.b16 %v3830, %v3829
    %v3865 = vpack.c.b16 %v3832, %v3831
    %v3866 = vpack.c.b16 %v3834, %v3833
    %3899 = vmatpush.bf16.msra.mxu0 %v3842
    %3900 = vmatpush.bf16.msra.mxu0 %v3841
    %3901 = vmatpush.bf16.msra.mxu0 %v3840
    %3902 = vmatpush.bf16.msra.mxu0 %v3839
    %3903 = vmatpush.bf16.msra.mxu0 %v3838
    %3904 = vmatpush.bf16.msra.mxu0 %v3837
    %3905 = vmatpush.bf16.msra.mxu0 %v3836
    %3906 = vmatpush.bf16.msra.mxu0 %v3835
    %3907 = vmatmul.bf16.gmra.mxu0 %v3635
    %v3908 = vpop.f32.mrf.mxu0
    %v3909 = vadd.f32 %v3705, %v3908
    %v3910 = vpop.f32.mrf.mxu0
    %3911 = vdwg.mxu0
    %3912 = vmatpush.bf16.msra.mxu0 %v3850
    %3913 = vmatpush.bf16.msra.mxu0 %v3849
    %3914 = vmatpush.bf16.msra.mxu0 %v3848
    %3915 = vmatpush.bf16.msra.mxu0 %v3847
    %3916 = vmatpush.bf16.msra.mxu0 %v3846
    %3917 = vmatpush.bf16.msra.mxu0 %v3845
    %3918 = vmatpush.bf16.msra.mxu0 %v3844
    %3919 = vmatpush.bf16.msra.mxu0 %v3843
    %3920 = vmatmul.bf16.gmra.mxu0 %v3636
    %v3921 = vpop.f32.mrf.mxu0
    %v3922 = vadd.f32 %v3909, %v3921
    %v3923 = vpop.f32.mrf.mxu0
    %3924 = vdwg.mxu0
    %3925 = vmatpush.bf16.msra.mxu0 %v3858
    %3926 = vmatpush.bf16.msra.mxu0 %v3857
    %3927 = vmatpush.bf16.msra.mxu0 %v3856
    %3928 = vmatpush.bf16.msra.mxu0 %v3855
    %3929 = vmatpush.bf16.msra.mxu0 %v3854
    %3930 = vmatpush.bf16.msra.mxu0 %v3853
    %3931 = vmatpush.bf16.msra.mxu0 %v3852
    %3932 = vmatpush.bf16.msra.mxu0 %v3851
    %3933 = vmatmul.bf16.gmra.mxu0 %v3637
    %v3934 = vpop.f32.mrf.mxu0
    %v3935 = vadd.f32 %v3922, %v3934
    %v3936 = vpop.f32.mrf.mxu0
    %3937 = vdwg.mxu0
    %3938 = vmatpush.bf16.msra.mxu0 %v3866
    %3939 = vmatpush.bf16.msra.mxu0 %v3865
    %3940 = vmatpush.bf16.msra.mxu0 %v3864
    %3941 = vmatpush.bf16.msra.mxu0 %v3863
    %3942 = vmatpush.bf16.msra.mxu0 %v3862
    %3943 = vmatpush.bf16.msra.mxu0 %v3861
    %3944 = vmatpush.bf16.msra.mxu0 %v3860
    %3945 = vmatpush.bf16.msra.mxu0 %v3859
    %3946 = vmatmul.bf16.gmra.mxu0 %v3638
    %v3947 = vpop.f32.mrf.mxu0
    %v3948 = vadd.f32 %v3935, %v3947
    %v3949 = vpop.f32.mrf.mxu0
    %3950 = vdwg.mxu0
    %v3951 = vmax.f32 %v3948, 0.0
    %v3952 = vpack.c.bf16 %v3951, %v3951
    %v3953 = vld [vmem:[#allocation13] sm:$0xf]
    %v3954 = vld [vmem:[#allocation13 + $0x4] sm:$0xf]
    %v3955 = vld [vmem:[#allocation13 + $0x8] sm:$0xf]
    %v3956 = vld [vmem:[#allocation13 + $0xc] sm:$0xf]
    %v3957 = vld [vmem:[#allocation13 + $0x10] sm:$0xf]
    %v3958 = vld [vmem:[#allocation13 + $0x14] sm:$0xf]
    %v3959 = vld [vmem:[#allocation13 + $0x18] sm:$0xf]
    %v3960 = vld [vmem:[#allocation13 + $0x1c] sm:$0xf]
    %v3961 = vld [vmem:[#allocation13 + $0x20] sm:$0xf]
    %v3962 = vld [vmem:[#allocation13 + $0x24] sm:$0xf]
    %v3963 = vld [vmem:[#allocation13 + $0x28] sm:$0xf]
    %v3964 = vld [vmem:[#allocation13 + $0x2c] sm:$0xf]
    %v3965 = vld [vmem:[#allocation13 + $0x30] sm:$0xf]
    %v3966 = vld [vmem:[#allocation13 + $0x34] sm:$0xf]
    %v3967 = vld [vmem:[#allocation13 + $0x38] sm:$0xf]
    %v3968 = vld [vmem:[#allocation13 + $0x3c] sm:$0xf]
    %v3969 = vld [vmem:[%s8] sm:$0x1]
    %v3971 = vperm.slane %v3969, 0
    %v3989 = vunpack.c.l.b16 %v3953
    %v3990 = vunpack.c.l.b16 %v3954
    %v3991 = vunpack.c.l.b16 %v3955
    %v3992 = vunpack.c.l.b16 %v3956
    %v3993 = vunpack.c.l.b16 %v3957
    %v3994 = vunpack.c.l.b16 %v3958
    %v3995 = vunpack.c.l.b16 %v3959
    %v3996 = vunpack.c.l.b16 %v3960
    %v3997 = vunpack.c.l.b16 %v3961
    %v3998 = vunpack.c.l.b16 %v3962
    %v3999 = vunpack.c.l.b16 %v3963
    %v4000 = vunpack.c.l.b16 %v3964
    %v4001 = vunpack.c.l.b16 %v3965
    %v4002 = vunpack.c.l.b16 %v3966
    %v4003 = vunpack.c.l.b16 %v3967
    %v4004 = vunpack.c.l.b16 %v3968
    %v4005 = vpack.c.b16 %v3990, %v3989
    %v4006 = vpack.c.b16 %v3992, %v3991
    %v4007 = vpack.c.b16 %v3994, %v3993
    %v4008 = vpack.c.b16 %v3996, %v3995
    %v4009 = vpack.c.b16 %v3998, %v3997
    %v4010 = vpack.c.b16 %v4000, %v3999
    %v4011 = vpack.c.b16 %v4002, %v4001
    %v4012 = vpack.c.b16 %v4004, %v4003
    %4021 = vmatpush.bf16.msra.mxu0 %v4012
    %4022 = vmatpush.bf16.msra.mxu0 %v4011
    %4023 = vmatpush.bf16.msra.mxu0 %v4010
    %4024 = vmatpush.bf16.msra.mxu0 %v4009
    %4025 = vmatpush.bf16.msra.mxu0 %v4008
    %4026 = vmatpush.bf16.msra.mxu0 %v4007
    %4027 = vmatpush.bf16.msra.mxu0 %v4006
    %4028 = vmatpush.bf16.msra.mxu0 %v4005
    %4029 = vmatmul.bf16.gmra.mxu0 %v3952
    %v4030 = vpop.f32.mrf.mxu0
    %v4031 = vadd.f32 %v3971, %v4030
    %v4032 = vpop.f32.mrf.mxu0
    %4033 = vdwg.mxu0
    %v4034 = vmax.f32 %v4031, 0.0
    %v4035 = vpack.c.bf16 %v4034, %v4034
    %v4036 = vld [vmem:[#allocation14] sm:$0xf]
    %v4037 = vld [vmem:[#allocation14 + $0x4] sm:$0xf]
    %v4038 = vld [vmem:[#allocation14 + $0x8] sm:$0xf]
    %v4039 = vld [vmem:[#allocation14 + $0xc] sm:$0xf]
    %v4040 = vld [vmem:[#allocation14 + $0x10] sm:$0xf]
    %v4041 = vld [vmem:[#allocation14 + $0x14] sm:$0xf]
    %v4042 = vld [vmem:[#allocation14 + $0x18] sm:$0xf]
    %v4043 = vld [vmem:[#allocation14 + $0x1c] sm:$0xf]
    %v4044 = vld [vmem:[#allocation14 + $0x20] sm:$0xf]
    %v4045 = vld [vmem:[#allocation14 + $0x24] sm:$0xf]
    %v4046 = vld [vmem:[#allocation14 + $0x28] sm:$0xf]
    %v4047 = vld [vmem:[#allocation14 + $0x2c] sm:$0xf]
    %v4048 = vld [vmem:[#allocation14 + $0x30] sm:$0xf]
    %v4049 = vld [vmem:[#allocation14 + $0x34] sm:$0xf]
    %v4050 = vld [vmem:[#allocation14 + $0x38] sm:$0xf]
    %v4051 = vld [vmem:[#allocation14 + $0x3c] sm:$0xf]
    %v4052 = vld [vmem:[%s10] sm:$0x1]
    %v4054 = vperm.slane %v4052, 0
    %v4072 = vunpack.c.l.b16 %v4036
    %v4073 = vunpack.c.l.b16 %v4037
    %v4074 = vunpack.c.l.b16 %v4038
    %v4075 = vunpack.c.l.b16 %v4039
    %v4076 = vunpack.c.l.b16 %v4040
    %v4077 = vunpack.c.l.b16 %v4041
    %v4078 = vunpack.c.l.b16 %v4042
    %v4079 = vunpack.c.l.b16 %v4043
    %v4080 = vunpack.c.l.b16 %v4044
    %v4081 = vunpack.c.l.b16 %v4045
    %v4082 = vunpack.c.l.b16 %v4046
    %v4083 = vunpack.c.l.b16 %v4047
    %v4084 = vunpack.c.l.b16 %v4048
    %v4085 = vunpack.c.l.b16 %v4049
    %v4086 = vunpack.c.l.b16 %v4050
    %v4087 = vunpack.c.l.b16 %v4051
    %v4088 = vpack.c.b16 %v4073, %v4072
    %v4089 = vpack.c.b16 %v4075, %v4074
    %v4090 = vpack.c.b16 %v4077, %v4076
    %v4091 = vpack.c.b16 %v4079, %v4078
    %v4092 = vpack.c.b16 %v4081, %v4080
    %v4093 = vpack.c.b16 %v4083, %v4082
    %v4094 = vpack.c.b16 %v4085, %v4084
    %v4095 = vpack.c.b16 %v4087, %v4086
    %4104 = vmatpush.bf16.msra.mxu0 %v4095
    %4105 = vmatpush.bf16.msra.mxu0 %v4094
    %4106 = vmatpush.bf16.msra.mxu0 %v4093
    %4107 = vmatpush.bf16.msra.mxu0 %v4092
    %4108 = vmatpush.bf16.msra.mxu0 %v4091
    %4109 = vmatpush.bf16.msra.mxu0 %v4090
    %4110 = vmatpush.bf16.msra.mxu0 %v4089
    %4111 = vmatpush.bf16.msra.mxu0 %v4088
    %4112 = vmatmul.bf16.gmra.mxu0 %v4035
    %v4113 = vpop.f32.mrf.mxu0
    %v4114 = vadd.f32 %v4054, %v4113
    %v4115 = vpop.f32.mrf.mxu0
    %4116 = vdwg.mxu0
    %v4117 = vxor.u32 %v4114, 2147483648
    %v4118 = vmul.f32 %v4117, 1.442695
    %v4119 = vpow.pop %v4118
    %v4120 = vadd.f32 %v4119, 1.0
    %v4121 = vrcp.pop %v4120
    %v4122 = vmul.f32 %v4120, %v4121
    %v4123 = vsub.f32 1.0, %v4122
    %v4124 = vmul.f32 %v4121, %v4123
    %v4125 = vadd.f32 %v4121, %v4124
    %vm4126 = vweird.f32 %v4120
    %vm4127 = vweird.f32 %v4121
    %vm4128 = vmor %vm4126, %vm4127
    %v4129 = vsel %vm4128, %v4121, %v4125
    %v4130 = vand.u32 2147483647, %v4120
    %vm4131 = vcmp.eq.f32.partialorder %v4130, 8.507059e+37
    %v4132 = vand.u32 %v4120, 2147483648
    %v4133 = vor.u32 1.1754944e-38, %v4132
    %v4134 = vsel %vm4131, %v4133, %v4129
    %v4135 = vmul.f32 1.0, %v4134
    %v4136 = vpack.c.bf16 %v4135, %v4135
    %4137 = vst [vmem:[#allocation16] sm:$0xf] %v4136
    // Predicated region
    $region78: #{tpu_custom_call.1} parent=1 // pred_check
      _
    $region79: #{tpu_custom_call.1} parent=1 // pred_check_branch
      %4139 = sbr.rel (0) target = $region81
    $region80: #{tpu_custom_call.1} parent=1 // pred_region
      %4141 = vsyncadd [#allocation4], 0
      %s4143 = sshll.u32 [#allocation16], 4
      %s4144 = int_to_ptr.vmem [resolvable:$true] %s4143
      %s4145 = sshll.u32 %s11, 4
      %s4146 = int_to_ptr.hbm [resolvable:$true] %s4145
      %4148 = dma.vmem_to_hbm [thread:$0]  %s4144, 64, %s4146, [#allocation4]
    $region81: #{tpu_custom_call.1} parent=1 // pred_fallthru
      _
    // Predicated region
    $region82: #{tpu_custom_call.1} parent=1 // pred_check
      _
    $region83: #{tpu_custom_call.1} parent=1 // pred_check_branch
      %4150 = sbr.rel (0) target = $region85
    $region84: #{tpu_custom_call.1} parent=1 // pred_region
      %4152 = dma.done [#allocation4], 64
    $region85: #{tpu_custom_call.1} parent=1 // pred_fallthru
      _
    %4153 = vsyncpa [#allocation3], 1
    %4154 = vsyncpa [#allocation6], 1
    %4155 = vsyncpa [#allocation9], 1
    %4156 = vsyncpa [#allocation12], 1
    %4157 = vsyncpa [#allocation15], 1
    %4158 = vsyncpa [#allocation4], 1

</llo_original>
